<compile_context>
chip_gen: v6e
topology: v6e:2x2x1
jax: 0.10.0
libtpu: 0.0.40
codegen_flags: <defaults>
</compile_context>

<pallas_src>
import functools
from typing import NamedTuple, Optional

import jax
import jax.numpy as jnp
from jax.experimental import pallas as pl
from jax.experimental.pallas import tpu as pltpu

BN_EPS = 1e-5
LANE = 128
VMEM_LIMIT = 32 * 1024 * 1024      # explicit; well under v7x's 64 MiB physical VMEM
CONV_M_ROWS_MAX = 512              # cap on conv row-tile rows (bounds per-step VMEM)
CONV_M_ROWS_MIN = 32               # don't split below this (per-step overhead ~0.35 us)
MIN_GRID_STEPS = 4                 # pipeline-depth target for 2-TensorCore parts (v7x)
ADD_ROW_TILE = 4096                # residual-add row tile (pure HBM bandwidth pass)


def _rup(x, m):
    return (x + m - 1) // m * m


def _cpad(c):
    return _rup(max(c, LANE), LANE)


# ----------------------------- Pallas kernels ------------------------------

def _conv_gemm_kernel(lhs_ref, w_ref, h_ref, ssum_ref, ssq_ref):
    """One (image, row-tile) per grid step.

    lhs is the tap-packed bf16 im2col block (tm, Kp); a single jnp.dot contracts over all
    nine 3x3 taps at once, so tap accumulation happens inside the MXU (no f32 VALU adds).
    The epilogue emits per-step BatchNorm partial sums so BN never re-reads the activation
    from HBM for its statistics.
    """
    acc = jnp.dot(lhs_ref[0], w_ref[...], preferred_element_type=jnp.float32)  # (tm, cout_p)
    h_ref[0] = acc.astype(h_ref.dtype)
    ssum_ref[0] = jnp.sum(acc, axis=0, keepdims=True)
    ssq_ref[0] = jnp.sum(acc * acc, axis=0, keepdims=True)


def _affine_add_kernel(h_ref, r_ref, sb_ref, o_ref):
    """o = (h * sb[0] + sb[1]) + (r * sb[2] + sb[3])  -- fused BN-apply + residual add."""
    h = h_ref[...].astype(jnp.float32)
    r = r_ref[...].astype(jnp.float32)
    out = h * sb_ref[0:1, :] + sb_ref[1:2, :] + r * sb_ref[2:3, :] + sb_ref[3:4, :]
    o_ref[...] = out.astype(o_ref.dtype)


def _head_kernel(x_ref, w_ref, b_ref, o_ref, *, inv):
    """Global average pool (single row reduction over hw) + FC for one image per step."""
    pooled = jnp.sum(x_ref[0].astype(jnp.float32), axis=0, keepdims=True) * inv      # (1, C)
    o_ref[0] = jnp.dot(pooled, w_ref[...], preferred_element_type=jnp.float32) + b_ref[...]


# ------------------------------ glue helpers --------------------------------

class Act(NamedTuple):
    """Activation with an optionally *pending* per-channel BN affine (value = x*scale + bias)."""
    x: jax.Array                    # (N, H, W, C_store) activation (bf16 after the stem)
    c_real: int                     # number of real (unpadded) channels
    scale: Optional[jax.Array]      # (C_store,) f32 pending BN scale, or None
    bias: Optional[jax.Array]       # (C_store,) f32 pending BN bias, or None


def _prep_conv_lhs(act: Act, stride: int, relu: bool):
    """Pending BN affine (+ReLU), spatial zero-pad and *compact tap-packed* im2col, all in one
    XLA layout fusion.  Output: lane-dense bf16 LHS (N, Ho*Wo, rup(9*cin, 128)).

    The affine/ReLU is applied here (fused with the layout pass, no extra HBM round trip)
    rather than in-kernel so the conv's spatial zero-padding stays exactly zero.
    """
    x = act.x
    N, H, W, _ = x.shape
    cin = act.c_real
    xf = x[..., :cin].astype(jnp.float32)
    if act.scale is not None:
        xf = xf * act.scale[:cin].reshape(1, 1, 1, cin) + act.bias[:cin].reshape(1, 1, 1, cin)
    if relu:
        xf = jnp.maximum(xf, 0.0)
    xp = jnp.pad(xf, ((0, 0), (1, 1), (1, 1), (0, 0)))        # conv padding=1 (zeros post-affine)
    s = stride
    Ho = (H - 1) // s + 1
    Wo = (W - 1) // s + 1
    taps = [xp[:, kh:kh + s * (Ho - 1) + 1:s, kw:kw + s * (Wo - 1) + 1:s, :]
            for kh in range(3) for kw in range(3)]            # 9 x (N, Ho, Wo, cin)
    lhs = jnp.concatenate(taps, axis=-1).astype(jnp.bfloat16)  # (N, Ho, Wo, 9*cin), bf16 LHS
    K = 9 * cin
    Kp = _rup(K, LANE)
    if Kp != K:
        lhs = jnp.pad(lhs, ((0, 0), (0, 0), (0, 0), (0, Kp - K)))
    # NOTE: compact tap packing is the right call while cin < 128 (this net: cin <= 64); for
    # cin >= 128 a per-tap shifted-slab scheme would avoid the 9x K blow-up.
    return lhs.reshape(N, Ho * Wo, Kp), Ho, Wo


def _pick_m_tile(m, n_batch):
    """Conv row tile: divides m, multiple of 8 (or full), bounded for VMEM, and split further
    (when cheap) so n_batch * n_tiles >= MIN_GRID_STEPS for pipeline depth on 2-TC parts."""
    tm, nm = m, 1

    def can_halve(t):
        return t % 2 == 0 and (t // 2) % 8 == 0

    while tm > CONV_M_ROWS_MAX and can_halve(tm):
        tm //= 2
        nm *= 2
    while n_batch * nm < MIN_GRID_STEPS and tm >= 2 * CONV_M_ROWS_MIN and can_halve(tm):
        tm //= 2
        nm *= 2
    return tm, nm


def conv_bn(act: Act, w_packed, gamma_p, beta_p, stride, relu, cout) -> Act:
    """3x3 conv (pad=1, no bias) as one tap-packed GEMM per row tile + fused training-mode BN
    statistics.  The BN normalization is returned as a *pending* per-channel affine (folded
    into the next conv's LHS prep or the fused BN-apply + residual-add kernel), so the conv
    output is written to HBM exactly once."""
    lhs, Ho, Wo = _prep_conv_lhs(act, stride, relu)
    N, M, Kp = lhs.shape
    cout_p = w_packed.shape[-1]
    tm, nm = _pick_m_tile(M, N)

    flops = 2 * N * M * Kp * cout_p
    bytes_accessed = (lhs.size * 2 + w_packed.size * 2
                      + N * M * cout_p * 2 + 2 * N * nm * cout_p * 4)

    h, ssum, ssq = pl.pallas_call(
        _conv_gemm_kernel,
        grid=(N, nm),
        in_specs=[
            pl.BlockSpec((1, tm, Kp), lambda i, j: (i, j, 0)),       # packed bf16 im2col tile
            pl.BlockSpec((Kp, cout_p), lambda i, j: (0, 0)),         # packed weights, resident
        ],
        out_specs=(
            pl.BlockSpec((1, tm, cout_p), lambda i, j: (i, j, 0)),
            pl.BlockSpec((1, 1, cout_p), lambda i, j: (i * nm + j, 0, 0)),
            pl.BlockSpec((1, 1, cout_p), lambda i, j: (i * nm + j, 0, 0)),
        ),
        out_shape=(
            jax.ShapeDtypeStruct((N, M, cout_p), jnp.bfloat16),
            jax.ShapeDtypeStruct((N * nm, 1, cout_p), jnp.float32),
            jax.ShapeDtypeStruct((N * nm, 1, cout_p), jnp.float32),
        ),
        compiler_params=pltpu.CompilerParams(
            dimension_semantics=("parallel", "parallel"),
            vmem_limit_bytes=VMEM_LIMIT,
        ),
        cost_estimate=pl.CostEstimate(flops=flops, transcendentals=0,
                                      bytes_accessed=bytes_accessed),
    )(lhs, w_packed)

    # Training-mode BatchNorm statistics from the in-kernel partial sums (biased variance,
    # PyTorch convention).  E[x^2]-mean^2 in f32 can go marginally negative from cancellation;
    # clamp before rsqrt.  (Stats come from the f32 accumulator; the affine is later applied
    # to the bf16-rounded activation -- the mismatch is within bf16 rounding noise.)
    count = float(N * M)
    s1 = jnp.sum(ssum.reshape(N * nm, cout_p), axis=0)
    s2 = jnp.sum(ssq.reshape(N * nm, cout_p), axis=0)
    mean = s1 / count
    var = jnp.maximum(s2 / count - mean * mean, 0.0)
    inv = jax.lax.rsqrt(var + BN_EPS)
    scale = gamma_p * inv
    bias = beta_p - mean * scale
    return Act(h.reshape(N, Ho, Wo, cout_p), cout, scale, bias)


def _pick_row_tile(m, cap=ADD_ROW_TILE):
    if m <= cap:
        return m
    t = cap - cap % 8
    while t >= 8:
        if m % t == 0:
            return t
        t -= 8
    return m                               # no suitable divisor; single (correct) block


def add_acts(a: Act, b: Act) -> Act:
    """value(a) + value(b): both pending BN affines fused with the residual add, one HBM pass."""
    assert a.x.shape == b.x.shape
    N, H, W, C = a.x.shape
    M = N * H * W
    h2 = a.x.reshape(M, C)
    r2 = b.x.reshape(M, C)
    ones = jnp.ones((C,), jnp.float32)
    zeros = jnp.zeros((C,), jnp.float32)
    sa, ba = (a.scale, a.bias) if a.scale is not None else (ones, zeros)
    sr, br = (b.scale, b.bias) if b.scale is not None else (ones, zeros)
    sb = jnp.stack([sa, ba, sr, br], axis=0)            # (4, C) f32, resident across steps
    tm = _pick_row_tile(M)
    out = pl.pallas_call(
        _affine_add_kernel,
        grid=(M // tm,),
        in_specs=[
            pl.BlockSpec((tm, C), lambda i: (i, 0)),
            pl.BlockSpec((tm, C), lambda i: (i, 0)),
            pl.BlockSpec((4, C), lambda i: (0, 0)),
        ],
        out_specs=pl.BlockSpec((tm, C), lambda i: (i, 0)),
        out_shape=jax.ShapeDtypeStruct((M, C), jnp.bfloat16),
        compiler_params=pltpu.CompilerParams(
            dimension_semantics=("parallel",),
            vmem_limit_bytes=VMEM_LIMIT,
        ),
    )(h2, r2, sb)
    return Act(out.reshape(N, H, W, C), a.c_real, None, None)


def head(act: Act, fc_w_p, fc_b_p, num_classes):
    """AdaptiveAvgPool2d((1,1)) + flatten + Linear, one image per grid step."""
    assert act.scale is None
    N, H, W, C = act.x.shape
    hw = H * W
    x3 = act.x.reshape(N, hw, C)
    ncp = fc_w_p.shape[-1]
    out = pl.pallas_call(
        functools.partial(_head_kernel, inv=1.0 / float(hw)),
        grid=(N,),
        in_specs=[
            pl.BlockSpec((1, hw, C), lambda i: (i, 0, 0)),
            pl.BlockSpec((C, ncp), lambda i: (0, 0)),
            pl.BlockSpec((1, ncp), lambda i: (0, 0)),
        ],
        out_specs=pl.BlockSpec((1, 1, ncp), lambda i: (i, 0, 0)),
        out_shape=jax.ShapeDtypeStruct((N, 1, ncp), jnp.float32),
        compiler_params=pltpu.CompilerParams(
            dimension_semantics=("parallel",),
            vmem_limit_bytes=VMEM_LIMIT,
        ),
    )(x3, fc_w_p, fc_b_p)
    # TODO(synk): `self.last_features` (detached pooled features stored on the module) is a
    # stateful side-effect and is not reproduced here.
    return out.reshape(N, ncp)[:, :num_classes]


# ------------------------------ model -------------------------------------

def basic_block(act_in: Act, p, stride, cout) -> Act:
    # main: ReLU -> Conv -> BN -> ReLU -> Conv -> BN ; shortcut: (Conv -> BN) or Identity
    a1 = conv_bn(act_in, p["w1"], p["g1"], p["b1"], stride, relu=True, cout=cout)
    a2 = conv_bn(a1, p["w2"], p["g2"], p["b2"], 1, relu=True, cout=cout)
    if "ws" in p:
        s = conv_bn(act_in, p["ws"], p["gs"], p["bs"], stride, relu=False, cout=cout)
    else:
        s = act_in
    return add_acts(a2, s)                              # bn2(h2) + shortcut, materialized once


def wideresnet_forward(params, x_nchw, k=1, num_classes=10):
    """x_nchw: (N, 3, H, W) float32, PyTorch layout.  Returns logits (N, num_classes)."""
    x = jnp.transpose(x_nchw, (0, 2, 3, 1)).astype(jnp.float32)      # NCHW -> NHWC
    act = Act(x, x.shape[-1], None, None)
    act = conv_bn(act, params["conv1"], params["bn1_g"], params["bn1_b"], 1, relu=False, cout=16)
    group_couts = (int(16 * k), int(32 * k), int(64 * k))
    for gi, group in enumerate(params["groups"]):
        for bi, bp in enumerate(group):
            stride = 2 if (gi > 0 and bi == 0) else 1
            act = basic_block(act, bp, stride, group_couts[gi])
    return head(act, params["fc_w"], params["fc_b"], num_classes)


def init_params(key, block_size=2, k=1, num_classes=10):
    """Deterministic synthetic parameters matching the module's shapes.  Conv weights are
    stored in the tap-packed (rup(9*cin,128), cout_p) bf16 layout (tap-major, compact cin per
    tap, zero rows for K padding); all output channel dims padded to a multiple of 128."""
    keys = iter(jax.random.split(key, 64))

    def conv_w(cin, cout):
        w = jax.random.normal(next(keys), (3, 3, cin, cout), jnp.float32) * ((9.0 * cin) ** -0.5)
        K, Kp, coutp = 9 * cin, _rup(9 * cin, LANE), _cpad(cout)
        wp = jnp.zeros((Kp, coutp), jnp.float32).at[:K, :cout].set(w.reshape(K, cout))
        return wp.astype(jnp.bfloat16)

    def bn_p(c):
        cp = _cpad(c)
        g = jnp.zeros((cp,), jnp.float32).at[:c].set(1.0)   # gamma=0 keeps padded channels at 0
        return g, jnp.zeros((cp,), jnp.float32)

    params = {"conv1": conv_w(3, 16)}
    params["bn1_g"], params["bn1_b"] = bn_p(16)
    group_cfg = [(16, int(16 * k)), (int(16 * k), int(32 * k)), (int(32 * k), int(64 * k))]
    groups = []
    for gi, (cin, cout) in enumerate(group_cfg):
        g_stride = 1 if gi == 0 else 2
        blocks = []
        for bi in range(block_size):
            in_c = cin if bi == 0 else cout
            s = g_stride if bi == 0 else 1
            bp = {"w1": conv_w(in_c, cout), "w2": conv_w(cout, cout)}
            bp["g1"], bp["b1"] = bn_p(cout)
            bp["g2"], bp["b2"] = bn_p(cout)
            if s != 1 or in_c != cout:
                bp["ws"] = conv_w(in_c, cout)
                bp["gs"], bp["bs"] = bn_p(cout)
            blocks.append(bp)
        groups.append(blocks)
    params["groups"] = groups

    c_final = int(64 * k)
    cfp, ncp = _cpad(c_final), _cpad(num_classes)
    fc_w = jax.random.normal(next(keys), (c_final, num_classes), jnp.float32) * (c_final ** -0.5)
    params["fc_w"] = jnp.zeros((cfp, ncp), jnp.float32).at[:c_final, :num_classes].set(fc_w)
    params["fc_b"] = jnp.zeros((1, ncp), jnp.float32)
    return params


if __name__ == "__main__":
    key = jax.random.PRNGKey(0)
    pkey, xkey = jax.random.split(key)
    # Small instantiation: WideResNet(block_size=2, k=1, num_classes=10), input (2, 3, 16, 16) NCHW.
    params = init_params(pkey, block_size=2, k=1, num_classes=10)
    x = jax.random.normal(xkey, (2, 3, 16, 16), jnp.float32)

    fwd = jax.jit(wideresnet_forward)
    logits = fwd(params, x)
    jax.block_until_ready(logits)
    assert logits.shape == (2, 10) and bool(jnp.all(jnp.isfinite(logits)))
    print("KERNEL_OK")
</pallas_src>

<mosaic_0001>
module attributes {stable_mosaic.version = 11 : i64} {
  func.func @_conv_gemm_kernel(%arg0: i32, %arg1: i32, %arg2: memref<1x128x128xbf16, #tpu.memory_space<vmem>>, %arg3: memref<128x128xbf16, #tpu.memory_space<vmem>>, %arg4: memref<1x128x128xbf16, #tpu.memory_space<vmem>>, %arg5: memref<1x1x128xf32, #tpu.memory_space<vmem>>, %arg6: memref<1x1x128xf32, #tpu.memory_space<vmem>>) attributes {dimension_semantics = [#tpu.dimension_semantics<parallel>, #tpu.dimension_semantics<parallel>], iteration_bounds = array<i64: 2, 2>, scalar_prefetch = 0 : i64, scratch_operands = 0 : i64, tpu.core_type = #tpu.core_type<tc>, window_params = [{transform_indices = @transform_0, window_bounds = array<i64: 1, 128, 128>}, {pipeline_mode = #tpu.pipeline_mode<synchronous>, transform_indices = @transform_1, window_bounds = array<i64: 128, 128>}, {transform_indices = @transform_2, window_bounds = array<i64: 1, 128, 128>}, {transform_indices = @transform_3, window_bounds = array<i64: 1, 1, 128>}, {transform_indices = @transform_4, window_bounds = array<i64: 1, 1, 128>}]} {
    %c0 = arith.constant 0 : index
    %c0_0 = arith.constant 0 : index
    %c0_1 = arith.constant 0 : index
    %0 = vector.load %arg2[%c0, %c0_0, %c0_1] : memref<1x128x128xbf16, #tpu.memory_space<vmem>>, vector<1x128x128xbf16>
    %1 = vector.shape_cast %0 : vector<1x128x128xbf16> to vector<128x128xbf16>
    %c0_2 = arith.constant 0 : index
    %c0_3 = arith.constant 0 : index
    %2 = vector.load %arg3[%c0_2, %c0_3] : memref<128x128xbf16, #tpu.memory_space<vmem>>, vector<128x128xbf16>
    %cst = arith.constant dense<0.000000e+00> : vector<128x128xf32>
    %3 = tpu.matmul %1, %2, %cst {dimension_numbers = #tpu.dot_dimension_numbers<[1], [0], [0], [1], [0, 0, 1, 1], [], []>} : vector<128x128xbf16>, vector<128x128xbf16>, vector<128x128xf32> -> vector<128x128xf32>
    %4 = arith.truncf %3 : vector<128x128xf32> to vector<128x128xbf16>
    %c0_4 = arith.constant 0 : index
    %c0_5 = arith.constant 0 : index
    %c0_6 = arith.constant 0 : index
    %5 = vector.load %arg4[%c0_4, %c0_5, %c0_6] : memref<1x128x128xbf16, #tpu.memory_space<vmem>>, vector<1x128x128xbf16>
    %6 = vector.shape_cast %5 : vector<1x128x128xbf16> to vector<128x128xbf16>
    %7 = vector.shape_cast %4 : vector<128x128xbf16> to vector<1x128x128xbf16>
    tpu.vector_store %arg4[%c0_4, %c0_5, %c0_6], %7 {strides = array<i32>} : memref<1x128x128xbf16, #tpu.memory_space<vmem>>, vector<1x128x128xbf16>,
    %cst_7 = arith.constant dense<0.000000e+00> : vector<128xf32>
    %8 = vector.multi_reduction <add>, %3, %cst_7 [0] : vector<128x128xf32> to vector<128xf32>
    %9 = vector.shape_cast %8 : vector<128xf32> to vector<1x128xf32>
    %c0_8 = arith.constant 0 : index
    %c0_9 = arith.constant 0 : index
    %c0_10 = arith.constant 0 : index
    %10 = vector.load %arg5[%c0_8, %c0_9, %c0_10] : memref<1x1x128xf32, #tpu.memory_space<vmem>>, vector<1x1x128xf32>
    %11 = vector.shape_cast %10 : vector<1x1x128xf32> to vector<1x128xf32>
    %12 = vector.shape_cast %9 : vector<1x128xf32> to vector<1x1x128xf32>
    tpu.vector_store %arg5[%c0_8, %c0_9, %c0_10], %12 {strides = array<i32>} : memref<1x1x128xf32, #tpu.memory_space<vmem>>, vector<1x1x128xf32>,
    %13 = arith.mulf %3, %3 : vector<128x128xf32>
    %cst_11 = arith.constant dense<0.000000e+00> : vector<128xf32>
    %14 = vector.multi_reduction <add>, %13, %cst_11 [0] : vector<128x128xf32> to vector<128xf32>
    %15 = vector.shape_cast %14 : vector<128xf32> to vector<1x128xf32>
    %c0_12 = arith.constant 0 : index
    %c0_13 = arith.constant 0 : index
    %c0_14 = arith.constant 0 : index
    %16 = vector.load %arg6[%c0_12, %c0_13, %c0_14] : memref<1x1x128xf32, #tpu.memory_space<vmem>>, vector<1x1x128xf32>
    %17 = vector.shape_cast %16 : vector<1x1x128xf32> to vector<1x128xf32>
    %18 = vector.shape_cast %15 : vector<1x128xf32> to vector<1x1x128xf32>
    tpu.vector_store %arg6[%c0_12, %c0_13, %c0_14], %18 {strides = array<i32>} : memref<1x1x128xf32, #tpu.memory_space<vmem>>, vector<1x1x128xf32>,
    return
  }
  func.func @transform_0(%arg0: i32, %arg1: i32) -> (i32, i32, i32) {
    %c0_i32 = arith.constant 0 : i32
    %c0_i32_0 = arith.constant 0 : i32
    return %arg0, %arg1, %c0_i32 : i32, i32, i32
  }
  func.func @transform_1(%arg0: i32, %arg1: i32) -> (i32, i32) {
    %c0_i32 = arith.constant 0 : i32
    %c0_i32_0 = arith.constant 0 : i32
    %c0_i32_1 = arith.constant 0 : i32
    return %c0_i32, %c0_i32_0 : i32, i32
  }
  func.func @transform_2(%arg0: i32, %arg1: i32) -> (i32, i32, i32) {
    %c0_i32 = arith.constant 0 : i32
    %c0_i32_0 = arith.constant 0 : i32
    return %arg0, %arg1, %c0_i32 : i32, i32, i32
  }
  func.func @transform_3(%arg0: i32, %arg1: i32) -> (i32, i32, i32) {
    %c2_i32 = arith.constant 2 : i32
    %0 = arith.muli %arg0, %c2_i32 : i32
    %1 = arith.addi %0, %arg1 : i32
    %c0_i32 = arith.constant 0 : i32
    %c0_i32_0 = arith.constant 0 : i32
    %c0_i32_1 = arith.constant 0 : i32
    return %1, %c0_i32, %c0_i32_0 : i32, i32, i32
  }
  func.func @transform_4(%arg0: i32, %arg1: i32) -> (i32, i32, i32) {
    %c2_i32 = arith.constant 2 : i32
    %0 = arith.muli %arg0, %c2_i32 : i32
    %1 = arith.addi %0, %arg1 : i32
    %c0_i32 = arith.constant 0 : i32
    %c0_i32_0 = arith.constant 0 : i32
    %c0_i32_1 = arith.constant 0 : i32
    return %1, %c0_i32, %c0_i32_0 : i32, i32, i32
  }
}

module attributes {stable_mosaic.version = 11 : i64} {
  func.func @_conv_gemm_kernel(%arg0: i32, %arg1: i32, %arg2: memref<1x128x256xbf16, #tpu.memory_space<vmem>>, %arg3: memref<256x128xbf16, #tpu.memory_space<vmem>>, %arg4: memref<1x128x128xbf16, #tpu.memory_space<vmem>>, %arg5: memref<1x1x128xf32, #tpu.memory_space<vmem>>, %arg6: memref<1x1x128xf32, #tpu.memory_space<vmem>>) attributes {dimension_semantics = [#tpu.dimension_semantics<parallel>, #tpu.dimension_semantics<parallel>], iteration_bounds = array<i64: 2, 2>, scalar_prefetch = 0 : i64, scratch_operands = 0 : i64, tpu.core_type = #tpu.core_type<tc>, window_params = [{transform_indices = @transform_0, window_bounds = array<i64: 1, 128, 256>}, {pipeline_mode = #tpu.pipeline_mode<synchronous>, transform_indices = @transform_1, window_bounds = array<i64: 256, 128>}, {transform_indices = @transform_2, window_bounds = array<i64: 1, 128, 128>}, {transform_indices = @transform_3, window_bounds = array<i64: 1, 1, 128>}, {transform_indices = @transform_4, window_bounds = array<i64: 1, 1, 128>}]} {
    %c0 = arith.constant 0 : index
    %c0_0 = arith.constant 0 : index
    %c0_1 = arith.constant 0 : index
    %0 = vector.load %arg2[%c0, %c0_0, %c0_1] : memref<1x128x256xbf16, #tpu.memory_space<vmem>>, vector<1x128x256xbf16>
    %1 = vector.shape_cast %0 : vector<1x128x256xbf16> to vector<128x256xbf16>
    %c0_2 = arith.constant 0 : index
    %c0_3 = arith.constant 0 : index
    %2 = vector.load %arg3[%c0_2, %c0_3] : memref<256x128xbf16, #tpu.memory_space<vmem>>, vector<256x128xbf16>
    %cst = arith.constant dense<0.000000e+00> : vector<128x128xf32>
    %3 = tpu.matmul %1, %2, %cst {dimension_numbers = #tpu.dot_dimension_numbers<[1], [0], [0], [1], [0, 0, 1, 1], [], []>} : vector<128x256xbf16>, vector<256x128xbf16>, vector<128x128xf32> -> vector<128x128xf32>
    %4 = arith.truncf %3 : vector<128x128xf32> to vector<128x128xbf16>
    %c0_4 = arith.constant 0 : index
    %c0_5 = arith.constant 0 : index
    %c0_6 = arith.constant 0 : index
    %5 = vector.load %arg4[%c0_4, %c0_5, %c0_6] : memref<1x128x128xbf16, #tpu.memory_space<vmem>>, vector<1x128x128xbf16>
    %6 = vector.shape_cast %5 : vector<1x128x128xbf16> to vector<128x128xbf16>
    %7 = vector.shape_cast %4 : vector<128x128xbf16> to vector<1x128x128xbf16>
    tpu.vector_store %arg4[%c0_4, %c0_5, %c0_6], %7 {strides = array<i32>} : memref<1x128x128xbf16, #tpu.memory_space<vmem>>, vector<1x128x128xbf16>,
    %cst_7 = arith.constant dense<0.000000e+00> : vector<128xf32>
    %8 = vector.multi_reduction <add>, %3, %cst_7 [0] : vector<128x128xf32> to vector<128xf32>
    %9 = vector.shape_cast %8 : vector<128xf32> to vector<1x128xf32>
    %c0_8 = arith.constant 0 : index
    %c0_9 = arith.constant 0 : index
    %c0_10 = arith.constant 0 : index
    %10 = vector.load %arg5[%c0_8, %c0_9, %c0_10] : memref<1x1x128xf32, #tpu.memory_space<vmem>>, vector<1x1x128xf32>
    %11 = vector.shape_cast %10 : vector<1x1x128xf32> to vector<1x128xf32>
    %12 = vector.shape_cast %9 : vector<1x128xf32> to vector<1x1x128xf32>
    tpu.vector_store %arg5[%c0_8, %c0_9, %c0_10], %12 {strides = array<i32>} : memref<1x1x128xf32, #tpu.memory_space<vmem>>, vector<1x1x128xf32>,
    %13 = arith.mulf %3, %3 : vector<128x128xf32>
    %cst_11 = arith.constant dense<0.000000e+00> : vector<128xf32>
    %14 = vector.multi_reduction <add>, %13, %cst_11 [0] : vector<128x128xf32> to vector<128xf32>
    %15 = vector.shape_cast %14 : vector<128xf32> to vector<1x128xf32>
    %c0_12 = arith.constant 0 : index
    %c0_13 = arith.constant 0 : index
    %c0_14 = arith.constant 0 : index
    %16 = vector.load %arg6[%c0_12, %c0_13, %c0_14] : memref<1x1x128xf32, #tpu.memory_space<vmem>>, vector<1x1x128xf32>
    %17 = vector.shape_cast %16 : vector<1x1x128xf32> to vector<1x128xf32>
    %18 = vector.shape_cast %15 : vector<1x128xf32> to vector<1x1x128xf32>
    tpu.vector_store %arg6[%c0_12, %c0_13, %c0_14], %18 {strides = array<i32>} : memref<1x1x128xf32, #tpu.memory_space<vmem>>, vector<1x1x128xf32>,
    return
  }
  func.func @transform_0(%arg0: i32, %arg1: i32) -> (i32, i32, i32) {
    %c0_i32 = arith.constant 0 : i32
    %c0_i32_0 = arith.constant 0 : i32
    return %arg0, %arg1, %c0_i32 : i32, i32, i32
  }
  func.func @transform_1(%arg0: i32, %arg1: i32) -> (i32, i32) {
    %c0_i32 = arith.constant 0 : i32
    %c0_i32_0 = arith.constant 0 : i32
    %c0_i32_1 = arith.constant 0 : i32
    return %c0_i32, %c0_i32_0 : i32, i32
  }
  func.func @transform_2(%arg0: i32, %arg1: i32) -> (i32, i32, i32) {
    %c0_i32 = arith.constant 0 : i32
    %c0_i32_0 = arith.constant 0 : i32
    return %arg0, %arg1, %c0_i32 : i32, i32, i32
  }
  func.func @transform_3(%arg0: i32, %arg1: i32) -> (i32, i32, i32) {
    %c2_i32 = arith.constant 2 : i32
    %0 = arith.muli %arg0, %c2_i32 : i32
    %1 = arith.addi %0, %arg1 : i32
    %c0_i32 = arith.constant 0 : i32
    %c0_i32_0 = arith.constant 0 : i32
    %c0_i32_1 = arith.constant 0 : i32
    return %1, %c0_i32, %c0_i32_0 : i32, i32, i32
  }
  func.func @transform_4(%arg0: i32, %arg1: i32) -> (i32, i32, i32) {
    %c2_i32 = arith.constant 2 : i32
    %0 = arith.muli %arg0, %c2_i32 : i32
    %1 = arith.addi %0, %arg1 : i32
    %c0_i32 = arith.constant 0 : i32
    %c0_i32_0 = arith.constant 0 : i32
    %c0_i32_1 = arith.constant 0 : i32
    return %1, %c0_i32, %c0_i32_0 : i32, i32, i32
  }
}

module attributes {stable_mosaic.version = 11 : i64} {
  func.func @_affine_add_kernel(%arg0: i32, %arg1: memref<512x128xbf16, #tpu.memory_space<vmem>>, %arg2: memref<512x128xbf16, #tpu.memory_space<vmem>>, %arg3: memref<4x128xf32, #tpu.memory_space<vmem>>, %arg4: memref<512x128xbf16, #tpu.memory_space<vmem>>) attributes {dimension_semantics = [#tpu.dimension_semantics<parallel>], iteration_bounds = array<i64: 1>, scalar_prefetch = 0 : i64, scratch_operands = 0 : i64, tpu.core_type = #tpu.core_type<tc>, window_params = [{transform_indices = @transform_0, window_bounds = array<i64: 512, 128>}, {transform_indices = @transform_1, window_bounds = array<i64: 512, 128>}, {pipeline_mode = #tpu.pipeline_mode<synchronous>, transform_indices = @transform_2, window_bounds = array<i64: 4, 128>}, {transform_indices = @transform_3, window_bounds = array<i64: 512, 128>}]} {
    %c0 = arith.constant 0 : index
    %c0_0 = arith.constant 0 : index
    %0 = vector.load %arg1[%c0, %c0_0] : memref<512x128xbf16, #tpu.memory_space<vmem>>, vector<512x128xbf16>
    %1 = arith.extf %0 : vector<512x128xbf16> to vector<512x128xf32>
    %c0_1 = arith.constant 0 : index
    %c0_2 = arith.constant 0 : index
    %2 = vector.load %arg2[%c0_1, %c0_2] : memref<512x128xbf16, #tpu.memory_space<vmem>>, vector<512x128xbf16>
    %3 = arith.extf %2 : vector<512x128xbf16> to vector<512x128xf32>
    %c0_3 = arith.constant 0 : index
    %c0_4 = arith.constant 0 : index
    %4 = vector.load %arg3[%c0_3, %c0_4] : memref<4x128xf32, #tpu.memory_space<vmem>>, vector<1x128xf32>
    %5 = vector.broadcast %4 : vector<1x128xf32> to vector<512x128xf32>
    %6 = arith.mulf %1, %5 : vector<512x128xf32>
    %c1 = arith.constant 1 : index
    %c0_5 = arith.constant 0 : index
    %7 = vector.load %arg3[%c1, %c0_5] : memref<4x128xf32, #tpu.memory_space<vmem>>, vector<1x128xf32>
    %8 = vector.broadcast %7 : vector<1x128xf32> to vector<512x128xf32>
    %9 = arith.addf %6, %8 : vector<512x128xf32>
    %c2 = arith.constant 2 : index
    %c0_6 = arith.constant 0 : index
    %10 = vector.load %arg3[%c2, %c0_6] : memref<4x128xf32, #tpu.memory_space<vmem>>, vector<1x128xf32>
    %11 = vector.broadcast %10 : vector<1x128xf32> to vector<512x128xf32>
    %12 = arith.mulf %3, %11 : vector<512x128xf32>
    %13 = arith.addf %9, %12 : vector<512x128xf32>
    %c3 = arith.constant 3 : index
    %c0_7 = arith.constant 0 : index
    %14 = vector.load %arg3[%c3, %c0_7] : memref<4x128xf32, #tpu.memory_space<vmem>>, vector<1x128xf32>
    %15 = vector.broadcast %14 : vector<1x128xf32> to vector<512x128xf32>
    %16 = arith.addf %13, %15 : vector<512x128xf32>
    %17 = arith.truncf %16 : vector<512x128xf32> to vector<512x128xbf16>
    %c0_8 = arith.constant 0 : index
    %c0_9 = arith.constant 0 : index
    %18 = vector.load %arg4[%c0_8, %c0_9] : memref<512x128xbf16, #tpu.memory_space<vmem>>, vector<512x128xbf16>
    tpu.vector_store %arg4[%c0_8, %c0_9], %17 {strides = array<i32>} : memref<512x128xbf16, #tpu.memory_space<vmem>>, vector<512x128xbf16>,
    return
  }
  func.func @transform_0(%arg0: i32) -> (i32, i32) {
    %c0_i32 = arith.constant 0 : i32
    %c0_i32_0 = arith.constant 0 : i32
    return %arg0, %c0_i32 : i32, i32
  }
  func.func @transform_1(%arg0: i32) -> (i32, i32) {
    %c0_i32 = arith.constant 0 : i32
    %c0_i32_0 = arith.constant 0 : i32
    return %arg0, %c0_i32 : i32, i32
  }
  func.func @transform_2(%arg0: i32) -> (i32, i32) {
    %c0_i32 = arith.constant 0 : i32
    %c0_i32_0 = arith.constant 0 : i32
    %c0_i32_1 = arith.constant 0 : i32
    return %c0_i32, %c0_i32_0 : i32, i32
  }
  func.func @transform_3(%arg0: i32) -> (i32, i32) {
    %c0_i32 = arith.constant 0 : i32
    %c0_i32_0 = arith.constant 0 : i32
    return %arg0, %c0_i32 : i32, i32
  }
}

module attributes {stable_mosaic.version = 11 : i64} {
  func.func @_conv_gemm_kernel(%arg0: i32, %arg1: i32, %arg2: memref<1x32x256xbf16, #tpu.memory_space<vmem>>, %arg3: memref<256x128xbf16, #tpu.memory_space<vmem>>, %arg4: memref<1x32x128xbf16, #tpu.memory_space<vmem>>, %arg5: memref<1x1x128xf32, #tpu.memory_space<vmem>>, %arg6: memref<1x1x128xf32, #tpu.memory_space<vmem>>) attributes {dimension_semantics = [#tpu.dimension_semantics<parallel>, #tpu.dimension_semantics<parallel>], iteration_bounds = array<i64: 2, 2>, scalar_prefetch = 0 : i64, scratch_operands = 0 : i64, tpu.core_type = #tpu.core_type<tc>, window_params = [{transform_indices = @transform_0, window_bounds = array<i64: 1, 32, 256>}, {pipeline_mode = #tpu.pipeline_mode<synchronous>, transform_indices = @transform_1, window_bounds = array<i64: 256, 128>}, {transform_indices = @transform_2, window_bounds = array<i64: 1, 32, 128>}, {transform_indices = @transform_3, window_bounds = array<i64: 1, 1, 128>}, {transform_indices = @transform_4, window_bounds = array<i64: 1, 1, 128>}]} {
    %c0 = arith.constant 0 : index
    %c0_0 = arith.constant 0 : index
    %c0_1 = arith.constant 0 : index
    %0 = vector.load %arg2[%c0, %c0_0, %c0_1] : memref<1x32x256xbf16, #tpu.memory_space<vmem>>, vector<1x32x256xbf16>
    %1 = vector.shape_cast %0 : vector<1x32x256xbf16> to vector<32x256xbf16>
    %c0_2 = arith.constant 0 : index
    %c0_3 = arith.constant 0 : index
    %2 = vector.load %arg3[%c0_2, %c0_3] : memref<256x128xbf16, #tpu.memory_space<vmem>>, vector<256x128xbf16>
    %cst = arith.constant dense<0.000000e+00> : vector<32x128xf32>
    %3 = tpu.matmul %1, %2, %cst {dimension_numbers = #tpu.dot_dimension_numbers<[1], [0], [0], [1], [0, 0, 1, 1], [], []>} : vector<32x256xbf16>, vector<256x128xbf16>, vector<32x128xf32> -> vector<32x128xf32>
    %4 = arith.truncf %3 : vector<32x128xf32> to vector<32x128xbf16>
    %c0_4 = arith.constant 0 : index
    %c0_5 = arith.constant 0 : index
    %c0_6 = arith.constant 0 : index
    %5 = vector.load %arg4[%c0_4, %c0_5, %c0_6] : memref<1x32x128xbf16, #tpu.memory_space<vmem>>, vector<1x32x128xbf16>
    %6 = vector.shape_cast %5 : vector<1x32x128xbf16> to vector<32x128xbf16>
    %7 = vector.shape_cast %4 : vector<32x128xbf16> to vector<1x32x128xbf16>
    tpu.vector_store %arg4[%c0_4, %c0_5, %c0_6], %7 {strides = array<i32>} : memref<1x32x128xbf16, #tpu.memory_space<vmem>>, vector<1x32x128xbf16>,
    %cst_7 = arith.constant dense<0.000000e+00> : vector<128xf32>
    %8 = vector.multi_reduction <add>, %3, %cst_7 [0] : vector<32x128xf32> to vector<128xf32>
    %9 = vector.shape_cast %8 : vector<128xf32> to vector<1x128xf32>
    %c0_8 = arith.constant 0 : index
    %c0_9 = arith.constant 0 : index
    %c0_10 = arith.constant 0 : index
    %10 = vector.load %arg5[%c0_8, %c0_9, %c0_10] : memref<1x1x128xf32, #tpu.memory_space<vmem>>, vector<1x1x128xf32>
    %11 = vector.shape_cast %10 : vector<1x1x128xf32> to vector<1x128xf32>
    %12 = vector.shape_cast %9 : vector<1x128xf32> to vector<1x1x128xf32>
    tpu.vector_store %arg5[%c0_8, %c0_9, %c0_10], %12 {strides = array<i32>} : memref<1x1x128xf32, #tpu.memory_space<vmem>>, vector<1x1x128xf32>,
    %13 = arith.mulf %3, %3 : vector<32x128xf32>
    %cst_11 = arith.constant dense<0.000000e+00> : vector<128xf32>
    %14 = vector.multi_reduction <add>, %13, %cst_11 [0] : vector<32x128xf32> to vector<128xf32>
    %15 = vector.shape_cast %14 : vector<128xf32> to vector<1x128xf32>
    %c0_12 = arith.constant 0 : index
    %c0_13 = arith.constant 0 : index
    %c0_14 = arith.constant 0 : index
    %16 = vector.load %arg6[%c0_12, %c0_13, %c0_14] : memref<1x1x128xf32, #tpu.memory_space<vmem>>, vector<1x1x128xf32>
    %17 = vector.shape_cast %16 : vector<1x1x128xf32> to vector<1x128xf32>
    %18 = vector.shape_cast %15 : vector<1x128xf32> to vector<1x1x128xf32>
    tpu.vector_store %arg6[%c0_12, %c0_13, %c0_14], %18 {strides = array<i32>} : memref<1x1x128xf32, #tpu.memory_space<vmem>>, vector<1x1x128xf32>,
    return
  }
  func.func @transform_0(%arg0: i32, %arg1: i32) -> (i32, i32, i32) {
    %c0_i32 = arith.constant 0 : i32
    %c0_i32_0 = arith.constant 0 : i32
    return %arg0, %arg1, %c0_i32 : i32, i32, i32
  }
  func.func @transform_1(%arg0: i32, %arg1: i32) -> (i32, i32) {
    %c0_i32 = arith.constant 0 : i32
    %c0_i32_0 = arith.constant 0 : i32
    %c0_i32_1 = arith.constant 0 : i32
    return %c0_i32, %c0_i32_0 : i32, i32
  }
  func.func @transform_2(%arg0: i32, %arg1: i32) -> (i32, i32, i32) {
    %c0_i32 = arith.constant 0 : i32
    %c0_i32_0 = arith.constant 0 : i32
    return %arg0, %arg1, %c0_i32 : i32, i32, i32
  }
  func.func @transform_3(%arg0: i32, %arg1: i32) -> (i32, i32, i32) {
    %c2_i32 = arith.constant 2 : i32
    %0 = arith.muli %arg0, %c2_i32 : i32
    %1 = arith.addi %0, %arg1 : i32
    %c0_i32 = arith.constant 0 : i32
    %c0_i32_0 = arith.constant 0 : i32
    %c0_i32_1 = arith.constant 0 : i32
    return %1, %c0_i32, %c0_i32_0 : i32, i32, i32
  }
  func.func @transform_4(%arg0: i32, %arg1: i32) -> (i32, i32, i32) {
    %c2_i32 = arith.constant 2 : i32
    %0 = arith.muli %arg0, %c2_i32 : i32
    %1 = arith.addi %0, %arg1 : i32
    %c0_i32 = arith.constant 0 : i32
    %c0_i32_0 = arith.constant 0 : i32
    %c0_i32_1 = arith.constant 0 : i32
    return %1, %c0_i32, %c0_i32_0 : i32, i32, i32
  }
}

module attributes {stable_mosaic.version = 11 : i64} {
  func.func @_conv_gemm_kernel(%arg0: i32, %arg1: i32, %arg2: memref<1x32x384xbf16, #tpu.memory_space<vmem>>, %arg3: memref<384x128xbf16, #tpu.memory_space<vmem>>, %arg4: memref<1x32x128xbf16, #tpu.memory_space<vmem>>, %arg5: memref<1x1x128xf32, #tpu.memory_space<vmem>>, %arg6: memref<1x1x128xf32, #tpu.memory_space<vmem>>) attributes {dimension_semantics = [#tpu.dimension_semantics<parallel>, #tpu.dimension_semantics<parallel>], iteration_bounds = array<i64: 2, 2>, scalar_prefetch = 0 : i64, scratch_operands = 0 : i64, tpu.core_type = #tpu.core_type<tc>, window_params = [{transform_indices = @transform_0, window_bounds = array<i64: 1, 32, 384>}, {pipeline_mode = #tpu.pipeline_mode<synchronous>, transform_indices = @transform_1, window_bounds = array<i64: 384, 128>}, {transform_indices = @transform_2, window_bounds = array<i64: 1, 32, 128>}, {transform_indices = @transform_3, window_bounds = array<i64: 1, 1, 128>}, {transform_indices = @transform_4, window_bounds = array<i64: 1, 1, 128>}]} {
    %c0 = arith.constant 0 : index
    %c0_0 = arith.constant 0 : index
    %c0_1 = arith.constant 0 : index
    %0 = vector.load %arg2[%c0, %c0_0, %c0_1] : memref<1x32x384xbf16, #tpu.memory_space<vmem>>, vector<1x32x384xbf16>
    %1 = vector.shape_cast %0 : vector<1x32x384xbf16> to vector<32x384xbf16>
    %c0_2 = arith.constant 0 : index
    %c0_3 = arith.constant 0 : index
    %2 = vector.load %arg3[%c0_2, %c0_3] : memref<384x128xbf16, #tpu.memory_space<vmem>>, vector<384x128xbf16>
    %cst = arith.constant dense<0.000000e+00> : vector<32x128xf32>
    %3 = tpu.matmul %1, %2, %cst {dimension_numbers = #tpu.dot_dimension_numbers<[1], [0], [0], [1], [0, 0, 1, 1], [], []>} : vector<32x384xbf16>, vector<384x128xbf16>, vector<32x128xf32> -> vector<32x128xf32>
    %4 = arith.truncf %3 : vector<32x128xf32> to vector<32x128xbf16>
    %c0_4 = arith.constant 0 : index
    %c0_5 = arith.constant 0 : index
    %c0_6 = arith.constant 0 : index
    %5 = vector.load %arg4[%c0_4, %c0_5, %c0_6] : memref<1x32x128xbf16, #tpu.memory_space<vmem>>, vector<1x32x128xbf16>
    %6 = vector.shape_cast %5 : vector<1x32x128xbf16> to vector<32x128xbf16>
    %7 = vector.shape_cast %4 : vector<32x128xbf16> to vector<1x32x128xbf16>
    tpu.vector_store %arg4[%c0_4, %c0_5, %c0_6], %7 {strides = array<i32>} : memref<1x32x128xbf16, #tpu.memory_space<vmem>>, vector<1x32x128xbf16>,
    %cst_7 = arith.constant dense<0.000000e+00> : vector<128xf32>
    %8 = vector.multi_reduction <add>, %3, %cst_7 [0] : vector<32x128xf32> to vector<128xf32>
    %9 = vector.shape_cast %8 : vector<128xf32> to vector<1x128xf32>
    %c0_8 = arith.constant 0 : index
    %c0_9 = arith.constant 0 : index
    %c0_10 = arith.constant 0 : index
    %10 = vector.load %arg5[%c0_8, %c0_9, %c0_10] : memref<1x1x128xf32, #tpu.memory_space<vmem>>, vector<1x1x128xf32>
    %11 = vector.shape_cast %10 : vector<1x1x128xf32> to vector<1x128xf32>
    %12 = vector.shape_cast %9 : vector<1x128xf32> to vector<1x1x128xf32>
    tpu.vector_store %arg5[%c0_8, %c0_9, %c0_10], %12 {strides = array<i32>} : memref<1x1x128xf32, #tpu.memory_space<vmem>>, vector<1x1x128xf32>,
    %13 = arith.mulf %3, %3 : vector<32x128xf32>
    %cst_11 = arith.constant dense<0.000000e+00> : vector<128xf32>
    %14 = vector.multi_reduction <add>, %13, %cst_11 [0] : vector<32x128xf32> to vector<128xf32>
    %15 = vector.shape_cast %14 : vector<128xf32> to vector<1x128xf32>
    %c0_12 = arith.constant 0 : index
    %c0_13 = arith.constant 0 : index
    %c0_14 = arith.constant 0 : index
    %16 = vector.load %arg6[%c0_12, %c0_13, %c0_14] : memref<1x1x128xf32, #tpu.memory_space<vmem>>, vector<1x1x128xf32>
    %17 = vector.shape_cast %16 : vector<1x1x128xf32> to vector<1x128xf32>
    %18 = vector.shape_cast %15 : vector<1x128xf32> to vector<1x1x128xf32>
    tpu.vector_store %arg6[%c0_12, %c0_13, %c0_14], %18 {strides = array<i32>} : memref<1x1x128xf32, #tpu.memory_space<vmem>>, vector<1x1x128xf32>,
    return
  }
  func.func @transform_0(%arg0: i32, %arg1: i32) -> (i32, i32, i32) {
    %c0_i32 = arith.constant 0 : i32
    %c0_i32_0 = arith.constant 0 : i32
    return %arg0, %arg1, %c0_i32 : i32, i32, i32
  }
  func.func @transform_1(%arg0: i32, %arg1: i32) -> (i32, i32) {
    %c0_i32 = arith.constant 0 : i32
    %c0_i32_0 = arith.constant 0 : i32
    %c0_i32_1 = arith.constant 0 : i32
    return %c0_i32, %c0_i32_0 : i32, i32
  }
  func.func @transform_2(%arg0: i32, %arg1: i32) -> (i32, i32, i32) {
    %c0_i32 = arith.constant 0 : i32
    %c0_i32_0 = arith.constant 0 : i32
    return %arg0, %arg1, %c0_i32 : i32, i32, i32
  }
  func.func @transform_3(%arg0: i32, %arg1: i32) -> (i32, i32, i32) {
    %c2_i32 = arith.constant 2 : i32
    %0 = arith.muli %arg0, %c2_i32 : i32
    %1 = arith.addi %0, %arg1 : i32
    %c0_i32 = arith.constant 0 : i32
    %c0_i32_0 = arith.constant 0 : i32
    %c0_i32_1 = arith.constant 0 : i32
    return %1, %c0_i32, %c0_i32_0 : i32, i32, i32
  }
  func.func @transform_4(%arg0: i32, %arg1: i32) -> (i32, i32, i32) {
    %c2_i32 = arith.constant 2 : i32
    %0 = arith.muli %arg0, %c2_i32 : i32
    %1 = arith.addi %0, %arg1 : i32
    %c0_i32 = arith.constant 0 : i32
    %c0_i32_0 = arith.constant 0 : i32
    %c0_i32_1 = arith.constant 0 : i32
    return %1, %c0_i32, %c0_i32_0 : i32, i32, i32
  }
}

module attributes {stable_mosaic.version = 11 : i64} {
  func.func @_affine_add_kernel(%arg0: i32, %arg1: memref<128x128xbf16, #tpu.memory_space<vmem>>, %arg2: memref<128x128xbf16, #tpu.memory_space<vmem>>, %arg3: memref<4x128xf32, #tpu.memory_space<vmem>>, %arg4: memref<128x128xbf16, #tpu.memory_space<vmem>>) attributes {dimension_semantics = [#tpu.dimension_semantics<parallel>], iteration_bounds = array<i64: 1>, scalar_prefetch = 0 : i64, scratch_operands = 0 : i64, tpu.core_type = #tpu.core_type<tc>, window_params = [{transform_indices = @transform_0, window_bounds = array<i64: 128, 128>}, {transform_indices = @transform_1, window_bounds = array<i64: 128, 128>}, {pipeline_mode = #tpu.pipeline_mode<synchronous>, transform_indices = @transform_2, window_bounds = array<i64: 4, 128>}, {transform_indices = @transform_3, window_bounds = array<i64: 128, 128>}]} {
    %c0 = arith.constant 0 : index
    %c0_0 = arith.constant 0 : index
    %0 = vector.load %arg1[%c0, %c0_0] : memref<128x128xbf16, #tpu.memory_space<vmem>>, vector<128x128xbf16>
    %1 = arith.extf %0 : vector<128x128xbf16> to vector<128x128xf32>
    %c0_1 = arith.constant 0 : index
    %c0_2 = arith.constant 0 : index
    %2 = vector.load %arg2[%c0_1, %c0_2] : memref<128x128xbf16, #tpu.memory_space<vmem>>, vector<128x128xbf16>
    %3 = arith.extf %2 : vector<128x128xbf16> to vector<128x128xf32>
    %c0_3 = arith.constant 0 : index
    %c0_4 = arith.constant 0 : index
    %4 = vector.load %arg3[%c0_3, %c0_4] : memref<4x128xf32, #tpu.memory_space<vmem>>, vector<1x128xf32>
    %5 = vector.broadcast %4 : vector<1x128xf32> to vector<128x128xf32>
    %6 = arith.mulf %1, %5 : vector<128x128xf32>
    %c1 = arith.constant 1 : index
    %c0_5 = arith.constant 0 : index
    %7 = vector.load %arg3[%c1, %c0_5] : memref<4x128xf32, #tpu.memory_space<vmem>>, vector<1x128xf32>
    %8 = vector.broadcast %7 : vector<1x128xf32> to vector<128x128xf32>
    %9 = arith.addf %6, %8 : vector<128x128xf32>
    %c2 = arith.constant 2 : index
    %c0_6 = arith.constant 0 : index
    %10 = vector.load %arg3[%c2, %c0_6] : memref<4x128xf32, #tpu.memory_space<vmem>>, vector<1x128xf32>
    %11 = vector.broadcast %10 : vector<1x128xf32> to vector<128x128xf32>
    %12 = arith.mulf %3, %11 : vector<128x128xf32>
    %13 = arith.addf %9, %12 : vector<128x128xf32>
    %c3 = arith.constant 3 : index
    %c0_7 = arith.constant 0 : index
    %14 = vector.load %arg3[%c3, %c0_7] : memref<4x128xf32, #tpu.memory_space<vmem>>, vector<1x128xf32>
    %15 = vector.broadcast %14 : vector<1x128xf32> to vector<128x128xf32>
    %16 = arith.addf %13, %15 : vector<128x128xf32>
    %17 = arith.truncf %16 : vector<128x128xf32> to vector<128x128xbf16>
    %c0_8 = arith.constant 0 : index
    %c0_9 = arith.constant 0 : index
    %18 = vector.load %arg4[%c0_8, %c0_9] : memref<128x128xbf16, #tpu.memory_space<vmem>>, vector<128x128xbf16>
    tpu.vector_store %arg4[%c0_8, %c0_9], %17 {strides = array<i32>} : memref<128x128xbf16, #tpu.memory_space<vmem>>, vector<128x128xbf16>,
    return
  }
  func.func @transform_0(%arg0: i32) -> (i32, i32) {
    %c0_i32 = arith.constant 0 : i32
    %c0_i32_0 = arith.constant 0 : i32
    return %arg0, %c0_i32 : i32, i32
  }
  func.func @transform_1(%arg0: i32) -> (i32, i32) {
    %c0_i32 = arith.constant 0 : i32
    %c0_i32_0 = arith.constant 0 : i32
    return %arg0, %c0_i32 : i32, i32
  }
  func.func @transform_2(%arg0: i32) -> (i32, i32) {
    %c0_i32 = arith.constant 0 : i32
    %c0_i32_0 = arith.constant 0 : i32
    %c0_i32_1 = arith.constant 0 : i32
    return %c0_i32, %c0_i32_0 : i32, i32
  }
  func.func @transform_3(%arg0: i32) -> (i32, i32) {
    %c0_i32 = arith.constant 0 : i32
    %c0_i32_0 = arith.constant 0 : i32
    return %arg0, %c0_i32 : i32, i32
  }
}

module attributes {stable_mosaic.version = 11 : i64} {
  func.func @_conv_gemm_kernel(%arg0: i32, %arg1: i32, %arg2: memref<1x16x384xbf16, #tpu.memory_space<vmem>>, %arg3: memref<384x128xbf16, #tpu.memory_space<vmem>>, %arg4: memref<1x16x128xbf16, #tpu.memory_space<vmem>>, %arg5: memref<1x1x128xf32, #tpu.memory_space<vmem>>, %arg6: memref<1x1x128xf32, #tpu.memory_space<vmem>>) attributes {dimension_semantics = [#tpu.dimension_semantics<parallel>, #tpu.dimension_semantics<parallel>], iteration_bounds = array<i64: 2, 1>, scalar_prefetch = 0 : i64, scratch_operands = 0 : i64, tpu.core_type = #tpu.core_type<tc>, window_params = [{transform_indices = @transform_0, window_bounds = array<i64: 1, 16, 384>}, {pipeline_mode = #tpu.pipeline_mode<synchronous>, transform_indices = @transform_1, window_bounds = array<i64: 384, 128>}, {transform_indices = @transform_2, window_bounds = array<i64: 1, 16, 128>}, {transform_indices = @transform_3, window_bounds = array<i64: 1, 1, 128>}, {transform_indices = @transform_4, window_bounds = array<i64: 1, 1, 128>}]} {
    %c0 = arith.constant 0 : index
    %c0_0 = arith.constant 0 : index
    %c0_1 = arith.constant 0 : index
    %0 = vector.load %arg2[%c0, %c0_0, %c0_1] : memref<1x16x384xbf16, #tpu.memory_space<vmem>>, vector<1x16x384xbf16>
    %1 = vector.shape_cast %0 : vector<1x16x384xbf16> to vector<16x384xbf16>
    %c0_2 = arith.constant 0 : index
    %c0_3 = arith.constant 0 : index
    %2 = vector.load %arg3[%c0_2, %c0_3] : memref<384x128xbf16, #tpu.memory_space<vmem>>, vector<384x128xbf16>
    %cst = arith.constant dense<0.000000e+00> : vector<16x128xf32>
    %3 = tpu.matmul %1, %2, %cst {dimension_numbers = #tpu.dot_dimension_numbers<[1], [0], [0], [1], [0, 0, 1, 1], [], []>} : vector<16x384xbf16>, vector<384x128xbf16>, vector<16x128xf32> -> vector<16x128xf32>
    %4 = arith.truncf %3 : vector<16x128xf32> to vector<16x128xbf16>
    %c0_4 = arith.constant 0 : index
    %c0_5 = arith.constant 0 : index
    %c0_6 = arith.constant 0 : index
    %5 = vector.load %arg4[%c0_4, %c0_5, %c0_6] : memref<1x16x128xbf16, #tpu.memory_space<vmem>>, vector<1x16x128xbf16>
    %6 = vector.shape_cast %5 : vector<1x16x128xbf16> to vector<16x128xbf16>
    %7 = vector.shape_cast %4 : vector<16x128xbf16> to vector<1x16x128xbf16>
    tpu.vector_store %arg4[%c0_4, %c0_5, %c0_6], %7 {strides = array<i32>} : memref<1x16x128xbf16, #tpu.memory_space<vmem>>, vector<1x16x128xbf16>,
    %cst_7 = arith.constant dense<0.000000e+00> : vector<128xf32>
    %8 = vector.multi_reduction <add>, %3, %cst_7 [0] : vector<16x128xf32> to vector<128xf32>
    %9 = vector.shape_cast %8 : vector<128xf32> to vector<1x128xf32>
    %c0_8 = arith.constant 0 : index
    %c0_9 = arith.constant 0 : index
    %c0_10 = arith.constant 0 : index
    %10 = vector.load %arg5[%c0_8, %c0_9, %c0_10] : memref<1x1x128xf32, #tpu.memory_space<vmem>>, vector<1x1x128xf32>
    %11 = vector.shape_cast %10 : vector<1x1x128xf32> to vector<1x128xf32>
    %12 = vector.shape_cast %9 : vector<1x128xf32> to vector<1x1x128xf32>
    tpu.vector_store %arg5[%c0_8, %c0_9, %c0_10], %12 {strides = array<i32>} : memref<1x1x128xf32, #tpu.memory_space<vmem>>, vector<1x1x128xf32>,
    %13 = arith.mulf %3, %3 : vector<16x128xf32>
    %cst_11 = arith.constant dense<0.000000e+00> : vector<128xf32>
    %14 = vector.multi_reduction <add>, %13, %cst_11 [0] : vector<16x128xf32> to vector<128xf32>
    %15 = vector.shape_cast %14 : vector<128xf32> to vector<1x128xf32>
    %c0_12 = arith.constant 0 : index
    %c0_13 = arith.constant 0 : index
    %c0_14 = arith.constant 0 : index
    %16 = vector.load %arg6[%c0_12, %c0_13, %c0_14] : memref<1x1x128xf32, #tpu.memory_space<vmem>>, vector<1x1x128xf32>
    %17 = vector.shape_cast %16 : vector<1x1x128xf32> to vector<1x128xf32>
    %18 = vector.shape_cast %15 : vector<1x128xf32> to vector<1x1x128xf32>
    tpu.vector_store %arg6[%c0_12, %c0_13, %c0_14], %18 {strides = array<i32>} : memref<1x1x128xf32, #tpu.memory_space<vmem>>, vector<1x1x128xf32>,
    return
  }
  func.func @transform_0(%arg0: i32, %arg1: i32) -> (i32, i32, i32) {
    %c0_i32 = arith.constant 0 : i32
    %c0_i32_0 = arith.constant 0 : i32
    return %arg0, %arg1, %c0_i32 : i32, i32, i32
  }
  func.func @transform_1(%arg0: i32, %arg1: i32) -> (i32, i32) {
    %c0_i32 = arith.constant 0 : i32
    %c0_i32_0 = arith.constant 0 : i32
    %c0_i32_1 = arith.constant 0 : i32
    return %c0_i32, %c0_i32_0 : i32, i32
  }
  func.func @transform_2(%arg0: i32, %arg1: i32) -> (i32, i32, i32) {
    %c0_i32 = arith.constant 0 : i32
    %c0_i32_0 = arith.constant 0 : i32
    return %arg0, %arg1, %c0_i32 : i32, i32, i32
  }
  func.func @transform_3(%arg0: i32, %arg1: i32) -> (i32, i32, i32) {
    %c1_i32 = arith.constant 1 : i32
    %0 = arith.muli %arg0, %c1_i32 : i32
    %1 = arith.addi %0, %arg1 : i32
    %c0_i32 = arith.constant 0 : i32
    %c0_i32_0 = arith.constant 0 : i32
    %c0_i32_1 = arith.constant 0 : i32
    return %1, %c0_i32, %c0_i32_0 : i32, i32, i32
  }
  func.func @transform_4(%arg0: i32, %arg1: i32) -> (i32, i32, i32) {
    %c1_i32 = arith.constant 1 : i32
    %0 = arith.muli %arg0, %c1_i32 : i32
    %1 = arith.addi %0, %arg1 : i32
    %c0_i32 = arith.constant 0 : i32
    %c0_i32_0 = arith.constant 0 : i32
    %c0_i32_1 = arith.constant 0 : i32
    return %1, %c0_i32, %c0_i32_0 : i32, i32, i32
  }
}

module attributes {stable_mosaic.version = 11 : i64} {
  func.func @_conv_gemm_kernel(%arg0: i32, %arg1: i32, %arg2: memref<1x16x640xbf16, #tpu.memory_space<vmem>>, %arg3: memref<640x128xbf16, #tpu.memory_space<vmem>>, %arg4: memref<1x16x128xbf16, #tpu.memory_space<vmem>>, %arg5: memref<1x1x128xf32, #tpu.memory_space<vmem>>, %arg6: memref<1x1x128xf32, #tpu.memory_space<vmem>>) attributes {dimension_semantics = [#tpu.dimension_semantics<parallel>, #tpu.dimension_semantics<parallel>], iteration_bounds = array<i64: 2, 1>, scalar_prefetch = 0 : i64, scratch_operands = 0 : i64, tpu.core_type = #tpu.core_type<tc>, window_params = [{transform_indices = @transform_0, window_bounds = array<i64: 1, 16, 640>}, {pipeline_mode = #tpu.pipeline_mode<synchronous>, transform_indices = @transform_1, window_bounds = array<i64: 640, 128>}, {transform_indices = @transform_2, window_bounds = array<i64: 1, 16, 128>}, {transform_indices = @transform_3, window_bounds = array<i64: 1, 1, 128>}, {transform_indices = @transform_4, window_bounds = array<i64: 1, 1, 128>}]} {
    %c0 = arith.constant 0 : index
    %c0_0 = arith.constant 0 : index
    %c0_1 = arith.constant 0 : index
    %0 = vector.load %arg2[%c0, %c0_0, %c0_1] : memref<1x16x640xbf16, #tpu.memory_space<vmem>>, vector<1x16x640xbf16>
    %1 = vector.shape_cast %0 : vector<1x16x640xbf16> to vector<16x640xbf16>
    %c0_2 = arith.constant 0 : index
    %c0_3 = arith.constant 0 : index
    %2 = vector.load %arg3[%c0_2, %c0_3] : memref<640x128xbf16, #tpu.memory_space<vmem>>, vector<640x128xbf16>
    %cst = arith.constant dense<0.000000e+00> : vector<16x128xf32>
    %3 = tpu.matmul %1, %2, %cst {dimension_numbers = #tpu.dot_dimension_numbers<[1], [0], [0], [1], [0, 0, 1, 1], [], []>} : vector<16x640xbf16>, vector<640x128xbf16>, vector<16x128xf32> -> vector<16x128xf32>
    %4 = arith.truncf %3 : vector<16x128xf32> to vector<16x128xbf16>
    %c0_4 = arith.constant 0 : index
    %c0_5 = arith.constant 0 : index
    %c0_6 = arith.constant 0 : index
    %5 = vector.load %arg4[%c0_4, %c0_5, %c0_6] : memref<1x16x128xbf16, #tpu.memory_space<vmem>>, vector<1x16x128xbf16>
    %6 = vector.shape_cast %5 : vector<1x16x128xbf16> to vector<16x128xbf16>
    %7 = vector.shape_cast %4 : vector<16x128xbf16> to vector<1x16x128xbf16>
    tpu.vector_store %arg4[%c0_4, %c0_5, %c0_6], %7 {strides = array<i32>} : memref<1x16x128xbf16, #tpu.memory_space<vmem>>, vector<1x16x128xbf16>,
    %cst_7 = arith.constant dense<0.000000e+00> : vector<128xf32>
    %8 = vector.multi_reduction <add>, %3, %cst_7 [0] : vector<16x128xf32> to vector<128xf32>
    %9 = vector.shape_cast %8 : vector<128xf32> to vector<1x128xf32>
    %c0_8 = arith.constant 0 : index
    %c0_9 = arith.constant 0 : index
    %c0_10 = arith.constant 0 : index
    %10 = vector.load %arg5[%c0_8, %c0_9, %c0_10] : memref<1x1x128xf32, #tpu.memory_space<vmem>>, vector<1x1x128xf32>
    %11 = vector.shape_cast %10 : vector<1x1x128xf32> to vector<1x128xf32>
    %12 = vector.shape_cast %9 : vector<1x128xf32> to vector<1x1x128xf32>
    tpu.vector_store %arg5[%c0_8, %c0_9, %c0_10], %12 {strides = array<i32>} : memref<1x1x128xf32, #tpu.memory_space<vmem>>, vector<1x1x128xf32>,
    %13 = arith.mulf %3, %3 : vector<16x128xf32>
    %cst_11 = arith.constant dense<0.000000e+00> : vector<128xf32>
    %14 = vector.multi_reduction <add>, %13, %cst_11 [0] : vector<16x128xf32> to vector<128xf32>
    %15 = vector.shape_cast %14 : vector<128xf32> to vector<1x128xf32>
    %c0_12 = arith.constant 0 : index
    %c0_13 = arith.constant 0 : index
    %c0_14 = arith.constant 0 : index
    %16 = vector.load %arg6[%c0_12, %c0_13, %c0_14] : memref<1x1x128xf32, #tpu.memory_space<vmem>>, vector<1x1x128xf32>
    %17 = vector.shape_cast %16 : vector<1x1x128xf32> to vector<1x128xf32>
    %18 = vector.shape_cast %15 : vector<1x128xf32> to vector<1x1x128xf32>
    tpu.vector_store %arg6[%c0_12, %c0_13, %c0_14], %18 {strides = array<i32>} : memref<1x1x128xf32, #tpu.memory_space<vmem>>, vector<1x1x128xf32>,
    return
  }
  func.func @transform_0(%arg0: i32, %arg1: i32) -> (i32, i32, i32) {
    %c0_i32 = arith.constant 0 : i32
    %c0_i32_0 = arith.constant 0 : i32
    return %arg0, %arg1, %c0_i32 : i32, i32, i32
  }
  func.func @transform_1(%arg0: i32, %arg1: i32) -> (i32, i32) {
    %c0_i32 = arith.constant 0 : i32
    %c0_i32_0 = arith.constant 0 : i32
    %c0_i32_1 = arith.constant 0 : i32
    return %c0_i32, %c0_i32_0 : i32, i32
  }
  func.func @transform_2(%arg0: i32, %arg1: i32) -> (i32, i32, i32) {
    %c0_i32 = arith.constant 0 : i32
    %c0_i32_0 = arith.constant 0 : i32
    return %arg0, %arg1, %c0_i32 : i32, i32, i32
  }
  func.func @transform_3(%arg0: i32, %arg1: i32) -> (i32, i32, i32) {
    %c1_i32 = arith.constant 1 : i32
    %0 = arith.muli %arg0, %c1_i32 : i32
    %1 = arith.addi %0, %arg1 : i32
    %c0_i32 = arith.constant 0 : i32
    %c0_i32_0 = arith.constant 0 : i32
    %c0_i32_1 = arith.constant 0 : i32
    return %1, %c0_i32, %c0_i32_0 : i32, i32, i32
  }
  func.func @transform_4(%arg0: i32, %arg1: i32) -> (i32, i32, i32) {
    %c1_i32 = arith.constant 1 : i32
    %0 = arith.muli %arg0, %c1_i32 : i32
    %1 = arith.addi %0, %arg1 : i32
    %c0_i32 = arith.constant 0 : i32
    %c0_i32_0 = arith.constant 0 : i32
    %c0_i32_1 = arith.constant 0 : i32
    return %1, %c0_i32, %c0_i32_0 : i32, i32, i32
  }
}

module attributes {stable_mosaic.version = 11 : i64} {
  func.func @_head_kernel(%arg0: i32, %arg1: memref<1x16x128xbf16, #tpu.memory_space<vmem>>, %arg2: memref<128x128xf32, #tpu.memory_space<vmem>>, %arg3: memref<1x128xf32, #tpu.memory_space<vmem>>, %arg4: memref<1x1x128xf32, #tpu.memory_space<vmem>>) attributes {dimension_semantics = [#tpu.dimension_semantics<parallel>], iteration_bounds = array<i64: 2>, scalar_prefetch = 0 : i64, scratch_operands = 0 : i64, tpu.core_type = #tpu.core_type<tc>, window_params = [{transform_indices = @transform_0, window_bounds = array<i64: 1, 16, 128>}, {pipeline_mode = #tpu.pipeline_mode<synchronous>, transform_indices = @transform_1, window_bounds = array<i64: 128, 128>}, {pipeline_mode = #tpu.pipeline_mode<synchronous>, transform_indices = @transform_2, window_bounds = array<i64: 1, 128>}, {transform_indices = @transform_3, window_bounds = array<i64: 1, 1, 128>}]} {
    %c0 = arith.constant 0 : index
    %c0_0 = arith.constant 0 : index
    %c0_1 = arith.constant 0 : index
    %0 = vector.load %arg1[%c0, %c0_0, %c0_1] : memref<1x16x128xbf16, #tpu.memory_space<vmem>>, vector<1x16x128xbf16>
    %1 = vector.shape_cast %0 : vector<1x16x128xbf16> to vector<16x128xbf16>
    %2 = arith.extf %1 : vector<16x128xbf16> to vector<16x128xf32>
    %cst = arith.constant dense<0.000000e+00> : vector<128xf32>
    %3 = vector.multi_reduction <add>, %2, %cst [0] : vector<16x128xf32> to vector<128xf32>
    %4 = vector.shape_cast %3 : vector<128xf32> to vector<1x128xf32>
    %cst_2 = arith.constant 6.250000e-02 : f32
    %5 = vector.broadcast %cst_2 : f32 to vector<1x128xf32>
    %6 = arith.mulf %4, %5 : vector<1x128xf32>
    %c0_3 = arith.constant 0 : index
    %c0_4 = arith.constant 0 : index
    %7 = vector.load %arg2[%c0_3, %c0_4] : memref<128x128xf32, #tpu.memory_space<vmem>>, vector<128x128xf32>
    %cst_5 = arith.constant dense<0.000000e+00> : vector<1x128xf32>
    %8 = tpu.matmul %6, %7, %cst_5 {dimension_numbers = #tpu.dot_dimension_numbers<[1], [0], [0], [1], [0, 0, 1, 1], [], []>} : vector<1x128xf32>, vector<128x128xf32>, vector<1x128xf32> -> vector<1x128xf32>
    %c0_6 = arith.constant 0 : index
    %c0_7 = arith.constant 0 : index
    %9 = vector.load %arg3[%c0_6, %c0_7] : memref<1x128xf32, #tpu.memory_space<vmem>>, vector<1x128xf32>
    %10 = arith.addf %8, %9 : vector<1x128xf32>
    %c0_8 = arith.constant 0 : index
    %c0_9 = arith.constant 0 : index
    %c0_10 = arith.constant 0 : index
    %11 = vector.load %arg4[%c0_8, %c0_9, %c0_10] : memref<1x1x128xf32, #tpu.memory_space<vmem>>, vector<1x1x128xf32>
    %12 = vector.shape_cast %11 : vector<1x1x128xf32> to vector<1x128xf32>
    %13 = vector.shape_cast %10 : vector<1x128xf32> to vector<1x1x128xf32>
    tpu.vector_store %arg4[%c0_8, %c0_9, %c0_10], %13 {strides = array<i32>} : memref<1x1x128xf32, #tpu.memory_space<vmem>>, vector<1x1x128xf32>,
    return
  }
  func.func @transform_0(%arg0: i32) -> (i32, i32, i32) {
    %c0_i32 = arith.constant 0 : i32
    %c0_i32_0 = arith.constant 0 : i32
    %c0_i32_1 = arith.constant 0 : i32
    return %arg0, %c0_i32, %c0_i32_0 : i32, i32, i32
  }
  func.func @transform_1(%arg0: i32) -> (i32, i32) {
    %c0_i32 = arith.constant 0 : i32
    %c0_i32_0 = arith.constant 0 : i32
    %c0_i32_1 = arith.constant 0 : i32
    return %c0_i32, %c0_i32_0 : i32, i32
  }
  func.func @transform_2(%arg0: i32) -> (i32, i32) {
    %c0_i32 = arith.constant 0 : i32
    %c0_i32_0 = arith.constant 0 : i32
    %c0_i32_1 = arith.constant 0 : i32
    return %c0_i32, %c0_i32_0 : i32, i32
  }
  func.func @transform_3(%arg0: i32) -> (i32, i32, i32) {
    %c0_i32 = arith.constant 0 : i32
    %c0_i32_0 = arith.constant 0 : i32
    %c0_i32_1 = arith.constant 0 : i32
    return %arg0, %c0_i32, %c0_i32_0 : i32, i32, i32
  }
}

module attributes {stable_mosaic.version = 11 : i64} {
  func.func @_affine_add_kernel(%arg0: i32, %arg1: memref<32x128xbf16, #tpu.memory_space<vmem>>, %arg2: memref<32x128xbf16, #tpu.memory_space<vmem>>, %arg3: memref<4x128xf32, #tpu.memory_space<vmem>>, %arg4: memref<32x128xbf16, #tpu.memory_space<vmem>>) attributes {dimension_semantics = [#tpu.dimension_semantics<parallel>], iteration_bounds = array<i64: 1>, scalar_prefetch = 0 : i64, scratch_operands = 0 : i64, tpu.core_type = #tpu.core_type<tc>, window_params = [{transform_indices = @transform_0, window_bounds = array<i64: 32, 128>}, {transform_indices = @transform_1, window_bounds = array<i64: 32, 128>}, {pipeline_mode = #tpu.pipeline_mode<synchronous>, transform_indices = @transform_2, window_bounds = array<i64: 4, 128>}, {transform_indices = @transform_3, window_bounds = array<i64: 32, 128>}]} {
    %c0 = arith.constant 0 : index
    %c0_0 = arith.constant 0 : index
    %0 = vector.load %arg1[%c0, %c0_0] : memref<32x128xbf16, #tpu.memory_space<vmem>>, vector<32x128xbf16>
    %1 = arith.extf %0 : vector<32x128xbf16> to vector<32x128xf32>
    %c0_1 = arith.constant 0 : index
    %c0_2 = arith.constant 0 : index
    %2 = vector.load %arg2[%c0_1, %c0_2] : memref<32x128xbf16, #tpu.memory_space<vmem>>, vector<32x128xbf16>
    %3 = arith.extf %2 : vector<32x128xbf16> to vector<32x128xf32>
    %c0_3 = arith.constant 0 : index
    %c0_4 = arith.constant 0 : index
    %4 = vector.load %arg3[%c0_3, %c0_4] : memref<4x128xf32, #tpu.memory_space<vmem>>, vector<1x128xf32>
    %5 = vector.broadcast %4 : vector<1x128xf32> to vector<32x128xf32>
    %6 = arith.mulf %1, %5 : vector<32x128xf32>
    %c1 = arith.constant 1 : index
    %c0_5 = arith.constant 0 : index
    %7 = vector.load %arg3[%c1, %c0_5] : memref<4x128xf32, #tpu.memory_space<vmem>>, vector<1x128xf32>
    %8 = vector.broadcast %7 : vector<1x128xf32> to vector<32x128xf32>
    %9 = arith.addf %6, %8 : vector<32x128xf32>
    %c2 = arith.constant 2 : index
    %c0_6 = arith.constant 0 : index
    %10 = vector.load %arg3[%c2, %c0_6] : memref<4x128xf32, #tpu.memory_space<vmem>>, vector<1x128xf32>
    %11 = vector.broadcast %10 : vector<1x128xf32> to vector<32x128xf32>
    %12 = arith.mulf %3, %11 : vector<32x128xf32>
    %13 = arith.addf %9, %12 : vector<32x128xf32>
    %c3 = arith.constant 3 : index
    %c0_7 = arith.constant 0 : index
    %14 = vector.load %arg3[%c3, %c0_7] : memref<4x128xf32, #tpu.memory_space<vmem>>, vector<1x128xf32>
    %15 = vector.broadcast %14 : vector<1x128xf32> to vector<32x128xf32>
    %16 = arith.addf %13, %15 : vector<32x128xf32>
    %17 = arith.truncf %16 : vector<32x128xf32> to vector<32x128xbf16>
    %c0_8 = arith.constant 0 : index
    %c0_9 = arith.constant 0 : index
    %18 = vector.load %arg4[%c0_8, %c0_9] : memref<32x128xbf16, #tpu.memory_space<vmem>>, vector<32x128xbf16>
    tpu.vector_store %arg4[%c0_8, %c0_9], %17 {strides = array<i32>} : memref<32x128xbf16, #tpu.memory_space<vmem>>, vector<32x128xbf16>,
    return
  }
  func.func @transform_0(%arg0: i32) -> (i32, i32) {
    %c0_i32 = arith.constant 0 : i32
    %c0_i32_0 = arith.constant 0 : i32
    return %arg0, %c0_i32 : i32, i32
  }
  func.func @transform_1(%arg0: i32) -> (i32, i32) {
    %c0_i32 = arith.constant 0 : i32
    %c0_i32_0 = arith.constant 0 : i32
    return %arg0, %c0_i32 : i32, i32
  }
  func.func @transform_2(%arg0: i32) -> (i32, i32) {
    %c0_i32 = arith.constant 0 : i32
    %c0_i32_0 = arith.constant 0 : i32
    %c0_i32_1 = arith.constant 0 : i32
    return %c0_i32, %c0_i32_0 : i32, i32
  }
  func.func @transform_3(%arg0: i32) -> (i32, i32) {
    %c0_i32 = arith.constant 0 : i32
    %c0_i32_0 = arith.constant 0 : i32
    return %arg0, %c0_i32 : i32, i32
  }
}

</mosaic_0001>

<llo_original>
// kernel: wideresnet_forward.22
$region0: #{wideresnet_forward.22}
  #allocation0 [shape = 'u32[]', space=smem, size = 0x4, offset = 0x4, fixed_abs, tag = 'smem constant byte address 0x4 - core index']
  #allocation1 [shape = 'u32[144,128]{1,0:T(1,128)}', space=vmem, size = 0x12000, scoped, tag = 'internal scratch']
  %s0 = inlined_call_operand.vmem [shape: bf16[2,256,128], index: 0, kind: input, shape index: {}]
  %s1 = inlined_call_operand.vmem [shape: bf16[128,128], index: 1, kind: input, shape index: {}]
  %s2 = inlined_call_operand.vmem [shape: bf16[2,256,128], index: 2, kind: output, shape index: {0}]
  %s3 = inlined_call_operand.vmem [shape: f32[4,1,128], index: 3, kind: output, shape index: {1}]
  %s4 = inlined_call_operand.vmem [shape: f32[4,1,128], index: 4, kind: output, shape index: {2}]
  %5 = xla_tuple %s2, %s3, %s4
  %s6 = sld [smem:[#allocation0]]
  $region57: #{wideresnet_forward.22} parent=0
    _
  %s8 = ssub.s32 1, %s6
  %s9 = scalar_select 0, %s8, %s6
  loop: start=0, step=1, limit=6
  $region2: #{wideresnet_forward.22} parent=0 // loop_pre_header
    _
  $region3: #{wideresnet_forward.22} parent=0 // loop_header
    %s11 = sphi 0, %s15
    %p12 = scmp.ge.s32.totalorder %s11, 6
    %s18 = sphi 0, %s30
    %s19 = sphi 0, %s26
    %s20 = sphi 0, %s18
    %s21 = sphi 0, %s19
    %s22 = sphi 0, %s20
    %s23 = sphi 0, %s21
    %s35 = sphi 0, %s37
    %s38 = sphi 0, %s35
    %s39 = sphi 0, %s38
    %s55 = sphi 0, %s39
    %s59 = sphi 0, %s59
    %s61 = sphi 0, %s59
    %s62 = sphi 0, %s61
    %s76 = sphi 0, %s62
    %s84 = sphi 0, %s86
    %s87 = sphi 0, %s84
    %s88 = sphi 0, %s87
    %s104 = sphi 0, %s88
    %s114 = sphi 0, %s116
    %s117 = sphi 0, %s114
    %s118 = sphi 0, %s117
    %s134 = sphi 0, %s118
    %s144 = sphi 0, %s146
    %s147 = sphi 0, %s144
    %s148 = sphi 0, %s147
    %s164 = sphi 0, %s148
  $region4: #{wideresnet_forward.22} parent=0 // loop_header_branch
    %14 = sbr.rel (%p12) target = $region8
  $region5: #{wideresnet_forward.22} parent=0 // loop_body
    %s16 = ssub.s32 %s11, 1
    %s17 = ssub.s32 %s11, 2
    %s24 = sadd.s32 1, %s19
    %p25 = scmp.ge.s32.totalorder %s24, 2
    %s26 = scalar_select %p25, 0, %s24
    %s27 = sadd.s32 1, %s18
    %s28 = scalar_select %p25, %s27, %s18
    %p29 = scmp.ge.s32.totalorder %s28, 2
    %s30 = scalar_select %p29, 0, %s28
    %s31 = ssub.s32 %s18, %s30
    %s32 = ssub.s32 %s19, %s26
    %s33 = sor.u32 %s31, %s32
    %p34 = scmp.eq.s32.totalorder %s33, 0
    %s36 = sadd.s32 %s35, 1
    %s37 = scalar_select %p34, %s35, %s36
    %p40 = pneg %p34
    %p41 = scmp.eq.s32.totalorder %s11, 3
    %p42 = por %p40, %p41
    %p43 = scmp.ne.s32.totalorder %s35, %s38
    %p44 = scmp.eq.s32.totalorder %s11, 0
    %p45 = por %p43, %p44
    %p46 = scmp.ne.s32.totalorder %s35, %s38
    %p47 = scmp.eq.s32.totalorder %s16, 3
    %p48 = por %p46, %p47
    %p49 = scmp.ne.s32.totalorder %s38, %s39
    %p50 = scmp.eq.s32.totalorder %s16, 0
    %p51 = por %p49, %p50
    %p52 = scmp.ne.s32.totalorder %s38, %s39
    %p53 = scmp.eq.s32.totalorder %s17, 3
    %p54 = por %p52, %p53
    %p56 = scmp.ne.s32.totalorder %s39, %s55
    %p57 = scmp.eq.s32.totalorder %s17, 0
    %p58 = por %p56, %p57
    %s60 = sadd.s32 %s59, 1
    %p63 = scmp.eq.s32.totalorder %s11, 3
    %p64 = scmp.ne.s32.totalorder %s59, %s61
    %p65 = scmp.eq.s32.totalorder %s11, 0
    %p66 = por %p64, %p65
    %p67 = scmp.ne.s32.totalorder %s59, %s61
    %p68 = scmp.eq.s32.totalorder %s16, 3
    %p69 = por %p67, %p68
    %p70 = scmp.ne.s32.totalorder %s61, %s62
    %p71 = scmp.eq.s32.totalorder %s16, 0
    %p72 = por %p70, %p71
    %p73 = scmp.ne.s32.totalorder %s61, %s62
    %p74 = scmp.eq.s32.totalorder %s17, 3
    %p75 = por %p73, %p74
    %p77 = scmp.ne.s32.totalorder %s62, %s76
    %p78 = scmp.eq.s32.totalorder %s17, 0
    %p79 = por %p77, %p78
    %s80 = ssub.s32 %s18, %s30
    %s81 = ssub.s32 %s19, %s26
    %s82 = sor.u32 %s80, %s81
    %p83 = scmp.eq.s32.totalorder %s82, 0
    %s85 = sadd.s32 %s84, 1
    %s86 = scalar_select %p83, %s84, %s85
    %p89 = pneg %p83
    %p90 = scmp.eq.s32.totalorder %s11, 3
    %p91 = por %p89, %p90
    %p92 = scmp.ne.s32.totalorder %s84, %s87
    %p93 = scmp.eq.s32.totalorder %s11, 0
    %p94 = por %p92, %p93
    %p95 = scmp.ne.s32.totalorder %s84, %s87
    %p96 = scmp.eq.s32.totalorder %s16, 3
    %p97 = por %p95, %p96
    %p98 = scmp.ne.s32.totalorder %s87, %s88
    %p99 = scmp.eq.s32.totalorder %s16, 0
    %p100 = por %p98, %p99
    %p101 = scmp.ne.s32.totalorder %s87, %s88
    %p102 = scmp.eq.s32.totalorder %s17, 3
    %p103 = por %p101, %p102
    %p105 = scmp.ne.s32.totalorder %s88, %s104
    %p106 = scmp.eq.s32.totalorder %s17, 0
    %p107 = por %p105, %p106
    %s108 = smul.u32 %s18, 2
    %s109 = sadd.s32 %s108, %s19
    %s110 = smul.u32 %s30, 2
    %s111 = sadd.s32 %s110, %s26
    %s112 = ssub.s32 %s109, %s111
    %p113 = scmp.eq.s32.totalorder %s112, 0
    %s115 = sadd.s32 %s114, 1
    %s116 = scalar_select %p113, %s114, %s115
    %p119 = pneg %p113
    %p120 = scmp.eq.s32.totalorder %s11, 3
    %p121 = por %p119, %p120
    %p122 = scmp.ne.s32.totalorder %s114, %s117
    %p123 = scmp.eq.s32.totalorder %s11, 0
    %p124 = por %p122, %p123
    %p125 = scmp.ne.s32.totalorder %s114, %s117
    %p126 = scmp.eq.s32.totalorder %s16, 3
    %p127 = por %p125, %p126
    %p128 = scmp.ne.s32.totalorder %s117, %s118
    %p129 = scmp.eq.s32.totalorder %s16, 0
    %p130 = por %p128, %p129
    %p131 = scmp.ne.s32.totalorder %s117, %s118
    %p132 = scmp.eq.s32.totalorder %s17, 3
    %p133 = por %p131, %p132
    %p135 = scmp.ne.s32.totalorder %s118, %s134
    %p136 = scmp.eq.s32.totalorder %s17, 0
    %p137 = por %p135, %p136
    %s138 = smul.u32 %s18, 2
    %s139 = sadd.s32 %s138, %s19
    %s140 = smul.u32 %s30, 2
    %s141 = sadd.s32 %s140, %s26
    %s142 = ssub.s32 %s139, %s141
    %p143 = scmp.eq.s32.totalorder %s142, 0
    %s145 = sadd.s32 %s144, 1
    %s146 = scalar_select %p143, %s144, %s145
    %p149 = pneg %p143
    %p150 = scmp.eq.s32.totalorder %s11, 3
    %p151 = por %p149, %p150
    %p152 = scmp.ne.s32.totalorder %s144, %s147
    %p153 = scmp.eq.s32.totalorder %s11, 0
    %p154 = por %p152, %p153
    %p155 = scmp.ne.s32.totalorder %s144, %s147
    %p156 = scmp.eq.s32.totalorder %s16, 3
    %p157 = por %p155, %p156
    %p158 = scmp.ne.s32.totalorder %s147, %s148
    %p159 = scmp.eq.s32.totalorder %s16, 0
    %p160 = por %p158, %p159
    %p161 = scmp.ne.s32.totalorder %s147, %s148
    %p162 = scmp.eq.s32.totalorder %s17, 3
    %p163 = por %p161, %p162
    %p165 = scmp.ne.s32.totalorder %s148, %s164
    %p166 = scmp.eq.s32.totalorder %s17, 0
    %p167 = por %p165, %p166
    %p168 = scmp.le.s32.totalorder 1, %s11
    %p169 = scmp.lt.s32.totalorder %s11, 5
    %p170 = pnand %p168, %p169
    %p171 = pneg %p170
    // Predicated region
    $region9: #{wideresnet_forward.22} parent=5 // pred_check
      _
    $region10: #{wideresnet_forward.22} parent=5 // pred_check_branch
      %173 = sbr.rel (%p170) target = $region12
    $region11: #{wideresnet_forward.22} parent=5 // pred_region
      %s174 = ssub.s32 %s11, 1
      // Predicated region
      $region13: #{wideresnet_forward.22} parent=11 // pred_check
        %p175 = pneg %p72
      $region14: #{wideresnet_forward.22} parent=11 // pred_check_branch
        %177 = sbr.rel (%p175) target = $region16
      $region15: #{wideresnet_forward.22} parent=11 // pred_region
        _
      $region16: #{wideresnet_forward.22} parent=11 // pred_fallthru
        _
    $region12: #{wideresnet_forward.22} parent=5 // pred_fallthru
      _
    %p178 = scmp.lt.s32.totalorder %s11, 4
    // Predicated region
    $region17: #{wideresnet_forward.22} parent=5 // pred_check
      %p179 = pneg %p178
    $region18: #{wideresnet_forward.22} parent=5 // pred_check_branch
      %181 = sbr.rel (%p179) target = $region20
    $region19: #{wideresnet_forward.22} parent=5 // pred_region
      // Predicated region
      $region21: #{wideresnet_forward.22} parent=19 // pred_check
        %p182 = pneg %p45
      $region22: #{wideresnet_forward.22} parent=19 // pred_check_branch
        %184 = sbr.rel (%p182) target = $region24
      $region23: #{wideresnet_forward.22} parent=19 // pred_region
        %s185 = smul.u32 16, %s19
        %p186 = scmp.lt.s32.totalorder %s18, 1
        %s187 = scalar_select %p186, %s18, 1
        %p188 = scmp.lt.s32.totalorder %s185, 31
        %s189 = scalar_select %p188, %s185, 31
        %s190 = smul.addr %s187, 32
        %s191 = sadd.s32 %s189, %s190
        %s192 = smul.addr %s191, 4
        %s193 = scalar_lea.vmem %s0, %s192
        %s194 = smul.u32 16, %s19
      $region24: #{wideresnet_forward.22} parent=19 // pred_fallthru
        _
    $region20: #{wideresnet_forward.22} parent=5 // pred_fallthru
      _
    %p195 = scmp.le.s32.totalorder 1, %s11
    %p196 = scmp.lt.s32.totalorder %s11, 5
    %p197 = pnand %p195, %p196
    %p198 = pneg %p197
    // Predicated region
    $region25: #{wideresnet_forward.22} parent=5 // pred_check
      _
    $region26: #{wideresnet_forward.22} parent=5 // pred_check_branch
      %200 = sbr.rel (%p197) target = $region28
    $region27: #{wideresnet_forward.22} parent=5 // pred_region
      %s201 = ssub.s32 %s11, 1
      %s202 = smul.u32 16, %s21
      %p203 = scmp.lt.s32.totalorder %s20, 1
      %s204 = scalar_select %p203, %s20, 1
      %p205 = scmp.lt.s32.totalorder %s202, 31
      %s206 = scalar_select %p205, %s202, 31
      %s207 = smul.addr %s204, 32
      %s208 = sadd.s32 %s206, %s207
      %s209 = smul.addr %s208, 4
      %s210 = scalar_lea.vmem %s0, %s209
      %p211 = pneg %p51
      %p212 = pneg %p48
      %p213 = pneg %p72
      %p214 = pneg %p69
      %p215 = pneg %p100
      %p216 = pneg %p97
      %s217 = smul.u32 16, %s21
      %p218 = scmp.lt.s32.totalorder %s20, 1
      %s219 = scalar_select %p218, %s20, 1
      %p220 = scmp.lt.s32.totalorder %s217, 31
      %s221 = scalar_select %p220, %s217, 31
      %s222 = smul.addr %s219, 32
      %s223 = sadd.s32 %s221, %s222
      %s224 = smul.addr %s223, 4
      %s225 = scalar_lea.vmem %s2, %s224
      %p226 = pneg %p130
      %p227 = pneg %p127
      %s228 = smul.u32 %s20, 2
      %s229 = sadd.s32 %s228, %s21
      %p230 = scmp.lt.s32.totalorder %s229, 3
      %s231 = scalar_select %p230, %s229, 3
      %s232 = scalar_lea.vmem %s3, %s231
      %p233 = pneg %p160
      %p234 = pneg %p157
      %s235 = smul.u32 %s20, 2
      %s236 = sadd.s32 %s235, %s21
      %p237 = scmp.lt.s32.totalorder %s236, 3
      %s238 = scalar_select %p237, %s236, 3
      %s239 = scalar_lea.vmem %s4, %s238
      %s240 = smul.u32 16, %s21
      %p241 = scmp.lt.s32.totalorder %s20, 1
      %s242 = scalar_select %p241, %s20, 1
      %p243 = scmp.lt.s32.totalorder %s240, 31
      %s244 = scalar_select %p243, %s240, 31
      %s245 = smul.addr %s242, 32
      %s246 = sadd.s32 %s244, %s245
      %s247 = smul.addr %s246, 4
      %s248 = scalar_lea.vmem %s0, %s247
      %s249 = smul.u32 16, %s21
      %s250 = smul.u32 16, %s21
      %p251 = scmp.lt.s32.totalorder %s20, 1
      %s252 = scalar_select %p251, %s20, 1
      %p253 = scmp.lt.s32.totalorder %s250, 31
      %s254 = scalar_select %p253, %s250, 31
      %s255 = smul.addr %s252, 32
      %s256 = sadd.s32 %s254, %s255
      %s257 = smul.addr %s256, 4
      %s258 = scalar_lea.vmem %s2, %s257
      %s259 = smul.u32 16, %s21
      %s260 = smul.u32 %s20, 2
      %s261 = sadd.s32 %s260, %s21
      %p262 = scmp.lt.s32.totalorder %s261, 3
      %s263 = scalar_select %p262, %s261, 3
      %s264 = scalar_lea.vmem %s3, %s263
      %s265 = smul.u32 %s20, 2
      %s266 = sadd.s32 %s265, %s21
      %s267 = smul.u32 %s20, 2
      %s268 = sadd.s32 %s267, %s21
      %p269 = scmp.lt.s32.totalorder %s268, 3
      %s270 = scalar_select %p269, %s268, 3
      %s271 = scalar_lea.vmem %s4, %s270
      %s272 = smul.u32 %s20, 2
      %s273 = sadd.s32 %s272, %s21
      %v275 = vld [vmem:[%s248] sm:$0xf]
      %v276 = vld [vmem:[%s248 + $0x4] sm:$0xf]
      %v277 = vld [vmem:[%s248 + $0x8] sm:$0xf]
      %v278 = vld [vmem:[%s248 + $0xc] sm:$0xf]
      %v279 = vld [vmem:[%s248 + $0x10] sm:$0xf]
      %v280 = vld [vmem:[%s248 + $0x14] sm:$0xf]
      %v281 = vld [vmem:[%s248 + $0x18] sm:$0xf]
      %v282 = vld [vmem:[%s248 + $0x1c] sm:$0xf]
      %v283 = vld [vmem:[%s248 + $0x20] sm:$0xf]
      %v284 = vld [vmem:[%s248 + $0x24] sm:$0xf]
      %v285 = vld [vmem:[%s248 + $0x28] sm:$0xf]
      %v286 = vld [vmem:[%s248 + $0x2c] sm:$0xf]
      %v287 = vld [vmem:[%s248 + $0x30] sm:$0xf]
      %v288 = vld [vmem:[%s248 + $0x34] sm:$0xf]
      %v289 = vld [vmem:[%s248 + $0x38] sm:$0xf]
      %v290 = vld [vmem:[%s248 + $0x3c] sm:$0xf]
      %v291 = vld [vmem:[%s1] sm:$0xf]
      %v292 = vld [vmem:[%s1 + $0x4] sm:$0xf]
      %v293 = vld [vmem:[%s1 + $0x8] sm:$0xf]
      %v294 = vld [vmem:[%s1 + $0xc] sm:$0xf]
      %v295 = vld [vmem:[%s1 + $0x10] sm:$0xf]
      %v296 = vld [vmem:[%s1 + $0x14] sm:$0xf]
      %v297 = vld [vmem:[%s1 + $0x18] sm:$0xf]
      %v298 = vld [vmem:[%s1 + $0x1c] sm:$0xf]
      %v299 = vld [vmem:[%s1 + $0x20] sm:$0xf]
      %v300 = vld [vmem:[%s1 + $0x24] sm:$0xf]
      %v301 = vld [vmem:[%s1 + $0x28] sm:$0xf]
      %v302 = vld [vmem:[%s1 + $0x2c] sm:$0xf]
      %v303 = vld [vmem:[%s1 + $0x30] sm:$0xf]
      %v304 = vld [vmem:[%s1 + $0x34] sm:$0xf]
      %v305 = vld [vmem:[%s1 + $0x38] sm:$0xf]
      %v306 = vld [vmem:[%s1 + $0x3c] sm:$0xf]
      %v323 = vunpack.c.l.b16 %v275
      %v324 = vunpack.c.l.b16 %v276
      %v325 = vunpack.c.l.b16 %v277
      %v326 = vunpack.c.l.b16 %v278
      %v327 = vunpack.c.l.b16 %v279
      %v328 = vunpack.c.l.b16 %v280
      %v329 = vunpack.c.l.b16 %v281
      %v330 = vunpack.c.l.b16 %v282
      %v331 = vunpack.c.l.b16 %v283
      %v332 = vunpack.c.l.b16 %v284
      %v333 = vunpack.c.l.b16 %v285
      %v334 = vunpack.c.l.b16 %v286
      %v335 = vunpack.c.l.b16 %v287
      %v336 = vunpack.c.l.b16 %v288
      %v337 = vunpack.c.l.b16 %v289
      %v338 = vunpack.c.l.b16 %v290
      %v339 = vpack.c.b16 %v324, %v323
      %v340 = vpack.c.b16 %v326, %v325
      %v341 = vpack.c.b16 %v328, %v327
      %v342 = vpack.c.b16 %v330, %v329
      %v343 = vpack.c.b16 %v332, %v331
      %v344 = vpack.c.b16 %v334, %v333
      %v345 = vpack.c.b16 %v336, %v335
      %v346 = vpack.c.b16 %v338, %v337
      %v371 = vunpack.c.l.b16 %v291
      %v372 = vunpack.c.l.b16 %v292
      %v373 = vunpack.c.l.b16 %v293
      %v374 = vunpack.c.l.b16 %v294
      %v375 = vunpack.c.l.b16 %v295
      %v376 = vunpack.c.l.b16 %v296
      %v377 = vunpack.c.l.b16 %v297
      %v378 = vunpack.c.l.b16 %v298
      %v379 = vunpack.c.l.b16 %v299
      %v380 = vunpack.c.l.b16 %v300
      %v381 = vunpack.c.l.b16 %v301
      %v382 = vunpack.c.l.b16 %v302
      %v383 = vunpack.c.l.b16 %v303
      %v384 = vunpack.c.l.b16 %v304
      %v385 = vunpack.c.l.b16 %v305
      %v386 = vunpack.c.l.b16 %v306
      %v387 = vpack.c.b16 %v372, %v371
      %v388 = vpack.c.b16 %v374, %v373
      %v389 = vpack.c.b16 %v376, %v375
      %v390 = vpack.c.b16 %v378, %v377
      %v391 = vpack.c.b16 %v380, %v379
      %v392 = vpack.c.b16 %v382, %v381
      %v393 = vpack.c.b16 %v384, %v383
      %v394 = vpack.c.b16 %v386, %v385
      %403 = vmatprep.subr.bf16.mxu0 0
      %404 = vmatpush1.bf16.msra.mxu0 %v394
      %405 = vmatprep.subr.bf16.mxu0 0
      %406 = vmatpush1.bf16.msra.mxu0 %v393
      %407 = vmatprep.subr.bf16.mxu0 0
      %408 = vmatpush1.bf16.msra.mxu0 %v392
      %409 = vmatprep.subr.bf16.mxu0 0
      %410 = vmatpush1.bf16.msra.mxu0 %v391
      %411 = vmatprep.subr.bf16.mxu0 0
      %412 = vmatpush1.bf16.msra.mxu0 %v390
      %413 = vmatprep.subr.bf16.mxu0 0
      %414 = vmatpush1.bf16.msra.mxu0 %v389
      %415 = vmatprep.subr.bf16.mxu0 0
      %416 = vmatpush1.bf16.msra.mxu0 %v388
      %417 = vmatprep.subr.bf16.mxu0 0
      %418 = vmatpush1.bf16.msra.mxu0 %v387
      %419 = vmatprep.subr.bf16.mxu0 0
      %420 = vmatpush2.bf16.msra.mxu0 0
      %421 = vmatprep.subr.bf16.mxu0 0
      %422 = vmatpush2.bf16.msra.mxu0 0
      %423 = vmatprep.subr.bf16.mxu0 0
      %424 = vmatpush2.bf16.msra.mxu0 0
      %425 = vmatprep.subr.bf16.mxu0 0
      %426 = vmatpush2.bf16.msra.mxu0 0
      %427 = vmatprep.subr.bf16.mxu0 0
      %428 = vmatpush2.bf16.msra.mxu0 0
      %429 = vmatprep.subr.bf16.mxu0 0
      %430 = vmatpush2.bf16.msra.mxu0 0
      %431 = vmatprep.subr.bf16.mxu0 0
      %432 = vmatpush2.bf16.msra.mxu0 0
      %433 = vmatprep.subr.bf16.mxu0 0
      %434 = vmatpush2.bf16.msra.mxu0 0
      %435 = vmatprep.mubr.bf16.mxu0 0
      %436 = vmatmul.mubr.bf16.gmra.mxu0 %v339
      %v437 = vpop.f32.mrf.mxu0
      %v438 = vadd.f32 0.0, %v437
      %v439 = vpop.f32.mrf.mxu0
      %v440 = vpop.f32.mrf.mxu0
      %v441 = vadd.f32 0.0, %v440
      %v442 = vpop.f32.mrf.mxu0
      %443 = vmatprep.mubr.bf16.mxu0 0
      %444 = vmatmul.mubr.bf16.gmra.mxu0 %v340
      %v445 = vpop.f32.mrf.mxu0
      %v446 = vadd.f32 0.0, %v445
      %v447 = vpop.f32.mrf.mxu0
      %v448 = vpop.f32.mrf.mxu0
      %v449 = vadd.f32 0.0, %v448
      %v450 = vpop.f32.mrf.mxu0
      %451 = vmatprep.mubr.bf16.mxu0 0
      %452 = vmatmul.mubr.bf16.gmra.mxu0 %v341
      %v453 = vpop.f32.mrf.mxu0
      %v454 = vadd.f32 0.0, %v453
      %v455 = vpop.f32.mrf.mxu0
      %v456 = vpop.f32.mrf.mxu0
      %v457 = vadd.f32 0.0, %v456
      %v458 = vpop.f32.mrf.mxu0
      %459 = vmatprep.mubr.bf16.mxu0 0
      %460 = vmatmul.mubr.bf16.gmra.mxu0 %v342
      %v461 = vpop.f32.mrf.mxu0
      %v462 = vadd.f32 0.0, %v461
      %v463 = vpop.f32.mrf.mxu0
      %v464 = vpop.f32.mrf.mxu0
      %v465 = vadd.f32 0.0, %v464
      %v466 = vpop.f32.mrf.mxu0
      %467 = vmatprep.mubr.bf16.mxu0 0
      %468 = vmatmul.mubr.bf16.gmra.mxu0 %v343
      %v469 = vpop.f32.mrf.mxu0
      %v470 = vadd.f32 0.0, %v469
      %v471 = vpop.f32.mrf.mxu0
      %v472 = vpop.f32.mrf.mxu0
      %v473 = vadd.f32 0.0, %v472
      %v474 = vpop.f32.mrf.mxu0
      %475 = vmatprep.mubr.bf16.mxu0 0
      %476 = vmatmul.mubr.bf16.gmra.mxu0 %v344
      %v477 = vpop.f32.mrf.mxu0
      %v478 = vadd.f32 0.0, %v477
      %v479 = vpop.f32.mrf.mxu0
      %v480 = vpop.f32.mrf.mxu0
      %v481 = vadd.f32 0.0, %v480
      %v482 = vpop.f32.mrf.mxu0
      %483 = vmatprep.mubr.bf16.mxu0 0
      %484 = vmatmul.mubr.bf16.gmra.mxu0 %v345
      %v485 = vpop.f32.mrf.mxu0
      %v486 = vadd.f32 0.0, %v485
      %v487 = vpop.f32.mrf.mxu0
      %v488 = vpop.f32.mrf.mxu0
      %v489 = vadd.f32 0.0, %v488
      %v490 = vpop.f32.mrf.mxu0
      %491 = vmatprep.mubr.bf16.mxu0 0
      %492 = vmatmul.mubr.bf16.gmra.mxu0 %v346
      %v493 = vpop.f32.mrf.mxu0
      %v494 = vadd.f32 0.0, %v493
      %v495 = vpop.f32.mrf.mxu0
      %v496 = vpop.f32.mrf.mxu0
      %v497 = vadd.f32 0.0, %v496
      %v498 = vpop.f32.mrf.mxu0
      %499 = vdwg.mxu0
      %v500 = vpack.c.bf16 %v441, %v438
      %v501 = vpack.c.bf16 %v449, %v446
      %v502 = vpack.c.bf16 %v457, %v454
      %v503 = vpack.c.bf16 %v465, %v462
      %v504 = vpack.c.bf16 %v473, %v470
      %v505 = vpack.c.bf16 %v481, %v478
      %v506 = vpack.c.bf16 %v489, %v486
      %v507 = vpack.c.bf16 %v497, %v494
      %v516 = vunpack.c.l.b16 %v500
      %v517 = vunpack.c.h.b16 %v500
      %v518 = vunpack.c.l.b16 %v501
      %v519 = vunpack.c.h.b16 %v501
      %v520 = vunpack.c.l.b16 %v502
      %v521 = vunpack.c.h.b16 %v502
      %v522 = vunpack.c.l.b16 %v503
      %v523 = vunpack.c.h.b16 %v503
      %v524 = vunpack.c.l.b16 %v504
      %v525 = vunpack.c.h.b16 %v504
      %v526 = vunpack.c.l.b16 %v505
      %v527 = vunpack.c.h.b16 %v505
      %v528 = vunpack.c.l.b16 %v506
      %v529 = vunpack.c.h.b16 %v506
      %v530 = vunpack.c.l.b16 %v507
      %v531 = vunpack.c.h.b16 %v507
      %v532 = vpack.c.b16 %v516, %v516
      %v533 = vpack.c.b16 %v517, %v517
      %v534 = vpack.c.b16 %v518, %v518
      %v535 = vpack.c.b16 %v519, %v519
      %v536 = vpack.c.b16 %v520, %v520
      %v537 = vpack.c.b16 %v521, %v521
      %v538 = vpack.c.b16 %v522, %v522
      %v539 = vpack.c.b16 %v523, %v523
      %v540 = vpack.c.b16 %v524, %v524
      %v541 = vpack.c.b16 %v525, %v525
      %v542 = vpack.c.b16 %v526, %v526
      %v543 = vpack.c.b16 %v527, %v527
      %v544 = vpack.c.b16 %v528, %v528
      %v545 = vpack.c.b16 %v529, %v529
      %v546 = vpack.c.b16 %v530, %v530
      %v547 = vpack.c.b16 %v531, %v531
      %564 = vst [vmem:[%s258] sm:$0xf] %v532
      %565 = vst [vmem:[%s258 + $0x4] sm:$0xf] %v533
      %566 = vst [vmem:[%s258 + $0x8] sm:$0xf] %v534
      %567 = vst [vmem:[%s258 + $0xc] sm:$0xf] %v535
      %568 = vst [vmem:[%s258 + $0x10] sm:$0xf] %v536
      %569 = vst [vmem:[%s258 + $0x14] sm:$0xf] %v537
      %570 = vst [vmem:[%s258 + $0x18] sm:$0xf] %v538
      %571 = vst [vmem:[%s258 + $0x1c] sm:$0xf] %v539
      %572 = vst [vmem:[%s258 + $0x20] sm:$0xf] %v540
      %573 = vst [vmem:[%s258 + $0x24] sm:$0xf] %v541
      %574 = vst [vmem:[%s258 + $0x28] sm:$0xf] %v542
      %575 = vst [vmem:[%s258 + $0x2c] sm:$0xf] %v543
      %576 = vst [vmem:[%s258 + $0x30] sm:$0xf] %v544
      %577 = vst [vmem:[%s258 + $0x34] sm:$0xf] %v545
      %578 = vst [vmem:[%s258 + $0x38] sm:$0xf] %v546
      %579 = vst [vmem:[%s258 + $0x3c] sm:$0xf] %v547
      %v580 = vadd.f32 %v438, %v441
      %v581 = vadd.f32 %v580, %v446
      %v582 = vadd.f32 %v581, %v449
      %v583 = vadd.f32 %v582, %v454
      %v584 = vadd.f32 %v583, %v457
      %v585 = vadd.f32 %v584, %v462
      %v586 = vadd.f32 %v585, %v465
      %v587 = vadd.f32 %v586, %v470
      %v588 = vadd.f32 %v587, %v473
      %v589 = vadd.f32 %v588, %v478
      %v590 = vadd.f32 %v589, %v481
      %v591 = vadd.f32 %v590, %v486
      %v592 = vadd.f32 %v591, %v489
      %v593 = vadd.f32 %v592, %v494
      %v594 = vadd.f32 %v593, %v497
      %v595 = vrot.slane %v594, 4
      %v596 = vadd.f32 %v594, %v595
      %v597 = vrot.slane %v596, 2
      %v598 = vadd.f32 %v596, %v597
      %v599 = vrot.slane %v598, 1
      %v600 = vadd.f32 %v598, %v599
      %601 = vst [vmem:[%s264] sm:$0x1] %v600
      %v602 = vmul.f32 %v438, %v438
      %v603 = vmul.f32 %v441, %v441
      %v604 = vmul.f32 %v446, %v446
      %v605 = vmul.f32 %v449, %v449
      %v606 = vmul.f32 %v454, %v454
      %v607 = vmul.f32 %v457, %v457
      %v608 = vmul.f32 %v462, %v462
      %v609 = vmul.f32 %v465, %v465
      %v610 = vmul.f32 %v470, %v470
      %v611 = vmul.f32 %v473, %v473
      %v612 = vmul.f32 %v478, %v478
      %v613 = vmul.f32 %v481, %v481
      %v614 = vmul.f32 %v486, %v486
      %v615 = vmul.f32 %v489, %v489
      %v616 = vmul.f32 %v494, %v494
      %v617 = vmul.f32 %v497, %v497
      %v618 = vadd.f32 %v602, %v603
      %v619 = vadd.f32 %v618, %v604
      %v620 = vadd.f32 %v619, %v605
      %v621 = vadd.f32 %v620, %v606
      %v622 = vadd.f32 %v621, %v607
      %v623 = vadd.f32 %v622, %v608
      %v624 = vadd.f32 %v623, %v609
      %v625 = vadd.f32 %v624, %v610
      %v626 = vadd.f32 %v625, %v611
      %v627 = vadd.f32 %v626, %v612
      %v628 = vadd.f32 %v627, %v613
      %v629 = vadd.f32 %v628, %v614
      %v630 = vadd.f32 %v629, %v615
      %v631 = vadd.f32 %v630, %v616
      %v632 = vadd.f32 %v631, %v617
      %v633 = vrot.slane %v632, 4
      %v634 = vadd.f32 %v632, %v633
      %v635 = vrot.slane %v634, 2
      %v636 = vadd.f32 %v634, %v635
      %v637 = vrot.slane %v636, 1
      %v638 = vadd.f32 %v636, %v637
      %639 = vst [vmem:[%s271] sm:$0x1] %v638
      %s640 = smul.u32 16, %s21
      %p641 = scmp.lt.s32.totalorder %s20, 1
      %s642 = scalar_select %p641, %s20, 1
      %p643 = scmp.lt.s32.totalorder %s640, 31
      %s644 = scalar_select %p643, %s640, 31
      %s645 = smul.addr %s642, 32
      %s646 = sadd.s32 %s644, %s645
      %s647 = smul.addr %s646, 4
      %s648 = scalar_lea.vmem %s2, %s647
      %s649 = smul.u32 %s20, 2
      %s650 = sadd.s32 %s649, %s21
      %p651 = scmp.lt.s32.totalorder %s650, 3
      %s652 = scalar_select %p651, %s650, 3
      %s653 = scalar_lea.vmem %s3, %s652
      %s654 = smul.u32 %s20, 2
      %s655 = sadd.s32 %s654, %s21
      %p656 = scmp.lt.s32.totalorder %s655, 3
      %s657 = scalar_select %p656, %s655, 3
      %s658 = scalar_lea.vmem %s4, %s657
      // Predicated region
      $region29: #{wideresnet_forward.22} parent=27 // pred_check
        %p659 = pneg %p97
      $region30: #{wideresnet_forward.22} parent=27 // pred_check_branch
        %661 = sbr.rel (%p659) target = $region32
      $region31: #{wideresnet_forward.22} parent=27 // pred_region
        %s662 = smul.u32 16, %s21
      $region32: #{wideresnet_forward.22} parent=27 // pred_fallthru
        _
      // Predicated region
      $region33: #{wideresnet_forward.22} parent=27 // pred_check
        %p663 = pneg %p127
      $region34: #{wideresnet_forward.22} parent=27 // pred_check_branch
        %665 = sbr.rel (%p663) target = $region36
      $region35: #{wideresnet_forward.22} parent=27 // pred_region
        %s666 = smul.u32 %s20, 2
        %s667 = sadd.s32 %s666, %s21
      $region36: #{wideresnet_forward.22} parent=27 // pred_fallthru
        _
      // Predicated region
      $region37: #{wideresnet_forward.22} parent=27 // pred_check
        %p668 = pneg %p157
      $region38: #{wideresnet_forward.22} parent=27 // pred_check_branch
        %670 = sbr.rel (%p668) target = $region40
      $region39: #{wideresnet_forward.22} parent=27 // pred_region
        %s671 = smul.u32 %s20, 2
        %s672 = sadd.s32 %s671, %s21
      $region40: #{wideresnet_forward.22} parent=27 // pred_fallthru
        _
    $region28: #{wideresnet_forward.22} parent=5 // pred_fallthru
      _
    %p673 = scmp.le.s32.totalorder 2, %s11
    // Predicated region
    $region41: #{wideresnet_forward.22} parent=5 // pred_check
      %p674 = pneg %p673
    $region42: #{wideresnet_forward.22} parent=5 // pred_check_branch
      %676 = sbr.rel (%p674) target = $region44
    $region43: #{wideresnet_forward.22} parent=5 // pred_region
      %s677 = ssub.s32 %s11, 2
      // Predicated region
      $region45: #{wideresnet_forward.22} parent=43 // pred_check
        %p678 = pneg %p103
      $region46: #{wideresnet_forward.22} parent=43 // pred_check_branch
        %680 = sbr.rel (%p678) target = $region48
      $region47: #{wideresnet_forward.22} parent=43 // pred_region
        %s681 = smul.u32 16, %s23
        %p682 = scmp.lt.s32.totalorder %s22, 1
        %s683 = scalar_select %p682, %s22, 1
        %p684 = scmp.lt.s32.totalorder %s681, 31
        %s685 = scalar_select %p684, %s681, 31
        %s686 = smul.addr %s683, 32
        %s687 = sadd.s32 %s685, %s686
        %s688 = smul.addr %s687, 4
        %s689 = scalar_lea.vmem %s2, %s688
      $region48: #{wideresnet_forward.22} parent=43 // pred_fallthru
        _
      // Predicated region
      $region49: #{wideresnet_forward.22} parent=43 // pred_check
        %p690 = pneg %p133
      $region50: #{wideresnet_forward.22} parent=43 // pred_check_branch
        %692 = sbr.rel (%p690) target = $region52
      $region51: #{wideresnet_forward.22} parent=43 // pred_region
        %s693 = smul.u32 %s22, 2
        %s694 = sadd.s32 %s693, %s23
        %p695 = scmp.lt.s32.totalorder %s694, 3
        %s696 = scalar_select %p695, %s694, 3
        %s697 = scalar_lea.vmem %s3, %s696
      $region52: #{wideresnet_forward.22} parent=43 // pred_fallthru
        _
      // Predicated region
      $region53: #{wideresnet_forward.22} parent=43 // pred_check
        %p698 = pneg %p163
      $region54: #{wideresnet_forward.22} parent=43 // pred_check_branch
        %700 = sbr.rel (%p698) target = $region56
      $region55: #{wideresnet_forward.22} parent=43 // pred_region
        %s701 = smul.u32 %s22, 2
        %s702 = sadd.s32 %s701, %s23
        %p703 = scmp.lt.s32.totalorder %s702, 3
        %s704 = scalar_select %p703, %s702, 3
        %s705 = scalar_lea.vmem %s4, %s704
      $region56: #{wideresnet_forward.22} parent=43 // pred_fallthru
        _
    $region44: #{wideresnet_forward.22} parent=5 // pred_fallthru
      _
  $region6: #{wideresnet_forward.22} parent=0 // loop_footer
    %s15 = sadd.s32 1, %s11
  $region7: #{wideresnet_forward.22} parent=0 // loop_footer_branch
    %10 = sbr.rel target = $region3
  $region8: #{wideresnet_forward.22} parent=0 // loop_exit
    _

// kernel: wideresnet_forward.23
$region0: #{wideresnet_forward.23}
  #allocation0 [shape = 'u32[]', space=smem, size = 0x4, offset = 0x4, fixed_abs, tag = 'smem constant byte address 0x4 - core index']
  #allocation1 [shape = 'u32[144,128]{1,0:T(1,128)}', space=vmem, size = 0x12000, scoped, tag = 'internal scratch']
  %s0 = inlined_call_operand.vmem [shape: bf16[2,256,256], index: 0, kind: input, shape index: {}]
  %s1 = inlined_call_operand.vmem [shape: bf16[256,128], index: 1, kind: input, shape index: {}]
  %s2 = inlined_call_operand.vmem [shape: bf16[2,256,128], index: 2, kind: output, shape index: {0}]
  %s3 = inlined_call_operand.vmem [shape: f32[4,1,128], index: 3, kind: output, shape index: {1}]
  %s4 = inlined_call_operand.vmem [shape: f32[4,1,128], index: 4, kind: output, shape index: {2}]
  %5 = xla_tuple %s2, %s3, %s4
  %s6 = sld [smem:[#allocation0]]
  $region57: #{wideresnet_forward.23} parent=0
    _
  %s8 = ssub.s32 1, %s6
  %s9 = scalar_select 0, %s8, %s6
  loop: start=0, step=1, limit=6
  $region2: #{wideresnet_forward.23} parent=0 // loop_pre_header
    _
  $region3: #{wideresnet_forward.23} parent=0 // loop_header
    %s11 = sphi 0, %s15
    %p12 = scmp.ge.s32.totalorder %s11, 6
    %s18 = sphi 0, %s30
    %s19 = sphi 0, %s26
    %s20 = sphi 0, %s18
    %s21 = sphi 0, %s19
    %s22 = sphi 0, %s20
    %s23 = sphi 0, %s21
    %s35 = sphi 0, %s37
    %s38 = sphi 0, %s35
    %s39 = sphi 0, %s38
    %s55 = sphi 0, %s39
    %s59 = sphi 0, %s59
    %s61 = sphi 0, %s59
    %s62 = sphi 0, %s61
    %s76 = sphi 0, %s62
    %s84 = sphi 0, %s86
    %s87 = sphi 0, %s84
    %s88 = sphi 0, %s87
    %s104 = sphi 0, %s88
    %s114 = sphi 0, %s116
    %s117 = sphi 0, %s114
    %s118 = sphi 0, %s117
    %s134 = sphi 0, %s118
    %s144 = sphi 0, %s146
    %s147 = sphi 0, %s144
    %s148 = sphi 0, %s147
    %s164 = sphi 0, %s148
  $region4: #{wideresnet_forward.23} parent=0 // loop_header_branch
    %14 = sbr.rel (%p12) target = $region8
  $region5: #{wideresnet_forward.23} parent=0 // loop_body
    %s16 = ssub.s32 %s11, 1
    %s17 = ssub.s32 %s11, 2
    %s24 = sadd.s32 1, %s19
    %p25 = scmp.ge.s32.totalorder %s24, 2
    %s26 = scalar_select %p25, 0, %s24
    %s27 = sadd.s32 1, %s18
    %s28 = scalar_select %p25, %s27, %s18
    %p29 = scmp.ge.s32.totalorder %s28, 2
    %s30 = scalar_select %p29, 0, %s28
    %s31 = ssub.s32 %s18, %s30
    %s32 = ssub.s32 %s19, %s26
    %s33 = sor.u32 %s31, %s32
    %p34 = scmp.eq.s32.totalorder %s33, 0
    %s36 = sadd.s32 %s35, 1
    %s37 = scalar_select %p34, %s35, %s36
    %p40 = pneg %p34
    %p41 = scmp.eq.s32.totalorder %s11, 3
    %p42 = por %p40, %p41
    %p43 = scmp.ne.s32.totalorder %s35, %s38
    %p44 = scmp.eq.s32.totalorder %s11, 0
    %p45 = por %p43, %p44
    %p46 = scmp.ne.s32.totalorder %s35, %s38
    %p47 = scmp.eq.s32.totalorder %s16, 3
    %p48 = por %p46, %p47
    %p49 = scmp.ne.s32.totalorder %s38, %s39
    %p50 = scmp.eq.s32.totalorder %s16, 0
    %p51 = por %p49, %p50
    %p52 = scmp.ne.s32.totalorder %s38, %s39
    %p53 = scmp.eq.s32.totalorder %s17, 3
    %p54 = por %p52, %p53
    %p56 = scmp.ne.s32.totalorder %s39, %s55
    %p57 = scmp.eq.s32.totalorder %s17, 0
    %p58 = por %p56, %p57
    %s60 = sadd.s32 %s59, 1
    %p63 = scmp.eq.s32.totalorder %s11, 3
    %p64 = scmp.ne.s32.totalorder %s59, %s61
    %p65 = scmp.eq.s32.totalorder %s11, 0
    %p66 = por %p64, %p65
    %p67 = scmp.ne.s32.totalorder %s59, %s61
    %p68 = scmp.eq.s32.totalorder %s16, 3
    %p69 = por %p67, %p68
    %p70 = scmp.ne.s32.totalorder %s61, %s62
    %p71 = scmp.eq.s32.totalorder %s16, 0
    %p72 = por %p70, %p71
    %p73 = scmp.ne.s32.totalorder %s61, %s62
    %p74 = scmp.eq.s32.totalorder %s17, 3
    %p75 = por %p73, %p74
    %p77 = scmp.ne.s32.totalorder %s62, %s76
    %p78 = scmp.eq.s32.totalorder %s17, 0
    %p79 = por %p77, %p78
    %s80 = ssub.s32 %s18, %s30
    %s81 = ssub.s32 %s19, %s26
    %s82 = sor.u32 %s80, %s81
    %p83 = scmp.eq.s32.totalorder %s82, 0
    %s85 = sadd.s32 %s84, 1
    %s86 = scalar_select %p83, %s84, %s85
    %p89 = pneg %p83
    %p90 = scmp.eq.s32.totalorder %s11, 3
    %p91 = por %p89, %p90
    %p92 = scmp.ne.s32.totalorder %s84, %s87
    %p93 = scmp.eq.s32.totalorder %s11, 0
    %p94 = por %p92, %p93
    %p95 = scmp.ne.s32.totalorder %s84, %s87
    %p96 = scmp.eq.s32.totalorder %s16, 3
    %p97 = por %p95, %p96
    %p98 = scmp.ne.s32.totalorder %s87, %s88
    %p99 = scmp.eq.s32.totalorder %s16, 0
    %p100 = por %p98, %p99
    %p101 = scmp.ne.s32.totalorder %s87, %s88
    %p102 = scmp.eq.s32.totalorder %s17, 3
    %p103 = por %p101, %p102
    %p105 = scmp.ne.s32.totalorder %s88, %s104
    %p106 = scmp.eq.s32.totalorder %s17, 0
    %p107 = por %p105, %p106
    %s108 = smul.u32 %s18, 2
    %s109 = sadd.s32 %s108, %s19
    %s110 = smul.u32 %s30, 2
    %s111 = sadd.s32 %s110, %s26
    %s112 = ssub.s32 %s109, %s111
    %p113 = scmp.eq.s32.totalorder %s112, 0
    %s115 = sadd.s32 %s114, 1
    %s116 = scalar_select %p113, %s114, %s115
    %p119 = pneg %p113
    %p120 = scmp.eq.s32.totalorder %s11, 3
    %p121 = por %p119, %p120
    %p122 = scmp.ne.s32.totalorder %s114, %s117
    %p123 = scmp.eq.s32.totalorder %s11, 0
    %p124 = por %p122, %p123
    %p125 = scmp.ne.s32.totalorder %s114, %s117
    %p126 = scmp.eq.s32.totalorder %s16, 3
    %p127 = por %p125, %p126
    %p128 = scmp.ne.s32.totalorder %s117, %s118
    %p129 = scmp.eq.s32.totalorder %s16, 0
    %p130 = por %p128, %p129
    %p131 = scmp.ne.s32.totalorder %s117, %s118
    %p132 = scmp.eq.s32.totalorder %s17, 3
    %p133 = por %p131, %p132
    %p135 = scmp.ne.s32.totalorder %s118, %s134
    %p136 = scmp.eq.s32.totalorder %s17, 0
    %p137 = por %p135, %p136
    %s138 = smul.u32 %s18, 2
    %s139 = sadd.s32 %s138, %s19
    %s140 = smul.u32 %s30, 2
    %s141 = sadd.s32 %s140, %s26
    %s142 = ssub.s32 %s139, %s141
    %p143 = scmp.eq.s32.totalorder %s142, 0
    %s145 = sadd.s32 %s144, 1
    %s146 = scalar_select %p143, %s144, %s145
    %p149 = pneg %p143
    %p150 = scmp.eq.s32.totalorder %s11, 3
    %p151 = por %p149, %p150
    %p152 = scmp.ne.s32.totalorder %s144, %s147
    %p153 = scmp.eq.s32.totalorder %s11, 0
    %p154 = por %p152, %p153
    %p155 = scmp.ne.s32.totalorder %s144, %s147
    %p156 = scmp.eq.s32.totalorder %s16, 3
    %p157 = por %p155, %p156
    %p158 = scmp.ne.s32.totalorder %s147, %s148
    %p159 = scmp.eq.s32.totalorder %s16, 0
    %p160 = por %p158, %p159
    %p161 = scmp.ne.s32.totalorder %s147, %s148
    %p162 = scmp.eq.s32.totalorder %s17, 3
    %p163 = por %p161, %p162
    %p165 = scmp.ne.s32.totalorder %s148, %s164
    %p166 = scmp.eq.s32.totalorder %s17, 0
    %p167 = por %p165, %p166
    %p168 = scmp.le.s32.totalorder 1, %s11
    %p169 = scmp.lt.s32.totalorder %s11, 5
    %p170 = pnand %p168, %p169
    %p171 = pneg %p170
    // Predicated region
    $region9: #{wideresnet_forward.23} parent=5 // pred_check
      _
    $region10: #{wideresnet_forward.23} parent=5 // pred_check_branch
      %173 = sbr.rel (%p170) target = $region12
    $region11: #{wideresnet_forward.23} parent=5 // pred_region
      %s174 = ssub.s32 %s11, 1
      // Predicated region
      $region13: #{wideresnet_forward.23} parent=11 // pred_check
        %p175 = pneg %p72
      $region14: #{wideresnet_forward.23} parent=11 // pred_check_branch
        %177 = sbr.rel (%p175) target = $region16
      $region15: #{wideresnet_forward.23} parent=11 // pred_region
        _
      $region16: #{wideresnet_forward.23} parent=11 // pred_fallthru
        _
    $region12: #{wideresnet_forward.23} parent=5 // pred_fallthru
      _
    %p178 = scmp.lt.s32.totalorder %s11, 4
    // Predicated region
    $region17: #{wideresnet_forward.23} parent=5 // pred_check
      %p179 = pneg %p178
    $region18: #{wideresnet_forward.23} parent=5 // pred_check_branch
      %181 = sbr.rel (%p179) target = $region20
    $region19: #{wideresnet_forward.23} parent=5 // pred_region
      // Predicated region
      $region21: #{wideresnet_forward.23} parent=19 // pred_check
        %p182 = pneg %p45
      $region22: #{wideresnet_forward.23} parent=19 // pred_check_branch
        %184 = sbr.rel (%p182) target = $region24
      $region23: #{wideresnet_forward.23} parent=19 // pred_region
        %s185 = smul.u32 16, %s19
        %p186 = scmp.lt.s32.totalorder %s18, 1
        %s187 = scalar_select %p186, %s18, 1
        %p188 = scmp.lt.s32.totalorder %s185, 31
        %s189 = scalar_select %p188, %s185, 31
        %s190 = smul.addr %s189, 2
        %s191 = smul.addr %s187, 64
        %s192 = sadd.s32 %s190, %s191
        %s193 = smul.addr %s192, 4
        %s194 = scalar_lea.vmem %s0, %s193
        %s195 = smul.u32 16, %s19
      $region24: #{wideresnet_forward.23} parent=19 // pred_fallthru
        _
    $region20: #{wideresnet_forward.23} parent=5 // pred_fallthru
      _
    %p196 = scmp.le.s32.totalorder 1, %s11
    %p197 = scmp.lt.s32.totalorder %s11, 5
    %p198 = pnand %p196, %p197
    %p199 = pneg %p198
    // Predicated region
    $region25: #{wideresnet_forward.23} parent=5 // pred_check
      _
    $region26: #{wideresnet_forward.23} parent=5 // pred_check_branch
      %201 = sbr.rel (%p198) target = $region28
    $region27: #{wideresnet_forward.23} parent=5 // pred_region
      %s202 = ssub.s32 %s11, 1
      %s203 = smul.u32 16, %s21
      %p204 = scmp.lt.s32.totalorder %s20, 1
      %s205 = scalar_select %p204, %s20, 1
      %p206 = scmp.lt.s32.totalorder %s203, 31
      %s207 = scalar_select %p206, %s203, 31
      %s208 = smul.addr %s207, 2
      %s209 = smul.addr %s205, 64
      %s210 = sadd.s32 %s208, %s209
      %s211 = smul.addr %s210, 4
      %s212 = scalar_lea.vmem %s0, %s211
      %p213 = pneg %p51
      %p214 = pneg %p48
      %p215 = pneg %p72
      %p216 = pneg %p69
      %p217 = pneg %p100
      %p218 = pneg %p97
      %s219 = smul.u32 16, %s21
      %p220 = scmp.lt.s32.totalorder %s20, 1
      %s221 = scalar_select %p220, %s20, 1
      %p222 = scmp.lt.s32.totalorder %s219, 31
      %s223 = scalar_select %p222, %s219, 31
      %s224 = smul.addr %s221, 32
      %s225 = sadd.s32 %s223, %s224
      %s226 = smul.addr %s225, 4
      %s227 = scalar_lea.vmem %s2, %s226
      %p228 = pneg %p130
      %p229 = pneg %p127
      %s230 = smul.u32 %s20, 2
      %s231 = sadd.s32 %s230, %s21
      %p232 = scmp.lt.s32.totalorder %s231, 3
      %s233 = scalar_select %p232, %s231, 3
      %s234 = scalar_lea.vmem %s3, %s233
      %p235 = pneg %p160
      %p236 = pneg %p157
      %s237 = smul.u32 %s20, 2
      %s238 = sadd.s32 %s237, %s21
      %p239 = scmp.lt.s32.totalorder %s238, 3
      %s240 = scalar_select %p239, %s238, 3
      %s241 = scalar_lea.vmem %s4, %s240
      %s242 = smul.u32 16, %s21
      %p243 = scmp.lt.s32.totalorder %s20, 1
      %s244 = scalar_select %p243, %s20, 1
      %p245 = scmp.lt.s32.totalorder %s242, 31
      %s246 = scalar_select %p245, %s242, 31
      %s247 = smul.addr %s246, 2
      %s248 = smul.addr %s244, 64
      %s249 = sadd.s32 %s247, %s248
      %s250 = smul.addr %s249, 4
      %s251 = scalar_lea.vmem %s0, %s250
      %s252 = smul.u32 16, %s21
      %s253 = smul.u32 16, %s21
      %p254 = scmp.lt.s32.totalorder %s20, 1
      %s255 = scalar_select %p254, %s20, 1
      %p256 = scmp.lt.s32.totalorder %s253, 31
      %s257 = scalar_select %p256, %s253, 31
      %s258 = smul.addr %s255, 32
      %s259 = sadd.s32 %s257, %s258
      %s260 = smul.addr %s259, 4
      %s261 = scalar_lea.vmem %s2, %s260
      %s262 = smul.u32 16, %s21
      %s263 = smul.u32 %s20, 2
      %s264 = sadd.s32 %s263, %s21
      %p265 = scmp.lt.s32.totalorder %s264, 3
      %s266 = scalar_select %p265, %s264, 3
      %s267 = scalar_lea.vmem %s3, %s266
      %s268 = smul.u32 %s20, 2
      %s269 = sadd.s32 %s268, %s21
      %s270 = smul.u32 %s20, 2
      %s271 = sadd.s32 %s270, %s21
      %p272 = scmp.lt.s32.totalorder %s271, 3
      %s273 = scalar_select %p272, %s271, 3
      %s274 = scalar_lea.vmem %s4, %s273
      %s275 = smul.u32 %s20, 2
      %s276 = sadd.s32 %s275, %s21
      %v278 = vld [vmem:[%s251] sm:$0xff]
      %v279 = vld [vmem:[%s251 + $0x8] sm:$0xff]
      %v280 = vld [vmem:[%s251 + $0x10] sm:$0xff]
      %v281 = vld [vmem:[%s251 + $0x18] sm:$0xff]
      %v282 = vld [vmem:[%s251 + $0x20] sm:$0xff]
      %v283 = vld [vmem:[%s251 + $0x28] sm:$0xff]
      %v284 = vld [vmem:[%s251 + $0x30] sm:$0xff]
      %v285 = vld [vmem:[%s251 + $0x38] sm:$0xff]
      %v286 = vld [vmem:[%s251 + $0x40] sm:$0xff]
      %v287 = vld [vmem:[%s251 + $0x48] sm:$0xff]
      %v288 = vld [vmem:[%s251 + $0x50] sm:$0xff]
      %v289 = vld [vmem:[%s251 + $0x58] sm:$0xff]
      %v290 = vld [vmem:[%s251 + $0x60] sm:$0xff]
      %v291 = vld [vmem:[%s251 + $0x68] sm:$0xff]
      %v292 = vld [vmem:[%s251 + $0x70] sm:$0xff]
      %v293 = vld [vmem:[%s251 + $0x78] sm:$0xff]
      %v294 = vld [vmem:[%s1] sm:$0xf]
      %v295 = vld [vmem:[%s1 + $0x4] sm:$0xf]
      %v296 = vld [vmem:[%s1 + $0x8] sm:$0xf]
      %v297 = vld [vmem:[%s1 + $0xc] sm:$0xf]
      %v298 = vld [vmem:[%s1 + $0x10] sm:$0xf]
      %v299 = vld [vmem:[%s1 + $0x14] sm:$0xf]
      %v300 = vld [vmem:[%s1 + $0x18] sm:$0xf]
      %v301 = vld [vmem:[%s1 + $0x1c] sm:$0xf]
      %v302 = vld [vmem:[%s1 + $0x20] sm:$0xf]
      %v303 = vld [vmem:[%s1 + $0x24] sm:$0xf]
      %v304 = vld [vmem:[%s1 + $0x28] sm:$0xf]
      %v305 = vld [vmem:[%s1 + $0x2c] sm:$0xf]
      %v306 = vld [vmem:[%s1 + $0x30] sm:$0xf]
      %v307 = vld [vmem:[%s1 + $0x34] sm:$0xf]
      %v308 = vld [vmem:[%s1 + $0x38] sm:$0xf]
      %v309 = vld [vmem:[%s1 + $0x3c] sm:$0xf]
      %v310 = vld [vmem:[%s1 + $0x40] sm:$0xf]
      %v311 = vld [vmem:[%s1 + $0x44] sm:$0xf]
      %v312 = vld [vmem:[%s1 + $0x48] sm:$0xf]
      %v313 = vld [vmem:[%s1 + $0x4c] sm:$0xf]
      %v314 = vld [vmem:[%s1 + $0x50] sm:$0xf]
      %v315 = vld [vmem:[%s1 + $0x54] sm:$0xf]
      %v316 = vld [vmem:[%s1 + $0x58] sm:$0xf]
      %v317 = vld [vmem:[%s1 + $0x5c] sm:$0xf]
      %v318 = vld [vmem:[%s1 + $0x60] sm:$0xf]
      %v319 = vld [vmem:[%s1 + $0x64] sm:$0xf]
      %v320 = vld [vmem:[%s1 + $0x68] sm:$0xf]
      %v321 = vld [vmem:[%s1 + $0x6c] sm:$0xf]
      %v322 = vld [vmem:[%s1 + $0x70] sm:$0xf]
      %v323 = vld [vmem:[%s1 + $0x74] sm:$0xf]
      %v324 = vld [vmem:[%s1 + $0x78] sm:$0xf]
      %v325 = vld [vmem:[%s1 + $0x7c] sm:$0xf]
      %v342 = vunpack.c.l.b16 %v278
      %v343 = vunpack.c.h.b16 %v278
      %v344 = vunpack.c.l.b16 %v279
      %v345 = vunpack.c.h.b16 %v279
      %v346 = vunpack.c.l.b16 %v280
      %v347 = vunpack.c.h.b16 %v280
      %v348 = vunpack.c.l.b16 %v281
      %v349 = vunpack.c.h.b16 %v281
      %v350 = vunpack.c.l.b16 %v282
      %v351 = vunpack.c.h.b16 %v282
      %v352 = vunpack.c.l.b16 %v283
      %v353 = vunpack.c.h.b16 %v283
      %v354 = vunpack.c.l.b16 %v284
      %v355 = vunpack.c.h.b16 %v284
      %v356 = vunpack.c.l.b16 %v285
      %v357 = vunpack.c.h.b16 %v285
      %v358 = vunpack.c.l.b16 %v286
      %v359 = vunpack.c.h.b16 %v286
      %v360 = vunpack.c.l.b16 %v287
      %v361 = vunpack.c.h.b16 %v287
      %v362 = vunpack.c.l.b16 %v288
      %v363 = vunpack.c.h.b16 %v288
      %v364 = vunpack.c.l.b16 %v289
      %v365 = vunpack.c.h.b16 %v289
      %v366 = vunpack.c.l.b16 %v290
      %v367 = vunpack.c.h.b16 %v290
      %v368 = vunpack.c.l.b16 %v291
      %v369 = vunpack.c.h.b16 %v291
      %v370 = vunpack.c.l.b16 %v292
      %v371 = vunpack.c.h.b16 %v292
      %v372 = vunpack.c.l.b16 %v293
      %v373 = vunpack.c.h.b16 %v293
      %v374 = vpack.c.b16 %v344, %v342
      %v375 = vpack.c.b16 %v345, %v343
      %v376 = vpack.c.b16 %v348, %v346
      %v377 = vpack.c.b16 %v349, %v347
      %v378 = vpack.c.b16 %v352, %v350
      %v379 = vpack.c.b16 %v353, %v351
      %v380 = vpack.c.b16 %v356, %v354
      %v381 = vpack.c.b16 %v357, %v355
      %v382 = vpack.c.b16 %v360, %v358
      %v383 = vpack.c.b16 %v361, %v359
      %v384 = vpack.c.b16 %v364, %v362
      %v385 = vpack.c.b16 %v365, %v363
      %v386 = vpack.c.b16 %v368, %v366
      %v387 = vpack.c.b16 %v369, %v367
      %v388 = vpack.c.b16 %v372, %v370
      %v389 = vpack.c.b16 %v373, %v371
      %v438 = vunpack.c.l.b16 %v294
      %v439 = vunpack.c.l.b16 %v295
      %v440 = vunpack.c.l.b16 %v296
      %v441 = vunpack.c.l.b16 %v297
      %v442 = vunpack.c.l.b16 %v298
      %v443 = vunpack.c.l.b16 %v299
      %v444 = vunpack.c.l.b16 %v300
      %v445 = vunpack.c.l.b16 %v301
      %v446 = vunpack.c.l.b16 %v302
      %v447 = vunpack.c.l.b16 %v303
      %v448 = vunpack.c.l.b16 %v304
      %v449 = vunpack.c.l.b16 %v305
      %v450 = vunpack.c.l.b16 %v306
      %v451 = vunpack.c.l.b16 %v307
      %v452 = vunpack.c.l.b16 %v308
      %v453 = vunpack.c.l.b16 %v309
      %v454 = vunpack.c.l.b16 %v310
      %v455 = vunpack.c.l.b16 %v311
      %v456 = vunpack.c.l.b16 %v312
      %v457 = vunpack.c.l.b16 %v313
      %v458 = vunpack.c.l.b16 %v314
      %v459 = vunpack.c.l.b16 %v315
      %v460 = vunpack.c.l.b16 %v316
      %v461 = vunpack.c.l.b16 %v317
      %v462 = vunpack.c.l.b16 %v318
      %v463 = vunpack.c.l.b16 %v319
      %v464 = vunpack.c.l.b16 %v320
      %v465 = vunpack.c.l.b16 %v321
      %v466 = vunpack.c.l.b16 %v322
      %v467 = vunpack.c.l.b16 %v323
      %v468 = vunpack.c.l.b16 %v324
      %v469 = vunpack.c.l.b16 %v325
      %v470 = vpack.c.b16 %v439, %v438
      %v471 = vpack.c.b16 %v441, %v440
      %v472 = vpack.c.b16 %v443, %v442
      %v473 = vpack.c.b16 %v445, %v444
      %v474 = vpack.c.b16 %v447, %v446
      %v475 = vpack.c.b16 %v449, %v448
      %v476 = vpack.c.b16 %v451, %v450
      %v477 = vpack.c.b16 %v453, %v452
      %v478 = vpack.c.b16 %v455, %v454
      %v479 = vpack.c.b16 %v457, %v456
      %v480 = vpack.c.b16 %v459, %v458
      %v481 = vpack.c.b16 %v461, %v460
      %v482 = vpack.c.b16 %v463, %v462
      %v483 = vpack.c.b16 %v465, %v464
      %v484 = vpack.c.b16 %v467, %v466
      %v485 = vpack.c.b16 %v469, %v468
      %502 = vmatprep.subr.bf16.mxu0 0
      %503 = vmatpush1.bf16.msra.mxu0 %v477
      %504 = vmatprep.subr.bf16.mxu0 0
      %505 = vmatpush1.bf16.msra.mxu0 %v476
      %506 = vmatprep.subr.bf16.mxu0 0
      %507 = vmatpush1.bf16.msra.mxu0 %v475
      %508 = vmatprep.subr.bf16.mxu0 0
      %509 = vmatpush1.bf16.msra.mxu0 %v474
      %510 = vmatprep.subr.bf16.mxu0 0
      %511 = vmatpush1.bf16.msra.mxu0 %v473
      %512 = vmatprep.subr.bf16.mxu0 0
      %513 = vmatpush1.bf16.msra.mxu0 %v472
      %514 = vmatprep.subr.bf16.mxu0 0
      %515 = vmatpush1.bf16.msra.mxu0 %v471
      %516 = vmatprep.subr.bf16.mxu0 0
      %517 = vmatpush1.bf16.msra.mxu0 %v470
      %518 = vmatprep.subr.bf16.mxu0 0
      %519 = vmatpush2.bf16.msra.mxu0 %v485
      %520 = vmatprep.subr.bf16.mxu0 0
      %521 = vmatpush2.bf16.msra.mxu0 %v484
      %522 = vmatprep.subr.bf16.mxu0 0
      %523 = vmatpush2.bf16.msra.mxu0 %v483
      %524 = vmatprep.subr.bf16.mxu0 0
      %525 = vmatpush2.bf16.msra.mxu0 %v482
      %526 = vmatprep.subr.bf16.mxu0 0
      %527 = vmatpush2.bf16.msra.mxu0 %v481
      %528 = vmatprep.subr.bf16.mxu0 0
      %529 = vmatpush2.bf16.msra.mxu0 %v480
      %530 = vmatprep.subr.bf16.mxu0 0
      %531 = vmatpush2.bf16.msra.mxu0 %v479
      %532 = vmatprep.subr.bf16.mxu0 0
      %533 = vmatpush2.bf16.msra.mxu0 %v478
      %534 = vmatprep.mubr.bf16.mxu0 %v375
      %535 = vmatmul.mubr.bf16.gmra.mxu0 %v374
      %v536 = vpop.f32.mrf.mxu0
      %v537 = vadd.f32 0.0, %v536
      %v538 = vpop.f32.mrf.mxu0
      %v539 = vpop.f32.mrf.mxu0
      %v540 = vadd.f32 0.0, %v539
      %v541 = vpop.f32.mrf.mxu0
      %542 = vmatprep.mubr.bf16.mxu0 %v377
      %543 = vmatmul.mubr.bf16.gmra.mxu0 %v376
      %v544 = vpop.f32.mrf.mxu0
      %v545 = vadd.f32 0.0, %v544
      %v546 = vpop.f32.mrf.mxu0
      %v547 = vpop.f32.mrf.mxu0
      %v548 = vadd.f32 0.0, %v547
      %v549 = vpop.f32.mrf.mxu0
      %550 = vmatprep.mubr.bf16.mxu0 %v379
      %551 = vmatmul.mubr.bf16.gmra.mxu0 %v378
      %v552 = vpop.f32.mrf.mxu0
      %v553 = vadd.f32 0.0, %v552
      %v554 = vpop.f32.mrf.mxu0
      %v555 = vpop.f32.mrf.mxu0
      %v556 = vadd.f32 0.0, %v555
      %v557 = vpop.f32.mrf.mxu0
      %558 = vmatprep.mubr.bf16.mxu0 %v381
      %559 = vmatmul.mubr.bf16.gmra.mxu0 %v380
      %v560 = vpop.f32.mrf.mxu0
      %v561 = vadd.f32 0.0, %v560
      %v562 = vpop.f32.mrf.mxu0
      %v563 = vpop.f32.mrf.mxu0
      %v564 = vadd.f32 0.0, %v563
      %v565 = vpop.f32.mrf.mxu0
      %566 = vmatprep.mubr.bf16.mxu0 %v383
      %567 = vmatmul.mubr.bf16.gmra.mxu0 %v382
      %v568 = vpop.f32.mrf.mxu0
      %v569 = vadd.f32 0.0, %v568
      %v570 = vpop.f32.mrf.mxu0
      %v571 = vpop.f32.mrf.mxu0
      %v572 = vadd.f32 0.0, %v571
      %v573 = vpop.f32.mrf.mxu0
      %574 = vmatprep.mubr.bf16.mxu0 %v385
      %575 = vmatmul.mubr.bf16.gmra.mxu0 %v384
      %v576 = vpop.f32.mrf.mxu0
      %v577 = vadd.f32 0.0, %v576
      %v578 = vpop.f32.mrf.mxu0
      %v579 = vpop.f32.mrf.mxu0
      %v580 = vadd.f32 0.0, %v579
      %v581 = vpop.f32.mrf.mxu0
      %582 = vmatprep.mubr.bf16.mxu0 %v387
      %583 = vmatmul.mubr.bf16.gmra.mxu0 %v386
      %v584 = vpop.f32.mrf.mxu0
      %v585 = vadd.f32 0.0, %v584
      %v586 = vpop.f32.mrf.mxu0
      %v587 = vpop.f32.mrf.mxu0
      %v588 = vadd.f32 0.0, %v587
      %v589 = vpop.f32.mrf.mxu0
      %590 = vmatprep.mubr.bf16.mxu0 %v389
      %591 = vmatmul.mubr.bf16.gmra.mxu0 %v388
      %v592 = vpop.f32.mrf.mxu0
      %v593 = vadd.f32 0.0, %v592
      %v594 = vpop.f32.mrf.mxu0
      %v595 = vpop.f32.mrf.mxu0
      %v596 = vadd.f32 0.0, %v595
      %v597 = vpop.f32.mrf.mxu0
      %598 = vdwg.mxu0
      %v599 = vpack.c.bf16 %v540, %v537
      %v600 = vpack.c.bf16 %v548, %v545
      %v601 = vpack.c.bf16 %v556, %v553
      %v602 = vpack.c.bf16 %v564, %v561
      %v603 = vpack.c.bf16 %v572, %v569
      %v604 = vpack.c.bf16 %v580, %v577
      %v605 = vpack.c.bf16 %v588, %v585
      %v606 = vpack.c.bf16 %v596, %v593
      %v615 = vunpack.c.l.b16 %v599
      %v616 = vunpack.c.h.b16 %v599
      %v617 = vunpack.c.l.b16 %v600
      %v618 = vunpack.c.h.b16 %v600
      %v619 = vunpack.c.l.b16 %v601
      %v620 = vunpack.c.h.b16 %v601
      %v621 = vunpack.c.l.b16 %v602
      %v622 = vunpack.c.h.b16 %v602
      %v623 = vunpack.c.l.b16 %v603
      %v624 = vunpack.c.h.b16 %v603
      %v625 = vunpack.c.l.b16 %v604
      %v626 = vunpack.c.h.b16 %v604
      %v627 = vunpack.c.l.b16 %v605
      %v628 = vunpack.c.h.b16 %v605
      %v629 = vunpack.c.l.b16 %v606
      %v630 = vunpack.c.h.b16 %v606
      %v631 = vpack.c.b16 %v615, %v615
      %v632 = vpack.c.b16 %v616, %v616
      %v633 = vpack.c.b16 %v617, %v617
      %v634 = vpack.c.b16 %v618, %v618
      %v635 = vpack.c.b16 %v619, %v619
      %v636 = vpack.c.b16 %v620, %v620
      %v637 = vpack.c.b16 %v621, %v621
      %v638 = vpack.c.b16 %v622, %v622
      %v639 = vpack.c.b16 %v623, %v623
      %v640 = vpack.c.b16 %v624, %v624
      %v641 = vpack.c.b16 %v625, %v625
      %v642 = vpack.c.b16 %v626, %v626
      %v643 = vpack.c.b16 %v627, %v627
      %v644 = vpack.c.b16 %v628, %v628
      %v645 = vpack.c.b16 %v629, %v629
      %v646 = vpack.c.b16 %v630, %v630
      %663 = vst [vmem:[%s261] sm:$0xf] %v631
      %664 = vst [vmem:[%s261 + $0x4] sm:$0xf] %v632
      %665 = vst [vmem:[%s261 + $0x8] sm:$0xf] %v633
      %666 = vst [vmem:[%s261 + $0xc] sm:$0xf] %v634
      %667 = vst [vmem:[%s261 + $0x10] sm:$0xf] %v635
      %668 = vst [vmem:[%s261 + $0x14] sm:$0xf] %v636
      %669 = vst [vmem:[%s261 + $0x18] sm:$0xf] %v637
      %670 = vst [vmem:[%s261 + $0x1c] sm:$0xf] %v638
      %671 = vst [vmem:[%s261 + $0x20] sm:$0xf] %v639
      %672 = vst [vmem:[%s261 + $0x24] sm:$0xf] %v640
      %673 = vst [vmem:[%s261 + $0x28] sm:$0xf] %v641
      %674 = vst [vmem:[%s261 + $0x2c] sm:$0xf] %v642
      %675 = vst [vmem:[%s261 + $0x30] sm:$0xf] %v643
      %676 = vst [vmem:[%s261 + $0x34] sm:$0xf] %v644
      %677 = vst [vmem:[%s261 + $0x38] sm:$0xf] %v645
      %678 = vst [vmem:[%s261 + $0x3c] sm:$0xf] %v646
      %v679 = vadd.f32 %v537, %v540
      %v680 = vadd.f32 %v679, %v545
      %v681 = vadd.f32 %v680, %v548
      %v682 = vadd.f32 %v681, %v553
      %v683 = vadd.f32 %v682, %v556
      %v684 = vadd.f32 %v683, %v561
      %v685 = vadd.f32 %v684, %v564
      %v686 = vadd.f32 %v685, %v569
      %v687 = vadd.f32 %v686, %v572
      %v688 = vadd.f32 %v687, %v577
      %v689 = vadd.f32 %v688, %v580
      %v690 = vadd.f32 %v689, %v585
      %v691 = vadd.f32 %v690, %v588
      %v692 = vadd.f32 %v691, %v593
      %v693 = vadd.f32 %v692, %v596
      %v694 = vrot.slane %v693, 4
      %v695 = vadd.f32 %v693, %v694
      %v696 = vrot.slane %v695, 2
      %v697 = vadd.f32 %v695, %v696
      %v698 = vrot.slane %v697, 1
      %v699 = vadd.f32 %v697, %v698
      %700 = vst [vmem:[%s267] sm:$0x1] %v699
      %v701 = vmul.f32 %v537, %v537
      %v702 = vmul.f32 %v540, %v540
      %v703 = vmul.f32 %v545, %v545
      %v704 = vmul.f32 %v548, %v548
      %v705 = vmul.f32 %v553, %v553
      %v706 = vmul.f32 %v556, %v556
      %v707 = vmul.f32 %v561, %v561
      %v708 = vmul.f32 %v564, %v564
      %v709 = vmul.f32 %v569, %v569
      %v710 = vmul.f32 %v572, %v572
      %v711 = vmul.f32 %v577, %v577
      %v712 = vmul.f32 %v580, %v580
      %v713 = vmul.f32 %v585, %v585
      %v714 = vmul.f32 %v588, %v588
      %v715 = vmul.f32 %v593, %v593
      %v716 = vmul.f32 %v596, %v596
      %v717 = vadd.f32 %v701, %v702
      %v718 = vadd.f32 %v717, %v703
      %v719 = vadd.f32 %v718, %v704
      %v720 = vadd.f32 %v719, %v705
      %v721 = vadd.f32 %v720, %v706
      %v722 = vadd.f32 %v721, %v707
      %v723 = vadd.f32 %v722, %v708
      %v724 = vadd.f32 %v723, %v709
      %v725 = vadd.f32 %v724, %v710
      %v726 = vadd.f32 %v725, %v711
      %v727 = vadd.f32 %v726, %v712
      %v728 = vadd.f32 %v727, %v713
      %v729 = vadd.f32 %v728, %v714
      %v730 = vadd.f32 %v729, %v715
      %v731 = vadd.f32 %v730, %v716
      %v732 = vrot.slane %v731, 4
      %v733 = vadd.f32 %v731, %v732
      %v734 = vrot.slane %v733, 2
      %v735 = vadd.f32 %v733, %v734
      %v736 = vrot.slane %v735, 1
      %v737 = vadd.f32 %v735, %v736
      %738 = vst [vmem:[%s274] sm:$0x1] %v737
      %s739 = smul.u32 16, %s21
      %p740 = scmp.lt.s32.totalorder %s20, 1
      %s741 = scalar_select %p740, %s20, 1
      %p742 = scmp.lt.s32.totalorder %s739, 31
      %s743 = scalar_select %p742, %s739, 31
      %s744 = smul.addr %s741, 32
      %s745 = sadd.s32 %s743, %s744
      %s746 = smul.addr %s745, 4
      %s747 = scalar_lea.vmem %s2, %s746
      %s748 = smul.u32 %s20, 2
      %s749 = sadd.s32 %s748, %s21
      %p750 = scmp.lt.s32.totalorder %s749, 3
      %s751 = scalar_select %p750, %s749, 3
      %s752 = scalar_lea.vmem %s3, %s751
      %s753 = smul.u32 %s20, 2
      %s754 = sadd.s32 %s753, %s21
      %p755 = scmp.lt.s32.totalorder %s754, 3
      %s756 = scalar_select %p755, %s754, 3
      %s757 = scalar_lea.vmem %s4, %s756
      // Predicated region
      $region29: #{wideresnet_forward.23} parent=27 // pred_check
        %p758 = pneg %p97
      $region30: #{wideresnet_forward.23} parent=27 // pred_check_branch
        %760 = sbr.rel (%p758) target = $region32
      $region31: #{wideresnet_forward.23} parent=27 // pred_region
        %s761 = smul.u32 16, %s21
      $region32: #{wideresnet_forward.23} parent=27 // pred_fallthru
        _
      // Predicated region
      $region33: #{wideresnet_forward.23} parent=27 // pred_check
        %p762 = pneg %p127
      $region34: #{wideresnet_forward.23} parent=27 // pred_check_branch
        %764 = sbr.rel (%p762) target = $region36
      $region35: #{wideresnet_forward.23} parent=27 // pred_region
        %s765 = smul.u32 %s20, 2
        %s766 = sadd.s32 %s765, %s21
      $region36: #{wideresnet_forward.23} parent=27 // pred_fallthru
        _
      // Predicated region
      $region37: #{wideresnet_forward.23} parent=27 // pred_check
        %p767 = pneg %p157
      $region38: #{wideresnet_forward.23} parent=27 // pred_check_branch
        %769 = sbr.rel (%p767) target = $region40
      $region39: #{wideresnet_forward.23} parent=27 // pred_region
        %s770 = smul.u32 %s20, 2
        %s771 = sadd.s32 %s770, %s21
      $region40: #{wideresnet_forward.23} parent=27 // pred_fallthru
        _
    $region28: #{wideresnet_forward.23} parent=5 // pred_fallthru
      _
    %p772 = scmp.le.s32.totalorder 2, %s11
    // Predicated region
    $region41: #{wideresnet_forward.23} parent=5 // pred_check
      %p773 = pneg %p772
    $region42: #{wideresnet_forward.23} parent=5 // pred_check_branch
      %775 = sbr.rel (%p773) target = $region44
    $region43: #{wideresnet_forward.23} parent=5 // pred_region
      %s776 = ssub.s32 %s11, 2
      // Predicated region
      $region45: #{wideresnet_forward.23} parent=43 // pred_check
        %p777 = pneg %p103
      $region46: #{wideresnet_forward.23} parent=43 // pred_check_branch
        %779 = sbr.rel (%p777) target = $region48
      $region47: #{wideresnet_forward.23} parent=43 // pred_region
        %s780 = smul.u32 16, %s23
        %p781 = scmp.lt.s32.totalorder %s22, 1
        %s782 = scalar_select %p781, %s22, 1
        %p783 = scmp.lt.s32.totalorder %s780, 31
        %s784 = scalar_select %p783, %s780, 31
        %s785 = smul.addr %s782, 32
        %s786 = sadd.s32 %s784, %s785
        %s787 = smul.addr %s786, 4
        %s788 = scalar_lea.vmem %s2, %s787
      $region48: #{wideresnet_forward.23} parent=43 // pred_fallthru
        _
      // Predicated region
      $region49: #{wideresnet_forward.23} parent=43 // pred_check
        %p789 = pneg %p133
      $region50: #{wideresnet_forward.23} parent=43 // pred_check_branch
        %791 = sbr.rel (%p789) target = $region52
      $region51: #{wideresnet_forward.23} parent=43 // pred_region
        %s792 = smul.u32 %s22, 2
        %s793 = sadd.s32 %s792, %s23
        %p794 = scmp.lt.s32.totalorder %s793, 3
        %s795 = scalar_select %p794, %s793, 3
        %s796 = scalar_lea.vmem %s3, %s795
      $region52: #{wideresnet_forward.23} parent=43 // pred_fallthru
        _
      // Predicated region
      $region53: #{wideresnet_forward.23} parent=43 // pred_check
        %p797 = pneg %p163
      $region54: #{wideresnet_forward.23} parent=43 // pred_check_branch
        %799 = sbr.rel (%p797) target = $region56
      $region55: #{wideresnet_forward.23} parent=43 // pred_region
        %s800 = smul.u32 %s22, 2
        %s801 = sadd.s32 %s800, %s23
        %p802 = scmp.lt.s32.totalorder %s801, 3
        %s803 = scalar_select %p802, %s801, 3
        %s804 = scalar_lea.vmem %s4, %s803
      $region56: #{wideresnet_forward.23} parent=43 // pred_fallthru
        _
    $region44: #{wideresnet_forward.23} parent=5 // pred_fallthru
      _
  $region6: #{wideresnet_forward.23} parent=0 // loop_footer
    %s15 = sadd.s32 1, %s11
  $region7: #{wideresnet_forward.23} parent=0 // loop_footer_branch
    %10 = sbr.rel target = $region3
  $region8: #{wideresnet_forward.23} parent=0 // loop_exit
    _

// kernel: wideresnet_forward.25
$region0: #{wideresnet_forward.25}
  #allocation0 [shape = 'u32[]', space=smem, size = 0x4, offset = 0x4, fixed_abs, tag = 'smem constant byte address 0x4 - core index']
  #allocation1 [shape = 'u32[144,128]{1,0:T(1,128)}', space=vmem, size = 0x12000, scoped, tag = 'internal scratch']
  %s0 = inlined_call_operand.vmem [shape: bf16[512,128], index: 0, kind: input, shape index: {}]
  %s1 = inlined_call_operand.vmem [shape: bf16[512,128], index: 1, kind: input, shape index: {}]
  %s2 = inlined_call_operand.vmem [shape: f32[4,128], index: 2, kind: input, shape index: {}]
  %s3 = inlined_call_operand.vmem [shape: bf16[512,128], index: 3, kind: output, shape index: {}]
  %s4 = sld [smem:[#allocation0]]
  $region22: #{wideresnet_forward.25} parent=0
    _
  %s6 = ssub.s32 1, %s4
  %s7 = scalar_select 0, %s6, %s4
  // Predicated region
  $region2: #{wideresnet_forward.25} parent=0 // pred_check
    _
  $region3: #{wideresnet_forward.25} parent=0 // pred_check_branch
    %9 = sbr.rel (0) target = $region5
  $region4: #{wideresnet_forward.25} parent=0 // pred_region
    _
  $region5: #{wideresnet_forward.25} parent=0 // pred_fallthru
    _
  // Predicated region
  $region6: #{wideresnet_forward.25} parent=0 // pred_check
    _
  $region7: #{wideresnet_forward.25} parent=0 // pred_check_branch
    %11 = sbr.rel (0) target = $region9
  $region8: #{wideresnet_forward.25} parent=0 // pred_region
    _
  $region9: #{wideresnet_forward.25} parent=0 // pred_fallthru
    _
  // Predicated region
  $region10: #{wideresnet_forward.25} parent=0 // pred_check
    _
  $region11: #{wideresnet_forward.25} parent=0 // pred_check_branch
    %13 = sbr.rel (0) target = $region13
  $region12: #{wideresnet_forward.25} parent=0 // pred_region
    _
  $region13: #{wideresnet_forward.25} parent=0 // pred_fallthru
    _
  %v14 = vld [vmem:[%s0] sm:$0xf]
  %v15 = vld [vmem:[%s0 + $0x4] sm:$0xf]
  %v16 = vld [vmem:[%s0 + $0x8] sm:$0xf]
  %v17 = vld [vmem:[%s0 + $0xc] sm:$0xf]
  %v18 = vld [vmem:[%s0 + $0x10] sm:$0xf]
  %v19 = vld [vmem:[%s0 + $0x14] sm:$0xf]
  %v20 = vld [vmem:[%s0 + $0x18] sm:$0xf]
  %v21 = vld [vmem:[%s0 + $0x1c] sm:$0xf]
  %v22 = vld [vmem:[%s0 + $0x20] sm:$0xf]
  %v23 = vld [vmem:[%s0 + $0x24] sm:$0xf]
  %v24 = vld [vmem:[%s0 + $0x28] sm:$0xf]
  %v25 = vld [vmem:[%s0 + $0x2c] sm:$0xf]
  %v26 = vld [vmem:[%s0 + $0x30] sm:$0xf]
  %v27 = vld [vmem:[%s0 + $0x34] sm:$0xf]
  %v28 = vld [vmem:[%s0 + $0x38] sm:$0xf]
  %v29 = vld [vmem:[%s0 + $0x3c] sm:$0xf]
  %v30 = vld [vmem:[%s0 + $0x40] sm:$0xf]
  %v31 = vld [vmem:[%s0 + $0x44] sm:$0xf]
  %v32 = vld [vmem:[%s0 + $0x48] sm:$0xf]
  %v33 = vld [vmem:[%s0 + $0x4c] sm:$0xf]
  %v34 = vld [vmem:[%s0 + $0x50] sm:$0xf]
  %v35 = vld [vmem:[%s0 + $0x54] sm:$0xf]
  %v36 = vld [vmem:[%s0 + $0x58] sm:$0xf]
  %v37 = vld [vmem:[%s0 + $0x5c] sm:$0xf]
  %v38 = vld [vmem:[%s0 + $0x60] sm:$0xf]
  %v39 = vld [vmem:[%s0 + $0x64] sm:$0xf]
  %v40 = vld [vmem:[%s0 + $0x68] sm:$0xf]
  %v41 = vld [vmem:[%s0 + $0x6c] sm:$0xf]
  %v42 = vld [vmem:[%s0 + $0x70] sm:$0xf]
  %v43 = vld [vmem:[%s0 + $0x74] sm:$0xf]
  %v44 = vld [vmem:[%s0 + $0x78] sm:$0xf]
  %v45 = vld [vmem:[%s0 + $0x7c] sm:$0xf]
  %v46 = vld [vmem:[%s0 + $0x80] sm:$0xf]
  %v47 = vld [vmem:[%s0 + $0x84] sm:$0xf]
  %v48 = vld [vmem:[%s0 + $0x88] sm:$0xf]
  %v49 = vld [vmem:[%s0 + $0x8c] sm:$0xf]
  %v50 = vld [vmem:[%s0 + $0x90] sm:$0xf]
  %v51 = vld [vmem:[%s0 + $0x94] sm:$0xf]
  %v52 = vld [vmem:[%s0 + $0x98] sm:$0xf]
  %v53 = vld [vmem:[%s0 + $0x9c] sm:$0xf]
  %v54 = vld [vmem:[%s0 + $0xa0] sm:$0xf]
  %v55 = vld [vmem:[%s0 + $0xa4] sm:$0xf]
  %v56 = vld [vmem:[%s0 + $0xa8] sm:$0xf]
  %v57 = vld [vmem:[%s0 + $0xac] sm:$0xf]
  %v58 = vld [vmem:[%s0 + $0xb0] sm:$0xf]
  %v59 = vld [vmem:[%s0 + $0xb4] sm:$0xf]
  %v60 = vld [vmem:[%s0 + $0xb8] sm:$0xf]
  %v61 = vld [vmem:[%s0 + $0xbc] sm:$0xf]
  %v62 = vld [vmem:[%s0 + $0xc0] sm:$0xf]
  %v63 = vld [vmem:[%s0 + $0xc4] sm:$0xf]
  %v64 = vld [vmem:[%s0 + $0xc8] sm:$0xf]
  %v65 = vld [vmem:[%s0 + $0xcc] sm:$0xf]
  %v66 = vld [vmem:[%s0 + $0xd0] sm:$0xf]
  %v67 = vld [vmem:[%s0 + $0xd4] sm:$0xf]
  %v68 = vld [vmem:[%s0 + $0xd8] sm:$0xf]
  %v69 = vld [vmem:[%s0 + $0xdc] sm:$0xf]
  %v70 = vld [vmem:[%s0 + $0xe0] sm:$0xf]
  %v71 = vld [vmem:[%s0 + $0xe4] sm:$0xf]
  %v72 = vld [vmem:[%s0 + $0xe8] sm:$0xf]
  %v73 = vld [vmem:[%s0 + $0xec] sm:$0xf]
  %v74 = vld [vmem:[%s0 + $0xf0] sm:$0xf]
  %v75 = vld [vmem:[%s0 + $0xf4] sm:$0xf]
  %v76 = vld [vmem:[%s0 + $0xf8] sm:$0xf]
  %v77 = vld [vmem:[%s0 + $0xfc] sm:$0xf]
  %v78 = vunpack.c.l.bf16 %v14
  %v79 = vunpack.c.l.bf16 %v15
  %v80 = vunpack.c.l.bf16 %v16
  %v81 = vunpack.c.l.bf16 %v17
  %v82 = vunpack.c.l.bf16 %v18
  %v83 = vunpack.c.l.bf16 %v19
  %v84 = vunpack.c.l.bf16 %v20
  %v85 = vunpack.c.l.bf16 %v21
  %v86 = vunpack.c.l.bf16 %v22
  %v87 = vunpack.c.l.bf16 %v23
  %v88 = vunpack.c.l.bf16 %v24
  %v89 = vunpack.c.l.bf16 %v25
  %v90 = vunpack.c.l.bf16 %v26
  %v91 = vunpack.c.l.bf16 %v27
  %v92 = vunpack.c.l.bf16 %v28
  %v93 = vunpack.c.l.bf16 %v29
  %v94 = vunpack.c.l.bf16 %v30
  %v95 = vunpack.c.l.bf16 %v31
  %v96 = vunpack.c.l.bf16 %v32
  %v97 = vunpack.c.l.bf16 %v33
  %v98 = vunpack.c.l.bf16 %v34
  %v99 = vunpack.c.l.bf16 %v35
  %v100 = vunpack.c.l.bf16 %v36
  %v101 = vunpack.c.l.bf16 %v37
  %v102 = vunpack.c.l.bf16 %v38
  %v103 = vunpack.c.l.bf16 %v39
  %v104 = vunpack.c.l.bf16 %v40
  %v105 = vunpack.c.l.bf16 %v41
  %v106 = vunpack.c.l.bf16 %v42
  %v107 = vunpack.c.l.bf16 %v43
  %v108 = vunpack.c.l.bf16 %v44
  %v109 = vunpack.c.l.bf16 %v45
  %v110 = vunpack.c.l.bf16 %v46
  %v111 = vunpack.c.l.bf16 %v47
  %v112 = vunpack.c.l.bf16 %v48
  %v113 = vunpack.c.l.bf16 %v49
  %v114 = vunpack.c.l.bf16 %v50
  %v115 = vunpack.c.l.bf16 %v51
  %v116 = vunpack.c.l.bf16 %v52
  %v117 = vunpack.c.l.bf16 %v53
  %v118 = vunpack.c.l.bf16 %v54
  %v119 = vunpack.c.l.bf16 %v55
  %v120 = vunpack.c.l.bf16 %v56
  %v121 = vunpack.c.l.bf16 %v57
  %v122 = vunpack.c.l.bf16 %v58
  %v123 = vunpack.c.l.bf16 %v59
  %v124 = vunpack.c.l.bf16 %v60
  %v125 = vunpack.c.l.bf16 %v61
  %v126 = vunpack.c.l.bf16 %v62
  %v127 = vunpack.c.l.bf16 %v63
  %v128 = vunpack.c.l.bf16 %v64
  %v129 = vunpack.c.l.bf16 %v65
  %v130 = vunpack.c.l.bf16 %v66
  %v131 = vunpack.c.l.bf16 %v67
  %v132 = vunpack.c.l.bf16 %v68
  %v133 = vunpack.c.l.bf16 %v69
  %v134 = vunpack.c.l.bf16 %v70
  %v135 = vunpack.c.l.bf16 %v71
  %v136 = vunpack.c.l.bf16 %v72
  %v137 = vunpack.c.l.bf16 %v73
  %v138 = vunpack.c.l.bf16 %v74
  %v139 = vunpack.c.l.bf16 %v75
  %v140 = vunpack.c.l.bf16 %v76
  %v141 = vunpack.c.l.bf16 %v77
  %v142 = vld [vmem:[%s1] sm:$0xf]
  %v143 = vld [vmem:[%s1 + $0x4] sm:$0xf]
  %v144 = vld [vmem:[%s1 + $0x8] sm:$0xf]
  %v145 = vld [vmem:[%s1 + $0xc] sm:$0xf]
  %v146 = vld [vmem:[%s1 + $0x10] sm:$0xf]
  %v147 = vld [vmem:[%s1 + $0x14] sm:$0xf]
  %v148 = vld [vmem:[%s1 + $0x18] sm:$0xf]
  %v149 = vld [vmem:[%s1 + $0x1c] sm:$0xf]
  %v150 = vld [vmem:[%s1 + $0x20] sm:$0xf]
  %v151 = vld [vmem:[%s1 + $0x24] sm:$0xf]
  %v152 = vld [vmem:[%s1 + $0x28] sm:$0xf]
  %v153 = vld [vmem:[%s1 + $0x2c] sm:$0xf]
  %v154 = vld [vmem:[%s1 + $0x30] sm:$0xf]
  %v155 = vld [vmem:[%s1 + $0x34] sm:$0xf]
  %v156 = vld [vmem:[%s1 + $0x38] sm:$0xf]
  %v157 = vld [vmem:[%s1 + $0x3c] sm:$0xf]
  %v158 = vld [vmem:[%s1 + $0x40] sm:$0xf]
  %v159 = vld [vmem:[%s1 + $0x44] sm:$0xf]
  %v160 = vld [vmem:[%s1 + $0x48] sm:$0xf]
  %v161 = vld [vmem:[%s1 + $0x4c] sm:$0xf]
  %v162 = vld [vmem:[%s1 + $0x50] sm:$0xf]
  %v163 = vld [vmem:[%s1 + $0x54] sm:$0xf]
  %v164 = vld [vmem:[%s1 + $0x58] sm:$0xf]
  %v165 = vld [vmem:[%s1 + $0x5c] sm:$0xf]
  %v166 = vld [vmem:[%s1 + $0x60] sm:$0xf]
  %v167 = vld [vmem:[%s1 + $0x64] sm:$0xf]
  %v168 = vld [vmem:[%s1 + $0x68] sm:$0xf]
  %v169 = vld [vmem:[%s1 + $0x6c] sm:$0xf]
  %v170 = vld [vmem:[%s1 + $0x70] sm:$0xf]
  %v171 = vld [vmem:[%s1 + $0x74] sm:$0xf]
  %v172 = vld [vmem:[%s1 + $0x78] sm:$0xf]
  %v173 = vld [vmem:[%s1 + $0x7c] sm:$0xf]
  %v174 = vld [vmem:[%s1 + $0x80] sm:$0xf]
  %v175 = vld [vmem:[%s1 + $0x84] sm:$0xf]
  %v176 = vld [vmem:[%s1 + $0x88] sm:$0xf]
  %v177 = vld [vmem:[%s1 + $0x8c] sm:$0xf]
  %v178 = vld [vmem:[%s1 + $0x90] sm:$0xf]
  %v179 = vld [vmem:[%s1 + $0x94] sm:$0xf]
  %v180 = vld [vmem:[%s1 + $0x98] sm:$0xf]
  %v181 = vld [vmem:[%s1 + $0x9c] sm:$0xf]
  %v182 = vld [vmem:[%s1 + $0xa0] sm:$0xf]
  %v183 = vld [vmem:[%s1 + $0xa4] sm:$0xf]
  %v184 = vld [vmem:[%s1 + $0xa8] sm:$0xf]
  %v185 = vld [vmem:[%s1 + $0xac] sm:$0xf]
  %v186 = vld [vmem:[%s1 + $0xb0] sm:$0xf]
  %v187 = vld [vmem:[%s1 + $0xb4] sm:$0xf]
  %v188 = vld [vmem:[%s1 + $0xb8] sm:$0xf]
  %v189 = vld [vmem:[%s1 + $0xbc] sm:$0xf]
  %v190 = vld [vmem:[%s1 + $0xc0] sm:$0xf]
  %v191 = vld [vmem:[%s1 + $0xc4] sm:$0xf]
  %v192 = vld [vmem:[%s1 + $0xc8] sm:$0xf]
  %v193 = vld [vmem:[%s1 + $0xcc] sm:$0xf]
  %v194 = vld [vmem:[%s1 + $0xd0] sm:$0xf]
  %v195 = vld [vmem:[%s1 + $0xd4] sm:$0xf]
  %v196 = vld [vmem:[%s1 + $0xd8] sm:$0xf]
  %v197 = vld [vmem:[%s1 + $0xdc] sm:$0xf]
  %v198 = vld [vmem:[%s1 + $0xe0] sm:$0xf]
  %v199 = vld [vmem:[%s1 + $0xe4] sm:$0xf]
  %v200 = vld [vmem:[%s1 + $0xe8] sm:$0xf]
  %v201 = vld [vmem:[%s1 + $0xec] sm:$0xf]
  %v202 = vld [vmem:[%s1 + $0xf0] sm:$0xf]
  %v203 = vld [vmem:[%s1 + $0xf4] sm:$0xf]
  %v204 = vld [vmem:[%s1 + $0xf8] sm:$0xf]
  %v205 = vld [vmem:[%s1 + $0xfc] sm:$0xf]
  %v206 = vunpack.c.l.bf16 %v142
  %v207 = vunpack.c.l.bf16 %v143
  %v208 = vunpack.c.l.bf16 %v144
  %v209 = vunpack.c.l.bf16 %v145
  %v210 = vunpack.c.l.bf16 %v146
  %v211 = vunpack.c.l.bf16 %v147
  %v212 = vunpack.c.l.bf16 %v148
  %v213 = vunpack.c.l.bf16 %v149
  %v214 = vunpack.c.l.bf16 %v150
  %v215 = vunpack.c.l.bf16 %v151
  %v216 = vunpack.c.l.bf16 %v152
  %v217 = vunpack.c.l.bf16 %v153
  %v218 = vunpack.c.l.bf16 %v154
  %v219 = vunpack.c.l.bf16 %v155
  %v220 = vunpack.c.l.bf16 %v156
  %v221 = vunpack.c.l.bf16 %v157
  %v222 = vunpack.c.l.bf16 %v158
  %v223 = vunpack.c.l.bf16 %v159
  %v224 = vunpack.c.l.bf16 %v160
  %v225 = vunpack.c.l.bf16 %v161
  %v226 = vunpack.c.l.bf16 %v162
  %v227 = vunpack.c.l.bf16 %v163
  %v228 = vunpack.c.l.bf16 %v164
  %v229 = vunpack.c.l.bf16 %v165
  %v230 = vunpack.c.l.bf16 %v166
  %v231 = vunpack.c.l.bf16 %v167
  %v232 = vunpack.c.l.bf16 %v168
  %v233 = vunpack.c.l.bf16 %v169
  %v234 = vunpack.c.l.bf16 %v170
  %v235 = vunpack.c.l.bf16 %v171
  %v236 = vunpack.c.l.bf16 %v172
  %v237 = vunpack.c.l.bf16 %v173
  %v238 = vunpack.c.l.bf16 %v174
  %v239 = vunpack.c.l.bf16 %v175
  %v240 = vunpack.c.l.bf16 %v176
  %v241 = vunpack.c.l.bf16 %v177
  %v242 = vunpack.c.l.bf16 %v178
  %v243 = vunpack.c.l.bf16 %v179
  %v244 = vunpack.c.l.bf16 %v180
  %v245 = vunpack.c.l.bf16 %v181
  %v246 = vunpack.c.l.bf16 %v182
  %v247 = vunpack.c.l.bf16 %v183
  %v248 = vunpack.c.l.bf16 %v184
  %v249 = vunpack.c.l.bf16 %v185
  %v250 = vunpack.c.l.bf16 %v186
  %v251 = vunpack.c.l.bf16 %v187
  %v252 = vunpack.c.l.bf16 %v188
  %v253 = vunpack.c.l.bf16 %v189
  %v254 = vunpack.c.l.bf16 %v190
  %v255 = vunpack.c.l.bf16 %v191
  %v256 = vunpack.c.l.bf16 %v192
  %v257 = vunpack.c.l.bf16 %v193
  %v258 = vunpack.c.l.bf16 %v194
  %v259 = vunpack.c.l.bf16 %v195
  %v260 = vunpack.c.l.bf16 %v196
  %v261 = vunpack.c.l.bf16 %v197
  %v262 = vunpack.c.l.bf16 %v198
  %v263 = vunpack.c.l.bf16 %v199
  %v264 = vunpack.c.l.bf16 %v200
  %v265 = vunpack.c.l.bf16 %v201
  %v266 = vunpack.c.l.bf16 %v202
  %v267 = vunpack.c.l.bf16 %v203
  %v268 = vunpack.c.l.bf16 %v204
  %v269 = vunpack.c.l.bf16 %v205
  %v270 = vld [vmem:[%s2] sm:$0x1]
  %v271 = vlaneseq
  %v272 = vshrl.u32 %v271, 7
  %v273 = vsub.s32 0, %v272
  %v274 = vrot.slane %v270, %v273
  %v275 = vmul.f32 %v78, %v274
  %v276 = vmul.f32 %v79, %v274
  %v277 = vmul.f32 %v80, %v274
  %v278 = vmul.f32 %v81, %v274
  %v279 = vmul.f32 %v82, %v274
  %v280 = vmul.f32 %v83, %v274
  %v281 = vmul.f32 %v84, %v274
  %v282 = vmul.f32 %v85, %v274
  %v283 = vmul.f32 %v86, %v274
  %v284 = vmul.f32 %v87, %v274
  %v285 = vmul.f32 %v88, %v274
  %v286 = vmul.f32 %v89, %v274
  %v287 = vmul.f32 %v90, %v274
  %v288 = vmul.f32 %v91, %v274
  %v289 = vmul.f32 %v92, %v274
  %v290 = vmul.f32 %v93, %v274
  %v291 = vmul.f32 %v94, %v274
  %v292 = vmul.f32 %v95, %v274
  %v293 = vmul.f32 %v96, %v274
  %v294 = vmul.f32 %v97, %v274
  %v295 = vmul.f32 %v98, %v274
  %v296 = vmul.f32 %v99, %v274
  %v297 = vmul.f32 %v100, %v274
  %v298 = vmul.f32 %v101, %v274
  %v299 = vmul.f32 %v102, %v274
  %v300 = vmul.f32 %v103, %v274
  %v301 = vmul.f32 %v104, %v274
  %v302 = vmul.f32 %v105, %v274
  %v303 = vmul.f32 %v106, %v274
  %v304 = vmul.f32 %v107, %v274
  %v305 = vmul.f32 %v108, %v274
  %v306 = vmul.f32 %v109, %v274
  %v307 = vmul.f32 %v110, %v274
  %v308 = vmul.f32 %v111, %v274
  %v309 = vmul.f32 %v112, %v274
  %v310 = vmul.f32 %v113, %v274
  %v311 = vmul.f32 %v114, %v274
  %v312 = vmul.f32 %v115, %v274
  %v313 = vmul.f32 %v116, %v274
  %v314 = vmul.f32 %v117, %v274
  %v315 = vmul.f32 %v118, %v274
  %v316 = vmul.f32 %v119, %v274
  %v317 = vmul.f32 %v120, %v274
  %v318 = vmul.f32 %v121, %v274
  %v319 = vmul.f32 %v122, %v274
  %v320 = vmul.f32 %v123, %v274
  %v321 = vmul.f32 %v124, %v274
  %v322 = vmul.f32 %v125, %v274
  %v323 = vmul.f32 %v126, %v274
  %v324 = vmul.f32 %v127, %v274
  %v325 = vmul.f32 %v128, %v274
  %v326 = vmul.f32 %v129, %v274
  %v327 = vmul.f32 %v130, %v274
  %v328 = vmul.f32 %v131, %v274
  %v329 = vmul.f32 %v132, %v274
  %v330 = vmul.f32 %v133, %v274
  %v331 = vmul.f32 %v134, %v274
  %v332 = vmul.f32 %v135, %v274
  %v333 = vmul.f32 %v136, %v274
  %v334 = vmul.f32 %v137, %v274
  %v335 = vmul.f32 %v138, %v274
  %v336 = vmul.f32 %v139, %v274
  %v337 = vmul.f32 %v140, %v274
  %v338 = vmul.f32 %v141, %v274
  %v339 = vld [vmem:[%s2 + $0x1] sm:$0x1]
  %v340 = vlaneseq
  %v341 = vshrl.u32 %v340, 7
  %v342 = vsub.s32 0, %v341
  %v343 = vrot.slane %v339, %v342
  %v344 = vadd.f32 %v275, %v343
  %v345 = vadd.f32 %v276, %v343
  %v346 = vadd.f32 %v277, %v343
  %v347 = vadd.f32 %v278, %v343
  %v348 = vadd.f32 %v279, %v343
  %v349 = vadd.f32 %v280, %v343
  %v350 = vadd.f32 %v281, %v343
  %v351 = vadd.f32 %v282, %v343
  %v352 = vadd.f32 %v283, %v343
  %v353 = vadd.f32 %v284, %v343
  %v354 = vadd.f32 %v285, %v343
  %v355 = vadd.f32 %v286, %v343
  %v356 = vadd.f32 %v287, %v343
  %v357 = vadd.f32 %v288, %v343
  %v358 = vadd.f32 %v289, %v343
  %v359 = vadd.f32 %v290, %v343
  %v360 = vadd.f32 %v291, %v343
  %v361 = vadd.f32 %v292, %v343
  %v362 = vadd.f32 %v293, %v343
  %v363 = vadd.f32 %v294, %v343
  %v364 = vadd.f32 %v295, %v343
  %v365 = vadd.f32 %v296, %v343
  %v366 = vadd.f32 %v297, %v343
  %v367 = vadd.f32 %v298, %v343
  %v368 = vadd.f32 %v299, %v343
  %v369 = vadd.f32 %v300, %v343
  %v370 = vadd.f32 %v301, %v343
  %v371 = vadd.f32 %v302, %v343
  %v372 = vadd.f32 %v303, %v343
  %v373 = vadd.f32 %v304, %v343
  %v374 = vadd.f32 %v305, %v343
  %v375 = vadd.f32 %v306, %v343
  %v376 = vadd.f32 %v307, %v343
  %v377 = vadd.f32 %v308, %v343
  %v378 = vadd.f32 %v309, %v343
  %v379 = vadd.f32 %v310, %v343
  %v380 = vadd.f32 %v311, %v343
  %v381 = vadd.f32 %v312, %v343
  %v382 = vadd.f32 %v313, %v343
  %v383 = vadd.f32 %v314, %v343
  %v384 = vadd.f32 %v315, %v343
  %v385 = vadd.f32 %v316, %v343
  %v386 = vadd.f32 %v317, %v343
  %v387 = vadd.f32 %v318, %v343
  %v388 = vadd.f32 %v319, %v343
  %v389 = vadd.f32 %v320, %v343
  %v390 = vadd.f32 %v321, %v343
  %v391 = vadd.f32 %v322, %v343
  %v392 = vadd.f32 %v323, %v343
  %v393 = vadd.f32 %v324, %v343
  %v394 = vadd.f32 %v325, %v343
  %v395 = vadd.f32 %v326, %v343
  %v396 = vadd.f32 %v327, %v343
  %v397 = vadd.f32 %v328, %v343
  %v398 = vadd.f32 %v329, %v343
  %v399 = vadd.f32 %v330, %v343
  %v400 = vadd.f32 %v331, %v343
  %v401 = vadd.f32 %v332, %v343
  %v402 = vadd.f32 %v333, %v343
  %v403 = vadd.f32 %v334, %v343
  %v404 = vadd.f32 %v335, %v343
  %v405 = vadd.f32 %v336, %v343
  %v406 = vadd.f32 %v337, %v343
  %v407 = vadd.f32 %v338, %v343
  %v408 = vld [vmem:[%s2 + $0x2] sm:$0x1]
  %v409 = vlaneseq
  %v410 = vshrl.u32 %v409, 7
  %v411 = vsub.s32 0, %v410
  %v412 = vrot.slane %v408, %v411
  %v413 = vmul.f32 %v206, %v412
  %v414 = vmul.f32 %v207, %v412
  %v415 = vmul.f32 %v208, %v412
  %v416 = vmul.f32 %v209, %v412
  %v417 = vmul.f32 %v210, %v412
  %v418 = vmul.f32 %v211, %v412
  %v419 = vmul.f32 %v212, %v412
  %v420 = vmul.f32 %v213, %v412
  %v421 = vmul.f32 %v214, %v412
  %v422 = vmul.f32 %v215, %v412
  %v423 = vmul.f32 %v216, %v412
  %v424 = vmul.f32 %v217, %v412
  %v425 = vmul.f32 %v218, %v412
  %v426 = vmul.f32 %v219, %v412
  %v427 = vmul.f32 %v220, %v412
  %v428 = vmul.f32 %v221, %v412
  %v429 = vmul.f32 %v222, %v412
  %v430 = vmul.f32 %v223, %v412
  %v431 = vmul.f32 %v224, %v412
  %v432 = vmul.f32 %v225, %v412
  %v433 = vmul.f32 %v226, %v412
  %v434 = vmul.f32 %v227, %v412
  %v435 = vmul.f32 %v228, %v412
  %v436 = vmul.f32 %v229, %v412
  %v437 = vmul.f32 %v230, %v412
  %v438 = vmul.f32 %v231, %v412
  %v439 = vmul.f32 %v232, %v412
  %v440 = vmul.f32 %v233, %v412
  %v441 = vmul.f32 %v234, %v412
  %v442 = vmul.f32 %v235, %v412
  %v443 = vmul.f32 %v236, %v412
  %v444 = vmul.f32 %v237, %v412
  %v445 = vmul.f32 %v238, %v412
  %v446 = vmul.f32 %v239, %v412
  %v447 = vmul.f32 %v240, %v412
  %v448 = vmul.f32 %v241, %v412
  %v449 = vmul.f32 %v242, %v412
  %v450 = vmul.f32 %v243, %v412
  %v451 = vmul.f32 %v244, %v412
  %v452 = vmul.f32 %v245, %v412
  %v453 = vmul.f32 %v246, %v412
  %v454 = vmul.f32 %v247, %v412
  %v455 = vmul.f32 %v248, %v412
  %v456 = vmul.f32 %v249, %v412
  %v457 = vmul.f32 %v250, %v412
  %v458 = vmul.f32 %v251, %v412
  %v459 = vmul.f32 %v252, %v412
  %v460 = vmul.f32 %v253, %v412
  %v461 = vmul.f32 %v254, %v412
  %v462 = vmul.f32 %v255, %v412
  %v463 = vmul.f32 %v256, %v412
  %v464 = vmul.f32 %v257, %v412
  %v465 = vmul.f32 %v258, %v412
  %v466 = vmul.f32 %v259, %v412
  %v467 = vmul.f32 %v260, %v412
  %v468 = vmul.f32 %v261, %v412
  %v469 = vmul.f32 %v262, %v412
  %v470 = vmul.f32 %v263, %v412
  %v471 = vmul.f32 %v264, %v412
  %v472 = vmul.f32 %v265, %v412
  %v473 = vmul.f32 %v266, %v412
  %v474 = vmul.f32 %v267, %v412
  %v475 = vmul.f32 %v268, %v412
  %v476 = vmul.f32 %v269, %v412
  %v477 = vadd.f32 %v344, %v413
  %v478 = vadd.f32 %v345, %v414
  %v479 = vadd.f32 %v346, %v415
  %v480 = vadd.f32 %v347, %v416
  %v481 = vadd.f32 %v348, %v417
  %v482 = vadd.f32 %v349, %v418
  %v483 = vadd.f32 %v350, %v419
  %v484 = vadd.f32 %v351, %v420
  %v485 = vadd.f32 %v352, %v421
  %v486 = vadd.f32 %v353, %v422
  %v487 = vadd.f32 %v354, %v423
  %v488 = vadd.f32 %v355, %v424
  %v489 = vadd.f32 %v356, %v425
  %v490 = vadd.f32 %v357, %v426
  %v491 = vadd.f32 %v358, %v427
  %v492 = vadd.f32 %v359, %v428
  %v493 = vadd.f32 %v360, %v429
  %v494 = vadd.f32 %v361, %v430
  %v495 = vadd.f32 %v362, %v431
  %v496 = vadd.f32 %v363, %v432
  %v497 = vadd.f32 %v364, %v433
  %v498 = vadd.f32 %v365, %v434
  %v499 = vadd.f32 %v366, %v435
  %v500 = vadd.f32 %v367, %v436
  %v501 = vadd.f32 %v368, %v437
  %v502 = vadd.f32 %v369, %v438
  %v503 = vadd.f32 %v370, %v439
  %v504 = vadd.f32 %v371, %v440
  %v505 = vadd.f32 %v372, %v441
  %v506 = vadd.f32 %v373, %v442
  %v507 = vadd.f32 %v374, %v443
  %v508 = vadd.f32 %v375, %v444
  %v509 = vadd.f32 %v376, %v445
  %v510 = vadd.f32 %v377, %v446
  %v511 = vadd.f32 %v378, %v447
  %v512 = vadd.f32 %v379, %v448
  %v513 = vadd.f32 %v380, %v449
  %v514 = vadd.f32 %v381, %v450
  %v515 = vadd.f32 %v382, %v451
  %v516 = vadd.f32 %v383, %v452
  %v517 = vadd.f32 %v384, %v453
  %v518 = vadd.f32 %v385, %v454
  %v519 = vadd.f32 %v386, %v455
  %v520 = vadd.f32 %v387, %v456
  %v521 = vadd.f32 %v388, %v457
  %v522 = vadd.f32 %v389, %v458
  %v523 = vadd.f32 %v390, %v459
  %v524 = vadd.f32 %v391, %v460
  %v525 = vadd.f32 %v392, %v461
  %v526 = vadd.f32 %v393, %v462
  %v527 = vadd.f32 %v394, %v463
  %v528 = vadd.f32 %v395, %v464
  %v529 = vadd.f32 %v396, %v465
  %v530 = vadd.f32 %v397, %v466
  %v531 = vadd.f32 %v398, %v467
  %v532 = vadd.f32 %v399, %v468
  %v533 = vadd.f32 %v400, %v469
  %v534 = vadd.f32 %v401, %v470
  %v535 = vadd.f32 %v402, %v471
  %v536 = vadd.f32 %v403, %v472
  %v537 = vadd.f32 %v404, %v473
  %v538 = vadd.f32 %v405, %v474
  %v539 = vadd.f32 %v406, %v475
  %v540 = vadd.f32 %v407, %v476
  %v541 = vld [vmem:[%s2 + $0x3] sm:$0x1]
  %v542 = vlaneseq
  %v543 = vshrl.u32 %v542, 7
  %v544 = vsub.s32 0, %v543
  %v545 = vrot.slane %v541, %v544
  %v546 = vadd.f32 %v477, %v545
  %v547 = vadd.f32 %v478, %v545
  %v548 = vadd.f32 %v479, %v545
  %v549 = vadd.f32 %v480, %v545
  %v550 = vadd.f32 %v481, %v545
  %v551 = vadd.f32 %v482, %v545
  %v552 = vadd.f32 %v483, %v545
  %v553 = vadd.f32 %v484, %v545
  %v554 = vadd.f32 %v485, %v545
  %v555 = vadd.f32 %v486, %v545
  %v556 = vadd.f32 %v487, %v545
  %v557 = vadd.f32 %v488, %v545
  %v558 = vadd.f32 %v489, %v545
  %v559 = vadd.f32 %v490, %v545
  %v560 = vadd.f32 %v491, %v545
  %v561 = vadd.f32 %v492, %v545
  %v562 = vadd.f32 %v493, %v545
  %v563 = vadd.f32 %v494, %v545
  %v564 = vadd.f32 %v495, %v545
  %v565 = vadd.f32 %v496, %v545
  %v566 = vadd.f32 %v497, %v545
  %v567 = vadd.f32 %v498, %v545
  %v568 = vadd.f32 %v499, %v545
  %v569 = vadd.f32 %v500, %v545
  %v570 = vadd.f32 %v501, %v545
  %v571 = vadd.f32 %v502, %v545
  %v572 = vadd.f32 %v503, %v545
  %v573 = vadd.f32 %v504, %v545
  %v574 = vadd.f32 %v505, %v545
  %v575 = vadd.f32 %v506, %v545
  %v576 = vadd.f32 %v507, %v545
  %v577 = vadd.f32 %v508, %v545
  %v578 = vadd.f32 %v509, %v545
  %v579 = vadd.f32 %v510, %v545
  %v580 = vadd.f32 %v511, %v545
  %v581 = vadd.f32 %v512, %v545
  %v582 = vadd.f32 %v513, %v545
  %v583 = vadd.f32 %v514, %v545
  %v584 = vadd.f32 %v515, %v545
  %v585 = vadd.f32 %v516, %v545
  %v586 = vadd.f32 %v517, %v545
  %v587 = vadd.f32 %v518, %v545
  %v588 = vadd.f32 %v519, %v545
  %v589 = vadd.f32 %v520, %v545
  %v590 = vadd.f32 %v521, %v545
  %v591 = vadd.f32 %v522, %v545
  %v592 = vadd.f32 %v523, %v545
  %v593 = vadd.f32 %v524, %v545
  %v594 = vadd.f32 %v525, %v545
  %v595 = vadd.f32 %v526, %v545
  %v596 = vadd.f32 %v527, %v545
  %v597 = vadd.f32 %v528, %v545
  %v598 = vadd.f32 %v529, %v545
  %v599 = vadd.f32 %v530, %v545
  %v600 = vadd.f32 %v531, %v545
  %v601 = vadd.f32 %v532, %v545
  %v602 = vadd.f32 %v533, %v545
  %v603 = vadd.f32 %v534, %v545
  %v604 = vadd.f32 %v535, %v545
  %v605 = vadd.f32 %v536, %v545
  %v606 = vadd.f32 %v537, %v545
  %v607 = vadd.f32 %v538, %v545
  %v608 = vadd.f32 %v539, %v545
  %v609 = vadd.f32 %v540, %v545
  %v610 = vpack.c.bf16 %v547, %v546
  %v611 = vpack.c.bf16 %v549, %v548
  %v612 = vpack.c.bf16 %v551, %v550
  %v613 = vpack.c.bf16 %v553, %v552
  %v614 = vpack.c.bf16 %v555, %v554
  %v615 = vpack.c.bf16 %v557, %v556
  %v616 = vpack.c.bf16 %v559, %v558
  %v617 = vpack.c.bf16 %v561, %v560
  %v618 = vpack.c.bf16 %v563, %v562
  %v619 = vpack.c.bf16 %v565, %v564
  %v620 = vpack.c.bf16 %v567, %v566
  %v621 = vpack.c.bf16 %v569, %v568
  %v622 = vpack.c.bf16 %v571, %v570
  %v623 = vpack.c.bf16 %v573, %v572
  %v624 = vpack.c.bf16 %v575, %v574
  %v625 = vpack.c.bf16 %v577, %v576
  %v626 = vpack.c.bf16 %v579, %v578
  %v627 = vpack.c.bf16 %v581, %v580
  %v628 = vpack.c.bf16 %v583, %v582
  %v629 = vpack.c.bf16 %v585, %v584
  %v630 = vpack.c.bf16 %v587, %v586
  %v631 = vpack.c.bf16 %v589, %v588
  %v632 = vpack.c.bf16 %v591, %v590
  %v633 = vpack.c.bf16 %v593, %v592
  %v634 = vpack.c.bf16 %v595, %v594
  %v635 = vpack.c.bf16 %v597, %v596
  %v636 = vpack.c.bf16 %v599, %v598
  %v637 = vpack.c.bf16 %v601, %v600
  %v638 = vpack.c.bf16 %v603, %v602
  %v639 = vpack.c.bf16 %v605, %v604
  %v640 = vpack.c.bf16 %v607, %v606
  %v641 = vpack.c.bf16 %v609, %v608
  %v674 = vunpack.c.l.b16 %v610
  %v675 = vunpack.c.h.b16 %v610
  %v676 = vunpack.c.l.b16 %v611
  %v677 = vunpack.c.h.b16 %v611
  %v678 = vunpack.c.l.b16 %v612
  %v679 = vunpack.c.h.b16 %v612
  %v680 = vunpack.c.l.b16 %v613
  %v681 = vunpack.c.h.b16 %v613
  %v682 = vunpack.c.l.b16 %v614
  %v683 = vunpack.c.h.b16 %v614
  %v684 = vunpack.c.l.b16 %v615
  %v685 = vunpack.c.h.b16 %v615
  %v686 = vunpack.c.l.b16 %v616
  %v687 = vunpack.c.h.b16 %v616
  %v688 = vunpack.c.l.b16 %v617
  %v689 = vunpack.c.h.b16 %v617
  %v690 = vunpack.c.l.b16 %v618
  %v691 = vunpack.c.h.b16 %v618
  %v692 = vunpack.c.l.b16 %v619
  %v693 = vunpack.c.h.b16 %v619
  %v694 = vunpack.c.l.b16 %v620
  %v695 = vunpack.c.h.b16 %v620
  %v696 = vunpack.c.l.b16 %v621
  %v697 = vunpack.c.h.b16 %v621
  %v698 = vunpack.c.l.b16 %v622
  %v699 = vunpack.c.h.b16 %v622
  %v700 = vunpack.c.l.b16 %v623
  %v701 = vunpack.c.h.b16 %v623
  %v702 = vunpack.c.l.b16 %v624
  %v703 = vunpack.c.h.b16 %v624
  %v704 = vunpack.c.l.b16 %v625
  %v705 = vunpack.c.h.b16 %v625
  %v706 = vunpack.c.l.b16 %v626
  %v707 = vunpack.c.h.b16 %v626
  %v708 = vunpack.c.l.b16 %v627
  %v709 = vunpack.c.h.b16 %v627
  %v710 = vunpack.c.l.b16 %v628
  %v711 = vunpack.c.h.b16 %v628
  %v712 = vunpack.c.l.b16 %v629
  %v713 = vunpack.c.h.b16 %v629
  %v714 = vunpack.c.l.b16 %v630
  %v715 = vunpack.c.h.b16 %v630
  %v716 = vunpack.c.l.b16 %v631
  %v717 = vunpack.c.h.b16 %v631
  %v718 = vunpack.c.l.b16 %v632
  %v719 = vunpack.c.h.b16 %v632
  %v720 = vunpack.c.l.b16 %v633
  %v721 = vunpack.c.h.b16 %v633
  %v722 = vunpack.c.l.b16 %v634
  %v723 = vunpack.c.h.b16 %v634
  %v724 = vunpack.c.l.b16 %v635
  %v725 = vunpack.c.h.b16 %v635
  %v726 = vunpack.c.l.b16 %v636
  %v727 = vunpack.c.h.b16 %v636
  %v728 = vunpack.c.l.b16 %v637
  %v729 = vunpack.c.h.b16 %v637
  %v730 = vunpack.c.l.b16 %v638
  %v731 = vunpack.c.h.b16 %v638
  %v732 = vunpack.c.l.b16 %v639
  %v733 = vunpack.c.h.b16 %v639
  %v734 = vunpack.c.l.b16 %v640
  %v735 = vunpack.c.h.b16 %v640
  %v736 = vunpack.c.l.b16 %v641
  %v737 = vunpack.c.h.b16 %v641
  %v738 = vpack.c.b16 %v674, %v674
  %v739 = vpack.c.b16 %v675, %v675
  %v740 = vpack.c.b16 %v676, %v676
  %v741 = vpack.c.b16 %v677, %v677
  %v742 = vpack.c.b16 %v678, %v678
  %v743 = vpack.c.b16 %v679, %v679
  %v744 = vpack.c.b16 %v680, %v680
  %v745 = vpack.c.b16 %v681, %v681
  %v746 = vpack.c.b16 %v682, %v682
  %v747 = vpack.c.b16 %v683, %v683
  %v748 = vpack.c.b16 %v684, %v684
  %v749 = vpack.c.b16 %v685, %v685
  %v750 = vpack.c.b16 %v686, %v686
  %v751 = vpack.c.b16 %v687, %v687
  %v752 = vpack.c.b16 %v688, %v688
  %v753 = vpack.c.b16 %v689, %v689
  %v754 = vpack.c.b16 %v690, %v690
  %v755 = vpack.c.b16 %v691, %v691
  %v756 = vpack.c.b16 %v692, %v692
  %v757 = vpack.c.b16 %v693, %v693
  %v758 = vpack.c.b16 %v694, %v694
  %v759 = vpack.c.b16 %v695, %v695
  %v760 = vpack.c.b16 %v696, %v696
  %v761 = vpack.c.b16 %v697, %v697
  %v762 = vpack.c.b16 %v698, %v698
  %v763 = vpack.c.b16 %v699, %v699
  %v764 = vpack.c.b16 %v700, %v700
  %v765 = vpack.c.b16 %v701, %v701
  %v766 = vpack.c.b16 %v702, %v702
  %v767 = vpack.c.b16 %v703, %v703
  %v768 = vpack.c.b16 %v704, %v704
  %v769 = vpack.c.b16 %v705, %v705
  %v770 = vpack.c.b16 %v706, %v706
  %v771 = vpack.c.b16 %v707, %v707
  %v772 = vpack.c.b16 %v708, %v708
  %v773 = vpack.c.b16 %v709, %v709
  %v774 = vpack.c.b16 %v710, %v710
  %v775 = vpack.c.b16 %v711, %v711
  %v776 = vpack.c.b16 %v712, %v712
  %v777 = vpack.c.b16 %v713, %v713
  %v778 = vpack.c.b16 %v714, %v714
  %v779 = vpack.c.b16 %v715, %v715
  %v780 = vpack.c.b16 %v716, %v716
  %v781 = vpack.c.b16 %v717, %v717
  %v782 = vpack.c.b16 %v718, %v718
  %v783 = vpack.c.b16 %v719, %v719
  %v784 = vpack.c.b16 %v720, %v720
  %v785 = vpack.c.b16 %v721, %v721
  %v786 = vpack.c.b16 %v722, %v722
  %v787 = vpack.c.b16 %v723, %v723
  %v788 = vpack.c.b16 %v724, %v724
  %v789 = vpack.c.b16 %v725, %v725
  %v790 = vpack.c.b16 %v726, %v726
  %v791 = vpack.c.b16 %v727, %v727
  %v792 = vpack.c.b16 %v728, %v728
  %v793 = vpack.c.b16 %v729, %v729
  %v794 = vpack.c.b16 %v730, %v730
  %v795 = vpack.c.b16 %v731, %v731
  %v796 = vpack.c.b16 %v732, %v732
  %v797 = vpack.c.b16 %v733, %v733
  %v798 = vpack.c.b16 %v734, %v734
  %v799 = vpack.c.b16 %v735, %v735
  %v800 = vpack.c.b16 %v736, %v736
  %v801 = vpack.c.b16 %v737, %v737
  %866 = vst [vmem:[%s3] sm:$0xf] %v738
  %867 = vst [vmem:[%s3 + $0x4] sm:$0xf] %v739
  %868 = vst [vmem:[%s3 + $0x8] sm:$0xf] %v740
  %869 = vst [vmem:[%s3 + $0xc] sm:$0xf] %v741
  %870 = vst [vmem:[%s3 + $0x10] sm:$0xf] %v742
  %871 = vst [vmem:[%s3 + $0x14] sm:$0xf] %v743
  %872 = vst [vmem:[%s3 + $0x18] sm:$0xf] %v744
  %873 = vst [vmem:[%s3 + $0x1c] sm:$0xf] %v745
  %874 = vst [vmem:[%s3 + $0x20] sm:$0xf] %v746
  %875 = vst [vmem:[%s3 + $0x24] sm:$0xf] %v747
  %876 = vst [vmem:[%s3 + $0x28] sm:$0xf] %v748
  %877 = vst [vmem:[%s3 + $0x2c] sm:$0xf] %v749
  %878 = vst [vmem:[%s3 + $0x30] sm:$0xf] %v750
  %879 = vst [vmem:[%s3 + $0x34] sm:$0xf] %v751
  %880 = vst [vmem:[%s3 + $0x38] sm:$0xf] %v752
  %881 = vst [vmem:[%s3 + $0x3c] sm:$0xf] %v753
  %882 = vst [vmem:[%s3 + $0x40] sm:$0xf] %v754
  %883 = vst [vmem:[%s3 + $0x44] sm:$0xf] %v755
  %884 = vst [vmem:[%s3 + $0x48] sm:$0xf] %v756
  %885 = vst [vmem:[%s3 + $0x4c] sm:$0xf] %v757
  %886 = vst [vmem:[%s3 + $0x50] sm:$0xf] %v758
  %887 = vst [vmem:[%s3 + $0x54] sm:$0xf] %v759
  %888 = vst [vmem:[%s3 + $0x58] sm:$0xf] %v760
  %889 = vst [vmem:[%s3 + $0x5c] sm:$0xf] %v761
  %890 = vst [vmem:[%s3 + $0x60] sm:$0xf] %v762
  %891 = vst [vmem:[%s3 + $0x64] sm:$0xf] %v763
  %892 = vst [vmem:[%s3 + $0x68] sm:$0xf] %v764
  %893 = vst [vmem:[%s3 + $0x6c] sm:$0xf] %v765
  %894 = vst [vmem:[%s3 + $0x70] sm:$0xf] %v766
  %895 = vst [vmem:[%s3 + $0x74] sm:$0xf] %v767
  %896 = vst [vmem:[%s3 + $0x78] sm:$0xf] %v768
  %897 = vst [vmem:[%s3 + $0x7c] sm:$0xf] %v769
  %898 = vst [vmem:[%s3 + $0x80] sm:$0xf] %v770
  %899 = vst [vmem:[%s3 + $0x84] sm:$0xf] %v771
  %900 = vst [vmem:[%s3 + $0x88] sm:$0xf] %v772
  %901 = vst [vmem:[%s3 + $0x8c] sm:$0xf] %v773
  %902 = vst [vmem:[%s3 + $0x90] sm:$0xf] %v774
  %903 = vst [vmem:[%s3 + $0x94] sm:$0xf] %v775
  %904 = vst [vmem:[%s3 + $0x98] sm:$0xf] %v776
  %905 = vst [vmem:[%s3 + $0x9c] sm:$0xf] %v777
  %906 = vst [vmem:[%s3 + $0xa0] sm:$0xf] %v778
  %907 = vst [vmem:[%s3 + $0xa4] sm:$0xf] %v779
  %908 = vst [vmem:[%s3 + $0xa8] sm:$0xf] %v780
  %909 = vst [vmem:[%s3 + $0xac] sm:$0xf] %v781
  %910 = vst [vmem:[%s3 + $0xb0] sm:$0xf] %v782
  %911 = vst [vmem:[%s3 + $0xb4] sm:$0xf] %v783
  %912 = vst [vmem:[%s3 + $0xb8] sm:$0xf] %v784
  %913 = vst [vmem:[%s3 + $0xbc] sm:$0xf] %v785
  %914 = vst [vmem:[%s3 + $0xc0] sm:$0xf] %v786
  %915 = vst [vmem:[%s3 + $0xc4] sm:$0xf] %v787
  %916 = vst [vmem:[%s3 + $0xc8] sm:$0xf] %v788
  %917 = vst [vmem:[%s3 + $0xcc] sm:$0xf] %v789
  %918 = vst [vmem:[%s3 + $0xd0] sm:$0xf] %v790
  %919 = vst [vmem:[%s3 + $0xd4] sm:$0xf] %v791
  %920 = vst [vmem:[%s3 + $0xd8] sm:$0xf] %v792
  %921 = vst [vmem:[%s3 + $0xdc] sm:$0xf] %v793
  %922 = vst [vmem:[%s3 + $0xe0] sm:$0xf] %v794
  %923 = vst [vmem:[%s3 + $0xe4] sm:$0xf] %v795
  %924 = vst [vmem:[%s3 + $0xe8] sm:$0xf] %v796
  %925 = vst [vmem:[%s3 + $0xec] sm:$0xf] %v797
  %926 = vst [vmem:[%s3 + $0xf0] sm:$0xf] %v798
  %927 = vst [vmem:[%s3 + $0xf4] sm:$0xf] %v799
  %928 = vst [vmem:[%s3 + $0xf8] sm:$0xf] %v800
  %929 = vst [vmem:[%s3 + $0xfc] sm:$0xf] %v801
  // Predicated region
  $region14: #{wideresnet_forward.25} parent=0 // pred_check
    _
  $region15: #{wideresnet_forward.25} parent=0 // pred_check_branch
    %931 = sbr.rel (0) target = $region17
  $region16: #{wideresnet_forward.25} parent=0 // pred_region
    _
  $region17: #{wideresnet_forward.25} parent=0 // pred_fallthru
    _
  // Predicated region
  $region18: #{wideresnet_forward.25} parent=0 // pred_check
    _
  $region19: #{wideresnet_forward.25} parent=0 // pred_check_branch
    %933 = sbr.rel (0) target = $region21
  $region20: #{wideresnet_forward.25} parent=0 // pred_region
    _
  $region21: #{wideresnet_forward.25} parent=0 // pred_fallthru
    _

// kernel: wideresnet_forward.29
$region0: #{wideresnet_forward.29}
  #allocation0 [shape = 'u32[]', space=smem, size = 0x4, offset = 0x4, fixed_abs, tag = 'smem constant byte address 0x4 - core index']
  #allocation1 [shape = 'u32[144,128]{1,0:T(1,128)}', space=vmem, size = 0x12000, scoped, tag = 'internal scratch']
  %s0 = inlined_call_operand.vmem [shape: bf16[2,64,256], index: 0, kind: input, shape index: {}]
  %s1 = inlined_call_operand.vmem [shape: bf16[256,128], index: 1, kind: input, shape index: {}]
  %s2 = inlined_call_operand.vmem [shape: bf16[2,64,128], index: 2, kind: output, shape index: {0}]
  %s3 = inlined_call_operand.vmem [shape: f32[4,1,128], index: 3, kind: output, shape index: {1}]
  %s4 = inlined_call_operand.vmem [shape: f32[4,1,128], index: 4, kind: output, shape index: {2}]
  %5 = xla_tuple %s2, %s3, %s4
  %s6 = sld [smem:[#allocation0]]
  $region57: #{wideresnet_forward.29} parent=0
    _
  %s8 = ssub.s32 1, %s6
  %s9 = scalar_select 0, %s8, %s6
  loop: start=0, step=1, limit=6
  $region2: #{wideresnet_forward.29} parent=0 // loop_pre_header
    _
  $region3: #{wideresnet_forward.29} parent=0 // loop_header
    %s11 = sphi 0, %s15
    %p12 = scmp.ge.s32.totalorder %s11, 6
    %s18 = sphi 0, %s30
    %s19 = sphi 0, %s26
    %s20 = sphi 0, %s18
    %s21 = sphi 0, %s19
    %s22 = sphi 0, %s20
    %s23 = sphi 0, %s21
    %s35 = sphi 0, %s37
    %s38 = sphi 0, %s35
    %s39 = sphi 0, %s38
    %s55 = sphi 0, %s39
    %s59 = sphi 0, %s59
    %s61 = sphi 0, %s59
    %s62 = sphi 0, %s61
    %s76 = sphi 0, %s62
    %s84 = sphi 0, %s86
    %s87 = sphi 0, %s84
    %s88 = sphi 0, %s87
    %s104 = sphi 0, %s88
    %s114 = sphi 0, %s116
    %s117 = sphi 0, %s114
    %s118 = sphi 0, %s117
    %s134 = sphi 0, %s118
    %s144 = sphi 0, %s146
    %s147 = sphi 0, %s144
    %s148 = sphi 0, %s147
    %s164 = sphi 0, %s148
  $region4: #{wideresnet_forward.29} parent=0 // loop_header_branch
    %14 = sbr.rel (%p12) target = $region8
  $region5: #{wideresnet_forward.29} parent=0 // loop_body
    %s16 = ssub.s32 %s11, 1
    %s17 = ssub.s32 %s11, 2
    %s24 = sadd.s32 1, %s19
    %p25 = scmp.ge.s32.totalorder %s24, 2
    %s26 = scalar_select %p25, 0, %s24
    %s27 = sadd.s32 1, %s18
    %s28 = scalar_select %p25, %s27, %s18
    %p29 = scmp.ge.s32.totalorder %s28, 2
    %s30 = scalar_select %p29, 0, %s28
    %s31 = ssub.s32 %s18, %s30
    %s32 = ssub.s32 %s19, %s26
    %s33 = sor.u32 %s31, %s32
    %p34 = scmp.eq.s32.totalorder %s33, 0
    %s36 = sadd.s32 %s35, 1
    %s37 = scalar_select %p34, %s35, %s36
    %p40 = pneg %p34
    %p41 = scmp.eq.s32.totalorder %s11, 3
    %p42 = por %p40, %p41
    %p43 = scmp.ne.s32.totalorder %s35, %s38
    %p44 = scmp.eq.s32.totalorder %s11, 0
    %p45 = por %p43, %p44
    %p46 = scmp.ne.s32.totalorder %s35, %s38
    %p47 = scmp.eq.s32.totalorder %s16, 3
    %p48 = por %p46, %p47
    %p49 = scmp.ne.s32.totalorder %s38, %s39
    %p50 = scmp.eq.s32.totalorder %s16, 0
    %p51 = por %p49, %p50
    %p52 = scmp.ne.s32.totalorder %s38, %s39
    %p53 = scmp.eq.s32.totalorder %s17, 3
    %p54 = por %p52, %p53
    %p56 = scmp.ne.s32.totalorder %s39, %s55
    %p57 = scmp.eq.s32.totalorder %s17, 0
    %p58 = por %p56, %p57
    %s60 = sadd.s32 %s59, 1
    %p63 = scmp.eq.s32.totalorder %s11, 3
    %p64 = scmp.ne.s32.totalorder %s59, %s61
    %p65 = scmp.eq.s32.totalorder %s11, 0
    %p66 = por %p64, %p65
    %p67 = scmp.ne.s32.totalorder %s59, %s61
    %p68 = scmp.eq.s32.totalorder %s16, 3
    %p69 = por %p67, %p68
    %p70 = scmp.ne.s32.totalorder %s61, %s62
    %p71 = scmp.eq.s32.totalorder %s16, 0
    %p72 = por %p70, %p71
    %p73 = scmp.ne.s32.totalorder %s61, %s62
    %p74 = scmp.eq.s32.totalorder %s17, 3
    %p75 = por %p73, %p74
    %p77 = scmp.ne.s32.totalorder %s62, %s76
    %p78 = scmp.eq.s32.totalorder %s17, 0
    %p79 = por %p77, %p78
    %s80 = ssub.s32 %s18, %s30
    %s81 = ssub.s32 %s19, %s26
    %s82 = sor.u32 %s80, %s81
    %p83 = scmp.eq.s32.totalorder %s82, 0
    %s85 = sadd.s32 %s84, 1
    %s86 = scalar_select %p83, %s84, %s85
    %p89 = pneg %p83
    %p90 = scmp.eq.s32.totalorder %s11, 3
    %p91 = por %p89, %p90
    %p92 = scmp.ne.s32.totalorder %s84, %s87
    %p93 = scmp.eq.s32.totalorder %s11, 0
    %p94 = por %p92, %p93
    %p95 = scmp.ne.s32.totalorder %s84, %s87
    %p96 = scmp.eq.s32.totalorder %s16, 3
    %p97 = por %p95, %p96
    %p98 = scmp.ne.s32.totalorder %s87, %s88
    %p99 = scmp.eq.s32.totalorder %s16, 0
    %p100 = por %p98, %p99
    %p101 = scmp.ne.s32.totalorder %s87, %s88
    %p102 = scmp.eq.s32.totalorder %s17, 3
    %p103 = por %p101, %p102
    %p105 = scmp.ne.s32.totalorder %s88, %s104
    %p106 = scmp.eq.s32.totalorder %s17, 0
    %p107 = por %p105, %p106
    %s108 = smul.u32 %s18, 2
    %s109 = sadd.s32 %s108, %s19
    %s110 = smul.u32 %s30, 2
    %s111 = sadd.s32 %s110, %s26
    %s112 = ssub.s32 %s109, %s111
    %p113 = scmp.eq.s32.totalorder %s112, 0
    %s115 = sadd.s32 %s114, 1
    %s116 = scalar_select %p113, %s114, %s115
    %p119 = pneg %p113
    %p120 = scmp.eq.s32.totalorder %s11, 3
    %p121 = por %p119, %p120
    %p122 = scmp.ne.s32.totalorder %s114, %s117
    %p123 = scmp.eq.s32.totalorder %s11, 0
    %p124 = por %p122, %p123
    %p125 = scmp.ne.s32.totalorder %s114, %s117
    %p126 = scmp.eq.s32.totalorder %s16, 3
    %p127 = por %p125, %p126
    %p128 = scmp.ne.s32.totalorder %s117, %s118
    %p129 = scmp.eq.s32.totalorder %s16, 0
    %p130 = por %p128, %p129
    %p131 = scmp.ne.s32.totalorder %s117, %s118
    %p132 = scmp.eq.s32.totalorder %s17, 3
    %p133 = por %p131, %p132
    %p135 = scmp.ne.s32.totalorder %s118, %s134
    %p136 = scmp.eq.s32.totalorder %s17, 0
    %p137 = por %p135, %p136
    %s138 = smul.u32 %s18, 2
    %s139 = sadd.s32 %s138, %s19
    %s140 = smul.u32 %s30, 2
    %s141 = sadd.s32 %s140, %s26
    %s142 = ssub.s32 %s139, %s141
    %p143 = scmp.eq.s32.totalorder %s142, 0
    %s145 = sadd.s32 %s144, 1
    %s146 = scalar_select %p143, %s144, %s145
    %p149 = pneg %p143
    %p150 = scmp.eq.s32.totalorder %s11, 3
    %p151 = por %p149, %p150
    %p152 = scmp.ne.s32.totalorder %s144, %s147
    %p153 = scmp.eq.s32.totalorder %s11, 0
    %p154 = por %p152, %p153
    %p155 = scmp.ne.s32.totalorder %s144, %s147
    %p156 = scmp.eq.s32.totalorder %s16, 3
    %p157 = por %p155, %p156
    %p158 = scmp.ne.s32.totalorder %s147, %s148
    %p159 = scmp.eq.s32.totalorder %s16, 0
    %p160 = por %p158, %p159
    %p161 = scmp.ne.s32.totalorder %s147, %s148
    %p162 = scmp.eq.s32.totalorder %s17, 3
    %p163 = por %p161, %p162
    %p165 = scmp.ne.s32.totalorder %s148, %s164
    %p166 = scmp.eq.s32.totalorder %s17, 0
    %p167 = por %p165, %p166
    %p168 = scmp.le.s32.totalorder 1, %s11
    %p169 = scmp.lt.s32.totalorder %s11, 5
    %p170 = pnand %p168, %p169
    %p171 = pneg %p170
    // Predicated region
    $region9: #{wideresnet_forward.29} parent=5 // pred_check
      _
    $region10: #{wideresnet_forward.29} parent=5 // pred_check_branch
      %173 = sbr.rel (%p170) target = $region12
    $region11: #{wideresnet_forward.29} parent=5 // pred_region
      %s174 = ssub.s32 %s11, 1
      // Predicated region
      $region13: #{wideresnet_forward.29} parent=11 // pred_check
        %p175 = pneg %p72
      $region14: #{wideresnet_forward.29} parent=11 // pred_check_branch
        %177 = sbr.rel (%p175) target = $region16
      $region15: #{wideresnet_forward.29} parent=11 // pred_region
        _
      $region16: #{wideresnet_forward.29} parent=11 // pred_fallthru
        _
    $region12: #{wideresnet_forward.29} parent=5 // pred_fallthru
      _
    %p178 = scmp.lt.s32.totalorder %s11, 4
    // Predicated region
    $region17: #{wideresnet_forward.29} parent=5 // pred_check
      %p179 = pneg %p178
    $region18: #{wideresnet_forward.29} parent=5 // pred_check_branch
      %181 = sbr.rel (%p179) target = $region20
    $region19: #{wideresnet_forward.29} parent=5 // pred_region
      // Predicated region
      $region21: #{wideresnet_forward.29} parent=19 // pred_check
        %p182 = pneg %p45
      $region22: #{wideresnet_forward.29} parent=19 // pred_check_branch
        %184 = sbr.rel (%p182) target = $region24
      $region23: #{wideresnet_forward.29} parent=19 // pred_region
        %s185 = smul.u32 4, %s19
        %p186 = scmp.lt.s32.totalorder %s18, 1
        %s187 = scalar_select %p186, %s18, 1
        %p188 = scmp.lt.s32.totalorder %s185, 7
        %s189 = scalar_select %p188, %s185, 7
        %s190 = smul.addr %s189, 2
        %s191 = smul.addr %s187, 16
        %s192 = sadd.s32 %s190, %s191
        %s193 = smul.addr %s192, 4
        %s194 = scalar_lea.vmem %s0, %s193
        %s195 = smul.u32 4, %s19
      $region24: #{wideresnet_forward.29} parent=19 // pred_fallthru
        _
    $region20: #{wideresnet_forward.29} parent=5 // pred_fallthru
      _
    %p196 = scmp.le.s32.totalorder 1, %s11
    %p197 = scmp.lt.s32.totalorder %s11, 5
    %p198 = pnand %p196, %p197
    %p199 = pneg %p198
    // Predicated region
    $region25: #{wideresnet_forward.29} parent=5 // pred_check
      _
    $region26: #{wideresnet_forward.29} parent=5 // pred_check_branch
      %201 = sbr.rel (%p198) target = $region28
    $region27: #{wideresnet_forward.29} parent=5 // pred_region
      %s202 = ssub.s32 %s11, 1
      %s203 = smul.u32 4, %s21
      %p204 = scmp.lt.s32.totalorder %s20, 1
      %s205 = scalar_select %p204, %s20, 1
      %p206 = scmp.lt.s32.totalorder %s203, 7
      %s207 = scalar_select %p206, %s203, 7
      %s208 = smul.addr %s207, 2
      %s209 = smul.addr %s205, 16
      %s210 = sadd.s32 %s208, %s209
      %s211 = smul.addr %s210, 4
      %s212 = scalar_lea.vmem %s0, %s211
      %p213 = pneg %p51
      %p214 = pneg %p48
      %p215 = pneg %p72
      %p216 = pneg %p69
      %p217 = pneg %p100
      %p218 = pneg %p97
      %s219 = smul.u32 4, %s21
      %p220 = scmp.lt.s32.totalorder %s20, 1
      %s221 = scalar_select %p220, %s20, 1
      %p222 = scmp.lt.s32.totalorder %s219, 7
      %s223 = scalar_select %p222, %s219, 7
      %s224 = smul.addr %s221, 8
      %s225 = sadd.s32 %s223, %s224
      %s226 = smul.addr %s225, 4
      %s227 = scalar_lea.vmem %s2, %s226
      %p228 = pneg %p130
      %p229 = pneg %p127
      %s230 = smul.u32 %s20, 2
      %s231 = sadd.s32 %s230, %s21
      %p232 = scmp.lt.s32.totalorder %s231, 3
      %s233 = scalar_select %p232, %s231, 3
      %s234 = scalar_lea.vmem %s3, %s233
      %p235 = pneg %p160
      %p236 = pneg %p157
      %s237 = smul.u32 %s20, 2
      %s238 = sadd.s32 %s237, %s21
      %p239 = scmp.lt.s32.totalorder %s238, 3
      %s240 = scalar_select %p239, %s238, 3
      %s241 = scalar_lea.vmem %s4, %s240
      %s242 = smul.u32 4, %s21
      %p243 = scmp.lt.s32.totalorder %s20, 1
      %s244 = scalar_select %p243, %s20, 1
      %p245 = scmp.lt.s32.totalorder %s242, 7
      %s246 = scalar_select %p245, %s242, 7
      %s247 = smul.addr %s246, 2
      %s248 = smul.addr %s244, 16
      %s249 = sadd.s32 %s247, %s248
      %s250 = smul.addr %s249, 4
      %s251 = scalar_lea.vmem %s0, %s250
      %s252 = smul.u32 4, %s21
      %s253 = smul.u32 4, %s21
      %p254 = scmp.lt.s32.totalorder %s20, 1
      %s255 = scalar_select %p254, %s20, 1
      %p256 = scmp.lt.s32.totalorder %s253, 7
      %s257 = scalar_select %p256, %s253, 7
      %s258 = smul.addr %s255, 8
      %s259 = sadd.s32 %s257, %s258
      %s260 = smul.addr %s259, 4
      %s261 = scalar_lea.vmem %s2, %s260
      %s262 = smul.u32 4, %s21
      %s263 = smul.u32 %s20, 2
      %s264 = sadd.s32 %s263, %s21
      %p265 = scmp.lt.s32.totalorder %s264, 3
      %s266 = scalar_select %p265, %s264, 3
      %s267 = scalar_lea.vmem %s3, %s266
      %s268 = smul.u32 %s20, 2
      %s269 = sadd.s32 %s268, %s21
      %s270 = smul.u32 %s20, 2
      %s271 = sadd.s32 %s270, %s21
      %p272 = scmp.lt.s32.totalorder %s271, 3
      %s273 = scalar_select %p272, %s271, 3
      %s274 = scalar_lea.vmem %s4, %s273
      %s275 = smul.u32 %s20, 2
      %s276 = sadd.s32 %s275, %s21
      %v278 = vld [vmem:[%s251] sm:$0xff]
      %v279 = vld [vmem:[%s251 + $0x8] sm:$0xff]
      %v280 = vld [vmem:[%s251 + $0x10] sm:$0xff]
      %v281 = vld [vmem:[%s251 + $0x18] sm:$0xff]
      %v282 = vld [vmem:[%s1] sm:$0xf]
      %v283 = vld [vmem:[%s1 + $0x4] sm:$0xf]
      %v284 = vld [vmem:[%s1 + $0x8] sm:$0xf]
      %v285 = vld [vmem:[%s1 + $0xc] sm:$0xf]
      %v286 = vld [vmem:[%s1 + $0x10] sm:$0xf]
      %v287 = vld [vmem:[%s1 + $0x14] sm:$0xf]
      %v288 = vld [vmem:[%s1 + $0x18] sm:$0xf]
      %v289 = vld [vmem:[%s1 + $0x1c] sm:$0xf]
      %v290 = vld [vmem:[%s1 + $0x20] sm:$0xf]
      %v291 = vld [vmem:[%s1 + $0x24] sm:$0xf]
      %v292 = vld [vmem:[%s1 + $0x28] sm:$0xf]
      %v293 = vld [vmem:[%s1 + $0x2c] sm:$0xf]
      %v294 = vld [vmem:[%s1 + $0x30] sm:$0xf]
      %v295 = vld [vmem:[%s1 + $0x34] sm:$0xf]
      %v296 = vld [vmem:[%s1 + $0x38] sm:$0xf]
      %v297 = vld [vmem:[%s1 + $0x3c] sm:$0xf]
      %v298 = vld [vmem:[%s1 + $0x40] sm:$0xf]
      %v299 = vld [vmem:[%s1 + $0x44] sm:$0xf]
      %v300 = vld [vmem:[%s1 + $0x48] sm:$0xf]
      %v301 = vld [vmem:[%s1 + $0x4c] sm:$0xf]
      %v302 = vld [vmem:[%s1 + $0x50] sm:$0xf]
      %v303 = vld [vmem:[%s1 + $0x54] sm:$0xf]
      %v304 = vld [vmem:[%s1 + $0x58] sm:$0xf]
      %v305 = vld [vmem:[%s1 + $0x5c] sm:$0xf]
      %v306 = vld [vmem:[%s1 + $0x60] sm:$0xf]
      %v307 = vld [vmem:[%s1 + $0x64] sm:$0xf]
      %v308 = vld [vmem:[%s1 + $0x68] sm:$0xf]
      %v309 = vld [vmem:[%s1 + $0x6c] sm:$0xf]
      %v310 = vld [vmem:[%s1 + $0x70] sm:$0xf]
      %v311 = vld [vmem:[%s1 + $0x74] sm:$0xf]
      %v312 = vld [vmem:[%s1 + $0x78] sm:$0xf]
      %v313 = vld [vmem:[%s1 + $0x7c] sm:$0xf]
      %v318 = vunpack.c.l.b16 %v278
      %v319 = vunpack.c.h.b16 %v278
      %v320 = vunpack.c.l.b16 %v279
      %v321 = vunpack.c.h.b16 %v279
      %v322 = vunpack.c.l.b16 %v280
      %v323 = vunpack.c.h.b16 %v280
      %v324 = vunpack.c.l.b16 %v281
      %v325 = vunpack.c.h.b16 %v281
      %v326 = vpack.c.b16 %v320, %v318
      %v327 = vpack.c.b16 %v321, %v319
      %v328 = vpack.c.b16 %v324, %v322
      %v329 = vpack.c.b16 %v325, %v323
      %v366 = vunpack.c.l.b16 %v282
      %v367 = vunpack.c.l.b16 %v283
      %v368 = vunpack.c.l.b16 %v284
      %v369 = vunpack.c.l.b16 %v285
      %v370 = vunpack.c.l.b16 %v286
      %v371 = vunpack.c.l.b16 %v287
      %v372 = vunpack.c.l.b16 %v288
      %v373 = vunpack.c.l.b16 %v289
      %v374 = vunpack.c.l.b16 %v290
      %v375 = vunpack.c.l.b16 %v291
      %v376 = vunpack.c.l.b16 %v292
      %v377 = vunpack.c.l.b16 %v293
      %v378 = vunpack.c.l.b16 %v294
      %v379 = vunpack.c.l.b16 %v295
      %v380 = vunpack.c.l.b16 %v296
      %v381 = vunpack.c.l.b16 %v297
      %v382 = vunpack.c.l.b16 %v298
      %v383 = vunpack.c.l.b16 %v299
      %v384 = vunpack.c.l.b16 %v300
      %v385 = vunpack.c.l.b16 %v301
      %v386 = vunpack.c.l.b16 %v302
      %v387 = vunpack.c.l.b16 %v303
      %v388 = vunpack.c.l.b16 %v304
      %v389 = vunpack.c.l.b16 %v305
      %v390 = vunpack.c.l.b16 %v306
      %v391 = vunpack.c.l.b16 %v307
      %v392 = vunpack.c.l.b16 %v308
      %v393 = vunpack.c.l.b16 %v309
      %v394 = vunpack.c.l.b16 %v310
      %v395 = vunpack.c.l.b16 %v311
      %v396 = vunpack.c.l.b16 %v312
      %v397 = vunpack.c.l.b16 %v313
      %v398 = vpack.c.b16 %v367, %v366
      %v399 = vpack.c.b16 %v369, %v368
      %v400 = vpack.c.b16 %v371, %v370
      %v401 = vpack.c.b16 %v373, %v372
      %v402 = vpack.c.b16 %v375, %v374
      %v403 = vpack.c.b16 %v377, %v376
      %v404 = vpack.c.b16 %v379, %v378
      %v405 = vpack.c.b16 %v381, %v380
      %v406 = vpack.c.b16 %v383, %v382
      %v407 = vpack.c.b16 %v385, %v384
      %v408 = vpack.c.b16 %v387, %v386
      %v409 = vpack.c.b16 %v389, %v388
      %v410 = vpack.c.b16 %v391, %v390
      %v411 = vpack.c.b16 %v393, %v392
      %v412 = vpack.c.b16 %v395, %v394
      %v413 = vpack.c.b16 %v397, %v396
      %430 = vmatprep.subr.bf16.mxu0 0
      %431 = vmatpush1.bf16.msra.mxu0 %v405
      %432 = vmatprep.subr.bf16.mxu0 0
      %433 = vmatpush1.bf16.msra.mxu0 %v404
      %434 = vmatprep.subr.bf16.mxu0 0
      %435 = vmatpush1.bf16.msra.mxu0 %v403
      %436 = vmatprep.subr.bf16.mxu0 0
      %437 = vmatpush1.bf16.msra.mxu0 %v402
      %438 = vmatprep.subr.bf16.mxu0 0
      %439 = vmatpush1.bf16.msra.mxu0 %v401
      %440 = vmatprep.subr.bf16.mxu0 0
      %441 = vmatpush1.bf16.msra.mxu0 %v400
      %442 = vmatprep.subr.bf16.mxu0 0
      %443 = vmatpush1.bf16.msra.mxu0 %v399
      %444 = vmatprep.subr.bf16.mxu0 0
      %445 = vmatpush1.bf16.msra.mxu0 %v398
      %446 = vmatprep.subr.bf16.mxu0 0
      %447 = vmatpush2.bf16.msra.mxu0 %v413
      %448 = vmatprep.subr.bf16.mxu0 0
      %449 = vmatpush2.bf16.msra.mxu0 %v412
      %450 = vmatprep.subr.bf16.mxu0 0
      %451 = vmatpush2.bf16.msra.mxu0 %v411
      %452 = vmatprep.subr.bf16.mxu0 0
      %453 = vmatpush2.bf16.msra.mxu0 %v410
      %454 = vmatprep.subr.bf16.mxu0 0
      %455 = vmatpush2.bf16.msra.mxu0 %v409
      %456 = vmatprep.subr.bf16.mxu0 0
      %457 = vmatpush2.bf16.msra.mxu0 %v408
      %458 = vmatprep.subr.bf16.mxu0 0
      %459 = vmatpush2.bf16.msra.mxu0 %v407
      %460 = vmatprep.subr.bf16.mxu0 0
      %461 = vmatpush2.bf16.msra.mxu0 %v406
      %462 = vmatprep.mubr.bf16.mxu0 %v327
      %463 = vmatmul.mubr.bf16.gmra.mxu0 %v326
      %v464 = vpop.f32.mrf.mxu0
      %v465 = vadd.f32 0.0, %v464
      %v466 = vpop.f32.mrf.mxu0
      %v467 = vpop.f32.mrf.mxu0
      %v468 = vadd.f32 0.0, %v467
      %v469 = vpop.f32.mrf.mxu0
      %470 = vmatprep.mubr.bf16.mxu0 %v329
      %471 = vmatmul.mubr.bf16.gmra.mxu0 %v328
      %v472 = vpop.f32.mrf.mxu0
      %v473 = vadd.f32 0.0, %v472
      %v474 = vpop.f32.mrf.mxu0
      %v475 = vpop.f32.mrf.mxu0
      %v476 = vadd.f32 0.0, %v475
      %v477 = vpop.f32.mrf.mxu0
      %478 = vdwg.mxu0
      %v479 = vpack.c.bf16 %v468, %v465
      %v480 = vpack.c.bf16 %v476, %v473
      %v483 = vunpack.c.l.b16 %v479
      %v484 = vunpack.c.h.b16 %v479
      %v485 = vunpack.c.l.b16 %v480
      %v486 = vunpack.c.h.b16 %v480
      %v487 = vpack.c.b16 %v483, %v483
      %v488 = vpack.c.b16 %v484, %v484
      %v489 = vpack.c.b16 %v485, %v485
      %v490 = vpack.c.b16 %v486, %v486
      %495 = vst [vmem:[%s261] sm:$0xf] %v487
      %496 = vst [vmem:[%s261 + $0x4] sm:$0xf] %v488
      %497 = vst [vmem:[%s261 + $0x8] sm:$0xf] %v489
      %498 = vst [vmem:[%s261 + $0xc] sm:$0xf] %v490
      %v499 = vadd.f32 %v465, %v468
      %v500 = vadd.f32 %v499, %v473
      %v501 = vadd.f32 %v500, %v476
      %v502 = vrot.slane %v501, 4
      %v503 = vadd.f32 %v501, %v502
      %v504 = vrot.slane %v503, 2
      %v505 = vadd.f32 %v503, %v504
      %v506 = vrot.slane %v505, 1
      %v507 = vadd.f32 %v505, %v506
      %508 = vst [vmem:[%s267] sm:$0x1] %v507
      %v509 = vmul.f32 %v465, %v465
      %v510 = vmul.f32 %v468, %v468
      %v511 = vmul.f32 %v473, %v473
      %v512 = vmul.f32 %v476, %v476
      %v513 = vadd.f32 %v509, %v510
      %v514 = vadd.f32 %v513, %v511
      %v515 = vadd.f32 %v514, %v512
      %v516 = vrot.slane %v515, 4
      %v517 = vadd.f32 %v515, %v516
      %v518 = vrot.slane %v517, 2
      %v519 = vadd.f32 %v517, %v518
      %v520 = vrot.slane %v519, 1
      %v521 = vadd.f32 %v519, %v520
      %522 = vst [vmem:[%s274] sm:$0x1] %v521
      %s523 = smul.u32 4, %s21
      %p524 = scmp.lt.s32.totalorder %s20, 1
      %s525 = scalar_select %p524, %s20, 1
      %p526 = scmp.lt.s32.totalorder %s523, 7
      %s527 = scalar_select %p526, %s523, 7
      %s528 = smul.addr %s525, 8
      %s529 = sadd.s32 %s527, %s528
      %s530 = smul.addr %s529, 4
      %s531 = scalar_lea.vmem %s2, %s530
      %s532 = smul.u32 %s20, 2
      %s533 = sadd.s32 %s532, %s21
      %p534 = scmp.lt.s32.totalorder %s533, 3
      %s535 = scalar_select %p534, %s533, 3
      %s536 = scalar_lea.vmem %s3, %s535
      %s537 = smul.u32 %s20, 2
      %s538 = sadd.s32 %s537, %s21
      %p539 = scmp.lt.s32.totalorder %s538, 3
      %s540 = scalar_select %p539, %s538, 3
      %s541 = scalar_lea.vmem %s4, %s540
      // Predicated region
      $region29: #{wideresnet_forward.29} parent=27 // pred_check
        %p542 = pneg %p97
      $region30: #{wideresnet_forward.29} parent=27 // pred_check_branch
        %544 = sbr.rel (%p542) target = $region32
      $region31: #{wideresnet_forward.29} parent=27 // pred_region
        %s545 = smul.u32 4, %s21
      $region32: #{wideresnet_forward.29} parent=27 // pred_fallthru
        _
      // Predicated region
      $region33: #{wideresnet_forward.29} parent=27 // pred_check
        %p546 = pneg %p127
      $region34: #{wideresnet_forward.29} parent=27 // pred_check_branch
        %548 = sbr.rel (%p546) target = $region36
      $region35: #{wideresnet_forward.29} parent=27 // pred_region
        %s549 = smul.u32 %s20, 2
        %s550 = sadd.s32 %s549, %s21
      $region36: #{wideresnet_forward.29} parent=27 // pred_fallthru
        _
      // Predicated region
      $region37: #{wideresnet_forward.29} parent=27 // pred_check
        %p551 = pneg %p157
      $region38: #{wideresnet_forward.29} parent=27 // pred_check_branch
        %553 = sbr.rel (%p551) target = $region40
      $region39: #{wideresnet_forward.29} parent=27 // pred_region
        %s554 = smul.u32 %s20, 2
        %s555 = sadd.s32 %s554, %s21
      $region40: #{wideresnet_forward.29} parent=27 // pred_fallthru
        _
    $region28: #{wideresnet_forward.29} parent=5 // pred_fallthru
      _
    %p556 = scmp.le.s32.totalorder 2, %s11
    // Predicated region
    $region41: #{wideresnet_forward.29} parent=5 // pred_check
      %p557 = pneg %p556
    $region42: #{wideresnet_forward.29} parent=5 // pred_check_branch
      %559 = sbr.rel (%p557) target = $region44
    $region43: #{wideresnet_forward.29} parent=5 // pred_region
      %s560 = ssub.s32 %s11, 2
      // Predicated region
      $region45: #{wideresnet_forward.29} parent=43 // pred_check
        %p561 = pneg %p103
      $region46: #{wideresnet_forward.29} parent=43 // pred_check_branch
        %563 = sbr.rel (%p561) target = $region48
      $region47: #{wideresnet_forward.29} parent=43 // pred_region
        %s564 = smul.u32 4, %s23
        %p565 = scmp.lt.s32.totalorder %s22, 1
        %s566 = scalar_select %p565, %s22, 1
        %p567 = scmp.lt.s32.totalorder %s564, 7
        %s568 = scalar_select %p567, %s564, 7
        %s569 = smul.addr %s566, 8
        %s570 = sadd.s32 %s568, %s569
        %s571 = smul.addr %s570, 4
        %s572 = scalar_lea.vmem %s2, %s571
      $region48: #{wideresnet_forward.29} parent=43 // pred_fallthru
        _
      // Predicated region
      $region49: #{wideresnet_forward.29} parent=43 // pred_check
        %p573 = pneg %p133
      $region50: #{wideresnet_forward.29} parent=43 // pred_check_branch
        %575 = sbr.rel (%p573) target = $region52
      $region51: #{wideresnet_forward.29} parent=43 // pred_region
        %s576 = smul.u32 %s22, 2
        %s577 = sadd.s32 %s576, %s23
        %p578 = scmp.lt.s32.totalorder %s577, 3
        %s579 = scalar_select %p578, %s577, 3
        %s580 = scalar_lea.vmem %s3, %s579
      $region52: #{wideresnet_forward.29} parent=43 // pred_fallthru
        _
      // Predicated region
      $region53: #{wideresnet_forward.29} parent=43 // pred_check
        %p581 = pneg %p163
      $region54: #{wideresnet_forward.29} parent=43 // pred_check_branch
        %583 = sbr.rel (%p581) target = $region56
      $region55: #{wideresnet_forward.29} parent=43 // pred_region
        %s584 = smul.u32 %s22, 2
        %s585 = sadd.s32 %s584, %s23
        %p586 = scmp.lt.s32.totalorder %s585, 3
        %s587 = scalar_select %p586, %s585, 3
        %s588 = scalar_lea.vmem %s4, %s587
      $region56: #{wideresnet_forward.29} parent=43 // pred_fallthru
        _
    $region44: #{wideresnet_forward.29} parent=5 // pred_fallthru
      _
  $region6: #{wideresnet_forward.29} parent=0 // loop_footer
    %s15 = sadd.s32 1, %s11
  $region7: #{wideresnet_forward.29} parent=0 // loop_footer_branch
    %10 = sbr.rel target = $region3
  $region8: #{wideresnet_forward.29} parent=0 // loop_exit
    _

// kernel: wideresnet_forward.32
$region0: #{wideresnet_forward.32}
  #allocation0 [shape = 'u32[]', space=smem, size = 0x4, offset = 0x4, fixed_abs, tag = 'smem constant byte address 0x4 - core index']
  #allocation1 [shape = 'u32[144,128]{1,0:T(1,128)}', space=vmem, size = 0x12000, scoped, tag = 'internal scratch']
  %s0 = inlined_call_operand.vmem [shape: bf16[128,128], index: 0, kind: input, shape index: {}]
  %s1 = inlined_call_operand.vmem [shape: bf16[128,128], index: 1, kind: input, shape index: {}]
  %s2 = inlined_call_operand.vmem [shape: f32[4,128], index: 2, kind: input, shape index: {}]
  %s3 = inlined_call_operand.vmem [shape: bf16[128,128], index: 3, kind: output, shape index: {}]
  %s4 = sld [smem:[#allocation0]]
  $region22: #{wideresnet_forward.32} parent=0
    _
  %s6 = ssub.s32 1, %s4
  %s7 = scalar_select 0, %s6, %s4
  // Predicated region
  $region2: #{wideresnet_forward.32} parent=0 // pred_check
    _
  $region3: #{wideresnet_forward.32} parent=0 // pred_check_branch
    %9 = sbr.rel (0) target = $region5
  $region4: #{wideresnet_forward.32} parent=0 // pred_region
    _
  $region5: #{wideresnet_forward.32} parent=0 // pred_fallthru
    _
  // Predicated region
  $region6: #{wideresnet_forward.32} parent=0 // pred_check
    _
  $region7: #{wideresnet_forward.32} parent=0 // pred_check_branch
    %11 = sbr.rel (0) target = $region9
  $region8: #{wideresnet_forward.32} parent=0 // pred_region
    _
  $region9: #{wideresnet_forward.32} parent=0 // pred_fallthru
    _
  // Predicated region
  $region10: #{wideresnet_forward.32} parent=0 // pred_check
    _
  $region11: #{wideresnet_forward.32} parent=0 // pred_check_branch
    %13 = sbr.rel (0) target = $region13
  $region12: #{wideresnet_forward.32} parent=0 // pred_region
    _
  $region13: #{wideresnet_forward.32} parent=0 // pred_fallthru
    _
  %v14 = vld [vmem:[%s0] sm:$0xf]
  %v15 = vld [vmem:[%s0 + $0x4] sm:$0xf]
  %v16 = vld [vmem:[%s0 + $0x8] sm:$0xf]
  %v17 = vld [vmem:[%s0 + $0xc] sm:$0xf]
  %v18 = vld [vmem:[%s0 + $0x10] sm:$0xf]
  %v19 = vld [vmem:[%s0 + $0x14] sm:$0xf]
  %v20 = vld [vmem:[%s0 + $0x18] sm:$0xf]
  %v21 = vld [vmem:[%s0 + $0x1c] sm:$0xf]
  %v22 = vld [vmem:[%s0 + $0x20] sm:$0xf]
  %v23 = vld [vmem:[%s0 + $0x24] sm:$0xf]
  %v24 = vld [vmem:[%s0 + $0x28] sm:$0xf]
  %v25 = vld [vmem:[%s0 + $0x2c] sm:$0xf]
  %v26 = vld [vmem:[%s0 + $0x30] sm:$0xf]
  %v27 = vld [vmem:[%s0 + $0x34] sm:$0xf]
  %v28 = vld [vmem:[%s0 + $0x38] sm:$0xf]
  %v29 = vld [vmem:[%s0 + $0x3c] sm:$0xf]
  %v30 = vunpack.c.l.bf16 %v14
  %v31 = vunpack.c.l.bf16 %v15
  %v32 = vunpack.c.l.bf16 %v16
  %v33 = vunpack.c.l.bf16 %v17
  %v34 = vunpack.c.l.bf16 %v18
  %v35 = vunpack.c.l.bf16 %v19
  %v36 = vunpack.c.l.bf16 %v20
  %v37 = vunpack.c.l.bf16 %v21
  %v38 = vunpack.c.l.bf16 %v22
  %v39 = vunpack.c.l.bf16 %v23
  %v40 = vunpack.c.l.bf16 %v24
  %v41 = vunpack.c.l.bf16 %v25
  %v42 = vunpack.c.l.bf16 %v26
  %v43 = vunpack.c.l.bf16 %v27
  %v44 = vunpack.c.l.bf16 %v28
  %v45 = vunpack.c.l.bf16 %v29
  %v46 = vld [vmem:[%s1] sm:$0xf]
  %v47 = vld [vmem:[%s1 + $0x4] sm:$0xf]
  %v48 = vld [vmem:[%s1 + $0x8] sm:$0xf]
  %v49 = vld [vmem:[%s1 + $0xc] sm:$0xf]
  %v50 = vld [vmem:[%s1 + $0x10] sm:$0xf]
  %v51 = vld [vmem:[%s1 + $0x14] sm:$0xf]
  %v52 = vld [vmem:[%s1 + $0x18] sm:$0xf]
  %v53 = vld [vmem:[%s1 + $0x1c] sm:$0xf]
  %v54 = vld [vmem:[%s1 + $0x20] sm:$0xf]
  %v55 = vld [vmem:[%s1 + $0x24] sm:$0xf]
  %v56 = vld [vmem:[%s1 + $0x28] sm:$0xf]
  %v57 = vld [vmem:[%s1 + $0x2c] sm:$0xf]
  %v58 = vld [vmem:[%s1 + $0x30] sm:$0xf]
  %v59 = vld [vmem:[%s1 + $0x34] sm:$0xf]
  %v60 = vld [vmem:[%s1 + $0x38] sm:$0xf]
  %v61 = vld [vmem:[%s1 + $0x3c] sm:$0xf]
  %v62 = vunpack.c.l.bf16 %v46
  %v63 = vunpack.c.l.bf16 %v47
  %v64 = vunpack.c.l.bf16 %v48
  %v65 = vunpack.c.l.bf16 %v49
  %v66 = vunpack.c.l.bf16 %v50
  %v67 = vunpack.c.l.bf16 %v51
  %v68 = vunpack.c.l.bf16 %v52
  %v69 = vunpack.c.l.bf16 %v53
  %v70 = vunpack.c.l.bf16 %v54
  %v71 = vunpack.c.l.bf16 %v55
  %v72 = vunpack.c.l.bf16 %v56
  %v73 = vunpack.c.l.bf16 %v57
  %v74 = vunpack.c.l.bf16 %v58
  %v75 = vunpack.c.l.bf16 %v59
  %v76 = vunpack.c.l.bf16 %v60
  %v77 = vunpack.c.l.bf16 %v61
  %v78 = vld [vmem:[%s2] sm:$0x1]
  %v79 = vlaneseq
  %v80 = vshrl.u32 %v79, 7
  %v81 = vsub.s32 0, %v80
  %v82 = vrot.slane %v78, %v81
  %v83 = vmul.f32 %v30, %v82
  %v84 = vmul.f32 %v31, %v82
  %v85 = vmul.f32 %v32, %v82
  %v86 = vmul.f32 %v33, %v82
  %v87 = vmul.f32 %v34, %v82
  %v88 = vmul.f32 %v35, %v82
  %v89 = vmul.f32 %v36, %v82
  %v90 = vmul.f32 %v37, %v82
  %v91 = vmul.f32 %v38, %v82
  %v92 = vmul.f32 %v39, %v82
  %v93 = vmul.f32 %v40, %v82
  %v94 = vmul.f32 %v41, %v82
  %v95 = vmul.f32 %v42, %v82
  %v96 = vmul.f32 %v43, %v82
  %v97 = vmul.f32 %v44, %v82
  %v98 = vmul.f32 %v45, %v82
  %v99 = vld [vmem:[%s2 + $0x1] sm:$0x1]
  %v100 = vlaneseq
  %v101 = vshrl.u32 %v100, 7
  %v102 = vsub.s32 0, %v101
  %v103 = vrot.slane %v99, %v102
  %v104 = vadd.f32 %v83, %v103
  %v105 = vadd.f32 %v84, %v103
  %v106 = vadd.f32 %v85, %v103
  %v107 = vadd.f32 %v86, %v103
  %v108 = vadd.f32 %v87, %v103
  %v109 = vadd.f32 %v88, %v103
  %v110 = vadd.f32 %v89, %v103
  %v111 = vadd.f32 %v90, %v103
  %v112 = vadd.f32 %v91, %v103
  %v113 = vadd.f32 %v92, %v103
  %v114 = vadd.f32 %v93, %v103
  %v115 = vadd.f32 %v94, %v103
  %v116 = vadd.f32 %v95, %v103
  %v117 = vadd.f32 %v96, %v103
  %v118 = vadd.f32 %v97, %v103
  %v119 = vadd.f32 %v98, %v103
  %v120 = vld [vmem:[%s2 + $0x2] sm:$0x1]
  %v121 = vlaneseq
  %v122 = vshrl.u32 %v121, 7
  %v123 = vsub.s32 0, %v122
  %v124 = vrot.slane %v120, %v123
  %v125 = vmul.f32 %v62, %v124
  %v126 = vmul.f32 %v63, %v124
  %v127 = vmul.f32 %v64, %v124
  %v128 = vmul.f32 %v65, %v124
  %v129 = vmul.f32 %v66, %v124
  %v130 = vmul.f32 %v67, %v124
  %v131 = vmul.f32 %v68, %v124
  %v132 = vmul.f32 %v69, %v124
  %v133 = vmul.f32 %v70, %v124
  %v134 = vmul.f32 %v71, %v124
  %v135 = vmul.f32 %v72, %v124
  %v136 = vmul.f32 %v73, %v124
  %v137 = vmul.f32 %v74, %v124
  %v138 = vmul.f32 %v75, %v124
  %v139 = vmul.f32 %v76, %v124
  %v140 = vmul.f32 %v77, %v124
  %v141 = vadd.f32 %v104, %v125
  %v142 = vadd.f32 %v105, %v126
  %v143 = vadd.f32 %v106, %v127
  %v144 = vadd.f32 %v107, %v128
  %v145 = vadd.f32 %v108, %v129
  %v146 = vadd.f32 %v109, %v130
  %v147 = vadd.f32 %v110, %v131
  %v148 = vadd.f32 %v111, %v132
  %v149 = vadd.f32 %v112, %v133
  %v150 = vadd.f32 %v113, %v134
  %v151 = vadd.f32 %v114, %v135
  %v152 = vadd.f32 %v115, %v136
  %v153 = vadd.f32 %v116, %v137
  %v154 = vadd.f32 %v117, %v138
  %v155 = vadd.f32 %v118, %v139
  %v156 = vadd.f32 %v119, %v140
  %v157 = vld [vmem:[%s2 + $0x3] sm:$0x1]
  %v158 = vlaneseq
  %v159 = vshrl.u32 %v158, 7
  %v160 = vsub.s32 0, %v159
  %v161 = vrot.slane %v157, %v160
  %v162 = vadd.f32 %v141, %v161
  %v163 = vadd.f32 %v142, %v161
  %v164 = vadd.f32 %v143, %v161
  %v165 = vadd.f32 %v144, %v161
  %v166 = vadd.f32 %v145, %v161
  %v167 = vadd.f32 %v146, %v161
  %v168 = vadd.f32 %v147, %v161
  %v169 = vadd.f32 %v148, %v161
  %v170 = vadd.f32 %v149, %v161
  %v171 = vadd.f32 %v150, %v161
  %v172 = vadd.f32 %v151, %v161
  %v173 = vadd.f32 %v152, %v161
  %v174 = vadd.f32 %v153, %v161
  %v175 = vadd.f32 %v154, %v161
  %v176 = vadd.f32 %v155, %v161
  %v177 = vadd.f32 %v156, %v161
  %v178 = vpack.c.bf16 %v163, %v162
  %v179 = vpack.c.bf16 %v165, %v164
  %v180 = vpack.c.bf16 %v167, %v166
  %v181 = vpack.c.bf16 %v169, %v168
  %v182 = vpack.c.bf16 %v171, %v170
  %v183 = vpack.c.bf16 %v173, %v172
  %v184 = vpack.c.bf16 %v175, %v174
  %v185 = vpack.c.bf16 %v177, %v176
  %v194 = vunpack.c.l.b16 %v178
  %v195 = vunpack.c.h.b16 %v178
  %v196 = vunpack.c.l.b16 %v179
  %v197 = vunpack.c.h.b16 %v179
  %v198 = vunpack.c.l.b16 %v180
  %v199 = vunpack.c.h.b16 %v180
  %v200 = vunpack.c.l.b16 %v181
  %v201 = vunpack.c.h.b16 %v181
  %v202 = vunpack.c.l.b16 %v182
  %v203 = vunpack.c.h.b16 %v182
  %v204 = vunpack.c.l.b16 %v183
  %v205 = vunpack.c.h.b16 %v183
  %v206 = vunpack.c.l.b16 %v184
  %v207 = vunpack.c.h.b16 %v184
  %v208 = vunpack.c.l.b16 %v185
  %v209 = vunpack.c.h.b16 %v185
  %v210 = vpack.c.b16 %v194, %v194
  %v211 = vpack.c.b16 %v195, %v195
  %v212 = vpack.c.b16 %v196, %v196
  %v213 = vpack.c.b16 %v197, %v197
  %v214 = vpack.c.b16 %v198, %v198
  %v215 = vpack.c.b16 %v199, %v199
  %v216 = vpack.c.b16 %v200, %v200
  %v217 = vpack.c.b16 %v201, %v201
  %v218 = vpack.c.b16 %v202, %v202
  %v219 = vpack.c.b16 %v203, %v203
  %v220 = vpack.c.b16 %v204, %v204
  %v221 = vpack.c.b16 %v205, %v205
  %v222 = vpack.c.b16 %v206, %v206
  %v223 = vpack.c.b16 %v207, %v207
  %v224 = vpack.c.b16 %v208, %v208
  %v225 = vpack.c.b16 %v209, %v209
  %242 = vst [vmem:[%s3] sm:$0xf] %v210
  %243 = vst [vmem:[%s3 + $0x4] sm:$0xf] %v211
  %244 = vst [vmem:[%s3 + $0x8] sm:$0xf] %v212
  %245 = vst [vmem:[%s3 + $0xc] sm:$0xf] %v213
  %246 = vst [vmem:[%s3 + $0x10] sm:$0xf] %v214
  %247 = vst [vmem:[%s3 + $0x14] sm:$0xf] %v215
  %248 = vst [vmem:[%s3 + $0x18] sm:$0xf] %v216
  %249 = vst [vmem:[%s3 + $0x1c] sm:$0xf] %v217
  %250 = vst [vmem:[%s3 + $0x20] sm:$0xf] %v218
  %251 = vst [vmem:[%s3 + $0x24] sm:$0xf] %v219
  %252 = vst [vmem:[%s3 + $0x28] sm:$0xf] %v220
  %253 = vst [vmem:[%s3 + $0x2c] sm:$0xf] %v221
  %254 = vst [vmem:[%s3 + $0x30] sm:$0xf] %v222
  %255 = vst [vmem:[%s3 + $0x34] sm:$0xf] %v223
  %256 = vst [vmem:[%s3 + $0x38] sm:$0xf] %v224
  %257 = vst [vmem:[%s3 + $0x3c] sm:$0xf] %v225
  // Predicated region
  $region14: #{wideresnet_forward.32} parent=0 // pred_check
    _
  $region15: #{wideresnet_forward.32} parent=0 // pred_check_branch
    %259 = sbr.rel (0) target = $region17
  $region16: #{wideresnet_forward.32} parent=0 // pred_region
    _
  $region17: #{wideresnet_forward.32} parent=0 // pred_fallthru
    _
  // Predicated region
  $region18: #{wideresnet_forward.32} parent=0 // pred_check
    _
  $region19: #{wideresnet_forward.32} parent=0 // pred_check_branch
    %261 = sbr.rel (0) target = $region21
  $region20: #{wideresnet_forward.32} parent=0 // pred_region
    _
  $region21: #{wideresnet_forward.32} parent=0 // pred_fallthru
    _

// kernel: wideresnet_forward.30
$region0: #{wideresnet_forward.30}
  #allocation0 [shape = 'u32[]', space=smem, size = 0x4, offset = 0x4, fixed_abs, tag = 'smem constant byte address 0x4 - core index']
  #allocation1 [shape = 'u32[144,128]{1,0:T(1,128)}', space=vmem, size = 0x12000, scoped, tag = 'internal scratch']
  %s0 = inlined_call_operand.vmem [shape: bf16[2,64,384], index: 0, kind: input, shape index: {}]
  %s1 = inlined_call_operand.vmem [shape: bf16[384,128], index: 1, kind: input, shape index: {}]
  %s2 = inlined_call_operand.vmem [shape: bf16[2,64,128], index: 2, kind: output, shape index: {0}]
  %s3 = inlined_call_operand.vmem [shape: f32[4,1,128], index: 3, kind: output, shape index: {1}]
  %s4 = inlined_call_operand.vmem [shape: f32[4,1,128], index: 4, kind: output, shape index: {2}]
  %5 = xla_tuple %s2, %s3, %s4
  %s6 = sld [smem:[#allocation0]]
  $region57: #{wideresnet_forward.30} parent=0
    _
  %s8 = ssub.s32 1, %s6
  %s9 = scalar_select 0, %s8, %s6
  loop: start=0, step=1, limit=6
  $region2: #{wideresnet_forward.30} parent=0 // loop_pre_header
    _
  $region3: #{wideresnet_forward.30} parent=0 // loop_header
    %s11 = sphi 0, %s15
    %p12 = scmp.ge.s32.totalorder %s11, 6
    %s18 = sphi 0, %s30
    %s19 = sphi 0, %s26
    %s20 = sphi 0, %s18
    %s21 = sphi 0, %s19
    %s22 = sphi 0, %s20
    %s23 = sphi 0, %s21
    %s35 = sphi 0, %s37
    %s38 = sphi 0, %s35
    %s39 = sphi 0, %s38
    %s55 = sphi 0, %s39
    %s59 = sphi 0, %s59
    %s61 = sphi 0, %s59
    %s62 = sphi 0, %s61
    %s76 = sphi 0, %s62
    %s84 = sphi 0, %s86
    %s87 = sphi 0, %s84
    %s88 = sphi 0, %s87
    %s104 = sphi 0, %s88
    %s114 = sphi 0, %s116
    %s117 = sphi 0, %s114
    %s118 = sphi 0, %s117
    %s134 = sphi 0, %s118
    %s144 = sphi 0, %s146
    %s147 = sphi 0, %s144
    %s148 = sphi 0, %s147
    %s164 = sphi 0, %s148
  $region4: #{wideresnet_forward.30} parent=0 // loop_header_branch
    %14 = sbr.rel (%p12) target = $region8
  $region5: #{wideresnet_forward.30} parent=0 // loop_body
    %s16 = ssub.s32 %s11, 1
    %s17 = ssub.s32 %s11, 2
    %s24 = sadd.s32 1, %s19
    %p25 = scmp.ge.s32.totalorder %s24, 2
    %s26 = scalar_select %p25, 0, %s24
    %s27 = sadd.s32 1, %s18
    %s28 = scalar_select %p25, %s27, %s18
    %p29 = scmp.ge.s32.totalorder %s28, 2
    %s30 = scalar_select %p29, 0, %s28
    %s31 = ssub.s32 %s18, %s30
    %s32 = ssub.s32 %s19, %s26
    %s33 = sor.u32 %s31, %s32
    %p34 = scmp.eq.s32.totalorder %s33, 0
    %s36 = sadd.s32 %s35, 1
    %s37 = scalar_select %p34, %s35, %s36
    %p40 = pneg %p34
    %p41 = scmp.eq.s32.totalorder %s11, 3
    %p42 = por %p40, %p41
    %p43 = scmp.ne.s32.totalorder %s35, %s38
    %p44 = scmp.eq.s32.totalorder %s11, 0
    %p45 = por %p43, %p44
    %p46 = scmp.ne.s32.totalorder %s35, %s38
    %p47 = scmp.eq.s32.totalorder %s16, 3
    %p48 = por %p46, %p47
    %p49 = scmp.ne.s32.totalorder %s38, %s39
    %p50 = scmp.eq.s32.totalorder %s16, 0
    %p51 = por %p49, %p50
    %p52 = scmp.ne.s32.totalorder %s38, %s39
    %p53 = scmp.eq.s32.totalorder %s17, 3
    %p54 = por %p52, %p53
    %p56 = scmp.ne.s32.totalorder %s39, %s55
    %p57 = scmp.eq.s32.totalorder %s17, 0
    %p58 = por %p56, %p57
    %s60 = sadd.s32 %s59, 1
    %p63 = scmp.eq.s32.totalorder %s11, 3
    %p64 = scmp.ne.s32.totalorder %s59, %s61
    %p65 = scmp.eq.s32.totalorder %s11, 0
    %p66 = por %p64, %p65
    %p67 = scmp.ne.s32.totalorder %s59, %s61
    %p68 = scmp.eq.s32.totalorder %s16, 3
    %p69 = por %p67, %p68
    %p70 = scmp.ne.s32.totalorder %s61, %s62
    %p71 = scmp.eq.s32.totalorder %s16, 0
    %p72 = por %p70, %p71
    %p73 = scmp.ne.s32.totalorder %s61, %s62
    %p74 = scmp.eq.s32.totalorder %s17, 3
    %p75 = por %p73, %p74
    %p77 = scmp.ne.s32.totalorder %s62, %s76
    %p78 = scmp.eq.s32.totalorder %s17, 0
    %p79 = por %p77, %p78
    %s80 = ssub.s32 %s18, %s30
    %s81 = ssub.s32 %s19, %s26
    %s82 = sor.u32 %s80, %s81
    %p83 = scmp.eq.s32.totalorder %s82, 0
    %s85 = sadd.s32 %s84, 1
    %s86 = scalar_select %p83, %s84, %s85
    %p89 = pneg %p83
    %p90 = scmp.eq.s32.totalorder %s11, 3
    %p91 = por %p89, %p90
    %p92 = scmp.ne.s32.totalorder %s84, %s87
    %p93 = scmp.eq.s32.totalorder %s11, 0
    %p94 = por %p92, %p93
    %p95 = scmp.ne.s32.totalorder %s84, %s87
    %p96 = scmp.eq.s32.totalorder %s16, 3
    %p97 = por %p95, %p96
    %p98 = scmp.ne.s32.totalorder %s87, %s88
    %p99 = scmp.eq.s32.totalorder %s16, 0
    %p100 = por %p98, %p99
    %p101 = scmp.ne.s32.totalorder %s87, %s88
    %p102 = scmp.eq.s32.totalorder %s17, 3
    %p103 = por %p101, %p102
    %p105 = scmp.ne.s32.totalorder %s88, %s104
    %p106 = scmp.eq.s32.totalorder %s17, 0
    %p107 = por %p105, %p106
    %s108 = smul.u32 %s18, 2
    %s109 = sadd.s32 %s108, %s19
    %s110 = smul.u32 %s30, 2
    %s111 = sadd.s32 %s110, %s26
    %s112 = ssub.s32 %s109, %s111
    %p113 = scmp.eq.s32.totalorder %s112, 0
    %s115 = sadd.s32 %s114, 1
    %s116 = scalar_select %p113, %s114, %s115
    %p119 = pneg %p113
    %p120 = scmp.eq.s32.totalorder %s11, 3
    %p121 = por %p119, %p120
    %p122 = scmp.ne.s32.totalorder %s114, %s117
    %p123 = scmp.eq.s32.totalorder %s11, 0
    %p124 = por %p122, %p123
    %p125 = scmp.ne.s32.totalorder %s114, %s117
    %p126 = scmp.eq.s32.totalorder %s16, 3
    %p127 = por %p125, %p126
    %p128 = scmp.ne.s32.totalorder %s117, %s118
    %p129 = scmp.eq.s32.totalorder %s16, 0
    %p130 = por %p128, %p129
    %p131 = scmp.ne.s32.totalorder %s117, %s118
    %p132 = scmp.eq.s32.totalorder %s17, 3
    %p133 = por %p131, %p132
    %p135 = scmp.ne.s32.totalorder %s118, %s134
    %p136 = scmp.eq.s32.totalorder %s17, 0
    %p137 = por %p135, %p136
    %s138 = smul.u32 %s18, 2
    %s139 = sadd.s32 %s138, %s19
    %s140 = smul.u32 %s30, 2
    %s141 = sadd.s32 %s140, %s26
    %s142 = ssub.s32 %s139, %s141
    %p143 = scmp.eq.s32.totalorder %s142, 0
    %s145 = sadd.s32 %s144, 1
    %s146 = scalar_select %p143, %s144, %s145
    %p149 = pneg %p143
    %p150 = scmp.eq.s32.totalorder %s11, 3
    %p151 = por %p149, %p150
    %p152 = scmp.ne.s32.totalorder %s144, %s147
    %p153 = scmp.eq.s32.totalorder %s11, 0
    %p154 = por %p152, %p153
    %p155 = scmp.ne.s32.totalorder %s144, %s147
    %p156 = scmp.eq.s32.totalorder %s16, 3
    %p157 = por %p155, %p156
    %p158 = scmp.ne.s32.totalorder %s147, %s148
    %p159 = scmp.eq.s32.totalorder %s16, 0
    %p160 = por %p158, %p159
    %p161 = scmp.ne.s32.totalorder %s147, %s148
    %p162 = scmp.eq.s32.totalorder %s17, 3
    %p163 = por %p161, %p162
    %p165 = scmp.ne.s32.totalorder %s148, %s164
    %p166 = scmp.eq.s32.totalorder %s17, 0
    %p167 = por %p165, %p166
    %p168 = scmp.le.s32.totalorder 1, %s11
    %p169 = scmp.lt.s32.totalorder %s11, 5
    %p170 = pnand %p168, %p169
    %p171 = pneg %p170
    // Predicated region
    $region9: #{wideresnet_forward.30} parent=5 // pred_check
      _
    $region10: #{wideresnet_forward.30} parent=5 // pred_check_branch
      %173 = sbr.rel (%p170) target = $region12
    $region11: #{wideresnet_forward.30} parent=5 // pred_region
      %s174 = ssub.s32 %s11, 1
      // Predicated region
      $region13: #{wideresnet_forward.30} parent=11 // pred_check
        %p175 = pneg %p72
      $region14: #{wideresnet_forward.30} parent=11 // pred_check_branch
        %177 = sbr.rel (%p175) target = $region16
      $region15: #{wideresnet_forward.30} parent=11 // pred_region
        _
      $region16: #{wideresnet_forward.30} parent=11 // pred_fallthru
        _
    $region12: #{wideresnet_forward.30} parent=5 // pred_fallthru
      _
    %p178 = scmp.lt.s32.totalorder %s11, 4
    // Predicated region
    $region17: #{wideresnet_forward.30} parent=5 // pred_check
      %p179 = pneg %p178
    $region18: #{wideresnet_forward.30} parent=5 // pred_check_branch
      %181 = sbr.rel (%p179) target = $region20
    $region19: #{wideresnet_forward.30} parent=5 // pred_region
      // Predicated region
      $region21: #{wideresnet_forward.30} parent=19 // pred_check
        %p182 = pneg %p45
      $region22: #{wideresnet_forward.30} parent=19 // pred_check_branch
        %184 = sbr.rel (%p182) target = $region24
      $region23: #{wideresnet_forward.30} parent=19 // pred_region
        %s185 = smul.u32 4, %s19
        %p186 = scmp.lt.s32.totalorder %s18, 1
        %s187 = scalar_select %p186, %s18, 1
        %p188 = scmp.lt.s32.totalorder %s185, 7
        %s189 = scalar_select %p188, %s185, 7
        %s190 = smul.addr %s189, 3
        %s191 = smul.addr %s187, 24
        %s192 = sadd.s32 %s190, %s191
        %s193 = smul.addr %s192, 4
        %s194 = scalar_lea.vmem %s0, %s193
        %s195 = smul.u32 4, %s19
      $region24: #{wideresnet_forward.30} parent=19 // pred_fallthru
        _
    $region20: #{wideresnet_forward.30} parent=5 // pred_fallthru
      _
    %p196 = scmp.le.s32.totalorder 1, %s11
    %p197 = scmp.lt.s32.totalorder %s11, 5
    %p198 = pnand %p196, %p197
    %p199 = pneg %p198
    // Predicated region
    $region25: #{wideresnet_forward.30} parent=5 // pred_check
      _
    $region26: #{wideresnet_forward.30} parent=5 // pred_check_branch
      %201 = sbr.rel (%p198) target = $region28
    $region27: #{wideresnet_forward.30} parent=5 // pred_region
      %s202 = ssub.s32 %s11, 1
      %s203 = smul.u32 4, %s21
      %p204 = scmp.lt.s32.totalorder %s20, 1
      %s205 = scalar_select %p204, %s20, 1
      %p206 = scmp.lt.s32.totalorder %s203, 7
      %s207 = scalar_select %p206, %s203, 7
      %s208 = smul.addr %s207, 3
      %s209 = smul.addr %s205, 24
      %s210 = sadd.s32 %s208, %s209
      %s211 = smul.addr %s210, 4
      %s212 = scalar_lea.vmem %s0, %s211
      %p213 = pneg %p51
      %p214 = pneg %p48
      %p215 = pneg %p72
      %p216 = pneg %p69
      %p217 = pneg %p100
      %p218 = pneg %p97
      %s219 = smul.u32 4, %s21
      %p220 = scmp.lt.s32.totalorder %s20, 1
      %s221 = scalar_select %p220, %s20, 1
      %p222 = scmp.lt.s32.totalorder %s219, 7
      %s223 = scalar_select %p222, %s219, 7
      %s224 = smul.addr %s221, 8
      %s225 = sadd.s32 %s223, %s224
      %s226 = smul.addr %s225, 4
      %s227 = scalar_lea.vmem %s2, %s226
      %p228 = pneg %p130
      %p229 = pneg %p127
      %s230 = smul.u32 %s20, 2
      %s231 = sadd.s32 %s230, %s21
      %p232 = scmp.lt.s32.totalorder %s231, 3
      %s233 = scalar_select %p232, %s231, 3
      %s234 = scalar_lea.vmem %s3, %s233
      %p235 = pneg %p160
      %p236 = pneg %p157
      %s237 = smul.u32 %s20, 2
      %s238 = sadd.s32 %s237, %s21
      %p239 = scmp.lt.s32.totalorder %s238, 3
      %s240 = scalar_select %p239, %s238, 3
      %s241 = scalar_lea.vmem %s4, %s240
      %s242 = smul.u32 4, %s21
      %p243 = scmp.lt.s32.totalorder %s20, 1
      %s244 = scalar_select %p243, %s20, 1
      %p245 = scmp.lt.s32.totalorder %s242, 7
      %s246 = scalar_select %p245, %s242, 7
      %s247 = smul.addr %s246, 3
      %s248 = smul.addr %s244, 24
      %s249 = sadd.s32 %s247, %s248
      %s250 = smul.addr %s249, 4
      %s251 = scalar_lea.vmem %s0, %s250
      %s252 = smul.u32 4, %s21
      %s253 = smul.u32 4, %s21
      %p254 = scmp.lt.s32.totalorder %s20, 1
      %s255 = scalar_select %p254, %s20, 1
      %p256 = scmp.lt.s32.totalorder %s253, 7
      %s257 = scalar_select %p256, %s253, 7
      %s258 = smul.addr %s255, 8
      %s259 = sadd.s32 %s257, %s258
      %s260 = smul.addr %s259, 4
      %s261 = scalar_lea.vmem %s2, %s260
      %s262 = smul.u32 4, %s21
      %s263 = smul.u32 %s20, 2
      %s264 = sadd.s32 %s263, %s21
      %p265 = scmp.lt.s32.totalorder %s264, 3
      %s266 = scalar_select %p265, %s264, 3
      %s267 = scalar_lea.vmem %s3, %s266
      %s268 = smul.u32 %s20, 2
      %s269 = sadd.s32 %s268, %s21
      %s270 = smul.u32 %s20, 2
      %s271 = sadd.s32 %s270, %s21
      %p272 = scmp.lt.s32.totalorder %s271, 3
      %s273 = scalar_select %p272, %s271, 3
      %s274 = scalar_lea.vmem %s4, %s273
      %s275 = smul.u32 %s20, 2
      %s276 = sadd.s32 %s275, %s21
      %v278 = vld [vmem:[%s251] sm:$0xff]
      %v279 = vld [vmem:[%s251 + $0x8] sm:$0xf]
      %v280 = vld [vmem:[%s251 + $0xc] sm:$0xff]
      %v281 = vld [vmem:[%s251 + $0x14] sm:$0xf]
      %v282 = vld [vmem:[%s251 + $0x18] sm:$0xff]
      %v283 = vld [vmem:[%s251 + $0x20] sm:$0xf]
      %v284 = vld [vmem:[%s251 + $0x24] sm:$0xff]
      %v285 = vld [vmem:[%s251 + $0x2c] sm:$0xf]
      %v286 = vld [vmem:[%s1] sm:$0xf]
      %v287 = vld [vmem:[%s1 + $0x4] sm:$0xf]
      %v288 = vld [vmem:[%s1 + $0x8] sm:$0xf]
      %v289 = vld [vmem:[%s1 + $0xc] sm:$0xf]
      %v290 = vld [vmem:[%s1 + $0x10] sm:$0xf]
      %v291 = vld [vmem:[%s1 + $0x14] sm:$0xf]
      %v292 = vld [vmem:[%s1 + $0x18] sm:$0xf]
      %v293 = vld [vmem:[%s1 + $0x1c] sm:$0xf]
      %v294 = vld [vmem:[%s1 + $0x20] sm:$0xf]
      %v295 = vld [vmem:[%s1 + $0x24] sm:$0xf]
      %v296 = vld [vmem:[%s1 + $0x28] sm:$0xf]
      %v297 = vld [vmem:[%s1 + $0x2c] sm:$0xf]
      %v298 = vld [vmem:[%s1 + $0x30] sm:$0xf]
      %v299 = vld [vmem:[%s1 + $0x34] sm:$0xf]
      %v300 = vld [vmem:[%s1 + $0x38] sm:$0xf]
      %v301 = vld [vmem:[%s1 + $0x3c] sm:$0xf]
      %v302 = vld [vmem:[%s1 + $0x40] sm:$0xf]
      %v303 = vld [vmem:[%s1 + $0x44] sm:$0xf]
      %v304 = vld [vmem:[%s1 + $0x48] sm:$0xf]
      %v305 = vld [vmem:[%s1 + $0x4c] sm:$0xf]
      %v306 = vld [vmem:[%s1 + $0x50] sm:$0xf]
      %v307 = vld [vmem:[%s1 + $0x54] sm:$0xf]
      %v308 = vld [vmem:[%s1 + $0x58] sm:$0xf]
      %v309 = vld [vmem:[%s1 + $0x5c] sm:$0xf]
      %v310 = vld [vmem:[%s1 + $0x60] sm:$0xf]
      %v311 = vld [vmem:[%s1 + $0x64] sm:$0xf]
      %v312 = vld [vmem:[%s1 + $0x68] sm:$0xf]
      %v313 = vld [vmem:[%s1 + $0x6c] sm:$0xf]
      %v314 = vld [vmem:[%s1 + $0x70] sm:$0xf]
      %v315 = vld [vmem:[%s1 + $0x74] sm:$0xf]
      %v316 = vld [vmem:[%s1 + $0x78] sm:$0xf]
      %v317 = vld [vmem:[%s1 + $0x7c] sm:$0xf]
      %v318 = vld [vmem:[%s1 + $0x80] sm:$0xf]
      %v319 = vld [vmem:[%s1 + $0x84] sm:$0xf]
      %v320 = vld [vmem:[%s1 + $0x88] sm:$0xf]
      %v321 = vld [vmem:[%s1 + $0x8c] sm:$0xf]
      %v322 = vld [vmem:[%s1 + $0x90] sm:$0xf]
      %v323 = vld [vmem:[%s1 + $0x94] sm:$0xf]
      %v324 = vld [vmem:[%s1 + $0x98] sm:$0xf]
      %v325 = vld [vmem:[%s1 + $0x9c] sm:$0xf]
      %v326 = vld [vmem:[%s1 + $0xa0] sm:$0xf]
      %v327 = vld [vmem:[%s1 + $0xa4] sm:$0xf]
      %v328 = vld [vmem:[%s1 + $0xa8] sm:$0xf]
      %v329 = vld [vmem:[%s1 + $0xac] sm:$0xf]
      %v330 = vld [vmem:[%s1 + $0xb0] sm:$0xf]
      %v331 = vld [vmem:[%s1 + $0xb4] sm:$0xf]
      %v332 = vld [vmem:[%s1 + $0xb8] sm:$0xf]
      %v333 = vld [vmem:[%s1 + $0xbc] sm:$0xf]
      %v342 = vunpack.c.l.b16 %v278
      %v343 = vunpack.c.h.b16 %v278
      %v344 = vunpack.c.l.b16 %v279
      %v345 = vunpack.c.l.b16 %v280
      %v346 = vunpack.c.h.b16 %v280
      %v347 = vunpack.c.l.b16 %v281
      %v348 = vunpack.c.l.b16 %v282
      %v349 = vunpack.c.h.b16 %v282
      %v350 = vunpack.c.l.b16 %v283
      %v351 = vunpack.c.l.b16 %v284
      %v352 = vunpack.c.h.b16 %v284
      %v353 = vunpack.c.l.b16 %v285
      %v354 = vpack.c.b16 %v345, %v342
      %v355 = vpack.c.b16 %v346, %v343
      %v356 = vpack.c.b16 %v347, %v344
      %v357 = vpack.c.b16 %v351, %v348
      %v358 = vpack.c.b16 %v352, %v349
      %v359 = vpack.c.b16 %v353, %v350
      %v414 = vunpack.c.l.b16 %v286
      %v415 = vunpack.c.l.b16 %v287
      %v416 = vunpack.c.l.b16 %v288
      %v417 = vunpack.c.l.b16 %v289
      %v418 = vunpack.c.l.b16 %v290
      %v419 = vunpack.c.l.b16 %v291
      %v420 = vunpack.c.l.b16 %v292
      %v421 = vunpack.c.l.b16 %v293
      %v422 = vunpack.c.l.b16 %v294
      %v423 = vunpack.c.l.b16 %v295
      %v424 = vunpack.c.l.b16 %v296
      %v425 = vunpack.c.l.b16 %v297
      %v426 = vunpack.c.l.b16 %v298
      %v427 = vunpack.c.l.b16 %v299
      %v428 = vunpack.c.l.b16 %v300
      %v429 = vunpack.c.l.b16 %v301
      %v430 = vunpack.c.l.b16 %v302
      %v431 = vunpack.c.l.b16 %v303
      %v432 = vunpack.c.l.b16 %v304
      %v433 = vunpack.c.l.b16 %v305
      %v434 = vunpack.c.l.b16 %v306
      %v435 = vunpack.c.l.b16 %v307
      %v436 = vunpack.c.l.b16 %v308
      %v437 = vunpack.c.l.b16 %v309
      %v438 = vunpack.c.l.b16 %v310
      %v439 = vunpack.c.l.b16 %v311
      %v440 = vunpack.c.l.b16 %v312
      %v441 = vunpack.c.l.b16 %v313
      %v442 = vunpack.c.l.b16 %v314
      %v443 = vunpack.c.l.b16 %v315
      %v444 = vunpack.c.l.b16 %v316
      %v445 = vunpack.c.l.b16 %v317
      %v446 = vunpack.c.l.b16 %v318
      %v447 = vunpack.c.l.b16 %v319
      %v448 = vunpack.c.l.b16 %v320
      %v449 = vunpack.c.l.b16 %v321
      %v450 = vunpack.c.l.b16 %v322
      %v451 = vunpack.c.l.b16 %v323
      %v452 = vunpack.c.l.b16 %v324
      %v453 = vunpack.c.l.b16 %v325
      %v454 = vunpack.c.l.b16 %v326
      %v455 = vunpack.c.l.b16 %v327
      %v456 = vunpack.c.l.b16 %v328
      %v457 = vunpack.c.l.b16 %v329
      %v458 = vunpack.c.l.b16 %v330
      %v459 = vunpack.c.l.b16 %v331
      %v460 = vunpack.c.l.b16 %v332
      %v461 = vunpack.c.l.b16 %v333
      %v462 = vpack.c.b16 %v415, %v414
      %v463 = vpack.c.b16 %v417, %v416
      %v464 = vpack.c.b16 %v419, %v418
      %v465 = vpack.c.b16 %v421, %v420
      %v466 = vpack.c.b16 %v423, %v422
      %v467 = vpack.c.b16 %v425, %v424
      %v468 = vpack.c.b16 %v427, %v426
      %v469 = vpack.c.b16 %v429, %v428
      %v470 = vpack.c.b16 %v431, %v430
      %v471 = vpack.c.b16 %v433, %v432
      %v472 = vpack.c.b16 %v435, %v434
      %v473 = vpack.c.b16 %v437, %v436
      %v474 = vpack.c.b16 %v439, %v438
      %v475 = vpack.c.b16 %v441, %v440
      %v476 = vpack.c.b16 %v443, %v442
      %v477 = vpack.c.b16 %v445, %v444
      %v478 = vpack.c.b16 %v447, %v446
      %v479 = vpack.c.b16 %v449, %v448
      %v480 = vpack.c.b16 %v451, %v450
      %v481 = vpack.c.b16 %v453, %v452
      %v482 = vpack.c.b16 %v455, %v454
      %v483 = vpack.c.b16 %v457, %v456
      %v484 = vpack.c.b16 %v459, %v458
      %v485 = vpack.c.b16 %v461, %v460
      %510 = vmatprep.subr.bf16.mxu0 0
      %511 = vmatpush1.bf16.msra.mxu0 %v469
      %512 = vmatprep.subr.bf16.mxu0 0
      %513 = vmatpush1.bf16.msra.mxu0 %v468
      %514 = vmatprep.subr.bf16.mxu0 0
      %515 = vmatpush1.bf16.msra.mxu0 %v467
      %516 = vmatprep.subr.bf16.mxu0 0
      %517 = vmatpush1.bf16.msra.mxu0 %v466
      %518 = vmatprep.subr.bf16.mxu0 0
      %519 = vmatpush1.bf16.msra.mxu0 %v465
      %520 = vmatprep.subr.bf16.mxu0 0
      %521 = vmatpush1.bf16.msra.mxu0 %v464
      %522 = vmatprep.subr.bf16.mxu0 0
      %523 = vmatpush1.bf16.msra.mxu0 %v463
      %524 = vmatprep.subr.bf16.mxu0 0
      %525 = vmatpush1.bf16.msra.mxu0 %v462
      %526 = vmatprep.subr.bf16.mxu0 0
      %527 = vmatpush2.bf16.msra.mxu0 %v477
      %528 = vmatprep.subr.bf16.mxu0 0
      %529 = vmatpush2.bf16.msra.mxu0 %v476
      %530 = vmatprep.subr.bf16.mxu0 0
      %531 = vmatpush2.bf16.msra.mxu0 %v475
      %532 = vmatprep.subr.bf16.mxu0 0
      %533 = vmatpush2.bf16.msra.mxu0 %v474
      %534 = vmatprep.subr.bf16.mxu0 0
      %535 = vmatpush2.bf16.msra.mxu0 %v473
      %536 = vmatprep.subr.bf16.mxu0 0
      %537 = vmatpush2.bf16.msra.mxu0 %v472
      %538 = vmatprep.subr.bf16.mxu0 0
      %539 = vmatpush2.bf16.msra.mxu0 %v471
      %540 = vmatprep.subr.bf16.mxu0 0
      %541 = vmatpush2.bf16.msra.mxu0 %v470
      %542 = vmatprep.mubr.bf16.mxu0 %v355
      %543 = vmatmul.mubr.bf16.gmra.mxu0 %v354
      %v544 = vpop.f32.mrf.mxu0
      %v545 = vadd.f32 0.0, %v544
      %v546 = vpop.f32.mrf.mxu0
      %v547 = vpop.f32.mrf.mxu0
      %v548 = vadd.f32 0.0, %v547
      %v549 = vpop.f32.mrf.mxu0
      %550 = vmatprep.mubr.bf16.mxu0 %v358
      %551 = vmatmul.mubr.bf16.gmra.mxu0 %v357
      %v552 = vpop.f32.mrf.mxu0
      %v553 = vadd.f32 0.0, %v552
      %v554 = vpop.f32.mrf.mxu0
      %v555 = vpop.f32.mrf.mxu0
      %v556 = vadd.f32 0.0, %v555
      %v557 = vpop.f32.mrf.mxu0
      %558 = vdwg.mxu0
      %559 = vmatprep.subr.bf16.mxu0 0
      %560 = vmatpush1.bf16.msra.mxu0 %v485
      %561 = vmatprep.subr.bf16.mxu0 0
      %562 = vmatpush1.bf16.msra.mxu0 %v484
      %563 = vmatprep.subr.bf16.mxu0 0
      %564 = vmatpush1.bf16.msra.mxu0 %v483
      %565 = vmatprep.subr.bf16.mxu0 0
      %566 = vmatpush1.bf16.msra.mxu0 %v482
      %567 = vmatprep.subr.bf16.mxu0 0
      %568 = vmatpush1.bf16.msra.mxu0 %v481
      %569 = vmatprep.subr.bf16.mxu0 0
      %570 = vmatpush1.bf16.msra.mxu0 %v480
      %571 = vmatprep.subr.bf16.mxu0 0
      %572 = vmatpush1.bf16.msra.mxu0 %v479
      %573 = vmatprep.subr.bf16.mxu0 0
      %574 = vmatpush1.bf16.msra.mxu0 %v478
      %575 = vmatprep.subr.bf16.mxu0 0
      %576 = vmatpush2.bf16.msra.mxu0 0
      %577 = vmatprep.subr.bf16.mxu0 0
      %578 = vmatpush2.bf16.msra.mxu0 0
      %579 = vmatprep.subr.bf16.mxu0 0
      %580 = vmatpush2.bf16.msra.mxu0 0
      %581 = vmatprep.subr.bf16.mxu0 0
      %582 = vmatpush2.bf16.msra.mxu0 0
      %583 = vmatprep.subr.bf16.mxu0 0
      %584 = vmatpush2.bf16.msra.mxu0 0
      %585 = vmatprep.subr.bf16.mxu0 0
      %586 = vmatpush2.bf16.msra.mxu0 0
      %587 = vmatprep.subr.bf16.mxu0 0
      %588 = vmatpush2.bf16.msra.mxu0 0
      %589 = vmatprep.subr.bf16.mxu0 0
      %590 = vmatpush2.bf16.msra.mxu0 0
      %591 = vmatprep.mubr.bf16.mxu0 0
      %592 = vmatmul.mubr.bf16.gmra.mxu0 %v356
      %v593 = vpop.f32.mrf.mxu0
      %v594 = vadd.f32 %v545, %v593
      %v595 = vpop.f32.mrf.mxu0
      %v596 = vpop.f32.mrf.mxu0
      %v597 = vadd.f32 %v548, %v596
      %v598 = vpop.f32.mrf.mxu0
      %599 = vmatprep.mubr.bf16.mxu0 0
      %600 = vmatmul.mubr.bf16.gmra.mxu0 %v359
      %v601 = vpop.f32.mrf.mxu0
      %v602 = vadd.f32 %v553, %v601
      %v603 = vpop.f32.mrf.mxu0
      %v604 = vpop.f32.mrf.mxu0
      %v605 = vadd.f32 %v556, %v604
      %v606 = vpop.f32.mrf.mxu0
      %607 = vdwg.mxu0
      %v608 = vpack.c.bf16 %v597, %v594
      %v609 = vpack.c.bf16 %v605, %v602
      %v612 = vunpack.c.l.b16 %v608
      %v613 = vunpack.c.h.b16 %v608
      %v614 = vunpack.c.l.b16 %v609
      %v615 = vunpack.c.h.b16 %v609
      %v616 = vpack.c.b16 %v612, %v612
      %v617 = vpack.c.b16 %v613, %v613
      %v618 = vpack.c.b16 %v614, %v614
      %v619 = vpack.c.b16 %v615, %v615
      %624 = vst [vmem:[%s261] sm:$0xf] %v616
      %625 = vst [vmem:[%s261 + $0x4] sm:$0xf] %v617
      %626 = vst [vmem:[%s261 + $0x8] sm:$0xf] %v618
      %627 = vst [vmem:[%s261 + $0xc] sm:$0xf] %v619
      %v628 = vadd.f32 %v594, %v597
      %v629 = vadd.f32 %v628, %v602
      %v630 = vadd.f32 %v629, %v605
      %v631 = vrot.slane %v630, 4
      %v632 = vadd.f32 %v630, %v631
      %v633 = vrot.slane %v632, 2
      %v634 = vadd.f32 %v632, %v633
      %v635 = vrot.slane %v634, 1
      %v636 = vadd.f32 %v634, %v635
      %637 = vst [vmem:[%s267] sm:$0x1] %v636
      %v638 = vmul.f32 %v594, %v594
      %v639 = vmul.f32 %v597, %v597
      %v640 = vmul.f32 %v602, %v602
      %v641 = vmul.f32 %v605, %v605
      %v642 = vadd.f32 %v638, %v639
      %v643 = vadd.f32 %v642, %v640
      %v644 = vadd.f32 %v643, %v641
      %v645 = vrot.slane %v644, 4
      %v646 = vadd.f32 %v644, %v645
      %v647 = vrot.slane %v646, 2
      %v648 = vadd.f32 %v646, %v647
      %v649 = vrot.slane %v648, 1
      %v650 = vadd.f32 %v648, %v649
      %651 = vst [vmem:[%s274] sm:$0x1] %v650
      %s652 = smul.u32 4, %s21
      %p653 = scmp.lt.s32.totalorder %s20, 1
      %s654 = scalar_select %p653, %s20, 1
      %p655 = scmp.lt.s32.totalorder %s652, 7
      %s656 = scalar_select %p655, %s652, 7
      %s657 = smul.addr %s654, 8
      %s658 = sadd.s32 %s656, %s657
      %s659 = smul.addr %s658, 4
      %s660 = scalar_lea.vmem %s2, %s659
      %s661 = smul.u32 %s20, 2
      %s662 = sadd.s32 %s661, %s21
      %p663 = scmp.lt.s32.totalorder %s662, 3
      %s664 = scalar_select %p663, %s662, 3
      %s665 = scalar_lea.vmem %s3, %s664
      %s666 = smul.u32 %s20, 2
      %s667 = sadd.s32 %s666, %s21
      %p668 = scmp.lt.s32.totalorder %s667, 3
      %s669 = scalar_select %p668, %s667, 3
      %s670 = scalar_lea.vmem %s4, %s669
      // Predicated region
      $region29: #{wideresnet_forward.30} parent=27 // pred_check
        %p671 = pneg %p97
      $region30: #{wideresnet_forward.30} parent=27 // pred_check_branch
        %673 = sbr.rel (%p671) target = $region32
      $region31: #{wideresnet_forward.30} parent=27 // pred_region
        %s674 = smul.u32 4, %s21
      $region32: #{wideresnet_forward.30} parent=27 // pred_fallthru
        _
      // Predicated region
      $region33: #{wideresnet_forward.30} parent=27 // pred_check
        %p675 = pneg %p127
      $region34: #{wideresnet_forward.30} parent=27 // pred_check_branch
        %677 = sbr.rel (%p675) target = $region36
      $region35: #{wideresnet_forward.30} parent=27 // pred_region
        %s678 = smul.u32 %s20, 2
        %s679 = sadd.s32 %s678, %s21
      $region36: #{wideresnet_forward.30} parent=27 // pred_fallthru
        _
      // Predicated region
      $region37: #{wideresnet_forward.30} parent=27 // pred_check
        %p680 = pneg %p157
      $region38: #{wideresnet_forward.30} parent=27 // pred_check_branch
        %682 = sbr.rel (%p680) target = $region40
      $region39: #{wideresnet_forward.30} parent=27 // pred_region
        %s683 = smul.u32 %s20, 2
        %s684 = sadd.s32 %s683, %s21
      $region40: #{wideresnet_forward.30} parent=27 // pred_fallthru
        _
    $region28: #{wideresnet_forward.30} parent=5 // pred_fallthru
      _
    %p685 = scmp.le.s32.totalorder 2, %s11
    // Predicated region
    $region41: #{wideresnet_forward.30} parent=5 // pred_check
      %p686 = pneg %p685
    $region42: #{wideresnet_forward.30} parent=5 // pred_check_branch
      %688 = sbr.rel (%p686) target = $region44
    $region43: #{wideresnet_forward.30} parent=5 // pred_region
      %s689 = ssub.s32 %s11, 2
      // Predicated region
      $region45: #{wideresnet_forward.30} parent=43 // pred_check
        %p690 = pneg %p103
      $region46: #{wideresnet_forward.30} parent=43 // pred_check_branch
        %692 = sbr.rel (%p690) target = $region48
      $region47: #{wideresnet_forward.30} parent=43 // pred_region
        %s693 = smul.u32 4, %s23
        %p694 = scmp.lt.s32.totalorder %s22, 1
        %s695 = scalar_select %p694, %s22, 1
        %p696 = scmp.lt.s32.totalorder %s693, 7
        %s697 = scalar_select %p696, %s693, 7
        %s698 = smul.addr %s695, 8
        %s699 = sadd.s32 %s697, %s698
        %s700 = smul.addr %s699, 4
        %s701 = scalar_lea.vmem %s2, %s700
      $region48: #{wideresnet_forward.30} parent=43 // pred_fallthru
        _
      // Predicated region
      $region49: #{wideresnet_forward.30} parent=43 // pred_check
        %p702 = pneg %p133
      $region50: #{wideresnet_forward.30} parent=43 // pred_check_branch
        %704 = sbr.rel (%p702) target = $region52
      $region51: #{wideresnet_forward.30} parent=43 // pred_region
        %s705 = smul.u32 %s22, 2
        %s706 = sadd.s32 %s705, %s23
        %p707 = scmp.lt.s32.totalorder %s706, 3
        %s708 = scalar_select %p707, %s706, 3
        %s709 = scalar_lea.vmem %s3, %s708
      $region52: #{wideresnet_forward.30} parent=43 // pred_fallthru
        _
      // Predicated region
      $region53: #{wideresnet_forward.30} parent=43 // pred_check
        %p710 = pneg %p163
      $region54: #{wideresnet_forward.30} parent=43 // pred_check_branch
        %712 = sbr.rel (%p710) target = $region56
      $region55: #{wideresnet_forward.30} parent=43 // pred_region
        %s713 = smul.u32 %s22, 2
        %s714 = sadd.s32 %s713, %s23
        %p715 = scmp.lt.s32.totalorder %s714, 3
        %s716 = scalar_select %p715, %s714, 3
        %s717 = scalar_lea.vmem %s4, %s716
      $region56: #{wideresnet_forward.30} parent=43 // pred_fallthru
        _
    $region44: #{wideresnet_forward.30} parent=5 // pred_fallthru
      _
  $region6: #{wideresnet_forward.30} parent=0 // loop_footer
    %s15 = sadd.s32 1, %s11
  $region7: #{wideresnet_forward.30} parent=0 // loop_footer_branch
    %10 = sbr.rel target = $region3
  $region8: #{wideresnet_forward.30} parent=0 // loop_exit
    _

// kernel: wideresnet_forward.36
$region0: #{wideresnet_forward.36}
  #allocation0 [shape = 'u32[]', space=smem, size = 0x4, offset = 0x4, fixed_abs, tag = 'smem constant byte address 0x4 - core index']
  #allocation1 [shape = 'u32[144,128]{1,0:T(1,128)}', space=vmem, size = 0x12000, scoped, tag = 'internal scratch']
  %s0 = inlined_call_operand.vmem [shape: bf16[2,16,384], index: 0, kind: input, shape index: {}]
  %s1 = inlined_call_operand.vmem [shape: bf16[384,128], index: 1, kind: input, shape index: {}]
  %s2 = inlined_call_operand.vmem [shape: bf16[2,16,128], index: 2, kind: output, shape index: {0}]
  %s3 = inlined_call_operand.vmem [shape: f32[2,1,128], index: 3, kind: output, shape index: {1}]
  %s4 = inlined_call_operand.vmem [shape: f32[2,1,128], index: 4, kind: output, shape index: {2}]
  %5 = xla_tuple %s2, %s3, %s4
  %s6 = sld [smem:[#allocation0]]
  $region57: #{wideresnet_forward.36} parent=0
    _
  %s8 = ssub.s32 1, %s6
  %s9 = scalar_select 0, %s8, %s6
  loop: start=0, step=1, limit=4
  $region2: #{wideresnet_forward.36} parent=0 // loop_pre_header
    _
  $region3: #{wideresnet_forward.36} parent=0 // loop_header
    %s11 = sphi 0, %s15
    %p12 = scmp.ge.s32.totalorder %s11, 4
    %s18 = sphi 0, %s30
    %s19 = sphi 0, %s26
    %s20 = sphi 0, %s18
    %s21 = sphi 0, %s19
    %s22 = sphi 0, %s20
    %s23 = sphi 0, %s21
    %s35 = sphi 0, %s37
    %s38 = sphi 0, %s35
    %s39 = sphi 0, %s38
    %s55 = sphi 0, %s39
    %s59 = sphi 0, %s59
    %s61 = sphi 0, %s59
    %s62 = sphi 0, %s61
    %s76 = sphi 0, %s62
    %s84 = sphi 0, %s86
    %s87 = sphi 0, %s84
    %s88 = sphi 0, %s87
    %s104 = sphi 0, %s88
    %s112 = sphi 0, %s114
    %s115 = sphi 0, %s112
    %s116 = sphi 0, %s115
    %s132 = sphi 0, %s116
    %s140 = sphi 0, %s142
    %s143 = sphi 0, %s140
    %s144 = sphi 0, %s143
    %s160 = sphi 0, %s144
  $region4: #{wideresnet_forward.36} parent=0 // loop_header_branch
    %14 = sbr.rel (%p12) target = $region8
  $region5: #{wideresnet_forward.36} parent=0 // loop_body
    %s16 = ssub.s32 %s11, 1
    %s17 = ssub.s32 %s11, 2
    %s24 = sadd.s32 1, %s19
    %p25 = scmp.ge.s32.totalorder %s24, 1
    %s26 = scalar_select %p25, 0, %s24
    %s27 = sadd.s32 1, %s18
    %s28 = scalar_select %p25, %s27, %s18
    %p29 = scmp.ge.s32.totalorder %s28, 2
    %s30 = scalar_select %p29, 0, %s28
    %s31 = ssub.s32 %s18, %s30
    %s32 = ssub.s32 %s19, %s26
    %s33 = sor.u32 %s31, %s32
    %p34 = scmp.eq.s32.totalorder %s33, 0
    %s36 = sadd.s32 %s35, 1
    %s37 = scalar_select %p34, %s35, %s36
    %p40 = pneg %p34
    %p41 = scmp.eq.s32.totalorder %s11, 1
    %p42 = por %p40, %p41
    %p43 = scmp.ne.s32.totalorder %s35, %s38
    %p44 = scmp.eq.s32.totalorder %s11, 0
    %p45 = por %p43, %p44
    %p46 = scmp.ne.s32.totalorder %s35, %s38
    %p47 = scmp.eq.s32.totalorder %s16, 1
    %p48 = por %p46, %p47
    %p49 = scmp.ne.s32.totalorder %s38, %s39
    %p50 = scmp.eq.s32.totalorder %s16, 0
    %p51 = por %p49, %p50
    %p52 = scmp.ne.s32.totalorder %s38, %s39
    %p53 = scmp.eq.s32.totalorder %s17, 1
    %p54 = por %p52, %p53
    %p56 = scmp.ne.s32.totalorder %s39, %s55
    %p57 = scmp.eq.s32.totalorder %s17, 0
    %p58 = por %p56, %p57
    %s60 = sadd.s32 %s59, 1
    %p63 = scmp.eq.s32.totalorder %s11, 1
    %p64 = scmp.ne.s32.totalorder %s59, %s61
    %p65 = scmp.eq.s32.totalorder %s11, 0
    %p66 = por %p64, %p65
    %p67 = scmp.ne.s32.totalorder %s59, %s61
    %p68 = scmp.eq.s32.totalorder %s16, 1
    %p69 = por %p67, %p68
    %p70 = scmp.ne.s32.totalorder %s61, %s62
    %p71 = scmp.eq.s32.totalorder %s16, 0
    %p72 = por %p70, %p71
    %p73 = scmp.ne.s32.totalorder %s61, %s62
    %p74 = scmp.eq.s32.totalorder %s17, 1
    %p75 = por %p73, %p74
    %p77 = scmp.ne.s32.totalorder %s62, %s76
    %p78 = scmp.eq.s32.totalorder %s17, 0
    %p79 = por %p77, %p78
    %s80 = ssub.s32 %s18, %s30
    %s81 = ssub.s32 %s19, %s26
    %s82 = sor.u32 %s80, %s81
    %p83 = scmp.eq.s32.totalorder %s82, 0
    %s85 = sadd.s32 %s84, 1
    %s86 = scalar_select %p83, %s84, %s85
    %p89 = pneg %p83
    %p90 = scmp.eq.s32.totalorder %s11, 1
    %p91 = por %p89, %p90
    %p92 = scmp.ne.s32.totalorder %s84, %s87
    %p93 = scmp.eq.s32.totalorder %s11, 0
    %p94 = por %p92, %p93
    %p95 = scmp.ne.s32.totalorder %s84, %s87
    %p96 = scmp.eq.s32.totalorder %s16, 1
    %p97 = por %p95, %p96
    %p98 = scmp.ne.s32.totalorder %s87, %s88
    %p99 = scmp.eq.s32.totalorder %s16, 0
    %p100 = por %p98, %p99
    %p101 = scmp.ne.s32.totalorder %s87, %s88
    %p102 = scmp.eq.s32.totalorder %s17, 1
    %p103 = por %p101, %p102
    %p105 = scmp.ne.s32.totalorder %s88, %s104
    %p106 = scmp.eq.s32.totalorder %s17, 0
    %p107 = por %p105, %p106
    %s108 = sadd.s32 %s18, %s19
    %s109 = sadd.s32 %s30, %s26
    %s110 = ssub.s32 %s108, %s109
    %p111 = scmp.eq.s32.totalorder %s110, 0
    %s113 = sadd.s32 %s112, 1
    %s114 = scalar_select %p111, %s112, %s113
    %p117 = pneg %p111
    %p118 = scmp.eq.s32.totalorder %s11, 1
    %p119 = por %p117, %p118
    %p120 = scmp.ne.s32.totalorder %s112, %s115
    %p121 = scmp.eq.s32.totalorder %s11, 0
    %p122 = por %p120, %p121
    %p123 = scmp.ne.s32.totalorder %s112, %s115
    %p124 = scmp.eq.s32.totalorder %s16, 1
    %p125 = por %p123, %p124
    %p126 = scmp.ne.s32.totalorder %s115, %s116
    %p127 = scmp.eq.s32.totalorder %s16, 0
    %p128 = por %p126, %p127
    %p129 = scmp.ne.s32.totalorder %s115, %s116
    %p130 = scmp.eq.s32.totalorder %s17, 1
    %p131 = por %p129, %p130
    %p133 = scmp.ne.s32.totalorder %s116, %s132
    %p134 = scmp.eq.s32.totalorder %s17, 0
    %p135 = por %p133, %p134
    %s136 = sadd.s32 %s18, %s19
    %s137 = sadd.s32 %s30, %s26
    %s138 = ssub.s32 %s136, %s137
    %p139 = scmp.eq.s32.totalorder %s138, 0
    %s141 = sadd.s32 %s140, 1
    %s142 = scalar_select %p139, %s140, %s141
    %p145 = pneg %p139
    %p146 = scmp.eq.s32.totalorder %s11, 1
    %p147 = por %p145, %p146
    %p148 = scmp.ne.s32.totalorder %s140, %s143
    %p149 = scmp.eq.s32.totalorder %s11, 0
    %p150 = por %p148, %p149
    %p151 = scmp.ne.s32.totalorder %s140, %s143
    %p152 = scmp.eq.s32.totalorder %s16, 1
    %p153 = por %p151, %p152
    %p154 = scmp.ne.s32.totalorder %s143, %s144
    %p155 = scmp.eq.s32.totalorder %s16, 0
    %p156 = por %p154, %p155
    %p157 = scmp.ne.s32.totalorder %s143, %s144
    %p158 = scmp.eq.s32.totalorder %s17, 1
    %p159 = por %p157, %p158
    %p161 = scmp.ne.s32.totalorder %s144, %s160
    %p162 = scmp.eq.s32.totalorder %s17, 0
    %p163 = por %p161, %p162
    %p164 = scmp.le.s32.totalorder 1, %s11
    %p165 = scmp.lt.s32.totalorder %s11, 3
    %p166 = pnand %p164, %p165
    %p167 = pneg %p166
    // Predicated region
    $region9: #{wideresnet_forward.36} parent=5 // pred_check
      _
    $region10: #{wideresnet_forward.36} parent=5 // pred_check_branch
      %169 = sbr.rel (%p166) target = $region12
    $region11: #{wideresnet_forward.36} parent=5 // pred_region
      %s170 = ssub.s32 %s11, 1
      // Predicated region
      $region13: #{wideresnet_forward.36} parent=11 // pred_check
        %p171 = pneg %p72
      $region14: #{wideresnet_forward.36} parent=11 // pred_check_branch
        %173 = sbr.rel (%p171) target = $region16
      $region15: #{wideresnet_forward.36} parent=11 // pred_region
        _
      $region16: #{wideresnet_forward.36} parent=11 // pred_fallthru
        _
    $region12: #{wideresnet_forward.36} parent=5 // pred_fallthru
      _
    %p174 = scmp.lt.s32.totalorder %s11, 2
    // Predicated region
    $region17: #{wideresnet_forward.36} parent=5 // pred_check
      %p175 = pneg %p174
    $region18: #{wideresnet_forward.36} parent=5 // pred_check_branch
      %177 = sbr.rel (%p175) target = $region20
    $region19: #{wideresnet_forward.36} parent=5 // pred_region
      // Predicated region
      $region21: #{wideresnet_forward.36} parent=19 // pred_check
        %p178 = pneg %p45
      $region22: #{wideresnet_forward.36} parent=19 // pred_check_branch
        %180 = sbr.rel (%p178) target = $region24
      $region23: #{wideresnet_forward.36} parent=19 // pred_region
        %s181 = smul.u32 2, %s19
        %p182 = scmp.lt.s32.totalorder %s18, 1
        %s183 = scalar_select %p182, %s18, 1
        %p184 = scmp.lt.s32.totalorder %s181, 1
        %s185 = scalar_select %p184, %s181, 1
        %s186 = smul.addr %s185, 3
        %s187 = smul.addr %s183, 6
        %s188 = sadd.s32 %s186, %s187
        %s189 = smul.addr %s188, 4
        %s190 = scalar_lea.vmem %s0, %s189
        %s191 = smul.u32 2, %s19
      $region24: #{wideresnet_forward.36} parent=19 // pred_fallthru
        _
    $region20: #{wideresnet_forward.36} parent=5 // pred_fallthru
      _
    %p192 = scmp.le.s32.totalorder 1, %s11
    %p193 = scmp.lt.s32.totalorder %s11, 3
    %p194 = pnand %p192, %p193
    %p195 = pneg %p194
    // Predicated region
    $region25: #{wideresnet_forward.36} parent=5 // pred_check
      _
    $region26: #{wideresnet_forward.36} parent=5 // pred_check_branch
      %197 = sbr.rel (%p194) target = $region28
    $region27: #{wideresnet_forward.36} parent=5 // pred_region
      %s198 = ssub.s32 %s11, 1
      %s199 = smul.u32 2, %s21
      %p200 = scmp.lt.s32.totalorder %s20, 1
      %s201 = scalar_select %p200, %s20, 1
      %p202 = scmp.lt.s32.totalorder %s199, 1
      %s203 = scalar_select %p202, %s199, 1
      %s204 = smul.addr %s203, 3
      %s205 = smul.addr %s201, 6
      %s206 = sadd.s32 %s204, %s205
      %s207 = smul.addr %s206, 4
      %s208 = scalar_lea.vmem %s0, %s207
      %p209 = pneg %p51
      %p210 = pneg %p48
      %p211 = pneg %p72
      %p212 = pneg %p69
      %p213 = pneg %p100
      %p214 = pneg %p97
      %s215 = smul.u32 2, %s21
      %p216 = scmp.lt.s32.totalorder %s20, 1
      %s217 = scalar_select %p216, %s20, 1
      %p218 = scmp.lt.s32.totalorder %s215, 1
      %s219 = scalar_select %p218, %s215, 1
      %s220 = smul.addr %s217, 2
      %s221 = sadd.s32 %s219, %s220
      %s222 = smul.addr %s221, 4
      %s223 = scalar_lea.vmem %s2, %s222
      %p224 = pneg %p128
      %p225 = pneg %p125
      %s226 = sadd.s32 %s20, %s21
      %p227 = scmp.lt.s32.totalorder %s226, 1
      %s228 = scalar_select %p227, %s226, 1
      %s229 = scalar_lea.vmem %s3, %s228
      %p230 = pneg %p156
      %p231 = pneg %p153
      %s232 = sadd.s32 %s20, %s21
      %p233 = scmp.lt.s32.totalorder %s232, 1
      %s234 = scalar_select %p233, %s232, 1
      %s235 = scalar_lea.vmem %s4, %s234
      %s236 = smul.u32 2, %s21
      %p237 = scmp.lt.s32.totalorder %s20, 1
      %s238 = scalar_select %p237, %s20, 1
      %p239 = scmp.lt.s32.totalorder %s236, 1
      %s240 = scalar_select %p239, %s236, 1
      %s241 = smul.addr %s240, 3
      %s242 = smul.addr %s238, 6
      %s243 = sadd.s32 %s241, %s242
      %s244 = smul.addr %s243, 4
      %s245 = scalar_lea.vmem %s0, %s244
      %s246 = smul.u32 2, %s21
      %s247 = smul.u32 2, %s21
      %p248 = scmp.lt.s32.totalorder %s20, 1
      %s249 = scalar_select %p248, %s20, 1
      %p250 = scmp.lt.s32.totalorder %s247, 1
      %s251 = scalar_select %p250, %s247, 1
      %s252 = smul.addr %s249, 2
      %s253 = sadd.s32 %s251, %s252
      %s254 = smul.addr %s253, 4
      %s255 = scalar_lea.vmem %s2, %s254
      %s256 = smul.u32 2, %s21
      %s257 = sadd.s32 %s20, %s21
      %p258 = scmp.lt.s32.totalorder %s257, 1
      %s259 = scalar_select %p258, %s257, 1
      %s260 = scalar_lea.vmem %s3, %s259
      %s261 = sadd.s32 %s20, %s21
      %s262 = sadd.s32 %s20, %s21
      %p263 = scmp.lt.s32.totalorder %s262, 1
      %s264 = scalar_select %p263, %s262, 1
      %s265 = scalar_lea.vmem %s4, %s264
      %s266 = sadd.s32 %s20, %s21
      %v268 = vld [vmem:[%s245] sm:$0xff]
      %v269 = vld [vmem:[%s245 + $0x8] sm:$0xf]
      %v270 = vld [vmem:[%s245 + $0xc] sm:$0xff]
      %v271 = vld [vmem:[%s245 + $0x14] sm:$0xf]
      %v272 = vld [vmem:[%s1] sm:$0xf]
      %v273 = vld [vmem:[%s1 + $0x4] sm:$0xf]
      %v274 = vld [vmem:[%s1 + $0x8] sm:$0xf]
      %v275 = vld [vmem:[%s1 + $0xc] sm:$0xf]
      %v276 = vld [vmem:[%s1 + $0x10] sm:$0xf]
      %v277 = vld [vmem:[%s1 + $0x14] sm:$0xf]
      %v278 = vld [vmem:[%s1 + $0x18] sm:$0xf]
      %v279 = vld [vmem:[%s1 + $0x1c] sm:$0xf]
      %v280 = vld [vmem:[%s1 + $0x20] sm:$0xf]
      %v281 = vld [vmem:[%s1 + $0x24] sm:$0xf]
      %v282 = vld [vmem:[%s1 + $0x28] sm:$0xf]
      %v283 = vld [vmem:[%s1 + $0x2c] sm:$0xf]
      %v284 = vld [vmem:[%s1 + $0x30] sm:$0xf]
      %v285 = vld [vmem:[%s1 + $0x34] sm:$0xf]
      %v286 = vld [vmem:[%s1 + $0x38] sm:$0xf]
      %v287 = vld [vmem:[%s1 + $0x3c] sm:$0xf]
      %v288 = vld [vmem:[%s1 + $0x40] sm:$0xf]
      %v289 = vld [vmem:[%s1 + $0x44] sm:$0xf]
      %v290 = vld [vmem:[%s1 + $0x48] sm:$0xf]
      %v291 = vld [vmem:[%s1 + $0x4c] sm:$0xf]
      %v292 = vld [vmem:[%s1 + $0x50] sm:$0xf]
      %v293 = vld [vmem:[%s1 + $0x54] sm:$0xf]
      %v294 = vld [vmem:[%s1 + $0x58] sm:$0xf]
      %v295 = vld [vmem:[%s1 + $0x5c] sm:$0xf]
      %v296 = vld [vmem:[%s1 + $0x60] sm:$0xf]
      %v297 = vld [vmem:[%s1 + $0x64] sm:$0xf]
      %v298 = vld [vmem:[%s1 + $0x68] sm:$0xf]
      %v299 = vld [vmem:[%s1 + $0x6c] sm:$0xf]
      %v300 = vld [vmem:[%s1 + $0x70] sm:$0xf]
      %v301 = vld [vmem:[%s1 + $0x74] sm:$0xf]
      %v302 = vld [vmem:[%s1 + $0x78] sm:$0xf]
      %v303 = vld [vmem:[%s1 + $0x7c] sm:$0xf]
      %v304 = vld [vmem:[%s1 + $0x80] sm:$0xf]
      %v305 = vld [vmem:[%s1 + $0x84] sm:$0xf]
      %v306 = vld [vmem:[%s1 + $0x88] sm:$0xf]
      %v307 = vld [vmem:[%s1 + $0x8c] sm:$0xf]
      %v308 = vld [vmem:[%s1 + $0x90] sm:$0xf]
      %v309 = vld [vmem:[%s1 + $0x94] sm:$0xf]
      %v310 = vld [vmem:[%s1 + $0x98] sm:$0xf]
      %v311 = vld [vmem:[%s1 + $0x9c] sm:$0xf]
      %v312 = vld [vmem:[%s1 + $0xa0] sm:$0xf]
      %v313 = vld [vmem:[%s1 + $0xa4] sm:$0xf]
      %v314 = vld [vmem:[%s1 + $0xa8] sm:$0xf]
      %v315 = vld [vmem:[%s1 + $0xac] sm:$0xf]
      %v316 = vld [vmem:[%s1 + $0xb0] sm:$0xf]
      %v317 = vld [vmem:[%s1 + $0xb4] sm:$0xf]
      %v318 = vld [vmem:[%s1 + $0xb8] sm:$0xf]
      %v319 = vld [vmem:[%s1 + $0xbc] sm:$0xf]
      %v324 = vunpack.c.l.b16 %v268
      %v325 = vunpack.c.h.b16 %v268
      %v326 = vunpack.c.l.b16 %v269
      %v327 = vunpack.c.l.b16 %v270
      %v328 = vunpack.c.h.b16 %v270
      %v329 = vunpack.c.l.b16 %v271
      %v330 = vpack.c.b16 %v327, %v324
      %v331 = vpack.c.b16 %v328, %v325
      %v332 = vpack.c.b16 %v329, %v326
      %v384 = vunpack.c.l.b16 %v272
      %v385 = vunpack.c.l.b16 %v273
      %v386 = vunpack.c.l.b16 %v274
      %v387 = vunpack.c.l.b16 %v275
      %v388 = vunpack.c.l.b16 %v276
      %v389 = vunpack.c.l.b16 %v277
      %v390 = vunpack.c.l.b16 %v278
      %v391 = vunpack.c.l.b16 %v279
      %v392 = vunpack.c.l.b16 %v280
      %v393 = vunpack.c.l.b16 %v281
      %v394 = vunpack.c.l.b16 %v282
      %v395 = vunpack.c.l.b16 %v283
      %v396 = vunpack.c.l.b16 %v284
      %v397 = vunpack.c.l.b16 %v285
      %v398 = vunpack.c.l.b16 %v286
      %v399 = vunpack.c.l.b16 %v287
      %v400 = vunpack.c.l.b16 %v288
      %v401 = vunpack.c.l.b16 %v289
      %v402 = vunpack.c.l.b16 %v290
      %v403 = vunpack.c.l.b16 %v291
      %v404 = vunpack.c.l.b16 %v292
      %v405 = vunpack.c.l.b16 %v293
      %v406 = vunpack.c.l.b16 %v294
      %v407 = vunpack.c.l.b16 %v295
      %v408 = vunpack.c.l.b16 %v296
      %v409 = vunpack.c.l.b16 %v297
      %v410 = vunpack.c.l.b16 %v298
      %v411 = vunpack.c.l.b16 %v299
      %v412 = vunpack.c.l.b16 %v300
      %v413 = vunpack.c.l.b16 %v301
      %v414 = vunpack.c.l.b16 %v302
      %v415 = vunpack.c.l.b16 %v303
      %v416 = vunpack.c.l.b16 %v304
      %v417 = vunpack.c.l.b16 %v305
      %v418 = vunpack.c.l.b16 %v306
      %v419 = vunpack.c.l.b16 %v307
      %v420 = vunpack.c.l.b16 %v308
      %v421 = vunpack.c.l.b16 %v309
      %v422 = vunpack.c.l.b16 %v310
      %v423 = vunpack.c.l.b16 %v311
      %v424 = vunpack.c.l.b16 %v312
      %v425 = vunpack.c.l.b16 %v313
      %v426 = vunpack.c.l.b16 %v314
      %v427 = vunpack.c.l.b16 %v315
      %v428 = vunpack.c.l.b16 %v316
      %v429 = vunpack.c.l.b16 %v317
      %v430 = vunpack.c.l.b16 %v318
      %v431 = vunpack.c.l.b16 %v319
      %v432 = vpack.c.b16 %v385, %v384
      %v433 = vpack.c.b16 %v387, %v386
      %v434 = vpack.c.b16 %v389, %v388
      %v435 = vpack.c.b16 %v391, %v390
      %v436 = vpack.c.b16 %v393, %v392
      %v437 = vpack.c.b16 %v395, %v394
      %v438 = vpack.c.b16 %v397, %v396
      %v439 = vpack.c.b16 %v399, %v398
      %v440 = vpack.c.b16 %v401, %v400
      %v441 = vpack.c.b16 %v403, %v402
      %v442 = vpack.c.b16 %v405, %v404
      %v443 = vpack.c.b16 %v407, %v406
      %v444 = vpack.c.b16 %v409, %v408
      %v445 = vpack.c.b16 %v411, %v410
      %v446 = vpack.c.b16 %v413, %v412
      %v447 = vpack.c.b16 %v415, %v414
      %v448 = vpack.c.b16 %v417, %v416
      %v449 = vpack.c.b16 %v419, %v418
      %v450 = vpack.c.b16 %v421, %v420
      %v451 = vpack.c.b16 %v423, %v422
      %v452 = vpack.c.b16 %v425, %v424
      %v453 = vpack.c.b16 %v427, %v426
      %v454 = vpack.c.b16 %v429, %v428
      %v455 = vpack.c.b16 %v431, %v430
      %480 = vmatprep.subr.bf16.mxu0 0
      %481 = vmatpush1.bf16.msra.mxu0 %v439
      %482 = vmatprep.subr.bf16.mxu0 0
      %483 = vmatpush1.bf16.msra.mxu0 %v438
      %484 = vmatprep.subr.bf16.mxu0 0
      %485 = vmatpush1.bf16.msra.mxu0 %v437
      %486 = vmatprep.subr.bf16.mxu0 0
      %487 = vmatpush1.bf16.msra.mxu0 %v436
      %488 = vmatprep.subr.bf16.mxu0 0
      %489 = vmatpush1.bf16.msra.mxu0 %v435
      %490 = vmatprep.subr.bf16.mxu0 0
      %491 = vmatpush1.bf16.msra.mxu0 %v434
      %492 = vmatprep.subr.bf16.mxu0 0
      %493 = vmatpush1.bf16.msra.mxu0 %v433
      %494 = vmatprep.subr.bf16.mxu0 0
      %495 = vmatpush1.bf16.msra.mxu0 %v432
      %496 = vmatprep.subr.bf16.mxu0 0
      %497 = vmatpush2.bf16.msra.mxu0 %v447
      %498 = vmatprep.subr.bf16.mxu0 0
      %499 = vmatpush2.bf16.msra.mxu0 %v446
      %500 = vmatprep.subr.bf16.mxu0 0
      %501 = vmatpush2.bf16.msra.mxu0 %v445
      %502 = vmatprep.subr.bf16.mxu0 0
      %503 = vmatpush2.bf16.msra.mxu0 %v444
      %504 = vmatprep.subr.bf16.mxu0 0
      %505 = vmatpush2.bf16.msra.mxu0 %v443
      %506 = vmatprep.subr.bf16.mxu0 0
      %507 = vmatpush2.bf16.msra.mxu0 %v442
      %508 = vmatprep.subr.bf16.mxu0 0
      %509 = vmatpush2.bf16.msra.mxu0 %v441
      %510 = vmatprep.subr.bf16.mxu0 0
      %511 = vmatpush2.bf16.msra.mxu0 %v440
      %512 = vmatprep.mubr.bf16.mxu0 %v331
      %513 = vmatmul.mubr.bf16.gmra.mxu0 %v330
      %v514 = vpop.f32.mrf.mxu0
      %v515 = vadd.f32 0.0, %v514
      %v516 = vpop.f32.mrf.mxu0
      %v517 = vpop.f32.mrf.mxu0
      %v518 = vadd.f32 0.0, %v517
      %v519 = vpop.f32.mrf.mxu0
      %520 = vdwg.mxu0
      %521 = vmatprep.subr.bf16.mxu0 0
      %522 = vmatpush1.bf16.msra.mxu0 %v455
      %523 = vmatprep.subr.bf16.mxu0 0
      %524 = vmatpush1.bf16.msra.mxu0 %v454
      %525 = vmatprep.subr.bf16.mxu0 0
      %526 = vmatpush1.bf16.msra.mxu0 %v453
      %527 = vmatprep.subr.bf16.mxu0 0
      %528 = vmatpush1.bf16.msra.mxu0 %v452
      %529 = vmatprep.subr.bf16.mxu0 0
      %530 = vmatpush1.bf16.msra.mxu0 %v451
      %531 = vmatprep.subr.bf16.mxu0 0
      %532 = vmatpush1.bf16.msra.mxu0 %v450
      %533 = vmatprep.subr.bf16.mxu0 0
      %534 = vmatpush1.bf16.msra.mxu0 %v449
      %535 = vmatprep.subr.bf16.mxu0 0
      %536 = vmatpush1.bf16.msra.mxu0 %v448
      %537 = vmatprep.subr.bf16.mxu0 0
      %538 = vmatpush2.bf16.msra.mxu0 0
      %539 = vmatprep.subr.bf16.mxu0 0
      %540 = vmatpush2.bf16.msra.mxu0 0
      %541 = vmatprep.subr.bf16.mxu0 0
      %542 = vmatpush2.bf16.msra.mxu0 0
      %543 = vmatprep.subr.bf16.mxu0 0
      %544 = vmatpush2.bf16.msra.mxu0 0
      %545 = vmatprep.subr.bf16.mxu0 0
      %546 = vmatpush2.bf16.msra.mxu0 0
      %547 = vmatprep.subr.bf16.mxu0 0
      %548 = vmatpush2.bf16.msra.mxu0 0
      %549 = vmatprep.subr.bf16.mxu0 0
      %550 = vmatpush2.bf16.msra.mxu0 0
      %551 = vmatprep.subr.bf16.mxu0 0
      %552 = vmatpush2.bf16.msra.mxu0 0
      %553 = vmatprep.mubr.bf16.mxu0 0
      %554 = vmatmul.mubr.bf16.gmra.mxu0 %v332
      %v555 = vpop.f32.mrf.mxu0
      %v556 = vadd.f32 %v515, %v555
      %v557 = vpop.f32.mrf.mxu0
      %v558 = vpop.f32.mrf.mxu0
      %v559 = vadd.f32 %v518, %v558
      %v560 = vpop.f32.mrf.mxu0
      %561 = vdwg.mxu0
      %v562 = vpack.c.bf16 %v559, %v556
      %v564 = vunpack.c.l.b16 %v562
      %v565 = vunpack.c.h.b16 %v562
      %v566 = vpack.c.b16 %v564, %v564
      %v567 = vpack.c.b16 %v565, %v565
      %570 = vst [vmem:[%s255] sm:$0xf] %v566
      %571 = vst [vmem:[%s255 + $0x4] sm:$0xf] %v567
      %v572 = vadd.f32 %v556, %v559
      %v573 = vrot.slane %v572, 4
      %v574 = vadd.f32 %v572, %v573
      %v575 = vrot.slane %v574, 2
      %v576 = vadd.f32 %v574, %v575
      %v577 = vrot.slane %v576, 1
      %v578 = vadd.f32 %v576, %v577
      %579 = vst [vmem:[%s260] sm:$0x1] %v578
      %v580 = vmul.f32 %v556, %v556
      %v581 = vmul.f32 %v559, %v559
      %v582 = vadd.f32 %v580, %v581
      %v583 = vrot.slane %v582, 4
      %v584 = vadd.f32 %v582, %v583
      %v585 = vrot.slane %v584, 2
      %v586 = vadd.f32 %v584, %v585
      %v587 = vrot.slane %v586, 1
      %v588 = vadd.f32 %v586, %v587
      %589 = vst [vmem:[%s265] sm:$0x1] %v588
      %s590 = smul.u32 2, %s21
      %p591 = scmp.lt.s32.totalorder %s20, 1
      %s592 = scalar_select %p591, %s20, 1
      %p593 = scmp.lt.s32.totalorder %s590, 1
      %s594 = scalar_select %p593, %s590, 1
      %s595 = smul.addr %s592, 2
      %s596 = sadd.s32 %s594, %s595
      %s597 = smul.addr %s596, 4
      %s598 = scalar_lea.vmem %s2, %s597
      %s599 = sadd.s32 %s20, %s21
      %p600 = scmp.lt.s32.totalorder %s599, 1
      %s601 = scalar_select %p600, %s599, 1
      %s602 = scalar_lea.vmem %s3, %s601
      %s603 = sadd.s32 %s20, %s21
      %p604 = scmp.lt.s32.totalorder %s603, 1
      %s605 = scalar_select %p604, %s603, 1
      %s606 = scalar_lea.vmem %s4, %s605
      // Predicated region
      $region29: #{wideresnet_forward.36} parent=27 // pred_check
        %p607 = pneg %p97
      $region30: #{wideresnet_forward.36} parent=27 // pred_check_branch
        %609 = sbr.rel (%p607) target = $region32
      $region31: #{wideresnet_forward.36} parent=27 // pred_region
        %s610 = smul.u32 2, %s21
      $region32: #{wideresnet_forward.36} parent=27 // pred_fallthru
        _
      // Predicated region
      $region33: #{wideresnet_forward.36} parent=27 // pred_check
        %p611 = pneg %p125
      $region34: #{wideresnet_forward.36} parent=27 // pred_check_branch
        %613 = sbr.rel (%p611) target = $region36
      $region35: #{wideresnet_forward.36} parent=27 // pred_region
        %s614 = sadd.s32 %s20, %s21
      $region36: #{wideresnet_forward.36} parent=27 // pred_fallthru
        _
      // Predicated region
      $region37: #{wideresnet_forward.36} parent=27 // pred_check
        %p615 = pneg %p153
      $region38: #{wideresnet_forward.36} parent=27 // pred_check_branch
        %617 = sbr.rel (%p615) target = $region40
      $region39: #{wideresnet_forward.36} parent=27 // pred_region
        %s618 = sadd.s32 %s20, %s21
      $region40: #{wideresnet_forward.36} parent=27 // pred_fallthru
        _
    $region28: #{wideresnet_forward.36} parent=5 // pred_fallthru
      _
    %p619 = scmp.le.s32.totalorder 2, %s11
    // Predicated region
    $region41: #{wideresnet_forward.36} parent=5 // pred_check
      %p620 = pneg %p619
    $region42: #{wideresnet_forward.36} parent=5 // pred_check_branch
      %622 = sbr.rel (%p620) target = $region44
    $region43: #{wideresnet_forward.36} parent=5 // pred_region
      %s623 = ssub.s32 %s11, 2
      // Predicated region
      $region45: #{wideresnet_forward.36} parent=43 // pred_check
        %p624 = pneg %p103
      $region46: #{wideresnet_forward.36} parent=43 // pred_check_branch
        %626 = sbr.rel (%p624) target = $region48
      $region47: #{wideresnet_forward.36} parent=43 // pred_region
        %s627 = smul.u32 2, %s23
        %p628 = scmp.lt.s32.totalorder %s22, 1
        %s629 = scalar_select %p628, %s22, 1
        %p630 = scmp.lt.s32.totalorder %s627, 1
        %s631 = scalar_select %p630, %s627, 1
        %s632 = smul.addr %s629, 2
        %s633 = sadd.s32 %s631, %s632
        %s634 = smul.addr %s633, 4
        %s635 = scalar_lea.vmem %s2, %s634
      $region48: #{wideresnet_forward.36} parent=43 // pred_fallthru
        _
      // Predicated region
      $region49: #{wideresnet_forward.36} parent=43 // pred_check
        %p636 = pneg %p131
      $region50: #{wideresnet_forward.36} parent=43 // pred_check_branch
        %638 = sbr.rel (%p636) target = $region52
      $region51: #{wideresnet_forward.36} parent=43 // pred_region
        %s639 = sadd.s32 %s22, %s23
        %p640 = scmp.lt.s32.totalorder %s639, 1
        %s641 = scalar_select %p640, %s639, 1
        %s642 = scalar_lea.vmem %s3, %s641
      $region52: #{wideresnet_forward.36} parent=43 // pred_fallthru
        _
      // Predicated region
      $region53: #{wideresnet_forward.36} parent=43 // pred_check
        %p643 = pneg %p159
      $region54: #{wideresnet_forward.36} parent=43 // pred_check_branch
        %645 = sbr.rel (%p643) target = $region56
      $region55: #{wideresnet_forward.36} parent=43 // pred_region
        %s646 = sadd.s32 %s22, %s23
        %p647 = scmp.lt.s32.totalorder %s646, 1
        %s648 = scalar_select %p647, %s646, 1
        %s649 = scalar_lea.vmem %s4, %s648
      $region56: #{wideresnet_forward.36} parent=43 // pred_fallthru
        _
    $region44: #{wideresnet_forward.36} parent=5 // pred_fallthru
      _
  $region6: #{wideresnet_forward.36} parent=0 // loop_footer
    %s15 = sadd.s32 1, %s11
  $region7: #{wideresnet_forward.36} parent=0 // loop_footer_branch
    %10 = sbr.rel target = $region3
  $region8: #{wideresnet_forward.36} parent=0 // loop_exit
    _

// kernel: wideresnet_forward.39
$region0: #{wideresnet_forward.39}
  #allocation0 [shape = 'u32[]', space=smem, size = 0x4, offset = 0x4, fixed_abs, tag = 'smem constant byte address 0x4 - core index']
  #allocation1 [shape = 'u32[144,128]{1,0:T(1,128)}', space=vmem, size = 0x12000, scoped, tag = 'internal scratch']
  %s0 = inlined_call_operand.vmem [shape: bf16[32,128], index: 0, kind: input, shape index: {}]
  %s1 = inlined_call_operand.vmem [shape: bf16[32,128], index: 1, kind: input, shape index: {}]
  %s2 = inlined_call_operand.vmem [shape: f32[4,128], index: 2, kind: input, shape index: {}]
  %s3 = inlined_call_operand.vmem [shape: bf16[32,128], index: 3, kind: output, shape index: {}]
  %s4 = sld [smem:[#allocation0]]
  $region22: #{wideresnet_forward.39} parent=0
    _
  %s6 = ssub.s32 1, %s4
  %s7 = scalar_select 0, %s6, %s4
  // Predicated region
  $region2: #{wideresnet_forward.39} parent=0 // pred_check
    _
  $region3: #{wideresnet_forward.39} parent=0 // pred_check_branch
    %9 = sbr.rel (0) target = $region5
  $region4: #{wideresnet_forward.39} parent=0 // pred_region
    _
  $region5: #{wideresnet_forward.39} parent=0 // pred_fallthru
    _
  // Predicated region
  $region6: #{wideresnet_forward.39} parent=0 // pred_check
    _
  $region7: #{wideresnet_forward.39} parent=0 // pred_check_branch
    %11 = sbr.rel (0) target = $region9
  $region8: #{wideresnet_forward.39} parent=0 // pred_region
    _
  $region9: #{wideresnet_forward.39} parent=0 // pred_fallthru
    _
  // Predicated region
  $region10: #{wideresnet_forward.39} parent=0 // pred_check
    _
  $region11: #{wideresnet_forward.39} parent=0 // pred_check_branch
    %13 = sbr.rel (0) target = $region13
  $region12: #{wideresnet_forward.39} parent=0 // pred_region
    _
  $region13: #{wideresnet_forward.39} parent=0 // pred_fallthru
    _
  %v14 = vld [vmem:[%s0] sm:$0xf]
  %v15 = vld [vmem:[%s0 + $0x4] sm:$0xf]
  %v16 = vld [vmem:[%s0 + $0x8] sm:$0xf]
  %v17 = vld [vmem:[%s0 + $0xc] sm:$0xf]
  %v18 = vunpack.c.l.bf16 %v14
  %v19 = vunpack.c.l.bf16 %v15
  %v20 = vunpack.c.l.bf16 %v16
  %v21 = vunpack.c.l.bf16 %v17
  %v22 = vld [vmem:[%s1] sm:$0xf]
  %v23 = vld [vmem:[%s1 + $0x4] sm:$0xf]
  %v24 = vld [vmem:[%s1 + $0x8] sm:$0xf]
  %v25 = vld [vmem:[%s1 + $0xc] sm:$0xf]
  %v26 = vunpack.c.l.bf16 %v22
  %v27 = vunpack.c.l.bf16 %v23
  %v28 = vunpack.c.l.bf16 %v24
  %v29 = vunpack.c.l.bf16 %v25
  %v30 = vld [vmem:[%s2] sm:$0x1]
  %v31 = vlaneseq
  %v32 = vshrl.u32 %v31, 7
  %v33 = vsub.s32 0, %v32
  %v34 = vrot.slane %v30, %v33
  %v35 = vmul.f32 %v18, %v34
  %v36 = vmul.f32 %v19, %v34
  %v37 = vmul.f32 %v20, %v34
  %v38 = vmul.f32 %v21, %v34
  %v39 = vld [vmem:[%s2 + $0x1] sm:$0x1]
  %v40 = vlaneseq
  %v41 = vshrl.u32 %v40, 7
  %v42 = vsub.s32 0, %v41
  %v43 = vrot.slane %v39, %v42
  %v44 = vadd.f32 %v35, %v43
  %v45 = vadd.f32 %v36, %v43
  %v46 = vadd.f32 %v37, %v43
  %v47 = vadd.f32 %v38, %v43
  %v48 = vld [vmem:[%s2 + $0x2] sm:$0x1]
  %v49 = vlaneseq
  %v50 = vshrl.u32 %v49, 7
  %v51 = vsub.s32 0, %v50
  %v52 = vrot.slane %v48, %v51
  %v53 = vmul.f32 %v26, %v52
  %v54 = vmul.f32 %v27, %v52
  %v55 = vmul.f32 %v28, %v52
  %v56 = vmul.f32 %v29, %v52
  %v57 = vadd.f32 %v44, %v53
  %v58 = vadd.f32 %v45, %v54
  %v59 = vadd.f32 %v46, %v55
  %v60 = vadd.f32 %v47, %v56
  %v61 = vld [vmem:[%s2 + $0x3] sm:$0x1]
  %v62 = vlaneseq
  %v63 = vshrl.u32 %v62, 7
  %v64 = vsub.s32 0, %v63
  %v65 = vrot.slane %v61, %v64
  %v66 = vadd.f32 %v57, %v65
  %v67 = vadd.f32 %v58, %v65
  %v68 = vadd.f32 %v59, %v65
  %v69 = vadd.f32 %v60, %v65
  %v70 = vpack.c.bf16 %v67, %v66
  %v71 = vpack.c.bf16 %v69, %v68
  %v74 = vunpack.c.l.b16 %v70
  %v75 = vunpack.c.h.b16 %v70
  %v76 = vunpack.c.l.b16 %v71
  %v77 = vunpack.c.h.b16 %v71
  %v78 = vpack.c.b16 %v74, %v74
  %v79 = vpack.c.b16 %v75, %v75
  %v80 = vpack.c.b16 %v76, %v76
  %v81 = vpack.c.b16 %v77, %v77
  %86 = vst [vmem:[%s3] sm:$0xf] %v78
  %87 = vst [vmem:[%s3 + $0x4] sm:$0xf] %v79
  %88 = vst [vmem:[%s3 + $0x8] sm:$0xf] %v80
  %89 = vst [vmem:[%s3 + $0xc] sm:$0xf] %v81
  // Predicated region
  $region14: #{wideresnet_forward.39} parent=0 // pred_check
    _
  $region15: #{wideresnet_forward.39} parent=0 // pred_check_branch
    %91 = sbr.rel (0) target = $region17
  $region16: #{wideresnet_forward.39} parent=0 // pred_region
    _
  $region17: #{wideresnet_forward.39} parent=0 // pred_fallthru
    _
  // Predicated region
  $region18: #{wideresnet_forward.39} parent=0 // pred_check
    _
  $region19: #{wideresnet_forward.39} parent=0 // pred_check_branch
    %93 = sbr.rel (0) target = $region21
  $region20: #{wideresnet_forward.39} parent=0 // pred_region
    _
  $region21: #{wideresnet_forward.39} parent=0 // pred_fallthru
    _

// kernel: wideresnet_forward.43
$region0: #{wideresnet_forward.43}
  #allocation0 [shape = 'u32[]', space=smem, size = 0x4, offset = 0x4, fixed_abs, tag = 'smem constant byte address 0x4 - core index']
  #allocation1 [shape = 'u32[144,128]{1,0:T(1,128)}', space=vmem, size = 0x12000, scoped, tag = 'internal scratch']
  %s0 = inlined_call_operand.vmem [shape: bf16[2,16,128], index: 0, kind: input, shape index: {}]
  %s1 = inlined_call_operand.vmem [shape: f32[128,128], index: 1, kind: input, shape index: {}]
  %s2 = inlined_call_operand.vmem [shape: f32[1,128], index: 2, kind: input, shape index: {}]
  %s3 = inlined_call_operand.hbm [shape: f32[2,1,128], index: 3, kind: output, shape index: {}]
  %s4 = sld [smem:[#allocation0]]
  $region45: #{wideresnet_forward.43} parent=0
    _
  %s6 = ssub.s32 1, %s4
  %s7 = scalar_select 0, %s6, %s4
  $region1: #{wideresnet_forward.43} parent=0
    #allocation2 [shape = 'u8[1024]{0}', space=vmem, size = 0x400, scoped, tag = 'output window, operand 0']
    #allocation3 [shape = 's32[2]{0}', space=sflag, size = 0x8, scoped, tag = 'scoped memory for wideresnet_forward.43']
    %8 = vsyncpa [#allocation3], 0
    %s9 = scalar_lea.sflag [#allocation3], 1
    %10 = vsyncpa %s9, 0
    loop: start=0, step=1, limit=4
    $region2: #{wideresnet_forward.43} parent=1 // loop_pre_header
      _
    $region3: #{wideresnet_forward.43} parent=1 // loop_header
      %s12 = sphi 0, %s16
      %p13 = scmp.ge.s32.totalorder %s12, 4
      %s22 = sphi 0, %s24
      %s25 = sphi 0, %s22
      %s26 = sphi 0, %s25
      %s42 = sphi 0, %s26
      %s46 = sphi 0, %s46
      %s48 = sphi 0, %s46
      %s49 = sphi 0, %s48
      %s63 = sphi 0, %s49
      %s67 = sphi 0, %s67
      %s69 = sphi 0, %s67
      %s70 = sphi 0, %s69
      %s84 = sphi 0, %s70
      %s90 = sphi 0, %s92
      %s93 = sphi 0, %s90
      %s94 = sphi 0, %s93
      %s110 = sphi 0, %s94
    $region4: #{wideresnet_forward.43} parent=1 // loop_header_branch
      %15 = sbr.rel (%p13) target = $region8
    $region5: #{wideresnet_forward.43} parent=1 // loop_body
      %s17 = ssub.s32 %s12, 1
      %s18 = ssub.s32 %s12, 2
      %s19 = sadd.s32 %s12, 1
      %s20 = ssub.s32 %s12, %s19
      %p21 = scmp.eq.s32.totalorder %s20, 0
      %s23 = sadd.s32 %s22, 1
      %s24 = scalar_select %p21, %s22, %s23
      %p27 = pneg %p21
      %p28 = scmp.eq.s32.totalorder %s12, 1
      %p29 = por %p27, %p28
      %p30 = scmp.ne.s32.totalorder %s22, %s25
      %p31 = scmp.eq.s32.totalorder %s12, 0
      %p32 = por %p30, %p31
      %p33 = scmp.ne.s32.totalorder %s22, %s25
      %p34 = scmp.eq.s32.totalorder %s17, 1
      %p35 = por %p33, %p34
      %p36 = scmp.ne.s32.totalorder %s25, %s26
      %p37 = scmp.eq.s32.totalorder %s17, 0
      %p38 = por %p36, %p37
      %p39 = scmp.ne.s32.totalorder %s25, %s26
      %p40 = scmp.eq.s32.totalorder %s18, 1
      %p41 = por %p39, %p40
      %p43 = scmp.ne.s32.totalorder %s26, %s42
      %p44 = scmp.eq.s32.totalorder %s18, 0
      %p45 = por %p43, %p44
      %s47 = sadd.s32 %s46, 1
      %p50 = scmp.eq.s32.totalorder %s12, 1
      %p51 = scmp.ne.s32.totalorder %s46, %s48
      %p52 = scmp.eq.s32.totalorder %s12, 0
      %p53 = por %p51, %p52
      %p54 = scmp.ne.s32.totalorder %s46, %s48
      %p55 = scmp.eq.s32.totalorder %s17, 1
      %p56 = por %p54, %p55
      %p57 = scmp.ne.s32.totalorder %s48, %s49
      %p58 = scmp.eq.s32.totalorder %s17, 0
      %p59 = por %p57, %p58
      %p60 = scmp.ne.s32.totalorder %s48, %s49
      %p61 = scmp.eq.s32.totalorder %s18, 1
      %p62 = por %p60, %p61
      %p64 = scmp.ne.s32.totalorder %s49, %s63
      %p65 = scmp.eq.s32.totalorder %s18, 0
      %p66 = por %p64, %p65
      %s68 = sadd.s32 %s67, 1
      %p71 = scmp.eq.s32.totalorder %s12, 1
      %p72 = scmp.ne.s32.totalorder %s67, %s69
      %p73 = scmp.eq.s32.totalorder %s12, 0
      %p74 = por %p72, %p73
      %p75 = scmp.ne.s32.totalorder %s67, %s69
      %p76 = scmp.eq.s32.totalorder %s17, 1
      %p77 = por %p75, %p76
      %p78 = scmp.ne.s32.totalorder %s69, %s70
      %p79 = scmp.eq.s32.totalorder %s17, 0
      %p80 = por %p78, %p79
      %p81 = scmp.ne.s32.totalorder %s69, %s70
      %p82 = scmp.eq.s32.totalorder %s18, 1
      %p83 = por %p81, %p82
      %p85 = scmp.ne.s32.totalorder %s70, %s84
      %p86 = scmp.eq.s32.totalorder %s18, 0
      %p87 = por %p85, %p86
      %s88 = ssub.s32 %s12, %s19
      %p89 = scmp.eq.s32.totalorder %s88, 0
      %s91 = sadd.s32 %s90, 1
      %s92 = scalar_select %p89, %s90, %s91
      %p95 = pneg %p89
      %p96 = scmp.eq.s32.totalorder %s12, 1
      %p97 = por %p95, %p96
      %p98 = scmp.ne.s32.totalorder %s90, %s93
      %p99 = scmp.eq.s32.totalorder %s12, 0
      %p100 = por %p98, %p99
      %p101 = scmp.ne.s32.totalorder %s90, %s93
      %p102 = scmp.eq.s32.totalorder %s17, 1
      %p103 = por %p101, %p102
      %p104 = scmp.ne.s32.totalorder %s93, %s94
      %p105 = scmp.eq.s32.totalorder %s17, 0
      %p106 = por %p104, %p105
      %p107 = scmp.ne.s32.totalorder %s93, %s94
      %p108 = scmp.eq.s32.totalorder %s18, 1
      %p109 = por %p107, %p108
      %p111 = scmp.ne.s32.totalorder %s94, %s110
      %p112 = scmp.eq.s32.totalorder %s18, 0
      %p113 = por %p111, %p112
      %p114 = scmp.le.s32.totalorder 1, %s12
      %p115 = scmp.lt.s32.totalorder %s12, 3
      %p116 = pnand %p114, %p115
      %p117 = pneg %p116
      // Predicated region
      $region9: #{wideresnet_forward.43} parent=5 // pred_check
        _
      $region10: #{wideresnet_forward.43} parent=5 // pred_check_branch
        %119 = sbr.rel (%p116) target = $region12
      $region11: #{wideresnet_forward.43} parent=5 // pred_region
        %s120 = ssub.s32 %s12, 1
        // Predicated region
        $region13: #{wideresnet_forward.43} parent=11 // pred_check
          %p121 = pneg %p59
        $region14: #{wideresnet_forward.43} parent=11 // pred_check_branch
          %123 = sbr.rel (%p121) target = $region16
        $region15: #{wideresnet_forward.43} parent=11 // pred_region
          _
        $region16: #{wideresnet_forward.43} parent=11 // pred_fallthru
          _
        // Predicated region
        $region17: #{wideresnet_forward.43} parent=11 // pred_check
          %p124 = pneg %p80
        $region18: #{wideresnet_forward.43} parent=11 // pred_check_branch
          %126 = sbr.rel (%p124) target = $region20
        $region19: #{wideresnet_forward.43} parent=11 // pred_region
          _
        $region20: #{wideresnet_forward.43} parent=11 // pred_fallthru
          _
      $region12: #{wideresnet_forward.43} parent=5 // pred_fallthru
        _
      %p127 = scmp.lt.s32.totalorder %s12, 2
      // Predicated region
      $region21: #{wideresnet_forward.43} parent=5 // pred_check
        %p128 = pneg %p127
      $region22: #{wideresnet_forward.43} parent=5 // pred_check_branch
        %130 = sbr.rel (%p128) target = $region24
      $region23: #{wideresnet_forward.43} parent=5 // pred_region
        // Predicated region
        $region25: #{wideresnet_forward.43} parent=23 // pred_check
          %p131 = pneg %p32
        $region26: #{wideresnet_forward.43} parent=23 // pred_check_branch
          %133 = sbr.rel (%p131) target = $region28
        $region27: #{wideresnet_forward.43} parent=23 // pred_region
          %p134 = scmp.lt.s32.totalorder %s12, 1
          %s135 = scalar_select %p134, %s12, 1
          %s136 = smul.addr %s135, 2
          %s137 = smul.addr %s136, 4
          %s138 = scalar_lea.vmem %s0, %s137
        $region28: #{wideresnet_forward.43} parent=23 // pred_fallthru
          _
      $region24: #{wideresnet_forward.43} parent=5 // pred_fallthru
        _
      %p139 = scmp.le.s32.totalorder 1, %s12
      %p140 = scmp.lt.s32.totalorder %s12, 3
      %p141 = pnand %p139, %p140
      %p142 = pneg %p141
      // Predicated region
      $region29: #{wideresnet_forward.43} parent=5 // pred_check
        _
      $region30: #{wideresnet_forward.43} parent=5 // pred_check_branch
        %144 = sbr.rel (%p141) target = $region32
      $region31: #{wideresnet_forward.43} parent=5 // pred_region
        %s145 = ssub.s32 %s12, 1
        %p146 = scmp.lt.s32.totalorder %s17, 1
        %s147 = scalar_select %p146, %s17, 1
        %s148 = smul.addr %s147, 2
        %s149 = smul.addr %s148, 4
        %s150 = scalar_lea.vmem %s0, %s149
        %p151 = pneg %p38
        %p152 = pneg %p35
        %p153 = pneg %p59
        %p154 = pneg %p56
        %p155 = pneg %p80
        %p156 = pneg %p77
        %p157 = pneg %p106
        %p158 = pneg %p103
        %s159 = sand.u32 %s93, 1
        %s160 = scalar_lea.sflag [#allocation3], %s159
        %s161 = sand.u32 %s93, 1
        %s162 = scalar_lea.vmem [#allocation2], %s161
        %p163 = scmp.lt.s32.totalorder %s17, 1
        %s164 = scalar_select %p163, %s17, 1
        %s165 = smul.addr %s164, 2
        %s166 = smul.addr %s165, 4
        %s167 = scalar_lea.vmem %s0, %s166
        %v168 = vld [vmem:[%s167] sm:$0xf]
        %v169 = vld [vmem:[%s167 + $0x4] sm:$0xf]
        %v170 = vunpack.c.l.bf16 %v168
        %v171 = vunpack.c.l.bf16 %v169
        %v172 = vadd.f32 %v170, %v171
        %v173 = vrot.slane %v172, 4
        %v174 = vadd.f32 %v172, %v173
        %v175 = vrot.slane %v174, 2
        %v176 = vadd.f32 %v174, %v175
        %v177 = vrot.slane %v176, 1
        %v178 = vadd.f32 %v176, %v177
        %v179 = vmul.f32 %v178, 0.0625
        %v180 = vld [vmem:[%s1] sm:$0xff]
        %v181 = vld [vmem:[%s1 + $0x8] sm:$0xff]
        %v182 = vld [vmem:[%s1 + $0x10] sm:$0xff]
        %v183 = vld [vmem:[%s1 + $0x18] sm:$0xff]
        %v184 = vld [vmem:[%s1 + $0x20] sm:$0xff]
        %v185 = vld [vmem:[%s1 + $0x28] sm:$0xff]
        %v186 = vld [vmem:[%s1 + $0x30] sm:$0xff]
        %v187 = vld [vmem:[%s1 + $0x38] sm:$0xff]
        %v188 = vld [vmem:[%s1 + $0x40] sm:$0xff]
        %v189 = vld [vmem:[%s1 + $0x48] sm:$0xff]
        %v190 = vld [vmem:[%s1 + $0x50] sm:$0xff]
        %v191 = vld [vmem:[%s1 + $0x58] sm:$0xff]
        %v192 = vld [vmem:[%s1 + $0x60] sm:$0xff]
        %v193 = vld [vmem:[%s1 + $0x68] sm:$0xff]
        %v194 = vld [vmem:[%s1 + $0x70] sm:$0xff]
        %v195 = vld [vmem:[%s1 + $0x78] sm:$0xff]
        %v196 = vld [vmem:[%s2] sm:$0x1]
        %197 = vmatprep.subr.mxu0 0.0
        %198 = vmatpush1.msra.mxu0 %v195
        %199 = vmatprep.subr.mxu0 0.0
        %200 = vmatpush1.msra.mxu0 %v194
        %201 = vmatprep.subr.mxu0 0.0
        %202 = vmatpush1.msra.mxu0 %v193
        %203 = vmatprep.subr.mxu0 0.0
        %204 = vmatpush1.msra.mxu0 %v192
        %205 = vmatprep.subr.mxu0 0.0
        %206 = vmatpush1.msra.mxu0 %v191
        %207 = vmatprep.subr.mxu0 0.0
        %208 = vmatpush1.msra.mxu0 %v190
        %209 = vmatprep.subr.mxu0 0.0
        %210 = vmatpush1.msra.mxu0 %v189
        %211 = vmatprep.subr.mxu0 0.0
        %212 = vmatpush1.msra.mxu0 %v188
        %213 = vmatprep.subr.mxu0 0.0
        %214 = vmatpush1.msra.mxu0 %v187
        %215 = vmatprep.subr.mxu0 0.0
        %216 = vmatpush1.msra.mxu0 %v186
        %217 = vmatprep.subr.mxu0 0.0
        %218 = vmatpush1.msra.mxu0 %v185
        %219 = vmatprep.subr.mxu0 0.0
        %220 = vmatpush1.msra.mxu0 %v184
        %221 = vmatprep.subr.mxu0 0.0
        %222 = vmatpush1.msra.mxu0 %v183
        %223 = vmatprep.subr.mxu0 0.0
        %224 = vmatpush1.msra.mxu0 %v182
        %225 = vmatprep.subr.mxu0 0.0
        %226 = vmatpush1.msra.mxu0 %v181
        %227 = vmatprep.subr.mxu0 0.0
        %228 = vmatpush1.msra.mxu0 %v180
        %229 = vmatprep.subr.mxu0 0.0
        %230 = vmatpush2.msra.mxu0 0.0
        %231 = vmatprep.subr.mxu0 0.0
        %232 = vmatpush2.msra.mxu0 0.0
        %233 = vmatprep.subr.mxu0 0.0
        %234 = vmatpush2.msra.mxu0 0.0
        %235 = vmatprep.subr.mxu0 0.0
        %236 = vmatpush2.msra.mxu0 0.0
        %237 = vmatprep.subr.mxu0 0.0
        %238 = vmatpush2.msra.mxu0 0.0
        %239 = vmatprep.subr.mxu0 0.0
        %240 = vmatpush2.msra.mxu0 0.0
        %241 = vmatprep.subr.mxu0 0.0
        %242 = vmatpush2.msra.mxu0 0.0
        %243 = vmatprep.subr.mxu0 0.0
        %244 = vmatpush2.msra.mxu0 0.0
        %245 = vmatprep.subr.mxu0 0.0
        %246 = vmatpush2.msra.mxu0 0.0
        %247 = vmatprep.subr.mxu0 0.0
        %248 = vmatpush2.msra.mxu0 0.0
        %249 = vmatprep.subr.mxu0 0.0
        %250 = vmatpush2.msra.mxu0 0.0
        %251 = vmatprep.subr.mxu0 0.0
        %252 = vmatpush2.msra.mxu0 0.0
        %253 = vmatprep.subr.mxu0 0.0
        %254 = vmatpush2.msra.mxu0 0.0
        %255 = vmatprep.subr.mxu0 0.0
        %256 = vmatpush2.msra.mxu0 0.0
        %257 = vmatprep.subr.mxu0 0.0
        %258 = vmatpush2.msra.mxu0 0.0
        %259 = vmatprep.subr.mxu0 0.0
        %260 = vmatpush2.msra.mxu0 0.0
        %261 = vmatprep.mubr.f32.mxu0 0.0
        %262 = vmatmul.mubr.f32.gmra.mxu0 %v179
        %v263 = vpop.f32.mrf.mxu0
        %v264 = vadd.f32 %v196, %v263
        %v265 = vpop.f32.mrf.mxu0
        %266 = vdwg.mxu0
        %267 = vst [vmem:[%s162] sm:$0x1] %v264
        %s268 = sand.u32 %s93, 1
        %s269 = scalar_lea.sflag [#allocation3], %s268
        %s270 = sand.u32 %s93, 1
        %s271 = scalar_lea.vmem [#allocation2], %s270
        // Predicated region
        $region33: #{wideresnet_forward.43} parent=31 // pred_check
          %p272 = pneg %p103
        $region34: #{wideresnet_forward.43} parent=31 // pred_check_branch
          %274 = sbr.rel (%p272) target = $region36
        $region35: #{wideresnet_forward.43} parent=31 // pred_region
          %s276 = ssub.s32 16, 16
          %277 = vsyncadd %s269, %s276
          %s278 = smul.addr %s17, 16
          %s279 = scalar_lea.hbm %s3, %s278
          %s281 = sshll.u32 %s271, 4
          %s282 = int_to_ptr.vmem [resolvable:$true] %s281
          %284 = dma.vmem_to_hbm [thread:$0]  %s282, 16, %s279, %s269
        $region36: #{wideresnet_forward.43} parent=31 // pred_fallthru
          _
      $region32: #{wideresnet_forward.43} parent=5 // pred_fallthru
        _
      %p285 = scmp.le.s32.totalorder 2, %s12
      // Predicated region
      $region37: #{wideresnet_forward.43} parent=5 // pred_check
        %p286 = pneg %p285
      $region38: #{wideresnet_forward.43} parent=5 // pred_check_branch
        %288 = sbr.rel (%p286) target = $region40
      $region39: #{wideresnet_forward.43} parent=5 // pred_region
        %s289 = ssub.s32 %s12, 2
        // Predicated region
        $region41: #{wideresnet_forward.43} parent=39 // pred_check
          %p290 = pneg %p109
        $region42: #{wideresnet_forward.43} parent=39 // pred_check_branch
          %292 = sbr.rel (%p290) target = $region44
        $region43: #{wideresnet_forward.43} parent=39 // pred_region
          %s293 = sand.u32 %s94, 1
          %s294 = scalar_lea.sflag [#allocation3], %s293
          %s295 = sand.u32 %s94, 1
          %s296 = scalar_lea.vmem [#allocation2], %s295
          %297 = dma.done %s294, 16
        $region44: #{wideresnet_forward.43} parent=39 // pred_fallthru
          _
      $region40: #{wideresnet_forward.43} parent=5 // pred_fallthru
        _
    $region6: #{wideresnet_forward.43} parent=1 // loop_footer
      %s16 = sadd.s32 1, %s12
    $region7: #{wideresnet_forward.43} parent=1 // loop_footer_branch
      %11 = sbr.rel target = $region3
    $region8: #{wideresnet_forward.43} parent=1 // loop_exit
      _
    %298 = vsyncpa [#allocation3], 1
    %s299 = scalar_lea.sflag [#allocation3], 1
    %300 = vsyncpa %s299, 1

// kernel: wideresnet_forward.37
$region0: #{wideresnet_forward.37}
  #allocation0 [shape = 'u32[]', space=smem, size = 0x4, offset = 0x4, fixed_abs, tag = 'smem constant byte address 0x4 - core index']
  #allocation1 [shape = 'u32[144,128]{1,0:T(1,128)}', space=vmem, size = 0x12000, scoped, tag = 'internal scratch']
  %s0 = inlined_call_operand.vmem [shape: bf16[2,16,640], index: 0, kind: input, shape index: {}]
  %s1 = inlined_call_operand.vmem [shape: bf16[640,128], index: 1, kind: input, shape index: {}]
  %s2 = inlined_call_operand.vmem [shape: bf16[2,16,128], index: 2, kind: output, shape index: {0}]
  %s3 = inlined_call_operand.vmem [shape: f32[2,1,128], index: 3, kind: output, shape index: {1}]
  %s4 = inlined_call_operand.vmem [shape: f32[2,1,128], index: 4, kind: output, shape index: {2}]
  %5 = xla_tuple %s2, %s3, %s4
  %s6 = sld [smem:[#allocation0]]
  $region57: #{wideresnet_forward.37} parent=0
    _
  %s8 = ssub.s32 1, %s6
  %s9 = scalar_select 0, %s8, %s6
  loop: start=0, step=1, limit=4
  $region2: #{wideresnet_forward.37} parent=0 // loop_pre_header
    _
  $region3: #{wideresnet_forward.37} parent=0 // loop_header
    %s11 = sphi 0, %s15
    %p12 = scmp.ge.s32.totalorder %s11, 4
    %s18 = sphi 0, %s30
    %s19 = sphi 0, %s26
    %s20 = sphi 0, %s18
    %s21 = sphi 0, %s19
    %s22 = sphi 0, %s20
    %s23 = sphi 0, %s21
    %s35 = sphi 0, %s37
    %s38 = sphi 0, %s35
    %s39 = sphi 0, %s38
    %s55 = sphi 0, %s39
    %s59 = sphi 0, %s59
    %s61 = sphi 0, %s59
    %s62 = sphi 0, %s61
    %s76 = sphi 0, %s62
    %s84 = sphi 0, %s86
    %s87 = sphi 0, %s84
    %s88 = sphi 0, %s87
    %s104 = sphi 0, %s88
    %s112 = sphi 0, %s114
    %s115 = sphi 0, %s112
    %s116 = sphi 0, %s115
    %s132 = sphi 0, %s116
    %s140 = sphi 0, %s142
    %s143 = sphi 0, %s140
    %s144 = sphi 0, %s143
    %s160 = sphi 0, %s144
  $region4: #{wideresnet_forward.37} parent=0 // loop_header_branch
    %14 = sbr.rel (%p12) target = $region8
  $region5: #{wideresnet_forward.37} parent=0 // loop_body
    %s16 = ssub.s32 %s11, 1
    %s17 = ssub.s32 %s11, 2
    %s24 = sadd.s32 1, %s19
    %p25 = scmp.ge.s32.totalorder %s24, 1
    %s26 = scalar_select %p25, 0, %s24
    %s27 = sadd.s32 1, %s18
    %s28 = scalar_select %p25, %s27, %s18
    %p29 = scmp.ge.s32.totalorder %s28, 2
    %s30 = scalar_select %p29, 0, %s28
    %s31 = ssub.s32 %s18, %s30
    %s32 = ssub.s32 %s19, %s26
    %s33 = sor.u32 %s31, %s32
    %p34 = scmp.eq.s32.totalorder %s33, 0
    %s36 = sadd.s32 %s35, 1
    %s37 = scalar_select %p34, %s35, %s36
    %p40 = pneg %p34
    %p41 = scmp.eq.s32.totalorder %s11, 1
    %p42 = por %p40, %p41
    %p43 = scmp.ne.s32.totalorder %s35, %s38
    %p44 = scmp.eq.s32.totalorder %s11, 0
    %p45 = por %p43, %p44
    %p46 = scmp.ne.s32.totalorder %s35, %s38
    %p47 = scmp.eq.s32.totalorder %s16, 1
    %p48 = por %p46, %p47
    %p49 = scmp.ne.s32.totalorder %s38, %s39
    %p50 = scmp.eq.s32.totalorder %s16, 0
    %p51 = por %p49, %p50
    %p52 = scmp.ne.s32.totalorder %s38, %s39
    %p53 = scmp.eq.s32.totalorder %s17, 1
    %p54 = por %p52, %p53
    %p56 = scmp.ne.s32.totalorder %s39, %s55
    %p57 = scmp.eq.s32.totalorder %s17, 0
    %p58 = por %p56, %p57
    %s60 = sadd.s32 %s59, 1
    %p63 = scmp.eq.s32.totalorder %s11, 1
    %p64 = scmp.ne.s32.totalorder %s59, %s61
    %p65 = scmp.eq.s32.totalorder %s11, 0
    %p66 = por %p64, %p65
    %p67 = scmp.ne.s32.totalorder %s59, %s61
    %p68 = scmp.eq.s32.totalorder %s16, 1
    %p69 = por %p67, %p68
    %p70 = scmp.ne.s32.totalorder %s61, %s62
    %p71 = scmp.eq.s32.totalorder %s16, 0
    %p72 = por %p70, %p71
    %p73 = scmp.ne.s32.totalorder %s61, %s62
    %p74 = scmp.eq.s32.totalorder %s17, 1
    %p75 = por %p73, %p74
    %p77 = scmp.ne.s32.totalorder %s62, %s76
    %p78 = scmp.eq.s32.totalorder %s17, 0
    %p79 = por %p77, %p78
    %s80 = ssub.s32 %s18, %s30
    %s81 = ssub.s32 %s19, %s26
    %s82 = sor.u32 %s80, %s81
    %p83 = scmp.eq.s32.totalorder %s82, 0
    %s85 = sadd.s32 %s84, 1
    %s86 = scalar_select %p83, %s84, %s85
    %p89 = pneg %p83
    %p90 = scmp.eq.s32.totalorder %s11, 1
    %p91 = por %p89, %p90
    %p92 = scmp.ne.s32.totalorder %s84, %s87
    %p93 = scmp.eq.s32.totalorder %s11, 0
    %p94 = por %p92, %p93
    %p95 = scmp.ne.s32.totalorder %s84, %s87
    %p96 = scmp.eq.s32.totalorder %s16, 1
    %p97 = por %p95, %p96
    %p98 = scmp.ne.s32.totalorder %s87, %s88
    %p99 = scmp.eq.s32.totalorder %s16, 0
    %p100 = por %p98, %p99
    %p101 = scmp.ne.s32.totalorder %s87, %s88
    %p102 = scmp.eq.s32.totalorder %s17, 1
    %p103 = por %p101, %p102
    %p105 = scmp.ne.s32.totalorder %s88, %s104
    %p106 = scmp.eq.s32.totalorder %s17, 0
    %p107 = por %p105, %p106
    %s108 = sadd.s32 %s18, %s19
    %s109 = sadd.s32 %s30, %s26
    %s110 = ssub.s32 %s108, %s109
    %p111 = scmp.eq.s32.totalorder %s110, 0
    %s113 = sadd.s32 %s112, 1
    %s114 = scalar_select %p111, %s112, %s113
    %p117 = pneg %p111
    %p118 = scmp.eq.s32.totalorder %s11, 1
    %p119 = por %p117, %p118
    %p120 = scmp.ne.s32.totalorder %s112, %s115
    %p121 = scmp.eq.s32.totalorder %s11, 0
    %p122 = por %p120, %p121
    %p123 = scmp.ne.s32.totalorder %s112, %s115
    %p124 = scmp.eq.s32.totalorder %s16, 1
    %p125 = por %p123, %p124
    %p126 = scmp.ne.s32.totalorder %s115, %s116
    %p127 = scmp.eq.s32.totalorder %s16, 0
    %p128 = por %p126, %p127
    %p129 = scmp.ne.s32.totalorder %s115, %s116
    %p130 = scmp.eq.s32.totalorder %s17, 1
    %p131 = por %p129, %p130
    %p133 = scmp.ne.s32.totalorder %s116, %s132
    %p134 = scmp.eq.s32.totalorder %s17, 0
    %p135 = por %p133, %p134
    %s136 = sadd.s32 %s18, %s19
    %s137 = sadd.s32 %s30, %s26
    %s138 = ssub.s32 %s136, %s137
    %p139 = scmp.eq.s32.totalorder %s138, 0
    %s141 = sadd.s32 %s140, 1
    %s142 = scalar_select %p139, %s140, %s141
    %p145 = pneg %p139
    %p146 = scmp.eq.s32.totalorder %s11, 1
    %p147 = por %p145, %p146
    %p148 = scmp.ne.s32.totalorder %s140, %s143
    %p149 = scmp.eq.s32.totalorder %s11, 0
    %p150 = por %p148, %p149
    %p151 = scmp.ne.s32.totalorder %s140, %s143
    %p152 = scmp.eq.s32.totalorder %s16, 1
    %p153 = por %p151, %p152
    %p154 = scmp.ne.s32.totalorder %s143, %s144
    %p155 = scmp.eq.s32.totalorder %s16, 0
    %p156 = por %p154, %p155
    %p157 = scmp.ne.s32.totalorder %s143, %s144
    %p158 = scmp.eq.s32.totalorder %s17, 1
    %p159 = por %p157, %p158
    %p161 = scmp.ne.s32.totalorder %s144, %s160
    %p162 = scmp.eq.s32.totalorder %s17, 0
    %p163 = por %p161, %p162
    %p164 = scmp.le.s32.totalorder 1, %s11
    %p165 = scmp.lt.s32.totalorder %s11, 3
    %p166 = pnand %p164, %p165
    %p167 = pneg %p166
    // Predicated region
    $region9: #{wideresnet_forward.37} parent=5 // pred_check
      _
    $region10: #{wideresnet_forward.37} parent=5 // pred_check_branch
      %169 = sbr.rel (%p166) target = $region12
    $region11: #{wideresnet_forward.37} parent=5 // pred_region
      %s170 = ssub.s32 %s11, 1
      // Predicated region
      $region13: #{wideresnet_forward.37} parent=11 // pred_check
        %p171 = pneg %p72
      $region14: #{wideresnet_forward.37} parent=11 // pred_check_branch
        %173 = sbr.rel (%p171) target = $region16
      $region15: #{wideresnet_forward.37} parent=11 // pred_region
        _
      $region16: #{wideresnet_forward.37} parent=11 // pred_fallthru
        _
    $region12: #{wideresnet_forward.37} parent=5 // pred_fallthru
      _
    %p174 = scmp.lt.s32.totalorder %s11, 2
    // Predicated region
    $region17: #{wideresnet_forward.37} parent=5 // pred_check
      %p175 = pneg %p174
    $region18: #{wideresnet_forward.37} parent=5 // pred_check_branch
      %177 = sbr.rel (%p175) target = $region20
    $region19: #{wideresnet_forward.37} parent=5 // pred_region
      // Predicated region
      $region21: #{wideresnet_forward.37} parent=19 // pred_check
        %p178 = pneg %p45
      $region22: #{wideresnet_forward.37} parent=19 // pred_check_branch
        %180 = sbr.rel (%p178) target = $region24
      $region23: #{wideresnet_forward.37} parent=19 // pred_region
        %s181 = smul.u32 2, %s19
        %p182 = scmp.lt.s32.totalorder %s18, 1
        %s183 = scalar_select %p182, %s18, 1
        %p184 = scmp.lt.s32.totalorder %s181, 1
        %s185 = scalar_select %p184, %s181, 1
        %s186 = smul.addr %s185, 5
        %s187 = smul.addr %s183, 10
        %s188 = sadd.s32 %s186, %s187
        %s189 = smul.addr %s188, 4
        %s190 = scalar_lea.vmem %s0, %s189
        %s191 = smul.u32 2, %s19
      $region24: #{wideresnet_forward.37} parent=19 // pred_fallthru
        _
    $region20: #{wideresnet_forward.37} parent=5 // pred_fallthru
      _
    %p192 = scmp.le.s32.totalorder 1, %s11
    %p193 = scmp.lt.s32.totalorder %s11, 3
    %p194 = pnand %p192, %p193
    %p195 = pneg %p194
    // Predicated region
    $region25: #{wideresnet_forward.37} parent=5 // pred_check
      _
    $region26: #{wideresnet_forward.37} parent=5 // pred_check_branch
      %197 = sbr.rel (%p194) target = $region28
    $region27: #{wideresnet_forward.37} parent=5 // pred_region
      %s198 = ssub.s32 %s11, 1
      %s199 = smul.u32 2, %s21
      %p200 = scmp.lt.s32.totalorder %s20, 1
      %s201 = scalar_select %p200, %s20, 1
      %p202 = scmp.lt.s32.totalorder %s199, 1
      %s203 = scalar_select %p202, %s199, 1
      %s204 = smul.addr %s203, 5
      %s205 = smul.addr %s201, 10
      %s206 = sadd.s32 %s204, %s205
      %s207 = smul.addr %s206, 4
      %s208 = scalar_lea.vmem %s0, %s207
      %p209 = pneg %p51
      %p210 = pneg %p48
      %p211 = pneg %p72
      %p212 = pneg %p69
      %p213 = pneg %p100
      %p214 = pneg %p97
      %s215 = smul.u32 2, %s21
      %p216 = scmp.lt.s32.totalorder %s20, 1
      %s217 = scalar_select %p216, %s20, 1
      %p218 = scmp.lt.s32.totalorder %s215, 1
      %s219 = scalar_select %p218, %s215, 1
      %s220 = smul.addr %s217, 2
      %s221 = sadd.s32 %s219, %s220
      %s222 = smul.addr %s221, 4
      %s223 = scalar_lea.vmem %s2, %s222
      %p224 = pneg %p128
      %p225 = pneg %p125
      %s226 = sadd.s32 %s20, %s21
      %p227 = scmp.lt.s32.totalorder %s226, 1
      %s228 = scalar_select %p227, %s226, 1
      %s229 = scalar_lea.vmem %s3, %s228
      %p230 = pneg %p156
      %p231 = pneg %p153
      %s232 = sadd.s32 %s20, %s21
      %p233 = scmp.lt.s32.totalorder %s232, 1
      %s234 = scalar_select %p233, %s232, 1
      %s235 = scalar_lea.vmem %s4, %s234
      %s236 = smul.u32 2, %s21
      %p237 = scmp.lt.s32.totalorder %s20, 1
      %s238 = scalar_select %p237, %s20, 1
      %p239 = scmp.lt.s32.totalorder %s236, 1
      %s240 = scalar_select %p239, %s236, 1
      %s241 = smul.addr %s240, 5
      %s242 = smul.addr %s238, 10
      %s243 = sadd.s32 %s241, %s242
      %s244 = smul.addr %s243, 4
      %s245 = scalar_lea.vmem %s0, %s244
      %s246 = smul.u32 2, %s21
      %s247 = smul.u32 2, %s21
      %p248 = scmp.lt.s32.totalorder %s20, 1
      %s249 = scalar_select %p248, %s20, 1
      %p250 = scmp.lt.s32.totalorder %s247, 1
      %s251 = scalar_select %p250, %s247, 1
      %s252 = smul.addr %s249, 2
      %s253 = sadd.s32 %s251, %s252
      %s254 = smul.addr %s253, 4
      %s255 = scalar_lea.vmem %s2, %s254
      %s256 = smul.u32 2, %s21
      %s257 = sadd.s32 %s20, %s21
      %p258 = scmp.lt.s32.totalorder %s257, 1
      %s259 = scalar_select %p258, %s257, 1
      %s260 = scalar_lea.vmem %s3, %s259
      %s261 = sadd.s32 %s20, %s21
      %s262 = sadd.s32 %s20, %s21
      %p263 = scmp.lt.s32.totalorder %s262, 1
      %s264 = scalar_select %p263, %s262, 1
      %s265 = scalar_lea.vmem %s4, %s264
      %s266 = sadd.s32 %s20, %s21
      %v268 = vld [vmem:[%s245] sm:$0xff]
      %v269 = vld [vmem:[%s245 + $0x8] sm:$0xff]
      %v270 = vld [vmem:[%s245 + $0x10] sm:$0xf]
      %v271 = vld [vmem:[%s245 + $0x14] sm:$0xff]
      %v272 = vld [vmem:[%s245 + $0x1c] sm:$0xff]
      %v273 = vld [vmem:[%s245 + $0x24] sm:$0xf]
      %v274 = vld [vmem:[%s1] sm:$0xf]
      %v275 = vld [vmem:[%s1 + $0x4] sm:$0xf]
      %v276 = vld [vmem:[%s1 + $0x8] sm:$0xf]
      %v277 = vld [vmem:[%s1 + $0xc] sm:$0xf]
      %v278 = vld [vmem:[%s1 + $0x10] sm:$0xf]
      %v279 = vld [vmem:[%s1 + $0x14] sm:$0xf]
      %v280 = vld [vmem:[%s1 + $0x18] sm:$0xf]
      %v281 = vld [vmem:[%s1 + $0x1c] sm:$0xf]
      %v282 = vld [vmem:[%s1 + $0x20] sm:$0xf]
      %v283 = vld [vmem:[%s1 + $0x24] sm:$0xf]
      %v284 = vld [vmem:[%s1 + $0x28] sm:$0xf]
      %v285 = vld [vmem:[%s1 + $0x2c] sm:$0xf]
      %v286 = vld [vmem:[%s1 + $0x30] sm:$0xf]
      %v287 = vld [vmem:[%s1 + $0x34] sm:$0xf]
      %v288 = vld [vmem:[%s1 + $0x38] sm:$0xf]
      %v289 = vld [vmem:[%s1 + $0x3c] sm:$0xf]
      %v290 = vld [vmem:[%s1 + $0x40] sm:$0xf]
      %v291 = vld [vmem:[%s1 + $0x44] sm:$0xf]
      %v292 = vld [vmem:[%s1 + $0x48] sm:$0xf]
      %v293 = vld [vmem:[%s1 + $0x4c] sm:$0xf]
      %v294 = vld [vmem:[%s1 + $0x50] sm:$0xf]
      %v295 = vld [vmem:[%s1 + $0x54] sm:$0xf]
      %v296 = vld [vmem:[%s1 + $0x58] sm:$0xf]
      %v297 = vld [vmem:[%s1 + $0x5c] sm:$0xf]
      %v298 = vld [vmem:[%s1 + $0x60] sm:$0xf]
      %v299 = vld [vmem:[%s1 + $0x64] sm:$0xf]
      %v300 = vld [vmem:[%s1 + $0x68] sm:$0xf]
      %v301 = vld [vmem:[%s1 + $0x6c] sm:$0xf]
      %v302 = vld [vmem:[%s1 + $0x70] sm:$0xf]
      %v303 = vld [vmem:[%s1 + $0x74] sm:$0xf]
      %v304 = vld [vmem:[%s1 + $0x78] sm:$0xf]
      %v305 = vld [vmem:[%s1 + $0x7c] sm:$0xf]
      %v306 = vld [vmem:[%s1 + $0x80] sm:$0xf]
      %v307 = vld [vmem:[%s1 + $0x84] sm:$0xf]
      %v308 = vld [vmem:[%s1 + $0x88] sm:$0xf]
      %v309 = vld [vmem:[%s1 + $0x8c] sm:$0xf]
      %v310 = vld [vmem:[%s1 + $0x90] sm:$0xf]
      %v311 = vld [vmem:[%s1 + $0x94] sm:$0xf]
      %v312 = vld [vmem:[%s1 + $0x98] sm:$0xf]
      %v313 = vld [vmem:[%s1 + $0x9c] sm:$0xf]
      %v314 = vld [vmem:[%s1 + $0xa0] sm:$0xf]
      %v315 = vld [vmem:[%s1 + $0xa4] sm:$0xf]
      %v316 = vld [vmem:[%s1 + $0xa8] sm:$0xf]
      %v317 = vld [vmem:[%s1 + $0xac] sm:$0xf]
      %v318 = vld [vmem:[%s1 + $0xb0] sm:$0xf]
      %v319 = vld [vmem:[%s1 + $0xb4] sm:$0xf]
      %v320 = vld [vmem:[%s1 + $0xb8] sm:$0xf]
      %v321 = vld [vmem:[%s1 + $0xbc] sm:$0xf]
      %v322 = vld [vmem:[%s1 + $0xc0] sm:$0xf]
      %v323 = vld [vmem:[%s1 + $0xc4] sm:$0xf]
      %v324 = vld [vmem:[%s1 + $0xc8] sm:$0xf]
      %v325 = vld [vmem:[%s1 + $0xcc] sm:$0xf]
      %v326 = vld [vmem:[%s1 + $0xd0] sm:$0xf]
      %v327 = vld [vmem:[%s1 + $0xd4] sm:$0xf]
      %v328 = vld [vmem:[%s1 + $0xd8] sm:$0xf]
      %v329 = vld [vmem:[%s1 + $0xdc] sm:$0xf]
      %v330 = vld [vmem:[%s1 + $0xe0] sm:$0xf]
      %v331 = vld [vmem:[%s1 + $0xe4] sm:$0xf]
      %v332 = vld [vmem:[%s1 + $0xe8] sm:$0xf]
      %v333 = vld [vmem:[%s1 + $0xec] sm:$0xf]
      %v334 = vld [vmem:[%s1 + $0xf0] sm:$0xf]
      %v335 = vld [vmem:[%s1 + $0xf4] sm:$0xf]
      %v336 = vld [vmem:[%s1 + $0xf8] sm:$0xf]
      %v337 = vld [vmem:[%s1 + $0xfc] sm:$0xf]
      %v338 = vld [vmem:[%s1 + $0x100] sm:$0xf]
      %v339 = vld [vmem:[%s1 + $0x104] sm:$0xf]
      %v340 = vld [vmem:[%s1 + $0x108] sm:$0xf]
      %v341 = vld [vmem:[%s1 + $0x10c] sm:$0xf]
      %v342 = vld [vmem:[%s1 + $0x110] sm:$0xf]
      %v343 = vld [vmem:[%s1 + $0x114] sm:$0xf]
      %v344 = vld [vmem:[%s1 + $0x118] sm:$0xf]
      %v345 = vld [vmem:[%s1 + $0x11c] sm:$0xf]
      %v346 = vld [vmem:[%s1 + $0x120] sm:$0xf]
      %v347 = vld [vmem:[%s1 + $0x124] sm:$0xf]
      %v348 = vld [vmem:[%s1 + $0x128] sm:$0xf]
      %v349 = vld [vmem:[%s1 + $0x12c] sm:$0xf]
      %v350 = vld [vmem:[%s1 + $0x130] sm:$0xf]
      %v351 = vld [vmem:[%s1 + $0x134] sm:$0xf]
      %v352 = vld [vmem:[%s1 + $0x138] sm:$0xf]
      %v353 = vld [vmem:[%s1 + $0x13c] sm:$0xf]
      %v360 = vunpack.c.l.b16 %v268
      %v361 = vunpack.c.h.b16 %v268
      %v362 = vunpack.c.l.b16 %v269
      %v363 = vunpack.c.h.b16 %v269
      %v364 = vunpack.c.l.b16 %v270
      %v365 = vunpack.c.l.b16 %v271
      %v366 = vunpack.c.h.b16 %v271
      %v367 = vunpack.c.l.b16 %v272
      %v368 = vunpack.c.h.b16 %v272
      %v369 = vunpack.c.l.b16 %v273
      %v370 = vpack.c.b16 %v365, %v360
      %v371 = vpack.c.b16 %v366, %v361
      %v372 = vpack.c.b16 %v367, %v362
      %v373 = vpack.c.b16 %v368, %v363
      %v374 = vpack.c.b16 %v369, %v364
      %v460 = vunpack.c.l.b16 %v274
      %v461 = vunpack.c.l.b16 %v275
      %v462 = vunpack.c.l.b16 %v276
      %v463 = vunpack.c.l.b16 %v277
      %v464 = vunpack.c.l.b16 %v278
      %v465 = vunpack.c.l.b16 %v279
      %v466 = vunpack.c.l.b16 %v280
      %v467 = vunpack.c.l.b16 %v281
      %v468 = vunpack.c.l.b16 %v282
      %v469 = vunpack.c.l.b16 %v283
      %v470 = vunpack.c.l.b16 %v284
      %v471 = vunpack.c.l.b16 %v285
      %v472 = vunpack.c.l.b16 %v286
      %v473 = vunpack.c.l.b16 %v287
      %v474 = vunpack.c.l.b16 %v288
      %v475 = vunpack.c.l.b16 %v289
      %v476 = vunpack.c.l.b16 %v290
      %v477 = vunpack.c.l.b16 %v291
      %v478 = vunpack.c.l.b16 %v292
      %v479 = vunpack.c.l.b16 %v293
      %v480 = vunpack.c.l.b16 %v294
      %v481 = vunpack.c.l.b16 %v295
      %v482 = vunpack.c.l.b16 %v296
      %v483 = vunpack.c.l.b16 %v297
      %v484 = vunpack.c.l.b16 %v298
      %v485 = vunpack.c.l.b16 %v299
      %v486 = vunpack.c.l.b16 %v300
      %v487 = vunpack.c.l.b16 %v301
      %v488 = vunpack.c.l.b16 %v302
      %v489 = vunpack.c.l.b16 %v303
      %v490 = vunpack.c.l.b16 %v304
      %v491 = vunpack.c.l.b16 %v305
      %v492 = vunpack.c.l.b16 %v306
      %v493 = vunpack.c.l.b16 %v307
      %v494 = vunpack.c.l.b16 %v308
      %v495 = vunpack.c.l.b16 %v309
      %v496 = vunpack.c.l.b16 %v310
      %v497 = vunpack.c.l.b16 %v311
      %v498 = vunpack.c.l.b16 %v312
      %v499 = vunpack.c.l.b16 %v313
      %v500 = vunpack.c.l.b16 %v314
      %v501 = vunpack.c.l.b16 %v315
      %v502 = vunpack.c.l.b16 %v316
      %v503 = vunpack.c.l.b16 %v317
      %v504 = vunpack.c.l.b16 %v318
      %v505 = vunpack.c.l.b16 %v319
      %v506 = vunpack.c.l.b16 %v320
      %v507 = vunpack.c.l.b16 %v321
      %v508 = vunpack.c.l.b16 %v322
      %v509 = vunpack.c.l.b16 %v323
      %v510 = vunpack.c.l.b16 %v324
      %v511 = vunpack.c.l.b16 %v325
      %v512 = vunpack.c.l.b16 %v326
      %v513 = vunpack.c.l.b16 %v327
      %v514 = vunpack.c.l.b16 %v328
      %v515 = vunpack.c.l.b16 %v329
      %v516 = vunpack.c.l.b16 %v330
      %v517 = vunpack.c.l.b16 %v331
      %v518 = vunpack.c.l.b16 %v332
      %v519 = vunpack.c.l.b16 %v333
      %v520 = vunpack.c.l.b16 %v334
      %v521 = vunpack.c.l.b16 %v335
      %v522 = vunpack.c.l.b16 %v336
      %v523 = vunpack.c.l.b16 %v337
      %v524 = vunpack.c.l.b16 %v338
      %v525 = vunpack.c.l.b16 %v339
      %v526 = vunpack.c.l.b16 %v340
      %v527 = vunpack.c.l.b16 %v341
      %v528 = vunpack.c.l.b16 %v342
      %v529 = vunpack.c.l.b16 %v343
      %v530 = vunpack.c.l.b16 %v344
      %v531 = vunpack.c.l.b16 %v345
      %v532 = vunpack.c.l.b16 %v346
      %v533 = vunpack.c.l.b16 %v347
      %v534 = vunpack.c.l.b16 %v348
      %v535 = vunpack.c.l.b16 %v349
      %v536 = vunpack.c.l.b16 %v350
      %v537 = vunpack.c.l.b16 %v351
      %v538 = vunpack.c.l.b16 %v352
      %v539 = vunpack.c.l.b16 %v353
      %v540 = vpack.c.b16 %v461, %v460
      %v541 = vpack.c.b16 %v463, %v462
      %v542 = vpack.c.b16 %v465, %v464
      %v543 = vpack.c.b16 %v467, %v466
      %v544 = vpack.c.b16 %v469, %v468
      %v545 = vpack.c.b16 %v471, %v470
      %v546 = vpack.c.b16 %v473, %v472
      %v547 = vpack.c.b16 %v475, %v474
      %v548 = vpack.c.b16 %v477, %v476
      %v549 = vpack.c.b16 %v479, %v478
      %v550 = vpack.c.b16 %v481, %v480
      %v551 = vpack.c.b16 %v483, %v482
      %v552 = vpack.c.b16 %v485, %v484
      %v553 = vpack.c.b16 %v487, %v486
      %v554 = vpack.c.b16 %v489, %v488
      %v555 = vpack.c.b16 %v491, %v490
      %v556 = vpack.c.b16 %v493, %v492
      %v557 = vpack.c.b16 %v495, %v494
      %v558 = vpack.c.b16 %v497, %v496
      %v559 = vpack.c.b16 %v499, %v498
      %v560 = vpack.c.b16 %v501, %v500
      %v561 = vpack.c.b16 %v503, %v502
      %v562 = vpack.c.b16 %v505, %v504
      %v563 = vpack.c.b16 %v507, %v506
      %v564 = vpack.c.b16 %v509, %v508
      %v565 = vpack.c.b16 %v511, %v510
      %v566 = vpack.c.b16 %v513, %v512
      %v567 = vpack.c.b16 %v515, %v514
      %v568 = vpack.c.b16 %v517, %v516
      %v569 = vpack.c.b16 %v519, %v518
      %v570 = vpack.c.b16 %v521, %v520
      %v571 = vpack.c.b16 %v523, %v522
      %v572 = vpack.c.b16 %v525, %v524
      %v573 = vpack.c.b16 %v527, %v526
      %v574 = vpack.c.b16 %v529, %v528
      %v575 = vpack.c.b16 %v531, %v530
      %v576 = vpack.c.b16 %v533, %v532
      %v577 = vpack.c.b16 %v535, %v534
      %v578 = vpack.c.b16 %v537, %v536
      %v579 = vpack.c.b16 %v539, %v538
      %620 = vmatprep.subr.bf16.mxu0 0
      %621 = vmatpush1.bf16.msra.mxu0 %v547
      %622 = vmatprep.subr.bf16.mxu0 0
      %623 = vmatpush1.bf16.msra.mxu0 %v546
      %624 = vmatprep.subr.bf16.mxu0 0
      %625 = vmatpush1.bf16.msra.mxu0 %v545
      %626 = vmatprep.subr.bf16.mxu0 0
      %627 = vmatpush1.bf16.msra.mxu0 %v544
      %628 = vmatprep.subr.bf16.mxu0 0
      %629 = vmatpush1.bf16.msra.mxu0 %v543
      %630 = vmatprep.subr.bf16.mxu0 0
      %631 = vmatpush1.bf16.msra.mxu0 %v542
      %632 = vmatprep.subr.bf16.mxu0 0
      %633 = vmatpush1.bf16.msra.mxu0 %v541
      %634 = vmatprep.subr.bf16.mxu0 0
      %635 = vmatpush1.bf16.msra.mxu0 %v540
      %636 = vmatprep.subr.bf16.mxu0 0
      %637 = vmatpush2.bf16.msra.mxu0 %v555
      %638 = vmatprep.subr.bf16.mxu0 0
      %639 = vmatpush2.bf16.msra.mxu0 %v554
      %640 = vmatprep.subr.bf16.mxu0 0
      %641 = vmatpush2.bf16.msra.mxu0 %v553
      %642 = vmatprep.subr.bf16.mxu0 0
      %643 = vmatpush2.bf16.msra.mxu0 %v552
      %644 = vmatprep.subr.bf16.mxu0 0
      %645 = vmatpush2.bf16.msra.mxu0 %v551
      %646 = vmatprep.subr.bf16.mxu0 0
      %647 = vmatpush2.bf16.msra.mxu0 %v550
      %648 = vmatprep.subr.bf16.mxu0 0
      %649 = vmatpush2.bf16.msra.mxu0 %v549
      %650 = vmatprep.subr.bf16.mxu0 0
      %651 = vmatpush2.bf16.msra.mxu0 %v548
      %652 = vmatprep.mubr.bf16.mxu0 %v371
      %653 = vmatmul.mubr.bf16.gmra.mxu0 %v370
      %v654 = vpop.f32.mrf.mxu0
      %v655 = vadd.f32 0.0, %v654
      %v656 = vpop.f32.mrf.mxu0
      %v657 = vpop.f32.mrf.mxu0
      %v658 = vadd.f32 0.0, %v657
      %v659 = vpop.f32.mrf.mxu0
      %660 = vdwg.mxu0
      %661 = vmatprep.subr.bf16.mxu0 0
      %662 = vmatpush1.bf16.msra.mxu0 %v563
      %663 = vmatprep.subr.bf16.mxu0 0
      %664 = vmatpush1.bf16.msra.mxu0 %v562
      %665 = vmatprep.subr.bf16.mxu0 0
      %666 = vmatpush1.bf16.msra.mxu0 %v561
      %667 = vmatprep.subr.bf16.mxu0 0
      %668 = vmatpush1.bf16.msra.mxu0 %v560
      %669 = vmatprep.subr.bf16.mxu0 0
      %670 = vmatpush1.bf16.msra.mxu0 %v559
      %671 = vmatprep.subr.bf16.mxu0 0
      %672 = vmatpush1.bf16.msra.mxu0 %v558
      %673 = vmatprep.subr.bf16.mxu0 0
      %674 = vmatpush1.bf16.msra.mxu0 %v557
      %675 = vmatprep.subr.bf16.mxu0 0
      %676 = vmatpush1.bf16.msra.mxu0 %v556
      %677 = vmatprep.subr.bf16.mxu0 0
      %678 = vmatpush2.bf16.msra.mxu0 %v571
      %679 = vmatprep.subr.bf16.mxu0 0
      %680 = vmatpush2.bf16.msra.mxu0 %v570
      %681 = vmatprep.subr.bf16.mxu0 0
      %682 = vmatpush2.bf16.msra.mxu0 %v569
      %683 = vmatprep.subr.bf16.mxu0 0
      %684 = vmatpush2.bf16.msra.mxu0 %v568
      %685 = vmatprep.subr.bf16.mxu0 0
      %686 = vmatpush2.bf16.msra.mxu0 %v567
      %687 = vmatprep.subr.bf16.mxu0 0
      %688 = vmatpush2.bf16.msra.mxu0 %v566
      %689 = vmatprep.subr.bf16.mxu0 0
      %690 = vmatpush2.bf16.msra.mxu0 %v565
      %691 = vmatprep.subr.bf16.mxu0 0
      %692 = vmatpush2.bf16.msra.mxu0 %v564
      %693 = vmatprep.mubr.bf16.mxu0 %v373
      %694 = vmatmul.mubr.bf16.gmra.mxu0 %v372
      %v695 = vpop.f32.mrf.mxu0
      %v696 = vadd.f32 %v655, %v695
      %v697 = vpop.f32.mrf.mxu0
      %v698 = vpop.f32.mrf.mxu0
      %v699 = vadd.f32 %v658, %v698
      %v700 = vpop.f32.mrf.mxu0
      %701 = vdwg.mxu0
      %702 = vmatprep.subr.bf16.mxu0 0
      %703 = vmatpush1.bf16.msra.mxu0 %v579
      %704 = vmatprep.subr.bf16.mxu0 0
      %705 = vmatpush1.bf16.msra.mxu0 %v578
      %706 = vmatprep.subr.bf16.mxu0 0
      %707 = vmatpush1.bf16.msra.mxu0 %v577
      %708 = vmatprep.subr.bf16.mxu0 0
      %709 = vmatpush1.bf16.msra.mxu0 %v576
      %710 = vmatprep.subr.bf16.mxu0 0
      %711 = vmatpush1.bf16.msra.mxu0 %v575
      %712 = vmatprep.subr.bf16.mxu0 0
      %713 = vmatpush1.bf16.msra.mxu0 %v574
      %714 = vmatprep.subr.bf16.mxu0 0
      %715 = vmatpush1.bf16.msra.mxu0 %v573
      %716 = vmatprep.subr.bf16.mxu0 0
      %717 = vmatpush1.bf16.msra.mxu0 %v572
      %718 = vmatprep.subr.bf16.mxu0 0
      %719 = vmatpush2.bf16.msra.mxu0 0
      %720 = vmatprep.subr.bf16.mxu0 0
      %721 = vmatpush2.bf16.msra.mxu0 0
      %722 = vmatprep.subr.bf16.mxu0 0
      %723 = vmatpush2.bf16.msra.mxu0 0
      %724 = vmatprep.subr.bf16.mxu0 0
      %725 = vmatpush2.bf16.msra.mxu0 0
      %726 = vmatprep.subr.bf16.mxu0 0
      %727 = vmatpush2.bf16.msra.mxu0 0
      %728 = vmatprep.subr.bf16.mxu0 0
      %729 = vmatpush2.bf16.msra.mxu0 0
      %730 = vmatprep.subr.bf16.mxu0 0
      %731 = vmatpush2.bf16.msra.mxu0 0
      %732 = vmatprep.subr.bf16.mxu0 0
      %733 = vmatpush2.bf16.msra.mxu0 0
      %734 = vmatprep.mubr.bf16.mxu0 0
      %735 = vmatmul.mubr.bf16.gmra.mxu0 %v374
      %v736 = vpop.f32.mrf.mxu0
      %v737 = vadd.f32 %v696, %v736
      %v738 = vpop.f32.mrf.mxu0
      %v739 = vpop.f32.mrf.mxu0
      %v740 = vadd.f32 %v699, %v739
      %v741 = vpop.f32.mrf.mxu0
      %742 = vdwg.mxu0
      %v743 = vpack.c.bf16 %v740, %v737
      %v745 = vunpack.c.l.b16 %v743
      %v746 = vunpack.c.h.b16 %v743
      %v747 = vpack.c.b16 %v745, %v745
      %v748 = vpack.c.b16 %v746, %v746
      %751 = vst [vmem:[%s255] sm:$0xf] %v747
      %752 = vst [vmem:[%s255 + $0x4] sm:$0xf] %v748
      %v753 = vadd.f32 %v737, %v740
      %v754 = vrot.slane %v753, 4
      %v755 = vadd.f32 %v753, %v754
      %v756 = vrot.slane %v755, 2
      %v757 = vadd.f32 %v755, %v756
      %v758 = vrot.slane %v757, 1
      %v759 = vadd.f32 %v757, %v758
      %760 = vst [vmem:[%s260] sm:$0x1] %v759
      %v761 = vmul.f32 %v737, %v737
      %v762 = vmul.f32 %v740, %v740
      %v763 = vadd.f32 %v761, %v762
      %v764 = vrot.slane %v763, 4
      %v765 = vadd.f32 %v763, %v764
      %v766 = vrot.slane %v765, 2
      %v767 = vadd.f32 %v765, %v766
      %v768 = vrot.slane %v767, 1
      %v769 = vadd.f32 %v767, %v768
      %770 = vst [vmem:[%s265] sm:$0x1] %v769
      %s771 = smul.u32 2, %s21
      %p772 = scmp.lt.s32.totalorder %s20, 1
      %s773 = scalar_select %p772, %s20, 1
      %p774 = scmp.lt.s32.totalorder %s771, 1
      %s775 = scalar_select %p774, %s771, 1
      %s776 = smul.addr %s773, 2
      %s777 = sadd.s32 %s775, %s776
      %s778 = smul.addr %s777, 4
      %s779 = scalar_lea.vmem %s2, %s778
      %s780 = sadd.s32 %s20, %s21
      %p781 = scmp.lt.s32.totalorder %s780, 1
      %s782 = scalar_select %p781, %s780, 1
      %s783 = scalar_lea.vmem %s3, %s782
      %s784 = sadd.s32 %s20, %s21
      %p785 = scmp.lt.s32.totalorder %s784, 1
      %s786 = scalar_select %p785, %s784, 1
      %s787 = scalar_lea.vmem %s4, %s786
      // Predicated region
      $region29: #{wideresnet_forward.37} parent=27 // pred_check
        %p788 = pneg %p97
      $region30: #{wideresnet_forward.37} parent=27 // pred_check_branch
        %790 = sbr.rel (%p788) target = $region32
      $region31: #{wideresnet_forward.37} parent=27 // pred_region
        %s791 = smul.u32 2, %s21
      $region32: #{wideresnet_forward.37} parent=27 // pred_fallthru
        _
      // Predicated region
      $region33: #{wideresnet_forward.37} parent=27 // pred_check
        %p792 = pneg %p125
      $region34: #{wideresnet_forward.37} parent=27 // pred_check_branch
        %794 = sbr.rel (%p792) target = $region36
      $region35: #{wideresnet_forward.37} parent=27 // pred_region
        %s795 = sadd.s32 %s20, %s21
      $region36: #{wideresnet_forward.37} parent=27 // pred_fallthru
        _
      // Predicated region
      $region37: #{wideresnet_forward.37} parent=27 // pred_check
        %p796 = pneg %p153
      $region38: #{wideresnet_forward.37} parent=27 // pred_check_branch
        %798 = sbr.rel (%p796) target = $region40
      $region39: #{wideresnet_forward.37} parent=27 // pred_region
        %s799 = sadd.s32 %s20, %s21
      $region40: #{wideresnet_forward.37} parent=27 // pred_fallthru
        _
    $region28: #{wideresnet_forward.37} parent=5 // pred_fallthru
      _
    %p800 = scmp.le.s32.totalorder 2, %s11
    // Predicated region
    $region41: #{wideresnet_forward.37} parent=5 // pred_check
      %p801 = pneg %p800
    $region42: #{wideresnet_forward.37} parent=5 // pred_check_branch
      %803 = sbr.rel (%p801) target = $region44
    $region43: #{wideresnet_forward.37} parent=5 // pred_region
      %s804 = ssub.s32 %s11, 2
      // Predicated region
      $region45: #{wideresnet_forward.37} parent=43 // pred_check
        %p805 = pneg %p103
      $region46: #{wideresnet_forward.37} parent=43 // pred_check_branch
        %807 = sbr.rel (%p805) target = $region48
      $region47: #{wideresnet_forward.37} parent=43 // pred_region
        %s808 = smul.u32 2, %s23
        %p809 = scmp.lt.s32.totalorder %s22, 1
        %s810 = scalar_select %p809, %s22, 1
        %p811 = scmp.lt.s32.totalorder %s808, 1
        %s812 = scalar_select %p811, %s808, 1
        %s813 = smul.addr %s810, 2
        %s814 = sadd.s32 %s812, %s813
        %s815 = smul.addr %s814, 4
        %s816 = scalar_lea.vmem %s2, %s815
      $region48: #{wideresnet_forward.37} parent=43 // pred_fallthru
        _
      // Predicated region
      $region49: #{wideresnet_forward.37} parent=43 // pred_check
        %p817 = pneg %p131
      $region50: #{wideresnet_forward.37} parent=43 // pred_check_branch
        %819 = sbr.rel (%p817) target = $region52
      $region51: #{wideresnet_forward.37} parent=43 // pred_region
        %s820 = sadd.s32 %s22, %s23
        %p821 = scmp.lt.s32.totalorder %s820, 1
        %s822 = scalar_select %p821, %s820, 1
        %s823 = scalar_lea.vmem %s3, %s822
      $region52: #{wideresnet_forward.37} parent=43 // pred_fallthru
        _
      // Predicated region
      $region53: #{wideresnet_forward.37} parent=43 // pred_check
        %p824 = pneg %p159
      $region54: #{wideresnet_forward.37} parent=43 // pred_check_branch
        %826 = sbr.rel (%p824) target = $region56
      $region55: #{wideresnet_forward.37} parent=43 // pred_region
        %s827 = sadd.s32 %s22, %s23
        %p828 = scmp.lt.s32.totalorder %s827, 1
        %s829 = scalar_select %p828, %s827, 1
        %s830 = scalar_lea.vmem %s4, %s829
      $region56: #{wideresnet_forward.37} parent=43 // pred_fallthru
        _
    $region44: #{wideresnet_forward.37} parent=5 // pred_fallthru
      _
  $region6: #{wideresnet_forward.37} parent=0 // loop_footer
    %s15 = sadd.s32 1, %s11
  $region7: #{wideresnet_forward.37} parent=0 // loop_footer_branch
    %10 = sbr.rel target = $region3
  $region8: #{wideresnet_forward.37} parent=0 // loop_exit
    _

</llo_original>
